<compile_context>
chip_gen: v7x
topology: tpu7x:2x2x1
jax: 0.10.0
libtpu: 0.0.40
codegen_flags: <defaults>
</compile_context>

<pallas_src>
import functools

import jax
import jax.numpy as jnp
from jax import lax
from jax.experimental import pallas as pl
from jax.experimental.pallas import tpu as pltpu


def _round_up(x, m):
    return ((x + m - 1) // m) * m


# ------------------------- in-kernel building blocks ------------------------ #

def _conv_block(act_ref, w_ref, b_ref, *, h_out, w_out, negative_slope):
    """Stride-2 4x4 conv + bias + LeakyReLU from a padded VMEM activation.

    act_ref: (h_in+2, w_pad, c_in) f32 scratch holding the zero-padded input
             activation (columns beyond the padded extent are zero).
    w_ref:   (16*c_in, c_out) bf16 im2col weights, tap order (kh, kw, c_in).
    b_ref:   (1, c_out) f32.
    Returns (h_out, w_op, c_out) f32 with w_op = max(w_out, 8); columns
    >= w_out are don't-care.
    """
    hp, wp, c = act_ref.shape
    w_op = max(w_out, 8)
    # 4 kw taps: stride-2 reads along the width (sublane) dim, fold into lanes.
    cols = [act_ref[:, pl.ds(b, w_op, stride=2), :] for b in range(4)]
    v = jnp.concatenate(cols, axis=-1)                      # (hp, w_op, 4c)
    # 4 kh taps: row-phase split of the outer dim (layout preserving), fold
    # into lanes -> full 16-tap im2col, K = 16*c_in.
    v = v.reshape(hp // 2, 2, w_op, 4 * c)
    rows = [v[a // 2:a // 2 + h_out, a % 2] for a in range(4)]
    lhs = jnp.concatenate(rows, axis=-1)                    # (h_out, w_op, 16c)
    lhs = lhs.reshape(h_out * w_op, 16 * c).astype(jnp.bfloat16)
    out = jnp.dot(lhs, w_ref[...], preferred_element_type=jnp.float32)
    out = out + b_ref[...]
    out = jnp.where(out >= 0.0, out, out * negative_slope)
    return out.reshape(h_out, w_op, out.shape[-1])


def _store_padded(act_ref, out3, h_out, w_out):
    """Write a layer output into the padded scratch of the next layer.

    The scratch was zero-initialised, so only the interior plus the left
    zero-pad column are stored (keeps every store at sublane offset 0)."""
    c = out3.shape[-1]
    zcol = jnp.zeros((h_out, 1, c), jnp.float32)
    act_ref[1:1 + h_out, 0:w_out + 1, :] = jnp.concatenate(
        [zcol, out3[:, :w_out, :]], axis=1)


def _disc_kernel(lhs1_ref, w1_ref, b1_ref, w2_ref, b2_ref, w3_ref, b3_ref,
                 w4_ref, b4_ref, w5_ref, out_ref, act1, act2, act3, *,
                 hs, negative_slope):
    h1, h2, h3, h4 = hs

    # Scratch persists across grid steps -> re-zero (borders must be zero).
    act1[...] = jnp.zeros_like(act1)
    act2[...] = jnp.zeros_like(act2)
    act3[...] = jnp.zeros_like(act3)

    # ---- layer 1: im2col LHS pre-built outside (C_in = 1, K = 16) -------- #
    c1 = w1_ref.shape[1]
    o1 = jnp.dot(lhs1_ref[0], w1_ref[...], preferred_element_type=jnp.float32)
    o1 = o1 + b1_ref[...]
    o1 = jnp.where(o1 >= 0.0, o1, o1 * negative_slope)
    o1 = o1.reshape(h1, h1, c1)                     # (32, 32, c1)
    _store_padded(act1, o1, h1, h1)

    # ---- layers 2-4: fully in-VMEM --------------------------------------- #
    o2 = _conv_block(act1, w2_ref, b2_ref, h_out=h2, w_out=h2,
                     negative_slope=negative_slope)
    _store_padded(act2, o2, h2, h2)
    o3 = _conv_block(act2, w3_ref, b3_ref, h_out=h3, w_out=h3,
                     negative_slope=negative_slope)
    _store_padded(act3, o3, h3, h3)
    o4 = _conv_block(act3, w4_ref, b4_ref, h_out=h4, w_out=h4,
                     negative_slope=negative_slope)  # (4, 8, c4), cols>=4 junk

    # ---- final Conv2d(c4, 1, 4, stride=1) on the 4x4 map ------------------ #
    # Elementwise multiply with the (zero-padded) weight plane, reduce over
    # (h, w); the final cross-lane sum + bias happens in the wrapper.
    partial = jnp.sum(o4 * w5_ref[...], axis=(0, 1))        # (c4,)
    out_ref[...] = partial.reshape(1, 1, partial.shape[0])


# --------------------------------- wrapper ---------------------------------- #

@jax.jit
def discriminator_forward(params, x_nchw, negative_slope=0.1):
    (w1, b1), (w2, b2), (w3, b3), (w4, b4), (w5, b5) = params
    B = x_nchw.shape[0]
    assert x_nchw.shape[1:] == (1, 64, 64), "kernel specialised to 1x64x64"
    c1, c2, c3, c4 = w1.shape[0], w2.shape[0], w3.shape[0], w4.shape[0]
    assert c4 <= 128, "TODO(synk): tile output channels for wider nets"
    h1, h2, h3, h4 = 32, 16, 8, 4

    # Layer-1 im2col built by XLA on the raw 64x64 input (tiny, one-off).
    xp = jnp.pad(x_nchw[:, 0], ((0, 0), (1, 1), (1, 1)))        # (B, 66, 66)
    patches = [xp[:, a:a + 64:2, b:b + 64:2]
               for a in range(4) for b in range(4)]             # 16 x (B,32,32)
    lhs1 = jnp.stack(patches, axis=-1).reshape(B, h1 * h1, 16)
    lhs1 = lhs1.astype(jnp.bfloat16)

    # Weights -> im2col matrices, tap order (kh, kw, c_in); bf16 for the MXU.
    def wmat(w):
        co, ci = w.shape[0], w.shape[1]
        return jnp.transpose(w, (2, 3, 1, 0)).reshape(16 * ci, co) \
                  .astype(jnp.bfloat16)

    w1m, w2m, w3m, w4m = wmat(w1), wmat(w2), wmat(w3), wmat(w4)
    b1m = b1.reshape(1, c1).astype(jnp.float32)
    b2m = b2.reshape(1, c2).astype(jnp.float32)
    b3m = b3.reshape(1, c3).astype(jnp.float32)
    b4m = b4.reshape(1, c4).astype(jnp.float32)
    # Final 4x4 valid conv as an elementwise weight plane (cols padded to 8).
    w5m = jnp.transpose(w5[0], (1, 2, 0))                       # (4, 4, c4)
    w5m = jnp.pad(w5m, ((0, 0), (0, 4), (0, 0))).astype(jnp.float32)

    # Scratch: padded activation planes for the layer-1/2/3 outputs.  Width is
    # padded so the next layer's stride-2 sublane reads stay in bounds.
    def scratch(h_out, w_out, c):
        w_next_op = max(w_out // 2, 8)
        wp = _round_up(max(w_out + 2, 2 * w_next_op + 2), 8)
        return pltpu.VMEM((h_out + 2, wp, c), jnp.float32)

    flops = 2 * B * (h1 * h1 * 16 * c1 + h2 * h2 * 16 * c1 * c2
                     + h3 * h3 * 16 * c2 * c3 + h4 * h4 * 16 * c3 * c4
                     + 16 * c4)
    bytes_accessed = (lhs1.size * 2 + (w1m.size + w2m.size + w3m.size
                                       + w4m.size) * 2 + w5m.size * 4
                      + (c1 + c2 + c3 + c4) * 4 + B * c4 * 4)

    kernel = functools.partial(_disc_kernel, hs=(h1, h2, h3, h4),
                               negative_slope=negative_slope)
    partial = pl.pallas_call(
        kernel,
        out_shape=jax.ShapeDtypeStruct((B, 1, c4), jnp.float32),
        grid=(B,),
        in_specs=[
            pl.BlockSpec((1, h1 * h1, 16), lambda b: (b, 0, 0)),
            pl.BlockSpec(w1m.shape, lambda b: (0, 0)),
            pl.BlockSpec(b1m.shape, lambda b: (0, 0)),
            pl.BlockSpec(w2m.shape, lambda b: (0, 0)),
            pl.BlockSpec(b2m.shape, lambda b: (0, 0)),
            pl.BlockSpec(w3m.shape, lambda b: (0, 0)),
            pl.BlockSpec(b3m.shape, lambda b: (0, 0)),
            pl.BlockSpec(w4m.shape, lambda b: (0, 0)),
            pl.BlockSpec(b4m.shape, lambda b: (0, 0)),
            pl.BlockSpec(w5m.shape, lambda b: (0, 0, 0)),
        ],
        out_specs=pl.BlockSpec((1, 1, c4), lambda b: (b, 0, 0)),
        scratch_shapes=[scratch(h1, h1, c1), scratch(h2, h2, c2),
                        scratch(h3, h3, c3)],
        compiler_params=pltpu.CompilerParams(
            dimension_semantics=("parallel",)),
        cost_estimate=pl.CostEstimate(flops=flops, transcendentals=0,
                                      bytes_accessed=bytes_accessed),
    )(lhs1, w1m, b1m, w2m, b2m, w3m, b3m, w4m, b4m, w5m)

    logits = jnp.sum(partial[:, 0, :], axis=-1) + b5[0]
    return logits.reshape(B, 1, 1, 1)


# ----------------------------- params / reference --------------------------- #

def init_discriminator_params(key, image_size=16):
    """DCGAN-style init: N(0, 0.02) weights, small random biases."""
    chans = [1, image_size, image_size * 2, image_size * 4, image_size * 8]
    params = []
    for li in range(4):
        key, kw, kb = jax.random.split(key, 3)
        w = 0.02 * jax.random.normal(kw, (chans[li + 1], chans[li], 4, 4),
                                     jnp.float32)
        b = 0.02 * jax.random.normal(kb, (chans[li + 1],), jnp.float32)
        params.append((w, b))
    key, kw, kb = jax.random.split(key, 3)
    w5 = 0.02 * jax.random.normal(kw, (1, chans[4], 4, 4), jnp.float32)
    b5 = 0.02 * jax.random.normal(kb, (1,), jnp.float32)
    params.append((w5, b5))
    return params


def discriminator_reference(params, x):
    """Pure-JAX reference (f32, highest precision)."""
    dn = ("NCHW", "OIHW", "NCHW")
    hp = lax.Precision.HIGHEST
    out = x
    for li in range(4):
        w, b = params[li]
        out = lax.conv_general_dilated(out, w, (2, 2), [(1, 1), (1, 1)],
                                       dimension_numbers=dn, precision=hp)
        out = out + b[None, :, None, None]
        out = jnp.where(out >= 0.0, out, out * 0.1)
    w, b = params[4]
    out = lax.conv_general_dilated(out, w, (1, 1), [(0, 0), (0, 0)],
                                   dimension_numbers=dn, precision=hp)
    return out + b[None, :, None, None]


if __name__ == "__main__":
    key = jax.random.PRNGKey(0)
    k_x, k_p = jax.random.split(key)

    # Structurally faithful small config: spatial 64 so the final 4x4 valid
    # conv yields 1x1; channel budget shrunk via image_size=16 (-> 16/32/64/128).
    image_size = 16
    x = jax.random.normal(k_x, (2, 1, 64, 64), jnp.float32)
    params = init_discriminator_params(k_p, image_size=image_size)

    out = jax.block_until_ready(discriminator_forward(params, x))
    assert out.shape == (2, 1, 1, 1), out.shape

    ref = jax.block_until_ready(discriminator_reference(params, x))
    assert jnp.allclose(out, ref, atol=2e-3, rtol=2e-2), (out, ref)

    print("KERNEL_OK")
</pallas_src>

<mosaic_0001>
module attributes {stable_mosaic.version = 11 : i64} {
  func.func @_disc_kernel(%arg0: i32, %arg1: memref<1x1024x16xbf16, #tpu.memory_space<vmem>>, %arg2: memref<16x16xbf16, #tpu.memory_space<vmem>>, %arg3: memref<1x16xf32, #tpu.memory_space<vmem>>, %arg4: memref<256x32xbf16, #tpu.memory_space<vmem>>, %arg5: memref<1x32xf32, #tpu.memory_space<vmem>>, %arg6: memref<512x64xbf16, #tpu.memory_space<vmem>>, %arg7: memref<1x64xf32, #tpu.memory_space<vmem>>, %arg8: memref<1024x128xbf16, #tpu.memory_space<vmem>>, %arg9: memref<1x128xf32, #tpu.memory_space<vmem>>, %arg10: memref<4x8x128xf32, #tpu.memory_space<vmem>>, %arg11: memref<1x1x128xf32, #tpu.memory_space<vmem>>, %arg12: memref<34x40x16xf32, #tpu.memory_space<vmem>>, %arg13: memref<18x24x32xf32, #tpu.memory_space<vmem>>, %arg14: memref<10x24x64xf32, #tpu.memory_space<vmem>>) attributes {dimension_semantics = [#tpu.dimension_semantics<parallel>], iteration_bounds = array<i64: 2>, scalar_prefetch = 0 : i64, scratch_operands = 3 : i64, tpu.core_type = #tpu.core_type<tc>, window_params = [{transform_indices = @transform_0, window_bounds = array<i64: 1, 1024, 16>}, {pipeline_mode = #tpu.pipeline_mode<synchronous>, transform_indices = @transform_1, window_bounds = array<i64: 16, 16>}, {pipeline_mode = #tpu.pipeline_mode<synchronous>, transform_indices = @transform_2, window_bounds = array<i64: 1, 16>}, {pipeline_mode = #tpu.pipeline_mode<synchronous>, transform_indices = @transform_3, window_bounds = array<i64: 256, 32>}, {pipeline_mode = #tpu.pipeline_mode<synchronous>, transform_indices = @transform_4, window_bounds = array<i64: 1, 32>}, {pipeline_mode = #tpu.pipeline_mode<synchronous>, transform_indices = @transform_5, window_bounds = array<i64: 512, 64>}, {pipeline_mode = #tpu.pipeline_mode<synchronous>, transform_indices = @transform_6, window_bounds = array<i64: 1, 64>}, {pipeline_mode = #tpu.pipeline_mode<synchronous>, transform_indices = @transform_7, window_bounds = array<i64: 1024, 128>}, {pipeline_mode = #tpu.pipeline_mode<synchronous>, transform_indices = @transform_8, window_bounds = array<i64: 1, 128>}, {pipeline_mode = #tpu.pipeline_mode<synchronous>, transform_indices = @transform_9, window_bounds = array<i64: 4, 8, 128>}, {transform_indices = @transform_10, window_bounds = array<i64: 1, 1, 128>}]} {
    %cst = arith.constant 0.000000e+00 : f32
    %0 = vector.broadcast %cst : f32 to vector<34x40x16xf32>
    %c0 = arith.constant 0 : index
    %c0_0 = arith.constant 0 : index
    %c0_1 = arith.constant 0 : index
    %1 = vector.load %arg12[%c0, %c0_0, %c0_1] : memref<34x40x16xf32, #tpu.memory_space<vmem>>, vector<34x40x16xf32>
    tpu.vector_store %arg12[%c0, %c0_0, %c0_1], %0 {strides = array<i32>} : memref<34x40x16xf32, #tpu.memory_space<vmem>>, vector<34x40x16xf32>,
    %cst_2 = arith.constant 0.000000e+00 : f32
    %2 = vector.broadcast %cst_2 : f32 to vector<18x24x32xf32>
    %c0_3 = arith.constant 0 : index
    %c0_4 = arith.constant 0 : index
    %c0_5 = arith.constant 0 : index
    %3 = vector.load %arg13[%c0_3, %c0_4, %c0_5] : memref<18x24x32xf32, #tpu.memory_space<vmem>>, vector<18x24x32xf32>
    tpu.vector_store %arg13[%c0_3, %c0_4, %c0_5], %2 {strides = array<i32>} : memref<18x24x32xf32, #tpu.memory_space<vmem>>, vector<18x24x32xf32>,
    %cst_6 = arith.constant 0.000000e+00 : f32
    %4 = vector.broadcast %cst_6 : f32 to vector<10x24x64xf32>
    %c0_7 = arith.constant 0 : index
    %c0_8 = arith.constant 0 : index
    %c0_9 = arith.constant 0 : index
    %5 = vector.load %arg14[%c0_7, %c0_8, %c0_9] : memref<10x24x64xf32, #tpu.memory_space<vmem>>, vector<10x24x64xf32>
    tpu.vector_store %arg14[%c0_7, %c0_8, %c0_9], %4 {strides = array<i32>} : memref<10x24x64xf32, #tpu.memory_space<vmem>>, vector<10x24x64xf32>,
    %c0_10 = arith.constant 0 : index
    %c0_11 = arith.constant 0 : index
    %c0_12 = arith.constant 0 : index
    %6 = vector.load %arg1[%c0_10, %c0_11, %c0_12] : memref<1x1024x16xbf16, #tpu.memory_space<vmem>>, vector<1x1024x16xbf16>
    %7 = vector.shape_cast %6 : vector<1x1024x16xbf16> to vector<1024x16xbf16>
    %c0_13 = arith.constant 0 : index
    %c0_14 = arith.constant 0 : index
    %8 = vector.load %arg2[%c0_13, %c0_14] : memref<16x16xbf16, #tpu.memory_space<vmem>>, vector<16x16xbf16>
    %cst_15 = arith.constant dense<0.000000e+00> : vector<1024x16xf32>
    %9 = tpu.matmul %7, %8, %cst_15 {dimension_numbers = #tpu.dot_dimension_numbers<[1], [0], [0], [1], [0, 0, 1, 1], [], []>} : vector<1024x16xbf16>, vector<16x16xbf16>, vector<1024x16xf32> -> vector<1024x16xf32>
    %c0_16 = arith.constant 0 : index
    %c0_17 = arith.constant 0 : index
    %10 = vector.load %arg3[%c0_16, %c0_17] : memref<1x16xf32, #tpu.memory_space<vmem>>, vector<1x16xf32>
    %11 = vector.broadcast %10 : vector<1x16xf32> to vector<1024x16xf32>
    %12 = arith.addf %9, %11 : vector<1024x16xf32>
    %cst_18 = arith.constant 0.000000e+00 : f32
    %13 = vector.broadcast %cst_18 : f32 to vector<1024x16xf32>
    %14 = arith.cmpf oge, %12, %13 : vector<1024x16xf32>
    %cst_19 = arith.constant 1.000000e-01 : f32
    %15 = vector.broadcast %cst_19 : f32 to vector<1024x16xf32>
    %16 = arith.mulf %12, %15 : vector<1024x16xf32>
    %17 = arith.select %14, %12, %16 : vector<1024x16xi1>, vector<1024x16xf32>
    %18 = vector.shape_cast %17 : vector<1024x16xf32> to vector<32x32x16xf32>
    %cst_20 = arith.constant 0.000000e+00 : f32
    %19 = vector.broadcast %cst_20 : f32 to vector<32x1x16xf32>
    %20 = tpu.concatenate %19, %18 in 1 : vector<32x1x16xf32>, vector<32x32x16xf32> -> vector<32x33x16xf32>
    %c1 = arith.constant 1 : index
    %c0_21 = arith.constant 0 : index
    %c0_22 = arith.constant 0 : index
    %21 = vector.load %arg12[%c1, %c0_21, %c0_22] : memref<34x40x16xf32, #tpu.memory_space<vmem>>, vector<32x33x16xf32>
    tpu.vector_store %arg12[%c1, %c0_21, %c0_22], %20 {strides = array<i32>} : memref<34x40x16xf32, #tpu.memory_space<vmem>>, vector<32x33x16xf32>,
    %c0_23 = arith.constant 0 : index
    %c0_24 = arith.constant 0 : index
    %c0_25 = arith.constant 0 : index
    %22 = tpu.strided_load %arg12[%c0_23, %c0_24, %c0_25] {strides = array<i32: 1, 2, 1>} : memref<34x40x16xf32, #tpu.memory_space<vmem>>, vector<34x16x16xf32>
    %c0_26 = arith.constant 0 : index
    %c1_27 = arith.constant 1 : index
    %c0_28 = arith.constant 0 : index
    %23 = tpu.strided_load %arg12[%c0_26, %c1_27, %c0_28] {strides = array<i32: 1, 2, 1>} : memref<34x40x16xf32, #tpu.memory_space<vmem>>, vector<34x16x16xf32>
    %c0_29 = arith.constant 0 : index
    %c2 = arith.constant 2 : index
    %c0_30 = arith.constant 0 : index
    %24 = tpu.strided_load %arg12[%c0_29, %c2, %c0_30] {strides = array<i32: 1, 2, 1>} : memref<34x40x16xf32, #tpu.memory_space<vmem>>, vector<34x16x16xf32>
    %c0_31 = arith.constant 0 : index
    %c3 = arith.constant 3 : index
    %c0_32 = arith.constant 0 : index
    %25 = tpu.strided_load %arg12[%c0_31, %c3, %c0_32] {strides = array<i32: 1, 2, 1>} : memref<34x40x16xf32, #tpu.memory_space<vmem>>, vector<34x16x16xf32>
    %26 = tpu.concatenate %22, %23, %24, %25 in 2 : vector<34x16x16xf32>, vector<34x16x16xf32>, vector<34x16x16xf32>, vector<34x16x16xf32> -> vector<34x16x64xf32>
    %27 = vector.shape_cast %26 : vector<34x16x64xf32> to vector<17x2x16x64xf32>
    %28 = vector.extract_strided_slice %27 {offsets = [0, 0, 0, 0], sizes = [16, 1, 16, 64], strides = [1, 1, 1, 1]} : vector<17x2x16x64xf32> to vector<16x1x16x64xf32>
    %29 = vector.shape_cast %28 : vector<16x1x16x64xf32> to vector<16x16x64xf32>
    %30 = vector.extract_strided_slice %27 {offsets = [0, 1, 0, 0], sizes = [16, 1, 16, 64], strides = [1, 1, 1, 1]} : vector<17x2x16x64xf32> to vector<16x1x16x64xf32>
    %31 = vector.shape_cast %30 : vector<16x1x16x64xf32> to vector<16x16x64xf32>
    %32 = vector.extract_strided_slice %27 {offsets = [1, 0, 0, 0], sizes = [16, 1, 16, 64], strides = [1, 1, 1, 1]} : vector<17x2x16x64xf32> to vector<16x1x16x64xf32>
    %33 = vector.shape_cast %32 : vector<16x1x16x64xf32> to vector<16x16x64xf32>
    %34 = vector.extract_strided_slice %27 {offsets = [1, 1, 0, 0], sizes = [16, 1, 16, 64], strides = [1, 1, 1, 1]} : vector<17x2x16x64xf32> to vector<16x1x16x64xf32>
    %35 = vector.shape_cast %34 : vector<16x1x16x64xf32> to vector<16x16x64xf32>
    %36 = tpu.concatenate %29, %31, %33, %35 in 2 : vector<16x16x64xf32>, vector<16x16x64xf32>, vector<16x16x64xf32>, vector<16x16x64xf32> -> vector<16x16x256xf32>
    %37 = vector.shape_cast %36 : vector<16x16x256xf32> to vector<256x256xf32>
    %38 = arith.truncf %37 : vector<256x256xf32> to vector<256x256xbf16>
    %c0_33 = arith.constant 0 : index
    %c0_34 = arith.constant 0 : index
    %39 = vector.load %arg4[%c0_33, %c0_34] : memref<256x32xbf16, #tpu.memory_space<vmem>>, vector<256x32xbf16>
    %cst_35 = arith.constant dense<0.000000e+00> : vector<256x32xf32>
    %40 = tpu.matmul %38, %39, %cst_35 {dimension_numbers = #tpu.dot_dimension_numbers<[1], [0], [0], [1], [0, 0, 1, 1], [], []>} : vector<256x256xbf16>, vector<256x32xbf16>, vector<256x32xf32> -> vector<256x32xf32>
    %c0_36 = arith.constant 0 : index
    %c0_37 = arith.constant 0 : index
    %41 = vector.load %arg5[%c0_36, %c0_37] : memref<1x32xf32, #tpu.memory_space<vmem>>, vector<1x32xf32>
    %42 = vector.broadcast %41 : vector<1x32xf32> to vector<256x32xf32>
    %43 = arith.addf %40, %42 : vector<256x32xf32>
    %cst_38 = arith.constant 0.000000e+00 : f32
    %44 = vector.broadcast %cst_38 : f32 to vector<256x32xf32>
    %45 = arith.cmpf oge, %43, %44 : vector<256x32xf32>
    %cst_39 = arith.constant 1.000000e-01 : f32
    %46 = vector.broadcast %cst_39 : f32 to vector<256x32xf32>
    %47 = arith.mulf %43, %46 : vector<256x32xf32>
    %48 = arith.select %45, %43, %47 : vector<256x32xi1>, vector<256x32xf32>
    %49 = vector.shape_cast %48 : vector<256x32xf32> to vector<16x16x32xf32>
    %cst_40 = arith.constant 0.000000e+00 : f32
    %50 = vector.broadcast %cst_40 : f32 to vector<16x1x32xf32>
    %51 = tpu.concatenate %50, %49 in 1 : vector<16x1x32xf32>, vector<16x16x32xf32> -> vector<16x17x32xf32>
    %c1_41 = arith.constant 1 : index
    %c0_42 = arith.constant 0 : index
    %c0_43 = arith.constant 0 : index
    %52 = vector.load %arg13[%c1_41, %c0_42, %c0_43] : memref<18x24x32xf32, #tpu.memory_space<vmem>>, vector<16x17x32xf32>
    tpu.vector_store %arg13[%c1_41, %c0_42, %c0_43], %51 {strides = array<i32>} : memref<18x24x32xf32, #tpu.memory_space<vmem>>, vector<16x17x32xf32>,
    %c0_44 = arith.constant 0 : index
    %c0_45 = arith.constant 0 : index
    %c0_46 = arith.constant 0 : index
    %53 = tpu.strided_load %arg13[%c0_44, %c0_45, %c0_46] {strides = array<i32: 1, 2, 1>} : memref<18x24x32xf32, #tpu.memory_space<vmem>>, vector<18x8x32xf32>
    %c0_47 = arith.constant 0 : index
    %c1_48 = arith.constant 1 : index
    %c0_49 = arith.constant 0 : index
    %54 = tpu.strided_load %arg13[%c0_47, %c1_48, %c0_49] {strides = array<i32: 1, 2, 1>} : memref<18x24x32xf32, #tpu.memory_space<vmem>>, vector<18x8x32xf32>
    %c0_50 = arith.constant 0 : index
    %c2_51 = arith.constant 2 : index
    %c0_52 = arith.constant 0 : index
    %55 = tpu.strided_load %arg13[%c0_50, %c2_51, %c0_52] {strides = array<i32: 1, 2, 1>} : memref<18x24x32xf32, #tpu.memory_space<vmem>>, vector<18x8x32xf32>
    %c0_53 = arith.constant 0 : index
    %c3_54 = arith.constant 3 : index
    %c0_55 = arith.constant 0 : index
    %56 = tpu.strided_load %arg13[%c0_53, %c3_54, %c0_55] {strides = array<i32: 1, 2, 1>} : memref<18x24x32xf32, #tpu.memory_space<vmem>>, vector<18x8x32xf32>
    %57 = tpu.concatenate %53, %54, %55, %56 in 2 : vector<18x8x32xf32>, vector<18x8x32xf32>, vector<18x8x32xf32>, vector<18x8x32xf32> -> vector<18x8x128xf32>
    %58 = vector.shape_cast %57 : vector<18x8x128xf32> to vector<9x2x8x128xf32>
    %59 = vector.extract_strided_slice %58 {offsets = [0, 0, 0, 0], sizes = [8, 1, 8, 128], strides = [1, 1, 1, 1]} : vector<9x2x8x128xf32> to vector<8x1x8x128xf32>
    %60 = vector.shape_cast %59 : vector<8x1x8x128xf32> to vector<8x8x128xf32>
    %61 = vector.extract_strided_slice %58 {offsets = [0, 1, 0, 0], sizes = [8, 1, 8, 128], strides = [1, 1, 1, 1]} : vector<9x2x8x128xf32> to vector<8x1x8x128xf32>
    %62 = vector.shape_cast %61 : vector<8x1x8x128xf32> to vector<8x8x128xf32>
    %63 = vector.extract_strided_slice %58 {offsets = [1, 0, 0, 0], sizes = [8, 1, 8, 128], strides = [1, 1, 1, 1]} : vector<9x2x8x128xf32> to vector<8x1x8x128xf32>
    %64 = vector.shape_cast %63 : vector<8x1x8x128xf32> to vector<8x8x128xf32>
    %65 = vector.extract_strided_slice %58 {offsets = [1, 1, 0, 0], sizes = [8, 1, 8, 128], strides = [1, 1, 1, 1]} : vector<9x2x8x128xf32> to vector<8x1x8x128xf32>
    %66 = vector.shape_cast %65 : vector<8x1x8x128xf32> to vector<8x8x128xf32>
    %67 = tpu.concatenate %60, %62, %64, %66 in 2 : vector<8x8x128xf32>, vector<8x8x128xf32>, vector<8x8x128xf32>, vector<8x8x128xf32> -> vector<8x8x512xf32>
    %68 = vector.shape_cast %67 : vector<8x8x512xf32> to vector<64x512xf32>
    %69 = arith.truncf %68 : vector<64x512xf32> to vector<64x512xbf16>
    %c0_56 = arith.constant 0 : index
    %c0_57 = arith.constant 0 : index
    %70 = vector.load %arg6[%c0_56, %c0_57] : memref<512x64xbf16, #tpu.memory_space<vmem>>, vector<512x64xbf16>
    %cst_58 = arith.constant dense<0.000000e+00> : vector<64x64xf32>
    %71 = tpu.matmul %69, %70, %cst_58 {dimension_numbers = #tpu.dot_dimension_numbers<[1], [0], [0], [1], [0, 0, 1, 1], [], []>} : vector<64x512xbf16>, vector<512x64xbf16>, vector<64x64xf32> -> vector<64x64xf32>
    %c0_59 = arith.constant 0 : index
    %c0_60 = arith.constant 0 : index
    %72 = vector.load %arg7[%c0_59, %c0_60] : memref<1x64xf32, #tpu.memory_space<vmem>>, vector<1x64xf32>
    %73 = vector.broadcast %72 : vector<1x64xf32> to vector<64x64xf32>
    %74 = arith.addf %71, %73 : vector<64x64xf32>
    %cst_61 = arith.constant 0.000000e+00 : f32
    %75 = vector.broadcast %cst_61 : f32 to vector<64x64xf32>
    %76 = arith.cmpf oge, %74, %75 : vector<64x64xf32>
    %cst_62 = arith.constant 1.000000e-01 : f32
    %77 = vector.broadcast %cst_62 : f32 to vector<64x64xf32>
    %78 = arith.mulf %74, %77 : vector<64x64xf32>
    %79 = arith.select %76, %74, %78 : vector<64x64xi1>, vector<64x64xf32>
    %80 = vector.shape_cast %79 : vector<64x64xf32> to vector<8x8x64xf32>
    %cst_63 = arith.constant 0.000000e+00 : f32
    %81 = vector.broadcast %cst_63 : f32 to vector<8x1x64xf32>
    %82 = tpu.concatenate %81, %80 in 1 : vector<8x1x64xf32>, vector<8x8x64xf32> -> vector<8x9x64xf32>
    %c1_64 = arith.constant 1 : index
    %c0_65 = arith.constant 0 : index
    %c0_66 = arith.constant 0 : index
    %83 = vector.load %arg14[%c1_64, %c0_65, %c0_66] : memref<10x24x64xf32, #tpu.memory_space<vmem>>, vector<8x9x64xf32>
    tpu.vector_store %arg14[%c1_64, %c0_65, %c0_66], %82 {strides = array<i32>} : memref<10x24x64xf32, #tpu.memory_space<vmem>>, vector<8x9x64xf32>,
    %c0_67 = arith.constant 0 : index
    %c0_68 = arith.constant 0 : index
    %c0_69 = arith.constant 0 : index
    %84 = tpu.strided_load %arg14[%c0_67, %c0_68, %c0_69] {strides = array<i32: 1, 2, 1>} : memref<10x24x64xf32, #tpu.memory_space<vmem>>, vector<10x8x64xf32>
    %c0_70 = arith.constant 0 : index
    %c1_71 = arith.constant 1 : index
    %c0_72 = arith.constant 0 : index
    %85 = tpu.strided_load %arg14[%c0_70, %c1_71, %c0_72] {strides = array<i32: 1, 2, 1>} : memref<10x24x64xf32, #tpu.memory_space<vmem>>, vector<10x8x64xf32>
    %c0_73 = arith.constant 0 : index
    %c2_74 = arith.constant 2 : index
    %c0_75 = arith.constant 0 : index
    %86 = tpu.strided_load %arg14[%c0_73, %c2_74, %c0_75] {strides = array<i32: 1, 2, 1>} : memref<10x24x64xf32, #tpu.memory_space<vmem>>, vector<10x8x64xf32>
    %c0_76 = arith.constant 0 : index
    %c3_77 = arith.constant 3 : index
    %c0_78 = arith.constant 0 : index
    %87 = tpu.strided_load %arg14[%c0_76, %c3_77, %c0_78] {strides = array<i32: 1, 2, 1>} : memref<10x24x64xf32, #tpu.memory_space<vmem>>, vector<10x8x64xf32>
    %88 = tpu.concatenate %84, %85, %86, %87 in 2 : vector<10x8x64xf32>, vector<10x8x64xf32>, vector<10x8x64xf32>, vector<10x8x64xf32> -> vector<10x8x256xf32>
    %89 = vector.shape_cast %88 : vector<10x8x256xf32> to vector<5x2x8x256xf32>
    %90 = vector.extract_strided_slice %89 {offsets = [0, 0, 0, 0], sizes = [4, 1, 8, 256], strides = [1, 1, 1, 1]} : vector<5x2x8x256xf32> to vector<4x1x8x256xf32>
    %91 = vector.shape_cast %90 : vector<4x1x8x256xf32> to vector<4x8x256xf32>
    %92 = vector.extract_strided_slice %89 {offsets = [0, 1, 0, 0], sizes = [4, 1, 8, 256], strides = [1, 1, 1, 1]} : vector<5x2x8x256xf32> to vector<4x1x8x256xf32>
    %93 = vector.shape_cast %92 : vector<4x1x8x256xf32> to vector<4x8x256xf32>
    %94 = vector.extract_strided_slice %89 {offsets = [1, 0, 0, 0], sizes = [4, 1, 8, 256], strides = [1, 1, 1, 1]} : vector<5x2x8x256xf32> to vector<4x1x8x256xf32>
    %95 = vector.shape_cast %94 : vector<4x1x8x256xf32> to vector<4x8x256xf32>
    %96 = vector.extract_strided_slice %89 {offsets = [1, 1, 0, 0], sizes = [4, 1, 8, 256], strides = [1, 1, 1, 1]} : vector<5x2x8x256xf32> to vector<4x1x8x256xf32>
    %97 = vector.shape_cast %96 : vector<4x1x8x256xf32> to vector<4x8x256xf32>
    %98 = tpu.concatenate %91, %93, %95, %97 in 2 : vector<4x8x256xf32>, vector<4x8x256xf32>, vector<4x8x256xf32>, vector<4x8x256xf32> -> vector<4x8x1024xf32>
    %99 = vector.shape_cast %98 : vector<4x8x1024xf32> to vector<32x1024xf32>
    %100 = arith.truncf %99 : vector<32x1024xf32> to vector<32x1024xbf16>
    %c0_79 = arith.constant 0 : index
    %c0_80 = arith.constant 0 : index
    %101 = vector.load %arg8[%c0_79, %c0_80] : memref<1024x128xbf16, #tpu.memory_space<vmem>>, vector<1024x128xbf16>
    %cst_81 = arith.constant dense<0.000000e+00> : vector<32x128xf32>
    %102 = tpu.matmul %100, %101, %cst_81 {dimension_numbers = #tpu.dot_dimension_numbers<[1], [0], [0], [1], [0, 0, 1, 1], [], []>} : vector<32x1024xbf16>, vector<1024x128xbf16>, vector<32x128xf32> -> vector<32x128xf32>
    %c0_82 = arith.constant 0 : index
    %c0_83 = arith.constant 0 : index
    %103 = vector.load %arg9[%c0_82, %c0_83] : memref<1x128xf32, #tpu.memory_space<vmem>>, vector<1x128xf32>
    %104 = vector.broadcast %103 : vector<1x128xf32> to vector<32x128xf32>
    %105 = arith.addf %102, %104 : vector<32x128xf32>
    %cst_84 = arith.constant 0.000000e+00 : f32
    %106 = vector.broadcast %cst_84 : f32 to vector<32x128xf32>
    %107 = arith.cmpf oge, %105, %106 : vector<32x128xf32>
    %cst_85 = arith.constant 1.000000e-01 : f32
    %108 = vector.broadcast %cst_85 : f32 to vector<32x128xf32>
    %109 = arith.mulf %105, %108 : vector<32x128xf32>
    %110 = arith.select %107, %105, %109 : vector<32x128xi1>, vector<32x128xf32>
    %111 = vector.shape_cast %110 : vector<32x128xf32> to vector<4x8x128xf32>
    %c0_86 = arith.constant 0 : index
    %c0_87 = arith.constant 0 : index
    %c0_88 = arith.constant 0 : index
    %112 = vector.load %arg10[%c0_86, %c0_87, %c0_88] : memref<4x8x128xf32, #tpu.memory_space<vmem>>, vector<4x8x128xf32>
    %113 = arith.mulf %111, %112 : vector<4x8x128xf32>
    %cst_89 = arith.constant dense<0.000000e+00> : vector<128xf32>
    %114 = vector.multi_reduction <add>, %113, %cst_89 [0, 1] : vector<4x8x128xf32> to vector<128xf32>
    %115 = vector.shape_cast %114 : vector<128xf32> to vector<1x1x128xf32>
    %c0_90 = arith.constant 0 : index
    %c0_91 = arith.constant 0 : index
    %c0_92 = arith.constant 0 : index
    %116 = vector.load %arg11[%c0_90, %c0_91, %c0_92] : memref<1x1x128xf32, #tpu.memory_space<vmem>>, vector<1x1x128xf32>
    tpu.vector_store %arg11[%c0_90, %c0_91, %c0_92], %115 {strides = array<i32>} : memref<1x1x128xf32, #tpu.memory_space<vmem>>, vector<1x1x128xf32>,
    return
  }
  func.func @transform_0(%arg0: i32) -> (i32, i32, i32) {
    %c0_i32 = arith.constant 0 : i32
    %c0_i32_0 = arith.constant 0 : i32
    %c0_i32_1 = arith.constant 0 : i32
    return %arg0, %c0_i32, %c0_i32_0 : i32, i32, i32
  }
  func.func @transform_1(%arg0: i32) -> (i32, i32) {
    %c0_i32 = arith.constant 0 : i32
    %c0_i32_0 = arith.constant 0 : i32
    %c0_i32_1 = arith.constant 0 : i32
    return %c0_i32, %c0_i32_0 : i32, i32
  }
  func.func @transform_2(%arg0: i32) -> (i32, i32) {
    %c0_i32 = arith.constant 0 : i32
    %c0_i32_0 = arith.constant 0 : i32
    %c0_i32_1 = arith.constant 0 : i32
    return %c0_i32, %c0_i32_0 : i32, i32
  }
  func.func @transform_3(%arg0: i32) -> (i32, i32) {
    %c0_i32 = arith.constant 0 : i32
    %c0_i32_0 = arith.constant 0 : i32
    %c0_i32_1 = arith.constant 0 : i32
    return %c0_i32, %c0_i32_0 : i32, i32
  }
  func.func @transform_4(%arg0: i32) -> (i32, i32) {
    %c0_i32 = arith.constant 0 : i32
    %c0_i32_0 = arith.constant 0 : i32
    %c0_i32_1 = arith.constant 0 : i32
    return %c0_i32, %c0_i32_0 : i32, i32
  }
  func.func @transform_5(%arg0: i32) -> (i32, i32) {
    %c0_i32 = arith.constant 0 : i32
    %c0_i32_0 = arith.constant 0 : i32
    %c0_i32_1 = arith.constant 0 : i32
    return %c0_i32, %c0_i32_0 : i32, i32
  }
  func.func @transform_6(%arg0: i32) -> (i32, i32) {
    %c0_i32 = arith.constant 0 : i32
    %c0_i32_0 = arith.constant 0 : i32
    %c0_i32_1 = arith.constant 0 : i32
    return %c0_i32, %c0_i32_0 : i32, i32
  }
  func.func @transform_7(%arg0: i32) -> (i32, i32) {
    %c0_i32 = arith.constant 0 : i32
    %c0_i32_0 = arith.constant 0 : i32
    %c0_i32_1 = arith.constant 0 : i32
    return %c0_i32, %c0_i32_0 : i32, i32
  }
  func.func @transform_8(%arg0: i32) -> (i32, i32) {
    %c0_i32 = arith.constant 0 : i32
    %c0_i32_0 = arith.constant 0 : i32
    %c0_i32_1 = arith.constant 0 : i32
    return %c0_i32, %c0_i32_0 : i32, i32
  }
  func.func @transform_9(%arg0: i32) -> (i32, i32, i32) {
    %c0_i32 = arith.constant 0 : i32
    %c0_i32_0 = arith.constant 0 : i32
    %c0_i32_1 = arith.constant 0 : i32
    %c0_i32_2 = arith.constant 0 : i32
    return %c0_i32, %c0_i32_0, %c0_i32_1 : i32, i32, i32
  }
  func.func @transform_10(%arg0: i32) -> (i32, i32, i32) {
    %c0_i32 = arith.constant 0 : i32
    %c0_i32_0 = arith.constant 0 : i32
    %c0_i32_1 = arith.constant 0 : i32
    return %arg0, %c0_i32, %c0_i32_0 : i32, i32, i32
  }
}

</mosaic_0001>

<llo_original>
// kernel: discriminator_forward.1
$region0: #{discriminator_forward.1}
  #allocation0 [shape = 'u32[]', space=smem, size = 0x4, offset = 0x4, fixed_abs, tag = 'smem constant byte address 0x4 - core index']
  #allocation1 [shape = 'u32[144,128]{1,0:T(1,128)}', space=vmem, size = 0x12000, scoped, tag = 'internal scratch']
  #allocation2 [shape = 'f32[34,40,16]{2,1,0:T(8,128)}', space=vmem, size = 0xaa000, scoped, tag = 'scratch operand']
  #allocation3 [shape = 'f32[18,24,32]{2,1,0:T(8,128)}', space=vmem, size = 0x36000, scoped, tag = 'scratch operand']
  #allocation4 [shape = 'f32[10,24,64]{2,1,0:T(8,128)}', space=vmem, size = 0x1e000, scoped, tag = 'scratch operand']
  %s0 = inlined_call_operand.vmem [shape: bf16[2,1024,16], index: 0, kind: input, shape index: {}]
  %s1 = inlined_call_operand.vmem [shape: bf16[16,16], index: 1, kind: input, shape index: {}]
  %s2 = inlined_call_operand.vmem [shape: f32[1,16], index: 2, kind: input, shape index: {}]
  %s3 = inlined_call_operand.vmem [shape: bf16[256,32], index: 3, kind: input, shape index: {}]
  %s4 = inlined_call_operand.vmem [shape: f32[1,32], index: 4, kind: input, shape index: {}]
  %s5 = inlined_call_operand.vmem [shape: bf16[512,64], index: 5, kind: input, shape index: {}]
  %s6 = inlined_call_operand.vmem [shape: f32[1,64], index: 6, kind: input, shape index: {}]
  %s7 = inlined_call_operand.vmem [shape: bf16[1024,128], index: 7, kind: input, shape index: {}]
  %s8 = inlined_call_operand.vmem [shape: f32[1,128], index: 8, kind: input, shape index: {}]
  %s9 = inlined_call_operand.vmem [shape: f32[4,8,128], index: 9, kind: input, shape index: {}]
  %s10 = inlined_call_operand.vmem [shape: f32[2,1,128], index: 10, kind: output, shape index: {}]
  %s11 = sld [smem:[#allocation0]]
  $region73: #{discriminator_forward.1} parent=0
    _
  %s13 = ssub.s32 1, %s11
  %s14 = scalar_select 0, %s13, %s11
  loop: start=0, step=1, limit=4
  $region2: #{discriminator_forward.1} parent=0 // loop_pre_header
    _
  $region3: #{discriminator_forward.1} parent=0 // loop_header
    %s16 = sphi 0, %s20
    %p17 = scmp.ge.s32.totalorder %s16, 4
    %s26 = sphi 0, %s28
    %s29 = sphi 0, %s26
    %s30 = sphi 0, %s29
    %s46 = sphi 0, %s30
    %s50 = sphi 0, %s50
    %s52 = sphi 0, %s50
    %s53 = sphi 0, %s52
    %s67 = sphi 0, %s53
    %s71 = sphi 0, %s71
    %s73 = sphi 0, %s71
    %s74 = sphi 0, %s73
    %s88 = sphi 0, %s74
    %s92 = sphi 0, %s92
    %s94 = sphi 0, %s92
    %s95 = sphi 0, %s94
    %s109 = sphi 0, %s95
    %s113 = sphi 0, %s113
    %s115 = sphi 0, %s113
    %s116 = sphi 0, %s115
    %s130 = sphi 0, %s116
    %s134 = sphi 0, %s134
    %s136 = sphi 0, %s134
    %s137 = sphi 0, %s136
    %s151 = sphi 0, %s137
    %s155 = sphi 0, %s155
    %s157 = sphi 0, %s155
    %s158 = sphi 0, %s157
    %s172 = sphi 0, %s158
    %s176 = sphi 0, %s176
    %s178 = sphi 0, %s176
    %s179 = sphi 0, %s178
    %s193 = sphi 0, %s179
    %s197 = sphi 0, %s197
    %s199 = sphi 0, %s197
    %s200 = sphi 0, %s199
    %s214 = sphi 0, %s200
    %s218 = sphi 0, %s218
    %s220 = sphi 0, %s218
    %s221 = sphi 0, %s220
    %s235 = sphi 0, %s221
    %s241 = sphi 0, %s243
    %s244 = sphi 0, %s241
    %s245 = sphi 0, %s244
    %s261 = sphi 0, %s245
  $region4: #{discriminator_forward.1} parent=0 // loop_header_branch
    %19 = sbr.rel (%p17) target = $region8
  $region5: #{discriminator_forward.1} parent=0 // loop_body
    %s21 = ssub.s32 %s16, 1
    %s22 = ssub.s32 %s16, 2
    %s23 = sadd.s32 %s16, 1
    %s24 = ssub.s32 %s16, %s23
    %p25 = scmp.eq.s32.totalorder %s24, 0
    %s27 = sadd.s32 %s26, 1
    %s28 = scalar_select %p25, %s26, %s27
    %p31 = pneg %p25
    %p32 = scmp.eq.s32.totalorder %s16, 1
    %p33 = por %p31, %p32
    %p34 = scmp.ne.s32.totalorder %s26, %s29
    %p35 = scmp.eq.s32.totalorder %s16, 0
    %p36 = por %p34, %p35
    %p37 = scmp.ne.s32.totalorder %s26, %s29
    %p38 = scmp.eq.s32.totalorder %s21, 1
    %p39 = por %p37, %p38
    %p40 = scmp.ne.s32.totalorder %s29, %s30
    %p41 = scmp.eq.s32.totalorder %s21, 0
    %p42 = por %p40, %p41
    %p43 = scmp.ne.s32.totalorder %s29, %s30
    %p44 = scmp.eq.s32.totalorder %s22, 1
    %p45 = por %p43, %p44
    %p47 = scmp.ne.s32.totalorder %s30, %s46
    %p48 = scmp.eq.s32.totalorder %s22, 0
    %p49 = por %p47, %p48
    %s51 = sadd.s32 %s50, 1
    %p54 = scmp.eq.s32.totalorder %s16, 1
    %p55 = scmp.ne.s32.totalorder %s50, %s52
    %p56 = scmp.eq.s32.totalorder %s16, 0
    %p57 = por %p55, %p56
    %p58 = scmp.ne.s32.totalorder %s50, %s52
    %p59 = scmp.eq.s32.totalorder %s21, 1
    %p60 = por %p58, %p59
    %p61 = scmp.ne.s32.totalorder %s52, %s53
    %p62 = scmp.eq.s32.totalorder %s21, 0
    %p63 = por %p61, %p62
    %p64 = scmp.ne.s32.totalorder %s52, %s53
    %p65 = scmp.eq.s32.totalorder %s22, 1
    %p66 = por %p64, %p65
    %p68 = scmp.ne.s32.totalorder %s53, %s67
    %p69 = scmp.eq.s32.totalorder %s22, 0
    %p70 = por %p68, %p69
    %s72 = sadd.s32 %s71, 1
    %p75 = scmp.eq.s32.totalorder %s16, 1
    %p76 = scmp.ne.s32.totalorder %s71, %s73
    %p77 = scmp.eq.s32.totalorder %s16, 0
    %p78 = por %p76, %p77
    %p79 = scmp.ne.s32.totalorder %s71, %s73
    %p80 = scmp.eq.s32.totalorder %s21, 1
    %p81 = por %p79, %p80
    %p82 = scmp.ne.s32.totalorder %s73, %s74
    %p83 = scmp.eq.s32.totalorder %s21, 0
    %p84 = por %p82, %p83
    %p85 = scmp.ne.s32.totalorder %s73, %s74
    %p86 = scmp.eq.s32.totalorder %s22, 1
    %p87 = por %p85, %p86
    %p89 = scmp.ne.s32.totalorder %s74, %s88
    %p90 = scmp.eq.s32.totalorder %s22, 0
    %p91 = por %p89, %p90
    %s93 = sadd.s32 %s92, 1
    %p96 = scmp.eq.s32.totalorder %s16, 1
    %p97 = scmp.ne.s32.totalorder %s92, %s94
    %p98 = scmp.eq.s32.totalorder %s16, 0
    %p99 = por %p97, %p98
    %p100 = scmp.ne.s32.totalorder %s92, %s94
    %p101 = scmp.eq.s32.totalorder %s21, 1
    %p102 = por %p100, %p101
    %p103 = scmp.ne.s32.totalorder %s94, %s95
    %p104 = scmp.eq.s32.totalorder %s21, 0
    %p105 = por %p103, %p104
    %p106 = scmp.ne.s32.totalorder %s94, %s95
    %p107 = scmp.eq.s32.totalorder %s22, 1
    %p108 = por %p106, %p107
    %p110 = scmp.ne.s32.totalorder %s95, %s109
    %p111 = scmp.eq.s32.totalorder %s22, 0
    %p112 = por %p110, %p111
    %s114 = sadd.s32 %s113, 1
    %p117 = scmp.eq.s32.totalorder %s16, 1
    %p118 = scmp.ne.s32.totalorder %s113, %s115
    %p119 = scmp.eq.s32.totalorder %s16, 0
    %p120 = por %p118, %p119
    %p121 = scmp.ne.s32.totalorder %s113, %s115
    %p122 = scmp.eq.s32.totalorder %s21, 1
    %p123 = por %p121, %p122
    %p124 = scmp.ne.s32.totalorder %s115, %s116
    %p125 = scmp.eq.s32.totalorder %s21, 0
    %p126 = por %p124, %p125
    %p127 = scmp.ne.s32.totalorder %s115, %s116
    %p128 = scmp.eq.s32.totalorder %s22, 1
    %p129 = por %p127, %p128
    %p131 = scmp.ne.s32.totalorder %s116, %s130
    %p132 = scmp.eq.s32.totalorder %s22, 0
    %p133 = por %p131, %p132
    %s135 = sadd.s32 %s134, 1
    %p138 = scmp.eq.s32.totalorder %s16, 1
    %p139 = scmp.ne.s32.totalorder %s134, %s136
    %p140 = scmp.eq.s32.totalorder %s16, 0
    %p141 = por %p139, %p140
    %p142 = scmp.ne.s32.totalorder %s134, %s136
    %p143 = scmp.eq.s32.totalorder %s21, 1
    %p144 = por %p142, %p143
    %p145 = scmp.ne.s32.totalorder %s136, %s137
    %p146 = scmp.eq.s32.totalorder %s21, 0
    %p147 = por %p145, %p146
    %p148 = scmp.ne.s32.totalorder %s136, %s137
    %p149 = scmp.eq.s32.totalorder %s22, 1
    %p150 = por %p148, %p149
    %p152 = scmp.ne.s32.totalorder %s137, %s151
    %p153 = scmp.eq.s32.totalorder %s22, 0
    %p154 = por %p152, %p153
    %s156 = sadd.s32 %s155, 1
    %p159 = scmp.eq.s32.totalorder %s16, 1
    %p160 = scmp.ne.s32.totalorder %s155, %s157
    %p161 = scmp.eq.s32.totalorder %s16, 0
    %p162 = por %p160, %p161
    %p163 = scmp.ne.s32.totalorder %s155, %s157
    %p164 = scmp.eq.s32.totalorder %s21, 1
    %p165 = por %p163, %p164
    %p166 = scmp.ne.s32.totalorder %s157, %s158
    %p167 = scmp.eq.s32.totalorder %s21, 0
    %p168 = por %p166, %p167
    %p169 = scmp.ne.s32.totalorder %s157, %s158
    %p170 = scmp.eq.s32.totalorder %s22, 1
    %p171 = por %p169, %p170
    %p173 = scmp.ne.s32.totalorder %s158, %s172
    %p174 = scmp.eq.s32.totalorder %s22, 0
    %p175 = por %p173, %p174
    %s177 = sadd.s32 %s176, 1
    %p180 = scmp.eq.s32.totalorder %s16, 1
    %p181 = scmp.ne.s32.totalorder %s176, %s178
    %p182 = scmp.eq.s32.totalorder %s16, 0
    %p183 = por %p181, %p182
    %p184 = scmp.ne.s32.totalorder %s176, %s178
    %p185 = scmp.eq.s32.totalorder %s21, 1
    %p186 = por %p184, %p185
    %p187 = scmp.ne.s32.totalorder %s178, %s179
    %p188 = scmp.eq.s32.totalorder %s21, 0
    %p189 = por %p187, %p188
    %p190 = scmp.ne.s32.totalorder %s178, %s179
    %p191 = scmp.eq.s32.totalorder %s22, 1
    %p192 = por %p190, %p191
    %p194 = scmp.ne.s32.totalorder %s179, %s193
    %p195 = scmp.eq.s32.totalorder %s22, 0
    %p196 = por %p194, %p195
    %s198 = sadd.s32 %s197, 1
    %p201 = scmp.eq.s32.totalorder %s16, 1
    %p202 = scmp.ne.s32.totalorder %s197, %s199
    %p203 = scmp.eq.s32.totalorder %s16, 0
    %p204 = por %p202, %p203
    %p205 = scmp.ne.s32.totalorder %s197, %s199
    %p206 = scmp.eq.s32.totalorder %s21, 1
    %p207 = por %p205, %p206
    %p208 = scmp.ne.s32.totalorder %s199, %s200
    %p209 = scmp.eq.s32.totalorder %s21, 0
    %p210 = por %p208, %p209
    %p211 = scmp.ne.s32.totalorder %s199, %s200
    %p212 = scmp.eq.s32.totalorder %s22, 1
    %p213 = por %p211, %p212
    %p215 = scmp.ne.s32.totalorder %s200, %s214
    %p216 = scmp.eq.s32.totalorder %s22, 0
    %p217 = por %p215, %p216
    %s219 = sadd.s32 %s218, 1
    %p222 = scmp.eq.s32.totalorder %s16, 1
    %p223 = scmp.ne.s32.totalorder %s218, %s220
    %p224 = scmp.eq.s32.totalorder %s16, 0
    %p225 = por %p223, %p224
    %p226 = scmp.ne.s32.totalorder %s218, %s220
    %p227 = scmp.eq.s32.totalorder %s21, 1
    %p228 = por %p226, %p227
    %p229 = scmp.ne.s32.totalorder %s220, %s221
    %p230 = scmp.eq.s32.totalorder %s21, 0
    %p231 = por %p229, %p230
    %p232 = scmp.ne.s32.totalorder %s220, %s221
    %p233 = scmp.eq.s32.totalorder %s22, 1
    %p234 = por %p232, %p233
    %p236 = scmp.ne.s32.totalorder %s221, %s235
    %p237 = scmp.eq.s32.totalorder %s22, 0
    %p238 = por %p236, %p237
    %s239 = ssub.s32 %s16, %s23
    %p240 = scmp.eq.s32.totalorder %s239, 0
    %s242 = sadd.s32 %s241, 1
    %s243 = scalar_select %p240, %s241, %s242
    %p246 = pneg %p240
    %p247 = scmp.eq.s32.totalorder %s16, 1
    %p248 = por %p246, %p247
    %p249 = scmp.ne.s32.totalorder %s241, %s244
    %p250 = scmp.eq.s32.totalorder %s16, 0
    %p251 = por %p249, %p250
    %p252 = scmp.ne.s32.totalorder %s241, %s244
    %p253 = scmp.eq.s32.totalorder %s21, 1
    %p254 = por %p252, %p253
    %p255 = scmp.ne.s32.totalorder %s244, %s245
    %p256 = scmp.eq.s32.totalorder %s21, 0
    %p257 = por %p255, %p256
    %p258 = scmp.ne.s32.totalorder %s244, %s245
    %p259 = scmp.eq.s32.totalorder %s22, 1
    %p260 = por %p258, %p259
    %p262 = scmp.ne.s32.totalorder %s245, %s261
    %p263 = scmp.eq.s32.totalorder %s22, 0
    %p264 = por %p262, %p263
    %p265 = scmp.le.s32.totalorder 1, %s16
    %p266 = scmp.lt.s32.totalorder %s16, 3
    %p267 = pnand %p265, %p266
    %p268 = pneg %p267
    // Predicated region
    $region9: #{discriminator_forward.1} parent=5 // pred_check
      _
    $region10: #{discriminator_forward.1} parent=5 // pred_check_branch
      %270 = sbr.rel (%p267) target = $region12
    $region11: #{discriminator_forward.1} parent=5 // pred_region
      %s271 = ssub.s32 %s16, 1
      // Predicated region
      $region13: #{discriminator_forward.1} parent=11 // pred_check
        %p272 = pneg %p63
      $region14: #{discriminator_forward.1} parent=11 // pred_check_branch
        %274 = sbr.rel (%p272) target = $region16
      $region15: #{discriminator_forward.1} parent=11 // pred_region
        _
      $region16: #{discriminator_forward.1} parent=11 // pred_fallthru
        _
      // Predicated region
      $region17: #{discriminator_forward.1} parent=11 // pred_check
        %p275 = pneg %p84
      $region18: #{discriminator_forward.1} parent=11 // pred_check_branch
        %277 = sbr.rel (%p275) target = $region20
      $region19: #{discriminator_forward.1} parent=11 // pred_region
        _
      $region20: #{discriminator_forward.1} parent=11 // pred_fallthru
        _
      // Predicated region
      $region21: #{discriminator_forward.1} parent=11 // pred_check
        %p278 = pneg %p105
      $region22: #{discriminator_forward.1} parent=11 // pred_check_branch
        %280 = sbr.rel (%p278) target = $region24
      $region23: #{discriminator_forward.1} parent=11 // pred_region
        _
      $region24: #{discriminator_forward.1} parent=11 // pred_fallthru
        _
      // Predicated region
      $region25: #{discriminator_forward.1} parent=11 // pred_check
        %p281 = pneg %p126
      $region26: #{discriminator_forward.1} parent=11 // pred_check_branch
        %283 = sbr.rel (%p281) target = $region28
      $region27: #{discriminator_forward.1} parent=11 // pred_region
        _
      $region28: #{discriminator_forward.1} parent=11 // pred_fallthru
        _
      // Predicated region
      $region29: #{discriminator_forward.1} parent=11 // pred_check
        %p284 = pneg %p147
      $region30: #{discriminator_forward.1} parent=11 // pred_check_branch
        %286 = sbr.rel (%p284) target = $region32
      $region31: #{discriminator_forward.1} parent=11 // pred_region
        _
      $region32: #{discriminator_forward.1} parent=11 // pred_fallthru
        _
      // Predicated region
      $region33: #{discriminator_forward.1} parent=11 // pred_check
        %p287 = pneg %p168
      $region34: #{discriminator_forward.1} parent=11 // pred_check_branch
        %289 = sbr.rel (%p287) target = $region36
      $region35: #{discriminator_forward.1} parent=11 // pred_region
        _
      $region36: #{discriminator_forward.1} parent=11 // pred_fallthru
        _
      // Predicated region
      $region37: #{discriminator_forward.1} parent=11 // pred_check
        %p290 = pneg %p189
      $region38: #{discriminator_forward.1} parent=11 // pred_check_branch
        %292 = sbr.rel (%p290) target = $region40
      $region39: #{discriminator_forward.1} parent=11 // pred_region
        _
      $region40: #{discriminator_forward.1} parent=11 // pred_fallthru
        _
      // Predicated region
      $region41: #{discriminator_forward.1} parent=11 // pred_check
        %p293 = pneg %p210
      $region42: #{discriminator_forward.1} parent=11 // pred_check_branch
        %295 = sbr.rel (%p293) target = $region44
      $region43: #{discriminator_forward.1} parent=11 // pred_region
        _
      $region44: #{discriminator_forward.1} parent=11 // pred_fallthru
        _
      // Predicated region
      $region45: #{discriminator_forward.1} parent=11 // pred_check
        %p296 = pneg %p231
      $region46: #{discriminator_forward.1} parent=11 // pred_check_branch
        %298 = sbr.rel (%p296) target = $region48
      $region47: #{discriminator_forward.1} parent=11 // pred_region
        _
      $region48: #{discriminator_forward.1} parent=11 // pred_fallthru
        _
    $region12: #{discriminator_forward.1} parent=5 // pred_fallthru
      _
    %p299 = scmp.lt.s32.totalorder %s16, 2
    // Predicated region
    $region49: #{discriminator_forward.1} parent=5 // pred_check
      %p300 = pneg %p299
    $region50: #{discriminator_forward.1} parent=5 // pred_check_branch
      %302 = sbr.rel (%p300) target = $region52
    $region51: #{discriminator_forward.1} parent=5 // pred_region
      // Predicated region
      $region53: #{discriminator_forward.1} parent=51 // pred_check
        %p303 = pneg %p36
      $region54: #{discriminator_forward.1} parent=51 // pred_check_branch
        %305 = sbr.rel (%p303) target = $region56
      $region55: #{discriminator_forward.1} parent=51 // pred_region
        %p306 = scmp.lt.s32.totalorder %s16, 1
        %s307 = scalar_select %p306, %s16, 1
        %s308 = smul.addr %s307, 128
        %s309 = smul.addr %s308, 4
        %s310 = scalar_lea.vmem %s0, %s309
      $region56: #{discriminator_forward.1} parent=51 // pred_fallthru
        _
    $region52: #{discriminator_forward.1} parent=5 // pred_fallthru
      _
    %p311 = scmp.le.s32.totalorder 1, %s16
    %p312 = scmp.lt.s32.totalorder %s16, 3
    %p313 = pnand %p311, %p312
    %p314 = pneg %p313
    // Predicated region
    $region57: #{discriminator_forward.1} parent=5 // pred_check
      _
    $region58: #{discriminator_forward.1} parent=5 // pred_check_branch
      %316 = sbr.rel (%p313) target = $region60
    $region59: #{discriminator_forward.1} parent=5 // pred_region
      %s317 = ssub.s32 %s16, 1
      %p318 = scmp.lt.s32.totalorder %s21, 1
      %s319 = scalar_select %p318, %s21, 1
      %s320 = smul.addr %s319, 128
      %s321 = smul.addr %s320, 4
      %s322 = scalar_lea.vmem %s0, %s321
      %p323 = pneg %p42
      %p324 = pneg %p39
      %p325 = pneg %p63
      %p326 = pneg %p60
      %p327 = pneg %p84
      %p328 = pneg %p81
      %p329 = pneg %p105
      %p330 = pneg %p102
      %p331 = pneg %p126
      %p332 = pneg %p123
      %p333 = pneg %p147
      %p334 = pneg %p144
      %p335 = pneg %p168
      %p336 = pneg %p165
      %p337 = pneg %p189
      %p338 = pneg %p186
      %p339 = pneg %p210
      %p340 = pneg %p207
      %p341 = pneg %p231
      %p342 = pneg %p228
      %p343 = pneg %p257
      %p344 = pneg %p254
      %p345 = scmp.lt.s32.totalorder %s21, 1
      %s346 = scalar_select %p345, %s21, 1
      %s347 = scalar_lea.vmem %s10, %s346
      %p348 = scmp.lt.s32.totalorder %s21, 1
      %s349 = scalar_select %p348, %s21, 1
      %s350 = smul.addr %s349, 128
      %s351 = smul.addr %s350, 4
      %s352 = scalar_lea.vmem %s0, %s351
      %p353 = scmp.lt.s32.totalorder %s21, 1
      %s354 = scalar_select %p353, %s21, 1
      %s355 = scalar_lea.vmem %s10, %s354
      %vm357 = vcmask 130048
      %358 = vst.msk [vmem:[#allocation2] sm:$0xff] %vm357, 0.0
      %359 = vst.msk [vmem:[#allocation2 + $0x8] sm:$0xff] %vm357, 0.0
      %360 = vst.msk [vmem:[#allocation2 + $0x10] sm:$0xff] %vm357, 0.0
      %361 = vst.msk [vmem:[#allocation2 + $0x18] sm:$0xff] %vm357, 0.0
      %362 = vst.msk [vmem:[#allocation2 + $0x20] sm:$0xff] %vm357, 0.0
      %363 = vst.msk [vmem:[#allocation2 + $0x28] sm:$0xff] %vm357, 0.0
      %364 = vst.msk [vmem:[#allocation2 + $0x30] sm:$0xff] %vm357, 0.0
      %365 = vst.msk [vmem:[#allocation2 + $0x38] sm:$0xff] %vm357, 0.0
      %366 = vst.msk [vmem:[#allocation2 + $0x40] sm:$0xff] %vm357, 0.0
      %367 = vst.msk [vmem:[#allocation2 + $0x48] sm:$0xff] %vm357, 0.0
      %368 = vst.msk [vmem:[#allocation2 + $0x50] sm:$0xff] %vm357, 0.0
      %369 = vst.msk [vmem:[#allocation2 + $0x58] sm:$0xff] %vm357, 0.0
      %370 = vst.msk [vmem:[#allocation2 + $0x60] sm:$0xff] %vm357, 0.0
      %371 = vst.msk [vmem:[#allocation2 + $0x68] sm:$0xff] %vm357, 0.0
      %372 = vst.msk [vmem:[#allocation2 + $0x70] sm:$0xff] %vm357, 0.0
      %373 = vst.msk [vmem:[#allocation2 + $0x78] sm:$0xff] %vm357, 0.0
      %374 = vst.msk [vmem:[#allocation2 + $0x80] sm:$0xff] %vm357, 0.0
      %375 = vst.msk [vmem:[#allocation2 + $0x88] sm:$0xff] %vm357, 0.0
      %376 = vst.msk [vmem:[#allocation2 + $0x90] sm:$0xff] %vm357, 0.0
      %377 = vst.msk [vmem:[#allocation2 + $0x98] sm:$0xff] %vm357, 0.0
      %378 = vst.msk [vmem:[#allocation2 + $0xa0] sm:$0xff] %vm357, 0.0
      %379 = vst.msk [vmem:[#allocation2 + $0xa8] sm:$0xff] %vm357, 0.0
      %380 = vst.msk [vmem:[#allocation2 + $0xb0] sm:$0xff] %vm357, 0.0
      %381 = vst.msk [vmem:[#allocation2 + $0xb8] sm:$0xff] %vm357, 0.0
      %382 = vst.msk [vmem:[#allocation2 + $0xc0] sm:$0xff] %vm357, 0.0
      %383 = vst.msk [vmem:[#allocation2 + $0xc8] sm:$0xff] %vm357, 0.0
      %384 = vst.msk [vmem:[#allocation2 + $0xd0] sm:$0xff] %vm357, 0.0
      %385 = vst.msk [vmem:[#allocation2 + $0xd8] sm:$0xff] %vm357, 0.0
      %386 = vst.msk [vmem:[#allocation2 + $0xe0] sm:$0xff] %vm357, 0.0
      %387 = vst.msk [vmem:[#allocation2 + $0xe8] sm:$0xff] %vm357, 0.0
      %388 = vst.msk [vmem:[#allocation2 + $0xf0] sm:$0xff] %vm357, 0.0
      %389 = vst.msk [vmem:[#allocation2 + $0xf8] sm:$0xff] %vm357, 0.0
      %390 = vst.msk [vmem:[#allocation2 + $0x100] sm:$0xff] %vm357, 0.0
      %391 = vst.msk [vmem:[#allocation2 + $0x108] sm:$0xff] %vm357, 0.0
      %392 = vst.msk [vmem:[#allocation2 + $0x110] sm:$0xff] %vm357, 0.0
      %393 = vst.msk [vmem:[#allocation2 + $0x118] sm:$0xff] %vm357, 0.0
      %394 = vst.msk [vmem:[#allocation2 + $0x120] sm:$0xff] %vm357, 0.0
      %395 = vst.msk [vmem:[#allocation2 + $0x128] sm:$0xff] %vm357, 0.0
      %396 = vst.msk [vmem:[#allocation2 + $0x130] sm:$0xff] %vm357, 0.0
      %397 = vst.msk [vmem:[#allocation2 + $0x138] sm:$0xff] %vm357, 0.0
      %398 = vst.msk [vmem:[#allocation2 + $0x140] sm:$0xff] %vm357, 0.0
      %399 = vst.msk [vmem:[#allocation2 + $0x148] sm:$0xff] %vm357, 0.0
      %400 = vst.msk [vmem:[#allocation2 + $0x150] sm:$0xff] %vm357, 0.0
      %401 = vst.msk [vmem:[#allocation2 + $0x158] sm:$0xff] %vm357, 0.0
      %402 = vst.msk [vmem:[#allocation2 + $0x160] sm:$0xff] %vm357, 0.0
      %403 = vst.msk [vmem:[#allocation2 + $0x168] sm:$0xff] %vm357, 0.0
      %404 = vst.msk [vmem:[#allocation2 + $0x170] sm:$0xff] %vm357, 0.0
      %405 = vst.msk [vmem:[#allocation2 + $0x178] sm:$0xff] %vm357, 0.0
      %406 = vst.msk [vmem:[#allocation2 + $0x180] sm:$0xff] %vm357, 0.0
      %407 = vst.msk [vmem:[#allocation2 + $0x188] sm:$0xff] %vm357, 0.0
      %408 = vst.msk [vmem:[#allocation2 + $0x190] sm:$0xff] %vm357, 0.0
      %409 = vst.msk [vmem:[#allocation2 + $0x198] sm:$0xff] %vm357, 0.0
      %410 = vst.msk [vmem:[#allocation2 + $0x1a0] sm:$0xff] %vm357, 0.0
      %411 = vst.msk [vmem:[#allocation2 + $0x1a8] sm:$0xff] %vm357, 0.0
      %412 = vst.msk [vmem:[#allocation2 + $0x1b0] sm:$0xff] %vm357, 0.0
      %413 = vst.msk [vmem:[#allocation2 + $0x1b8] sm:$0xff] %vm357, 0.0
      %414 = vst.msk [vmem:[#allocation2 + $0x1c0] sm:$0xff] %vm357, 0.0
      %415 = vst.msk [vmem:[#allocation2 + $0x1c8] sm:$0xff] %vm357, 0.0
      %416 = vst.msk [vmem:[#allocation2 + $0x1d0] sm:$0xff] %vm357, 0.0
      %417 = vst.msk [vmem:[#allocation2 + $0x1d8] sm:$0xff] %vm357, 0.0
      %418 = vst.msk [vmem:[#allocation2 + $0x1e0] sm:$0xff] %vm357, 0.0
      %419 = vst.msk [vmem:[#allocation2 + $0x1e8] sm:$0xff] %vm357, 0.0
      %420 = vst.msk [vmem:[#allocation2 + $0x1f0] sm:$0xff] %vm357, 0.0
      %421 = vst.msk [vmem:[#allocation2 + $0x1f8] sm:$0xff] %vm357, 0.0
      %422 = vst.msk [vmem:[#allocation2 + $0x200] sm:$0xff] %vm357, 0.0
      %423 = vst.msk [vmem:[#allocation2 + $0x208] sm:$0xff] %vm357, 0.0
      %424 = vst.msk [vmem:[#allocation2 + $0x210] sm:$0xff] %vm357, 0.0
      %425 = vst.msk [vmem:[#allocation2 + $0x218] sm:$0xff] %vm357, 0.0
      %426 = vst.msk [vmem:[#allocation2 + $0x220] sm:$0xff] %vm357, 0.0
      %427 = vst.msk [vmem:[#allocation2 + $0x228] sm:$0xff] %vm357, 0.0
      %428 = vst.msk [vmem:[#allocation2 + $0x230] sm:$0xff] %vm357, 0.0
      %429 = vst.msk [vmem:[#allocation2 + $0x238] sm:$0xff] %vm357, 0.0
      %430 = vst.msk [vmem:[#allocation2 + $0x240] sm:$0xff] %vm357, 0.0
      %431 = vst.msk [vmem:[#allocation2 + $0x248] sm:$0xff] %vm357, 0.0
      %432 = vst.msk [vmem:[#allocation2 + $0x250] sm:$0xff] %vm357, 0.0
      %433 = vst.msk [vmem:[#allocation2 + $0x258] sm:$0xff] %vm357, 0.0
      %434 = vst.msk [vmem:[#allocation2 + $0x260] sm:$0xff] %vm357, 0.0
      %435 = vst.msk [vmem:[#allocation2 + $0x268] sm:$0xff] %vm357, 0.0
      %436 = vst.msk [vmem:[#allocation2 + $0x270] sm:$0xff] %vm357, 0.0
      %437 = vst.msk [vmem:[#allocation2 + $0x278] sm:$0xff] %vm357, 0.0
      %438 = vst.msk [vmem:[#allocation2 + $0x280] sm:$0xff] %vm357, 0.0
      %439 = vst.msk [vmem:[#allocation2 + $0x288] sm:$0xff] %vm357, 0.0
      %440 = vst.msk [vmem:[#allocation2 + $0x290] sm:$0xff] %vm357, 0.0
      %441 = vst.msk [vmem:[#allocation2 + $0x298] sm:$0xff] %vm357, 0.0
      %442 = vst.msk [vmem:[#allocation2 + $0x2a0] sm:$0xff] %vm357, 0.0
      %443 = vst.msk [vmem:[#allocation2 + $0x2a8] sm:$0xff] %vm357, 0.0
      %444 = vst.msk [vmem:[#allocation2 + $0x2b0] sm:$0xff] %vm357, 0.0
      %445 = vst.msk [vmem:[#allocation2 + $0x2b8] sm:$0xff] %vm357, 0.0
      %446 = vst.msk [vmem:[#allocation2 + $0x2c0] sm:$0xff] %vm357, 0.0
      %447 = vst.msk [vmem:[#allocation2 + $0x2c8] sm:$0xff] %vm357, 0.0
      %448 = vst.msk [vmem:[#allocation2 + $0x2d0] sm:$0xff] %vm357, 0.0
      %449 = vst.msk [vmem:[#allocation2 + $0x2d8] sm:$0xff] %vm357, 0.0
      %450 = vst.msk [vmem:[#allocation2 + $0x2e0] sm:$0xff] %vm357, 0.0
      %451 = vst.msk [vmem:[#allocation2 + $0x2e8] sm:$0xff] %vm357, 0.0
      %452 = vst.msk [vmem:[#allocation2 + $0x2f0] sm:$0xff] %vm357, 0.0
      %453 = vst.msk [vmem:[#allocation2 + $0x2f8] sm:$0xff] %vm357, 0.0
      %454 = vst.msk [vmem:[#allocation2 + $0x300] sm:$0xff] %vm357, 0.0
      %455 = vst.msk [vmem:[#allocation2 + $0x308] sm:$0xff] %vm357, 0.0
      %456 = vst.msk [vmem:[#allocation2 + $0x310] sm:$0xff] %vm357, 0.0
      %457 = vst.msk [vmem:[#allocation2 + $0x318] sm:$0xff] %vm357, 0.0
      %458 = vst.msk [vmem:[#allocation2 + $0x320] sm:$0xff] %vm357, 0.0
      %459 = vst.msk [vmem:[#allocation2 + $0x328] sm:$0xff] %vm357, 0.0
      %460 = vst.msk [vmem:[#allocation2 + $0x330] sm:$0xff] %vm357, 0.0
      %461 = vst.msk [vmem:[#allocation2 + $0x338] sm:$0xff] %vm357, 0.0
      %462 = vst.msk [vmem:[#allocation2 + $0x340] sm:$0xff] %vm357, 0.0
      %463 = vst.msk [vmem:[#allocation2 + $0x348] sm:$0xff] %vm357, 0.0
      %464 = vst.msk [vmem:[#allocation2 + $0x350] sm:$0xff] %vm357, 0.0
      %465 = vst.msk [vmem:[#allocation2 + $0x358] sm:$0xff] %vm357, 0.0
      %466 = vst.msk [vmem:[#allocation2 + $0x360] sm:$0xff] %vm357, 0.0
      %467 = vst.msk [vmem:[#allocation2 + $0x368] sm:$0xff] %vm357, 0.0
      %468 = vst.msk [vmem:[#allocation2 + $0x370] sm:$0xff] %vm357, 0.0
      %469 = vst.msk [vmem:[#allocation2 + $0x378] sm:$0xff] %vm357, 0.0
      %470 = vst.msk [vmem:[#allocation2 + $0x380] sm:$0xff] %vm357, 0.0
      %471 = vst.msk [vmem:[#allocation2 + $0x388] sm:$0xff] %vm357, 0.0
      %472 = vst.msk [vmem:[#allocation2 + $0x390] sm:$0xff] %vm357, 0.0
      %473 = vst.msk [vmem:[#allocation2 + $0x398] sm:$0xff] %vm357, 0.0
      %474 = vst.msk [vmem:[#allocation2 + $0x3a0] sm:$0xff] %vm357, 0.0
      %475 = vst.msk [vmem:[#allocation2 + $0x3a8] sm:$0xff] %vm357, 0.0
      %476 = vst.msk [vmem:[#allocation2 + $0x3b0] sm:$0xff] %vm357, 0.0
      %477 = vst.msk [vmem:[#allocation2 + $0x3b8] sm:$0xff] %vm357, 0.0
      %478 = vst.msk [vmem:[#allocation2 + $0x3c0] sm:$0xff] %vm357, 0.0
      %479 = vst.msk [vmem:[#allocation2 + $0x3c8] sm:$0xff] %vm357, 0.0
      %480 = vst.msk [vmem:[#allocation2 + $0x3d0] sm:$0xff] %vm357, 0.0
      %481 = vst.msk [vmem:[#allocation2 + $0x3d8] sm:$0xff] %vm357, 0.0
      %482 = vst.msk [vmem:[#allocation2 + $0x3e0] sm:$0xff] %vm357, 0.0
      %483 = vst.msk [vmem:[#allocation2 + $0x3e8] sm:$0xff] %vm357, 0.0
      %484 = vst.msk [vmem:[#allocation2 + $0x3f0] sm:$0xff] %vm357, 0.0
      %485 = vst.msk [vmem:[#allocation2 + $0x3f8] sm:$0xff] %vm357, 0.0
      %486 = vst.msk [vmem:[#allocation2 + $0x400] sm:$0xff] %vm357, 0.0
      %487 = vst.msk [vmem:[#allocation2 + $0x408] sm:$0xff] %vm357, 0.0
      %488 = vst.msk [vmem:[#allocation2 + $0x410] sm:$0xff] %vm357, 0.0
      %489 = vst.msk [vmem:[#allocation2 + $0x418] sm:$0xff] %vm357, 0.0
      %490 = vst.msk [vmem:[#allocation2 + $0x420] sm:$0xff] %vm357, 0.0
      %491 = vst.msk [vmem:[#allocation2 + $0x428] sm:$0xff] %vm357, 0.0
      %492 = vst.msk [vmem:[#allocation2 + $0x430] sm:$0xff] %vm357, 0.0
      %493 = vst.msk [vmem:[#allocation2 + $0x438] sm:$0xff] %vm357, 0.0
      %494 = vst.msk [vmem:[#allocation2 + $0x440] sm:$0xff] %vm357, 0.0
      %495 = vst.msk [vmem:[#allocation2 + $0x448] sm:$0xff] %vm357, 0.0
      %496 = vst.msk [vmem:[#allocation2 + $0x450] sm:$0xff] %vm357, 0.0
      %497 = vst.msk [vmem:[#allocation2 + $0x458] sm:$0xff] %vm357, 0.0
      %498 = vst.msk [vmem:[#allocation2 + $0x460] sm:$0xff] %vm357, 0.0
      %499 = vst.msk [vmem:[#allocation2 + $0x468] sm:$0xff] %vm357, 0.0
      %500 = vst.msk [vmem:[#allocation2 + $0x470] sm:$0xff] %vm357, 0.0
      %501 = vst.msk [vmem:[#allocation2 + $0x478] sm:$0xff] %vm357, 0.0
      %502 = vst.msk [vmem:[#allocation2 + $0x480] sm:$0xff] %vm357, 0.0
      %503 = vst.msk [vmem:[#allocation2 + $0x488] sm:$0xff] %vm357, 0.0
      %504 = vst.msk [vmem:[#allocation2 + $0x490] sm:$0xff] %vm357, 0.0
      %505 = vst.msk [vmem:[#allocation2 + $0x498] sm:$0xff] %vm357, 0.0
      %506 = vst.msk [vmem:[#allocation2 + $0x4a0] sm:$0xff] %vm357, 0.0
      %507 = vst.msk [vmem:[#allocation2 + $0x4a8] sm:$0xff] %vm357, 0.0
      %508 = vst.msk [vmem:[#allocation2 + $0x4b0] sm:$0xff] %vm357, 0.0
      %509 = vst.msk [vmem:[#allocation2 + $0x4b8] sm:$0xff] %vm357, 0.0
      %510 = vst.msk [vmem:[#allocation2 + $0x4c0] sm:$0xff] %vm357, 0.0
      %511 = vst.msk [vmem:[#allocation2 + $0x4c8] sm:$0xff] %vm357, 0.0
      %512 = vst.msk [vmem:[#allocation2 + $0x4d0] sm:$0xff] %vm357, 0.0
      %513 = vst.msk [vmem:[#allocation2 + $0x4d8] sm:$0xff] %vm357, 0.0
      %514 = vst.msk [vmem:[#allocation2 + $0x4e0] sm:$0xff] %vm357, 0.0
      %515 = vst.msk [vmem:[#allocation2 + $0x4e8] sm:$0xff] %vm357, 0.0
      %516 = vst.msk [vmem:[#allocation2 + $0x4f0] sm:$0xff] %vm357, 0.0
      %517 = vst.msk [vmem:[#allocation2 + $0x4f8] sm:$0xff] %vm357, 0.0
      %518 = vst.msk [vmem:[#allocation2 + $0x500] sm:$0xff] %vm357, 0.0
      %519 = vst.msk [vmem:[#allocation2 + $0x508] sm:$0xff] %vm357, 0.0
      %520 = vst.msk [vmem:[#allocation2 + $0x510] sm:$0xff] %vm357, 0.0
      %521 = vst.msk [vmem:[#allocation2 + $0x518] sm:$0xff] %vm357, 0.0
      %522 = vst.msk [vmem:[#allocation2 + $0x520] sm:$0xff] %vm357, 0.0
      %523 = vst.msk [vmem:[#allocation2 + $0x528] sm:$0xff] %vm357, 0.0
      %524 = vst.msk [vmem:[#allocation2 + $0x530] sm:$0xff] %vm357, 0.0
      %525 = vst.msk [vmem:[#allocation2 + $0x538] sm:$0xff] %vm357, 0.0
      %526 = vst.msk [vmem:[#allocation2 + $0x540] sm:$0xff] %vm357, 0.0
      %527 = vst.msk [vmem:[#allocation2 + $0x548] sm:$0xff] %vm357, 0.0
      %vm528 = vcmask 261120
      %529 = vst.msk [vmem:[#allocation3] sm:$0xff] %vm528, 0.0
      %530 = vst.msk [vmem:[#allocation3 + $0x8] sm:$0xff] %vm528, 0.0
      %531 = vst.msk [vmem:[#allocation3 + $0x10] sm:$0xff] %vm528, 0.0
      %532 = vst.msk [vmem:[#allocation3 + $0x18] sm:$0xff] %vm528, 0.0
      %533 = vst.msk [vmem:[#allocation3 + $0x20] sm:$0xff] %vm528, 0.0
      %534 = vst.msk [vmem:[#allocation3 + $0x28] sm:$0xff] %vm528, 0.0
      %535 = vst.msk [vmem:[#allocation3 + $0x30] sm:$0xff] %vm528, 0.0
      %536 = vst.msk [vmem:[#allocation3 + $0x38] sm:$0xff] %vm528, 0.0
      %537 = vst.msk [vmem:[#allocation3 + $0x40] sm:$0xff] %vm528, 0.0
      %538 = vst.msk [vmem:[#allocation3 + $0x48] sm:$0xff] %vm528, 0.0
      %539 = vst.msk [vmem:[#allocation3 + $0x50] sm:$0xff] %vm528, 0.0
      %540 = vst.msk [vmem:[#allocation3 + $0x58] sm:$0xff] %vm528, 0.0
      %541 = vst.msk [vmem:[#allocation3 + $0x60] sm:$0xff] %vm528, 0.0
      %542 = vst.msk [vmem:[#allocation3 + $0x68] sm:$0xff] %vm528, 0.0
      %543 = vst.msk [vmem:[#allocation3 + $0x70] sm:$0xff] %vm528, 0.0
      %544 = vst.msk [vmem:[#allocation3 + $0x78] sm:$0xff] %vm528, 0.0
      %545 = vst.msk [vmem:[#allocation3 + $0x80] sm:$0xff] %vm528, 0.0
      %546 = vst.msk [vmem:[#allocation3 + $0x88] sm:$0xff] %vm528, 0.0
      %547 = vst.msk [vmem:[#allocation3 + $0x90] sm:$0xff] %vm528, 0.0
      %548 = vst.msk [vmem:[#allocation3 + $0x98] sm:$0xff] %vm528, 0.0
      %549 = vst.msk [vmem:[#allocation3 + $0xa0] sm:$0xff] %vm528, 0.0
      %550 = vst.msk [vmem:[#allocation3 + $0xa8] sm:$0xff] %vm528, 0.0
      %551 = vst.msk [vmem:[#allocation3 + $0xb0] sm:$0xff] %vm528, 0.0
      %552 = vst.msk [vmem:[#allocation3 + $0xb8] sm:$0xff] %vm528, 0.0
      %553 = vst.msk [vmem:[#allocation3 + $0xc0] sm:$0xff] %vm528, 0.0
      %554 = vst.msk [vmem:[#allocation3 + $0xc8] sm:$0xff] %vm528, 0.0
      %555 = vst.msk [vmem:[#allocation3 + $0xd0] sm:$0xff] %vm528, 0.0
      %556 = vst.msk [vmem:[#allocation3 + $0xd8] sm:$0xff] %vm528, 0.0
      %557 = vst.msk [vmem:[#allocation3 + $0xe0] sm:$0xff] %vm528, 0.0
      %558 = vst.msk [vmem:[#allocation3 + $0xe8] sm:$0xff] %vm528, 0.0
      %559 = vst.msk [vmem:[#allocation3 + $0xf0] sm:$0xff] %vm528, 0.0
      %560 = vst.msk [vmem:[#allocation3 + $0xf8] sm:$0xff] %vm528, 0.0
      %561 = vst.msk [vmem:[#allocation3 + $0x100] sm:$0xff] %vm528, 0.0
      %562 = vst.msk [vmem:[#allocation3 + $0x108] sm:$0xff] %vm528, 0.0
      %563 = vst.msk [vmem:[#allocation3 + $0x110] sm:$0xff] %vm528, 0.0
      %564 = vst.msk [vmem:[#allocation3 + $0x118] sm:$0xff] %vm528, 0.0
      %565 = vst.msk [vmem:[#allocation3 + $0x120] sm:$0xff] %vm528, 0.0
      %566 = vst.msk [vmem:[#allocation3 + $0x128] sm:$0xff] %vm528, 0.0
      %567 = vst.msk [vmem:[#allocation3 + $0x130] sm:$0xff] %vm528, 0.0
      %568 = vst.msk [vmem:[#allocation3 + $0x138] sm:$0xff] %vm528, 0.0
      %569 = vst.msk [vmem:[#allocation3 + $0x140] sm:$0xff] %vm528, 0.0
      %570 = vst.msk [vmem:[#allocation3 + $0x148] sm:$0xff] %vm528, 0.0
      %571 = vst.msk [vmem:[#allocation3 + $0x150] sm:$0xff] %vm528, 0.0
      %572 = vst.msk [vmem:[#allocation3 + $0x158] sm:$0xff] %vm528, 0.0
      %573 = vst.msk [vmem:[#allocation3 + $0x160] sm:$0xff] %vm528, 0.0
      %574 = vst.msk [vmem:[#allocation3 + $0x168] sm:$0xff] %vm528, 0.0
      %575 = vst.msk [vmem:[#allocation3 + $0x170] sm:$0xff] %vm528, 0.0
      %576 = vst.msk [vmem:[#allocation3 + $0x178] sm:$0xff] %vm528, 0.0
      %577 = vst.msk [vmem:[#allocation3 + $0x180] sm:$0xff] %vm528, 0.0
      %578 = vst.msk [vmem:[#allocation3 + $0x188] sm:$0xff] %vm528, 0.0
      %579 = vst.msk [vmem:[#allocation3 + $0x190] sm:$0xff] %vm528, 0.0
      %580 = vst.msk [vmem:[#allocation3 + $0x198] sm:$0xff] %vm528, 0.0
      %581 = vst.msk [vmem:[#allocation3 + $0x1a0] sm:$0xff] %vm528, 0.0
      %582 = vst.msk [vmem:[#allocation3 + $0x1a8] sm:$0xff] %vm528, 0.0
      %vm583 = vcmask 523264
      %584 = vst.msk [vmem:[#allocation4] sm:$0xff] %vm583, 0.0
      %585 = vst.msk [vmem:[#allocation4 + $0x8] sm:$0xff] %vm583, 0.0
      %586 = vst.msk [vmem:[#allocation4 + $0x10] sm:$0xff] %vm583, 0.0
      %587 = vst.msk [vmem:[#allocation4 + $0x18] sm:$0xff] %vm583, 0.0
      %588 = vst.msk [vmem:[#allocation4 + $0x20] sm:$0xff] %vm583, 0.0
      %589 = vst.msk [vmem:[#allocation4 + $0x28] sm:$0xff] %vm583, 0.0
      %590 = vst.msk [vmem:[#allocation4 + $0x30] sm:$0xff] %vm583, 0.0
      %591 = vst.msk [vmem:[#allocation4 + $0x38] sm:$0xff] %vm583, 0.0
      %592 = vst.msk [vmem:[#allocation4 + $0x40] sm:$0xff] %vm583, 0.0
      %593 = vst.msk [vmem:[#allocation4 + $0x48] sm:$0xff] %vm583, 0.0
      %594 = vst.msk [vmem:[#allocation4 + $0x50] sm:$0xff] %vm583, 0.0
      %595 = vst.msk [vmem:[#allocation4 + $0x58] sm:$0xff] %vm583, 0.0
      %596 = vst.msk [vmem:[#allocation4 + $0x60] sm:$0xff] %vm583, 0.0
      %597 = vst.msk [vmem:[#allocation4 + $0x68] sm:$0xff] %vm583, 0.0
      %598 = vst.msk [vmem:[#allocation4 + $0x70] sm:$0xff] %vm583, 0.0
      %599 = vst.msk [vmem:[#allocation4 + $0x78] sm:$0xff] %vm583, 0.0
      %600 = vst.msk [vmem:[#allocation4 + $0x80] sm:$0xff] %vm583, 0.0
      %601 = vst.msk [vmem:[#allocation4 + $0x88] sm:$0xff] %vm583, 0.0
      %602 = vst.msk [vmem:[#allocation4 + $0x90] sm:$0xff] %vm583, 0.0
      %603 = vst.msk [vmem:[#allocation4 + $0x98] sm:$0xff] %vm583, 0.0
      %604 = vst.msk [vmem:[#allocation4 + $0xa0] sm:$0xff] %vm583, 0.0
      %605 = vst.msk [vmem:[#allocation4 + $0xa8] sm:$0xff] %vm583, 0.0
      %606 = vst.msk [vmem:[#allocation4 + $0xb0] sm:$0xff] %vm583, 0.0
      %607 = vst.msk [vmem:[#allocation4 + $0xb8] sm:$0xff] %vm583, 0.0
      %608 = vst.msk [vmem:[#allocation4 + $0xc0] sm:$0xff] %vm583, 0.0
      %609 = vst.msk [vmem:[#allocation4 + $0xc8] sm:$0xff] %vm583, 0.0
      %610 = vst.msk [vmem:[#allocation4 + $0xd0] sm:$0xff] %vm583, 0.0
      %611 = vst.msk [vmem:[#allocation4 + $0xd8] sm:$0xff] %vm583, 0.0
      %612 = vst.msk [vmem:[#allocation4 + $0xe0] sm:$0xff] %vm583, 0.0
      %613 = vst.msk [vmem:[#allocation4 + $0xe8] sm:$0xff] %vm583, 0.0
      %v614 = vld [vmem:[%s352] sm:$0xf]
      %v615 = vld [vmem:[%s352 + $0x4] sm:$0xf]
      %v616 = vld [vmem:[%s352 + $0x8] sm:$0xf]
      %v617 = vld [vmem:[%s352 + $0xc] sm:$0xf]
      %v618 = vld [vmem:[%s352 + $0x10] sm:$0xf]
      %v619 = vld [vmem:[%s352 + $0x14] sm:$0xf]
      %v620 = vld [vmem:[%s352 + $0x18] sm:$0xf]
      %v621 = vld [vmem:[%s352 + $0x1c] sm:$0xf]
      %v622 = vld [vmem:[%s352 + $0x20] sm:$0xf]
      %v623 = vld [vmem:[%s352 + $0x24] sm:$0xf]
      %v624 = vld [vmem:[%s352 + $0x28] sm:$0xf]
      %v625 = vld [vmem:[%s352 + $0x2c] sm:$0xf]
      %v626 = vld [vmem:[%s352 + $0x30] sm:$0xf]
      %v627 = vld [vmem:[%s352 + $0x34] sm:$0xf]
      %v628 = vld [vmem:[%s352 + $0x38] sm:$0xf]
      %v629 = vld [vmem:[%s352 + $0x3c] sm:$0xf]
      %v630 = vld [vmem:[%s352 + $0x40] sm:$0xf]
      %v631 = vld [vmem:[%s352 + $0x44] sm:$0xf]
      %v632 = vld [vmem:[%s352 + $0x48] sm:$0xf]
      %v633 = vld [vmem:[%s352 + $0x4c] sm:$0xf]
      %v634 = vld [vmem:[%s352 + $0x50] sm:$0xf]
      %v635 = vld [vmem:[%s352 + $0x54] sm:$0xf]
      %v636 = vld [vmem:[%s352 + $0x58] sm:$0xf]
      %v637 = vld [vmem:[%s352 + $0x5c] sm:$0xf]
      %v638 = vld [vmem:[%s352 + $0x60] sm:$0xf]
      %v639 = vld [vmem:[%s352 + $0x64] sm:$0xf]
      %v640 = vld [vmem:[%s352 + $0x68] sm:$0xf]
      %v641 = vld [vmem:[%s352 + $0x6c] sm:$0xf]
      %v642 = vld [vmem:[%s352 + $0x70] sm:$0xf]
      %v643 = vld [vmem:[%s352 + $0x74] sm:$0xf]
      %v644 = vld [vmem:[%s352 + $0x78] sm:$0xf]
      %v645 = vld [vmem:[%s352 + $0x7c] sm:$0xf]
      %v646 = vld [vmem:[%s352 + $0x80] sm:$0xf]
      %v647 = vld [vmem:[%s352 + $0x84] sm:$0xf]
      %v648 = vld [vmem:[%s352 + $0x88] sm:$0xf]
      %v649 = vld [vmem:[%s352 + $0x8c] sm:$0xf]
      %v650 = vld [vmem:[%s352 + $0x90] sm:$0xf]
      %v651 = vld [vmem:[%s352 + $0x94] sm:$0xf]
      %v652 = vld [vmem:[%s352 + $0x98] sm:$0xf]
      %v653 = vld [vmem:[%s352 + $0x9c] sm:$0xf]
      %v654 = vld [vmem:[%s352 + $0xa0] sm:$0xf]
      %v655 = vld [vmem:[%s352 + $0xa4] sm:$0xf]
      %v656 = vld [vmem:[%s352 + $0xa8] sm:$0xf]
      %v657 = vld [vmem:[%s352 + $0xac] sm:$0xf]
      %v658 = vld [vmem:[%s352 + $0xb0] sm:$0xf]
      %v659 = vld [vmem:[%s352 + $0xb4] sm:$0xf]
      %v660 = vld [vmem:[%s352 + $0xb8] sm:$0xf]
      %v661 = vld [vmem:[%s352 + $0xbc] sm:$0xf]
      %v662 = vld [vmem:[%s352 + $0xc0] sm:$0xf]
      %v663 = vld [vmem:[%s352 + $0xc4] sm:$0xf]
      %v664 = vld [vmem:[%s352 + $0xc8] sm:$0xf]
      %v665 = vld [vmem:[%s352 + $0xcc] sm:$0xf]
      %v666 = vld [vmem:[%s352 + $0xd0] sm:$0xf]
      %v667 = vld [vmem:[%s352 + $0xd4] sm:$0xf]
      %v668 = vld [vmem:[%s352 + $0xd8] sm:$0xf]
      %v669 = vld [vmem:[%s352 + $0xdc] sm:$0xf]
      %v670 = vld [vmem:[%s352 + $0xe0] sm:$0xf]
      %v671 = vld [vmem:[%s352 + $0xe4] sm:$0xf]
      %v672 = vld [vmem:[%s352 + $0xe8] sm:$0xf]
      %v673 = vld [vmem:[%s352 + $0xec] sm:$0xf]
      %v674 = vld [vmem:[%s352 + $0xf0] sm:$0xf]
      %v675 = vld [vmem:[%s352 + $0xf4] sm:$0xf]
      %v676 = vld [vmem:[%s352 + $0xf8] sm:$0xf]
      %v677 = vld [vmem:[%s352 + $0xfc] sm:$0xf]
      %v678 = vld [vmem:[%s352 + $0x100] sm:$0xf]
      %v679 = vld [vmem:[%s352 + $0x104] sm:$0xf]
      %v680 = vld [vmem:[%s352 + $0x108] sm:$0xf]
      %v681 = vld [vmem:[%s352 + $0x10c] sm:$0xf]
      %v682 = vld [vmem:[%s352 + $0x110] sm:$0xf]
      %v683 = vld [vmem:[%s352 + $0x114] sm:$0xf]
      %v684 = vld [vmem:[%s352 + $0x118] sm:$0xf]
      %v685 = vld [vmem:[%s352 + $0x11c] sm:$0xf]
      %v686 = vld [vmem:[%s352 + $0x120] sm:$0xf]
      %v687 = vld [vmem:[%s352 + $0x124] sm:$0xf]
      %v688 = vld [vmem:[%s352 + $0x128] sm:$0xf]
      %v689 = vld [vmem:[%s352 + $0x12c] sm:$0xf]
      %v690 = vld [vmem:[%s352 + $0x130] sm:$0xf]
      %v691 = vld [vmem:[%s352 + $0x134] sm:$0xf]
      %v692 = vld [vmem:[%s352 + $0x138] sm:$0xf]
      %v693 = vld [vmem:[%s352 + $0x13c] sm:$0xf]
      %v694 = vld [vmem:[%s352 + $0x140] sm:$0xf]
      %v695 = vld [vmem:[%s352 + $0x144] sm:$0xf]
      %v696 = vld [vmem:[%s352 + $0x148] sm:$0xf]
      %v697 = vld [vmem:[%s352 + $0x14c] sm:$0xf]
      %v698 = vld [vmem:[%s352 + $0x150] sm:$0xf]
      %v699 = vld [vmem:[%s352 + $0x154] sm:$0xf]
      %v700 = vld [vmem:[%s352 + $0x158] sm:$0xf]
      %v701 = vld [vmem:[%s352 + $0x15c] sm:$0xf]
      %v702 = vld [vmem:[%s352 + $0x160] sm:$0xf]
      %v703 = vld [vmem:[%s352 + $0x164] sm:$0xf]
      %v704 = vld [vmem:[%s352 + $0x168] sm:$0xf]
      %v705 = vld [vmem:[%s352 + $0x16c] sm:$0xf]
      %v706 = vld [vmem:[%s352 + $0x170] sm:$0xf]
      %v707 = vld [vmem:[%s352 + $0x174] sm:$0xf]
      %v708 = vld [vmem:[%s352 + $0x178] sm:$0xf]
      %v709 = vld [vmem:[%s352 + $0x17c] sm:$0xf]
      %v710 = vld [vmem:[%s352 + $0x180] sm:$0xf]
      %v711 = vld [vmem:[%s352 + $0x184] sm:$0xf]
      %v712 = vld [vmem:[%s352 + $0x188] sm:$0xf]
      %v713 = vld [vmem:[%s352 + $0x18c] sm:$0xf]
      %v714 = vld [vmem:[%s352 + $0x190] sm:$0xf]
      %v715 = vld [vmem:[%s352 + $0x194] sm:$0xf]
      %v716 = vld [vmem:[%s352 + $0x198] sm:$0xf]
      %v717 = vld [vmem:[%s352 + $0x19c] sm:$0xf]
      %v718 = vld [vmem:[%s352 + $0x1a0] sm:$0xf]
      %v719 = vld [vmem:[%s352 + $0x1a4] sm:$0xf]
      %v720 = vld [vmem:[%s352 + $0x1a8] sm:$0xf]
      %v721 = vld [vmem:[%s352 + $0x1ac] sm:$0xf]
      %v722 = vld [vmem:[%s352 + $0x1b0] sm:$0xf]
      %v723 = vld [vmem:[%s352 + $0x1b4] sm:$0xf]
      %v724 = vld [vmem:[%s352 + $0x1b8] sm:$0xf]
      %v725 = vld [vmem:[%s352 + $0x1bc] sm:$0xf]
      %v726 = vld [vmem:[%s352 + $0x1c0] sm:$0xf]
      %v727 = vld [vmem:[%s352 + $0x1c4] sm:$0xf]
      %v728 = vld [vmem:[%s352 + $0x1c8] sm:$0xf]
      %v729 = vld [vmem:[%s352 + $0x1cc] sm:$0xf]
      %v730 = vld [vmem:[%s352 + $0x1d0] sm:$0xf]
      %v731 = vld [vmem:[%s352 + $0x1d4] sm:$0xf]
      %v732 = vld [vmem:[%s352 + $0x1d8] sm:$0xf]
      %v733 = vld [vmem:[%s352 + $0x1dc] sm:$0xf]
      %v734 = vld [vmem:[%s352 + $0x1e0] sm:$0xf]
      %v735 = vld [vmem:[%s352 + $0x1e4] sm:$0xf]
      %v736 = vld [vmem:[%s352 + $0x1e8] sm:$0xf]
      %v737 = vld [vmem:[%s352 + $0x1ec] sm:$0xf]
      %v738 = vld [vmem:[%s352 + $0x1f0] sm:$0xf]
      %v739 = vld [vmem:[%s352 + $0x1f4] sm:$0xf]
      %v740 = vld [vmem:[%s352 + $0x1f8] sm:$0xf]
      %v741 = vld [vmem:[%s352 + $0x1fc] sm:$0xf]
      %v742 = vld [vmem:[%s1] sm:$0xf]
      %v743 = vld [vmem:[%s1 + $0x4] sm:$0xf]
      %v744 = vld [vmem:[%s2] sm:$0x1]
      %v746 = vlaneseq
      %v747 = vshrl.u32 %v746, 7
      %v748 = vsub.s32 0, %v747
      %v749 = vrot.slane %v744, %v748
      %v879 = vunpack.c.l.b16 %v614
      %v880 = vunpack.c.l.b16 %v615
      %v881 = vunpack.c.l.b16 %v616
      %v882 = vunpack.c.l.b16 %v617
      %v883 = vunpack.c.l.b16 %v618
      %v884 = vunpack.c.l.b16 %v619
      %v885 = vunpack.c.l.b16 %v620
      %v886 = vunpack.c.l.b16 %v621
      %v887 = vunpack.c.l.b16 %v622
      %v888 = vunpack.c.l.b16 %v623
      %v889 = vunpack.c.l.b16 %v624
      %v890 = vunpack.c.l.b16 %v625
      %v891 = vunpack.c.l.b16 %v626
      %v892 = vunpack.c.l.b16 %v627
      %v893 = vunpack.c.l.b16 %v628
      %v894 = vunpack.c.l.b16 %v629
      %v895 = vunpack.c.l.b16 %v630
      %v896 = vunpack.c.l.b16 %v631
      %v897 = vunpack.c.l.b16 %v632
      %v898 = vunpack.c.l.b16 %v633
      %v899 = vunpack.c.l.b16 %v634
      %v900 = vunpack.c.l.b16 %v635
      %v901 = vunpack.c.l.b16 %v636
      %v902 = vunpack.c.l.b16 %v637
      %v903 = vunpack.c.l.b16 %v638
      %v904 = vunpack.c.l.b16 %v639
      %v905 = vunpack.c.l.b16 %v640
      %v906 = vunpack.c.l.b16 %v641
      %v907 = vunpack.c.l.b16 %v642
      %v908 = vunpack.c.l.b16 %v643
      %v909 = vunpack.c.l.b16 %v644
      %v910 = vunpack.c.l.b16 %v645
      %v911 = vunpack.c.l.b16 %v646
      %v912 = vunpack.c.l.b16 %v647
      %v913 = vunpack.c.l.b16 %v648
      %v914 = vunpack.c.l.b16 %v649
      %v915 = vunpack.c.l.b16 %v650
      %v916 = vunpack.c.l.b16 %v651
      %v917 = vunpack.c.l.b16 %v652
      %v918 = vunpack.c.l.b16 %v653
      %v919 = vunpack.c.l.b16 %v654
      %v920 = vunpack.c.l.b16 %v655
      %v921 = vunpack.c.l.b16 %v656
      %v922 = vunpack.c.l.b16 %v657
      %v923 = vunpack.c.l.b16 %v658
      %v924 = vunpack.c.l.b16 %v659
      %v925 = vunpack.c.l.b16 %v660
      %v926 = vunpack.c.l.b16 %v661
      %v927 = vunpack.c.l.b16 %v662
      %v928 = vunpack.c.l.b16 %v663
      %v929 = vunpack.c.l.b16 %v664
      %v930 = vunpack.c.l.b16 %v665
      %v931 = vunpack.c.l.b16 %v666
      %v932 = vunpack.c.l.b16 %v667
      %v933 = vunpack.c.l.b16 %v668
      %v934 = vunpack.c.l.b16 %v669
      %v935 = vunpack.c.l.b16 %v670
      %v936 = vunpack.c.l.b16 %v671
      %v937 = vunpack.c.l.b16 %v672
      %v938 = vunpack.c.l.b16 %v673
      %v939 = vunpack.c.l.b16 %v674
      %v940 = vunpack.c.l.b16 %v675
      %v941 = vunpack.c.l.b16 %v676
      %v942 = vunpack.c.l.b16 %v677
      %v943 = vunpack.c.l.b16 %v678
      %v944 = vunpack.c.l.b16 %v679
      %v945 = vunpack.c.l.b16 %v680
      %v946 = vunpack.c.l.b16 %v681
      %v947 = vunpack.c.l.b16 %v682
      %v948 = vunpack.c.l.b16 %v683
      %v949 = vunpack.c.l.b16 %v684
      %v950 = vunpack.c.l.b16 %v685
      %v951 = vunpack.c.l.b16 %v686
      %v952 = vunpack.c.l.b16 %v687
      %v953 = vunpack.c.l.b16 %v688
      %v954 = vunpack.c.l.b16 %v689
      %v955 = vunpack.c.l.b16 %v690
      %v956 = vunpack.c.l.b16 %v691
      %v957 = vunpack.c.l.b16 %v692
      %v958 = vunpack.c.l.b16 %v693
      %v959 = vunpack.c.l.b16 %v694
      %v960 = vunpack.c.l.b16 %v695
      %v961 = vunpack.c.l.b16 %v696
      %v962 = vunpack.c.l.b16 %v697
      %v963 = vunpack.c.l.b16 %v698
      %v964 = vunpack.c.l.b16 %v699
      %v965 = vunpack.c.l.b16 %v700
      %v966 = vunpack.c.l.b16 %v701
      %v967 = vunpack.c.l.b16 %v702
      %v968 = vunpack.c.l.b16 %v703
      %v969 = vunpack.c.l.b16 %v704
      %v970 = vunpack.c.l.b16 %v705
      %v971 = vunpack.c.l.b16 %v706
      %v972 = vunpack.c.l.b16 %v707
      %v973 = vunpack.c.l.b16 %v708
      %v974 = vunpack.c.l.b16 %v709
      %v975 = vunpack.c.l.b16 %v710
      %v976 = vunpack.c.l.b16 %v711
      %v977 = vunpack.c.l.b16 %v712
      %v978 = vunpack.c.l.b16 %v713
      %v979 = vunpack.c.l.b16 %v714
      %v980 = vunpack.c.l.b16 %v715
      %v981 = vunpack.c.l.b16 %v716
      %v982 = vunpack.c.l.b16 %v717
      %v983 = vunpack.c.l.b16 %v718
      %v984 = vunpack.c.l.b16 %v719
      %v985 = vunpack.c.l.b16 %v720
      %v986 = vunpack.c.l.b16 %v721
      %v987 = vunpack.c.l.b16 %v722
      %v988 = vunpack.c.l.b16 %v723
      %v989 = vunpack.c.l.b16 %v724
      %v990 = vunpack.c.l.b16 %v725
      %v991 = vunpack.c.l.b16 %v726
      %v992 = vunpack.c.l.b16 %v727
      %v993 = vunpack.c.l.b16 %v728
      %v994 = vunpack.c.l.b16 %v729
      %v995 = vunpack.c.l.b16 %v730
      %v996 = vunpack.c.l.b16 %v731
      %v997 = vunpack.c.l.b16 %v732
      %v998 = vunpack.c.l.b16 %v733
      %v999 = vunpack.c.l.b16 %v734
      %v1000 = vunpack.c.l.b16 %v735
      %v1001 = vunpack.c.l.b16 %v736
      %v1002 = vunpack.c.l.b16 %v737
      %v1003 = vunpack.c.l.b16 %v738
      %v1004 = vunpack.c.l.b16 %v739
      %v1005 = vunpack.c.l.b16 %v740
      %v1006 = vunpack.c.l.b16 %v741
      %v1007 = vpack.c.b16 %v880, %v879
      %v1008 = vpack.c.b16 %v882, %v881
      %v1009 = vpack.c.b16 %v884, %v883
      %v1010 = vpack.c.b16 %v886, %v885
      %v1011 = vpack.c.b16 %v888, %v887
      %v1012 = vpack.c.b16 %v890, %v889
      %v1013 = vpack.c.b16 %v892, %v891
      %v1014 = vpack.c.b16 %v894, %v893
      %v1015 = vpack.c.b16 %v896, %v895
      %v1016 = vpack.c.b16 %v898, %v897
      %v1017 = vpack.c.b16 %v900, %v899
      %v1018 = vpack.c.b16 %v902, %v901
      %v1019 = vpack.c.b16 %v904, %v903
      %v1020 = vpack.c.b16 %v906, %v905
      %v1021 = vpack.c.b16 %v908, %v907
      %v1022 = vpack.c.b16 %v910, %v909
      %v1023 = vpack.c.b16 %v912, %v911
      %v1024 = vpack.c.b16 %v914, %v913
      %v1025 = vpack.c.b16 %v916, %v915
      %v1026 = vpack.c.b16 %v918, %v917
      %v1027 = vpack.c.b16 %v920, %v919
      %v1028 = vpack.c.b16 %v922, %v921
      %v1029 = vpack.c.b16 %v924, %v923
      %v1030 = vpack.c.b16 %v926, %v925
      %v1031 = vpack.c.b16 %v928, %v927
      %v1032 = vpack.c.b16 %v930, %v929
      %v1033 = vpack.c.b16 %v932, %v931
      %v1034 = vpack.c.b16 %v934, %v933
      %v1035 = vpack.c.b16 %v936, %v935
      %v1036 = vpack.c.b16 %v938, %v937
      %v1037 = vpack.c.b16 %v940, %v939
      %v1038 = vpack.c.b16 %v942, %v941
      %v1039 = vpack.c.b16 %v944, %v943
      %v1040 = vpack.c.b16 %v946, %v945
      %v1041 = vpack.c.b16 %v948, %v947
      %v1042 = vpack.c.b16 %v950, %v949
      %v1043 = vpack.c.b16 %v952, %v951
      %v1044 = vpack.c.b16 %v954, %v953
      %v1045 = vpack.c.b16 %v956, %v955
      %v1046 = vpack.c.b16 %v958, %v957
      %v1047 = vpack.c.b16 %v960, %v959
      %v1048 = vpack.c.b16 %v962, %v961
      %v1049 = vpack.c.b16 %v964, %v963
      %v1050 = vpack.c.b16 %v966, %v965
      %v1051 = vpack.c.b16 %v968, %v967
      %v1052 = vpack.c.b16 %v970, %v969
      %v1053 = vpack.c.b16 %v972, %v971
      %v1054 = vpack.c.b16 %v974, %v973
      %v1055 = vpack.c.b16 %v976, %v975
      %v1056 = vpack.c.b16 %v978, %v977
      %v1057 = vpack.c.b16 %v980, %v979
      %v1058 = vpack.c.b16 %v982, %v981
      %v1059 = vpack.c.b16 %v984, %v983
      %v1060 = vpack.c.b16 %v986, %v985
      %v1061 = vpack.c.b16 %v988, %v987
      %v1062 = vpack.c.b16 %v990, %v989
      %v1063 = vpack.c.b16 %v992, %v991
      %v1064 = vpack.c.b16 %v994, %v993
      %v1065 = vpack.c.b16 %v996, %v995
      %v1066 = vpack.c.b16 %v998, %v997
      %v1067 = vpack.c.b16 %v1000, %v999
      %v1068 = vpack.c.b16 %v1002, %v1001
      %v1069 = vpack.c.b16 %v1004, %v1003
      %v1070 = vpack.c.b16 %v1006, %v1005
      %v1073 = vunpack.c.l.b16 %v742
      %v1074 = vunpack.c.l.b16 %v743
      %v1075 = vpack.c.b16 %v1074, %v1073
      %v1078 = vsel %vm357, %v1007, 0
      %v1081 = vsel %vm357, %v1008, 0
      %v1084 = vsel %vm357, %v1009, 0
      %v1087 = vsel %vm357, %v1010, 0
      %v1090 = vsel %vm357, %v1011, 0
      %v1093 = vsel %vm357, %v1012, 0
      %v1096 = vsel %vm357, %v1013, 0
      %v1099 = vsel %vm357, %v1014, 0
      %v1102 = vsel %vm357, %v1015, 0
      %v1105 = vsel %vm357, %v1016, 0
      %v1108 = vsel %vm357, %v1017, 0
      %v1111 = vsel %vm357, %v1018, 0
      %v1114 = vsel %vm357, %v1019, 0
      %v1117 = vsel %vm357, %v1020, 0
      %v1120 = vsel %vm357, %v1021, 0
      %v1123 = vsel %vm357, %v1022, 0
      %v1126 = vsel %vm357, %v1023, 0
      %v1129 = vsel %vm357, %v1024, 0
      %v1132 = vsel %vm357, %v1025, 0
      %v1135 = vsel %vm357, %v1026, 0
      %v1138 = vsel %vm357, %v1027, 0
      %v1141 = vsel %vm357, %v1028, 0
      %v1144 = vsel %vm357, %v1029, 0
      %v1147 = vsel %vm357, %v1030, 0
      %v1150 = vsel %vm357, %v1031, 0
      %v1153 = vsel %vm357, %v1032, 0
      %v1156 = vsel %vm357, %v1033, 0
      %v1159 = vsel %vm357, %v1034, 0
      %v1162 = vsel %vm357, %v1035, 0
      %v1165 = vsel %vm357, %v1036, 0
      %v1168 = vsel %vm357, %v1037, 0
      %v1171 = vsel %vm357, %v1038, 0
      %v1174 = vsel %vm357, %v1039, 0
      %v1177 = vsel %vm357, %v1040, 0
      %v1180 = vsel %vm357, %v1041, 0
      %v1183 = vsel %vm357, %v1042, 0
      %v1186 = vsel %vm357, %v1043, 0
      %v1189 = vsel %vm357, %v1044, 0
      %v1192 = vsel %vm357, %v1045, 0
      %v1195 = vsel %vm357, %v1046, 0
      %v1198 = vsel %vm357, %v1047, 0
      %v1201 = vsel %vm357, %v1048, 0
      %v1204 = vsel %vm357, %v1049, 0
      %v1207 = vsel %vm357, %v1050, 0
      %v1210 = vsel %vm357, %v1051, 0
      %v1213 = vsel %vm357, %v1052, 0
      %v1216 = vsel %vm357, %v1053, 0
      %v1219 = vsel %vm357, %v1054, 0
      %v1222 = vsel %vm357, %v1055, 0
      %v1225 = vsel %vm357, %v1056, 0
      %v1228 = vsel %vm357, %v1057, 0
      %v1231 = vsel %vm357, %v1058, 0
      %v1234 = vsel %vm357, %v1059, 0
      %v1237 = vsel %vm357, %v1060, 0
      %v1240 = vsel %vm357, %v1061, 0
      %v1243 = vsel %vm357, %v1062, 0
      %v1246 = vsel %vm357, %v1063, 0
      %v1249 = vsel %vm357, %v1064, 0
      %v1252 = vsel %vm357, %v1065, 0
      %v1255 = vsel %vm357, %v1066, 0
      %v1258 = vsel %vm357, %v1067, 0
      %v1261 = vsel %vm357, %v1068, 0
      %v1264 = vsel %vm357, %v1069, 0
      %v1267 = vsel %vm357, %v1070, 0
      %1269 = vmatprep.subr.bf16.mxu0 0
      %1270 = vmatpush1.bf16.msra.mxu0 %v1075
      %1271 = vmatprep.subr.bf16.mxu0 0
      %1272 = vmatpush1.bf16.msra.mxu0 0
      %1273 = vmatprep.subr.bf16.mxu0 0
      %1274 = vmatpush1.bf16.msra.mxu0 0
      %1275 = vmatprep.subr.bf16.mxu0 0
      %1276 = vmatpush1.bf16.msra.mxu0 0
      %1277 = vmatprep.subr.bf16.mxu0 0
      %1278 = vmatpush1.bf16.msra.mxu0 0
      %1279 = vmatprep.subr.bf16.mxu0 0
      %1280 = vmatpush1.bf16.msra.mxu0 0
      %1281 = vmatprep.subr.bf16.mxu0 0
      %1282 = vmatpush1.bf16.msra.mxu0 0
      %1283 = vmatprep.subr.bf16.mxu0 0
      %1284 = vmatpush1.bf16.msra.mxu0 0
      %1285 = vmatprep.subr.bf16.mxu0 0
      %1286 = vmatpush1.bf16.msra.mxu0 0
      %1287 = vmatprep.subr.bf16.mxu0 0
      %1288 = vmatpush1.bf16.msra.mxu0 0
      %1289 = vmatprep.subr.bf16.mxu0 0
      %1290 = vmatpush1.bf16.msra.mxu0 0
      %1291 = vmatprep.subr.bf16.mxu0 0
      %1292 = vmatpush1.bf16.msra.mxu0 0
      %1293 = vmatprep.subr.bf16.mxu0 0
      %1294 = vmatpush1.bf16.msra.mxu0 0
      %1295 = vmatprep.subr.bf16.mxu0 0
      %1296 = vmatpush1.bf16.msra.mxu0 0
      %1297 = vmatprep.subr.bf16.mxu0 0
      %1298 = vmatpush1.bf16.msra.mxu0 0
      %1299 = vmatprep.subr.bf16.mxu0 0
      %1300 = vmatpush1.bf16.msra.mxu0 0
      %1301 = vmatprep.mubr.bf16.mxu0 0
      %1302 = vmatmul.mubr.bf16.gmra.mrb[0].mxu0 %v1078
      %v1303 = vpop.f32.mrb[0].mxu0
      %v1304 = vadd.f32 %v749, %v1303
      %v1305 = vpop.f32.mrb[0].mxu0
      %v1306 = vpop.f32.mrb[0].mxu0
      %v1307 = vadd.f32 %v749, %v1306
      %v1308 = vpop.f32.mrb[0].mxu0
      %1309 = vmatprep.mubr.bf16.mxu0 0
      %1310 = vmatmul.mubr.bf16.gmra.mrb[0].mxu0 %v1081
      %v1311 = vpop.f32.mrb[0].mxu0
      %v1312 = vadd.f32 %v749, %v1311
      %v1313 = vpop.f32.mrb[0].mxu0
      %v1314 = vpop.f32.mrb[0].mxu0
      %v1315 = vadd.f32 %v749, %v1314
      %v1316 = vpop.f32.mrb[0].mxu0
      %1317 = vmatprep.mubr.bf16.mxu0 0
      %1318 = vmatmul.mubr.bf16.gmra.mrb[0].mxu0 %v1084
      %v1319 = vpop.f32.mrb[0].mxu0
      %v1320 = vadd.f32 %v749, %v1319
      %v1321 = vpop.f32.mrb[0].mxu0
      %v1322 = vpop.f32.mrb[0].mxu0
      %v1323 = vadd.f32 %v749, %v1322
      %v1324 = vpop.f32.mrb[0].mxu0
      %1325 = vmatprep.mubr.bf16.mxu0 0
      %1326 = vmatmul.mubr.bf16.gmra.mrb[0].mxu0 %v1087
      %v1327 = vpop.f32.mrb[0].mxu0
      %v1328 = vadd.f32 %v749, %v1327
      %v1329 = vpop.f32.mrb[0].mxu0
      %v1330 = vpop.f32.mrb[0].mxu0
      %v1331 = vadd.f32 %v749, %v1330
      %v1332 = vpop.f32.mrb[0].mxu0
      %1333 = vmatprep.mubr.bf16.mxu0 0
      %1334 = vmatmul.mubr.bf16.gmra.mrb[0].mxu0 %v1090
      %v1335 = vpop.f32.mrb[0].mxu0
      %v1336 = vadd.f32 %v749, %v1335
      %v1337 = vpop.f32.mrb[0].mxu0
      %v1338 = vpop.f32.mrb[0].mxu0
      %v1339 = vadd.f32 %v749, %v1338
      %v1340 = vpop.f32.mrb[0].mxu0
      %1341 = vmatprep.mubr.bf16.mxu0 0
      %1342 = vmatmul.mubr.bf16.gmra.mrb[0].mxu0 %v1093
      %v1343 = vpop.f32.mrb[0].mxu0
      %v1344 = vadd.f32 %v749, %v1343
      %v1345 = vpop.f32.mrb[0].mxu0
      %v1346 = vpop.f32.mrb[0].mxu0
      %v1347 = vadd.f32 %v749, %v1346
      %v1348 = vpop.f32.mrb[0].mxu0
      %1349 = vmatprep.mubr.bf16.mxu0 0
      %1350 = vmatmul.mubr.bf16.gmra.mrb[0].mxu0 %v1096
      %v1351 = vpop.f32.mrb[0].mxu0
      %v1352 = vadd.f32 %v749, %v1351
      %v1353 = vpop.f32.mrb[0].mxu0
      %v1354 = vpop.f32.mrb[0].mxu0
      %v1355 = vadd.f32 %v749, %v1354
      %v1356 = vpop.f32.mrb[0].mxu0
      %1357 = vmatprep.mubr.bf16.mxu0 0
      %1358 = vmatmul.mubr.bf16.gmra.mrb[0].mxu0 %v1099
      %v1359 = vpop.f32.mrb[0].mxu0
      %v1360 = vadd.f32 %v749, %v1359
      %v1361 = vpop.f32.mrb[0].mxu0
      %v1362 = vpop.f32.mrb[0].mxu0
      %v1363 = vadd.f32 %v749, %v1362
      %v1364 = vpop.f32.mrb[0].mxu0
      %1365 = vmatprep.mubr.bf16.mxu0 0
      %1366 = vmatmul.mubr.bf16.gmra.mrb[0].mxu0 %v1102
      %v1367 = vpop.f32.mrb[0].mxu0
      %v1368 = vadd.f32 %v749, %v1367
      %v1369 = vpop.f32.mrb[0].mxu0
      %v1370 = vpop.f32.mrb[0].mxu0
      %v1371 = vadd.f32 %v749, %v1370
      %v1372 = vpop.f32.mrb[0].mxu0
      %1373 = vmatprep.mubr.bf16.mxu0 0
      %1374 = vmatmul.mubr.bf16.gmra.mrb[0].mxu0 %v1105
      %v1375 = vpop.f32.mrb[0].mxu0
      %v1376 = vadd.f32 %v749, %v1375
      %v1377 = vpop.f32.mrb[0].mxu0
      %v1378 = vpop.f32.mrb[0].mxu0
      %v1379 = vadd.f32 %v749, %v1378
      %v1380 = vpop.f32.mrb[0].mxu0
      %1381 = vmatprep.mubr.bf16.mxu0 0
      %1382 = vmatmul.mubr.bf16.gmra.mrb[0].mxu0 %v1108
      %v1383 = vpop.f32.mrb[0].mxu0
      %v1384 = vadd.f32 %v749, %v1383
      %v1385 = vpop.f32.mrb[0].mxu0
      %v1386 = vpop.f32.mrb[0].mxu0
      %v1387 = vadd.f32 %v749, %v1386
      %v1388 = vpop.f32.mrb[0].mxu0
      %1389 = vmatprep.mubr.bf16.mxu0 0
      %1390 = vmatmul.mubr.bf16.gmra.mrb[0].mxu0 %v1111
      %v1391 = vpop.f32.mrb[0].mxu0
      %v1392 = vadd.f32 %v749, %v1391
      %v1393 = vpop.f32.mrb[0].mxu0
      %v1394 = vpop.f32.mrb[0].mxu0
      %v1395 = vadd.f32 %v749, %v1394
      %v1396 = vpop.f32.mrb[0].mxu0
      %1397 = vmatprep.mubr.bf16.mxu0 0
      %1398 = vmatmul.mubr.bf16.gmra.mrb[0].mxu0 %v1114
      %v1399 = vpop.f32.mrb[0].mxu0
      %v1400 = vadd.f32 %v749, %v1399
      %v1401 = vpop.f32.mrb[0].mxu0
      %v1402 = vpop.f32.mrb[0].mxu0
      %v1403 = vadd.f32 %v749, %v1402
      %v1404 = vpop.f32.mrb[0].mxu0
      %1405 = vmatprep.mubr.bf16.mxu0 0
      %1406 = vmatmul.mubr.bf16.gmra.mrb[0].mxu0 %v1117
      %v1407 = vpop.f32.mrb[0].mxu0
      %v1408 = vadd.f32 %v749, %v1407
      %v1409 = vpop.f32.mrb[0].mxu0
      %v1410 = vpop.f32.mrb[0].mxu0
      %v1411 = vadd.f32 %v749, %v1410
      %v1412 = vpop.f32.mrb[0].mxu0
      %1413 = vmatprep.mubr.bf16.mxu0 0
      %1414 = vmatmul.mubr.bf16.gmra.mrb[0].mxu0 %v1120
      %v1415 = vpop.f32.mrb[0].mxu0
      %v1416 = vadd.f32 %v749, %v1415
      %v1417 = vpop.f32.mrb[0].mxu0
      %v1418 = vpop.f32.mrb[0].mxu0
      %v1419 = vadd.f32 %v749, %v1418
      %v1420 = vpop.f32.mrb[0].mxu0
      %1421 = vmatprep.mubr.bf16.mxu0 0
      %1422 = vmatmul.mubr.bf16.gmra.mrb[0].mxu0 %v1123
      %v1423 = vpop.f32.mrb[0].mxu0
      %v1424 = vadd.f32 %v749, %v1423
      %v1425 = vpop.f32.mrb[0].mxu0
      %v1426 = vpop.f32.mrb[0].mxu0
      %v1427 = vadd.f32 %v749, %v1426
      %v1428 = vpop.f32.mrb[0].mxu0
      %1429 = vmatprep.mubr.bf16.mxu0 0
      %1430 = vmatmul.mubr.bf16.gmra.mrb[0].mxu0 %v1126
      %v1431 = vpop.f32.mrb[0].mxu0
      %v1432 = vadd.f32 %v749, %v1431
      %v1433 = vpop.f32.mrb[0].mxu0
      %v1434 = vpop.f32.mrb[0].mxu0
      %v1435 = vadd.f32 %v749, %v1434
      %v1436 = vpop.f32.mrb[0].mxu0
      %1437 = vmatprep.mubr.bf16.mxu0 0
      %1438 = vmatmul.mubr.bf16.gmra.mrb[0].mxu0 %v1129
      %v1439 = vpop.f32.mrb[0].mxu0
      %v1440 = vadd.f32 %v749, %v1439
      %v1441 = vpop.f32.mrb[0].mxu0
      %v1442 = vpop.f32.mrb[0].mxu0
      %v1443 = vadd.f32 %v749, %v1442
      %v1444 = vpop.f32.mrb[0].mxu0
      %1445 = vmatprep.mubr.bf16.mxu0 0
      %1446 = vmatmul.mubr.bf16.gmra.mrb[0].mxu0 %v1132
      %v1447 = vpop.f32.mrb[0].mxu0
      %v1448 = vadd.f32 %v749, %v1447
      %v1449 = vpop.f32.mrb[0].mxu0
      %v1450 = vpop.f32.mrb[0].mxu0
      %v1451 = vadd.f32 %v749, %v1450
      %v1452 = vpop.f32.mrb[0].mxu0
      %1453 = vmatprep.mubr.bf16.mxu0 0
      %1454 = vmatmul.mubr.bf16.gmra.mrb[0].mxu0 %v1135
      %v1455 = vpop.f32.mrb[0].mxu0
      %v1456 = vadd.f32 %v749, %v1455
      %v1457 = vpop.f32.mrb[0].mxu0
      %v1458 = vpop.f32.mrb[0].mxu0
      %v1459 = vadd.f32 %v749, %v1458
      %v1460 = vpop.f32.mrb[0].mxu0
      %1461 = vmatprep.mubr.bf16.mxu0 0
      %1462 = vmatmul.mubr.bf16.gmra.mrb[0].mxu0 %v1138
      %v1463 = vpop.f32.mrb[0].mxu0
      %v1464 = vadd.f32 %v749, %v1463
      %v1465 = vpop.f32.mrb[0].mxu0
      %v1466 = vpop.f32.mrb[0].mxu0
      %v1467 = vadd.f32 %v749, %v1466
      %v1468 = vpop.f32.mrb[0].mxu0
      %1469 = vmatprep.mubr.bf16.mxu0 0
      %1470 = vmatmul.mubr.bf16.gmra.mrb[0].mxu0 %v1141
      %v1471 = vpop.f32.mrb[0].mxu0
      %v1472 = vadd.f32 %v749, %v1471
      %v1473 = vpop.f32.mrb[0].mxu0
      %v1474 = vpop.f32.mrb[0].mxu0
      %v1475 = vadd.f32 %v749, %v1474
      %v1476 = vpop.f32.mrb[0].mxu0
      %1477 = vmatprep.mubr.bf16.mxu0 0
      %1478 = vmatmul.mubr.bf16.gmra.mrb[0].mxu0 %v1144
      %v1479 = vpop.f32.mrb[0].mxu0
      %v1480 = vadd.f32 %v749, %v1479
      %v1481 = vpop.f32.mrb[0].mxu0
      %v1482 = vpop.f32.mrb[0].mxu0
      %v1483 = vadd.f32 %v749, %v1482
      %v1484 = vpop.f32.mrb[0].mxu0
      %1485 = vmatprep.mubr.bf16.mxu0 0
      %1486 = vmatmul.mubr.bf16.gmra.mrb[0].mxu0 %v1147
      %v1487 = vpop.f32.mrb[0].mxu0
      %v1488 = vadd.f32 %v749, %v1487
      %v1489 = vpop.f32.mrb[0].mxu0
      %v1490 = vpop.f32.mrb[0].mxu0
      %v1491 = vadd.f32 %v749, %v1490
      %v1492 = vpop.f32.mrb[0].mxu0
      %1493 = vmatprep.mubr.bf16.mxu0 0
      %1494 = vmatmul.mubr.bf16.gmra.mrb[0].mxu0 %v1150
      %v1495 = vpop.f32.mrb[0].mxu0
      %v1496 = vadd.f32 %v749, %v1495
      %v1497 = vpop.f32.mrb[0].mxu0
      %v1498 = vpop.f32.mrb[0].mxu0
      %v1499 = vadd.f32 %v749, %v1498
      %v1500 = vpop.f32.mrb[0].mxu0
      %1501 = vmatprep.mubr.bf16.mxu0 0
      %1502 = vmatmul.mubr.bf16.gmra.mrb[0].mxu0 %v1153
      %v1503 = vpop.f32.mrb[0].mxu0
      %v1504 = vadd.f32 %v749, %v1503
      %v1505 = vpop.f32.mrb[0].mxu0
      %v1506 = vpop.f32.mrb[0].mxu0
      %v1507 = vadd.f32 %v749, %v1506
      %v1508 = vpop.f32.mrb[0].mxu0
      %1509 = vmatprep.mubr.bf16.mxu0 0
      %1510 = vmatmul.mubr.bf16.gmra.mrb[0].mxu0 %v1156
      %v1511 = vpop.f32.mrb[0].mxu0
      %v1512 = vadd.f32 %v749, %v1511
      %v1513 = vpop.f32.mrb[0].mxu0
      %v1514 = vpop.f32.mrb[0].mxu0
      %v1515 = vadd.f32 %v749, %v1514
      %v1516 = vpop.f32.mrb[0].mxu0
      %1517 = vmatprep.mubr.bf16.mxu0 0
      %1518 = vmatmul.mubr.bf16.gmra.mrb[0].mxu0 %v1159
      %v1519 = vpop.f32.mrb[0].mxu0
      %v1520 = vadd.f32 %v749, %v1519
      %v1521 = vpop.f32.mrb[0].mxu0
      %v1522 = vpop.f32.mrb[0].mxu0
      %v1523 = vadd.f32 %v749, %v1522
      %v1524 = vpop.f32.mrb[0].mxu0
      %1525 = vmatprep.mubr.bf16.mxu0 0
      %1526 = vmatmul.mubr.bf16.gmra.mrb[0].mxu0 %v1162
      %v1527 = vpop.f32.mrb[0].mxu0
      %v1528 = vadd.f32 %v749, %v1527
      %v1529 = vpop.f32.mrb[0].mxu0
      %v1530 = vpop.f32.mrb[0].mxu0
      %v1531 = vadd.f32 %v749, %v1530
      %v1532 = vpop.f32.mrb[0].mxu0
      %1533 = vmatprep.mubr.bf16.mxu0 0
      %1534 = vmatmul.mubr.bf16.gmra.mrb[0].mxu0 %v1165
      %v1535 = vpop.f32.mrb[0].mxu0
      %v1536 = vadd.f32 %v749, %v1535
      %v1537 = vpop.f32.mrb[0].mxu0
      %v1538 = vpop.f32.mrb[0].mxu0
      %v1539 = vadd.f32 %v749, %v1538
      %v1540 = vpop.f32.mrb[0].mxu0
      %1541 = vmatprep.mubr.bf16.mxu0 0
      %1542 = vmatmul.mubr.bf16.gmra.mrb[0].mxu0 %v1168
      %v1543 = vpop.f32.mrb[0].mxu0
      %v1544 = vadd.f32 %v749, %v1543
      %v1545 = vpop.f32.mrb[0].mxu0
      %v1546 = vpop.f32.mrb[0].mxu0
      %v1547 = vadd.f32 %v749, %v1546
      %v1548 = vpop.f32.mrb[0].mxu0
      %1549 = vmatprep.mubr.bf16.mxu0 0
      %1550 = vmatmul.mubr.bf16.gmra.mrb[0].mxu0 %v1171
      %v1551 = vpop.f32.mrb[0].mxu0
      %v1552 = vadd.f32 %v749, %v1551
      %v1553 = vpop.f32.mrb[0].mxu0
      %v1554 = vpop.f32.mrb[0].mxu0
      %v1555 = vadd.f32 %v749, %v1554
      %v1556 = vpop.f32.mrb[0].mxu0
      %1557 = vmatprep.mubr.bf16.mxu0 0
      %1558 = vmatmul.mubr.bf16.gmra.mrb[0].mxu0 %v1174
      %v1559 = vpop.f32.mrb[0].mxu0
      %v1560 = vadd.f32 %v749, %v1559
      %v1561 = vpop.f32.mrb[0].mxu0
      %v1562 = vpop.f32.mrb[0].mxu0
      %v1563 = vadd.f32 %v749, %v1562
      %v1564 = vpop.f32.mrb[0].mxu0
      %1565 = vmatprep.mubr.bf16.mxu0 0
      %1566 = vmatmul.mubr.bf16.gmra.mrb[0].mxu0 %v1177
      %v1567 = vpop.f32.mrb[0].mxu0
      %v1568 = vadd.f32 %v749, %v1567
      %v1569 = vpop.f32.mrb[0].mxu0
      %v1570 = vpop.f32.mrb[0].mxu0
      %v1571 = vadd.f32 %v749, %v1570
      %v1572 = vpop.f32.mrb[0].mxu0
      %1573 = vmatprep.mubr.bf16.mxu0 0
      %1574 = vmatmul.mubr.bf16.gmra.mrb[0].mxu0 %v1180
      %v1575 = vpop.f32.mrb[0].mxu0
      %v1576 = vadd.f32 %v749, %v1575
      %v1577 = vpop.f32.mrb[0].mxu0
      %v1578 = vpop.f32.mrb[0].mxu0
      %v1579 = vadd.f32 %v749, %v1578
      %v1580 = vpop.f32.mrb[0].mxu0
      %1581 = vmatprep.mubr.bf16.mxu0 0
      %1582 = vmatmul.mubr.bf16.gmra.mrb[0].mxu0 %v1183
      %v1583 = vpop.f32.mrb[0].mxu0
      %v1584 = vadd.f32 %v749, %v1583
      %v1585 = vpop.f32.mrb[0].mxu0
      %v1586 = vpop.f32.mrb[0].mxu0
      %v1587 = vadd.f32 %v749, %v1586
      %v1588 = vpop.f32.mrb[0].mxu0
      %1589 = vmatprep.mubr.bf16.mxu0 0
      %1590 = vmatmul.mubr.bf16.gmra.mrb[0].mxu0 %v1186
      %v1591 = vpop.f32.mrb[0].mxu0
      %v1592 = vadd.f32 %v749, %v1591
      %v1593 = vpop.f32.mrb[0].mxu0
      %v1594 = vpop.f32.mrb[0].mxu0
      %v1595 = vadd.f32 %v749, %v1594
      %v1596 = vpop.f32.mrb[0].mxu0
      %1597 = vmatprep.mubr.bf16.mxu0 0
      %1598 = vmatmul.mubr.bf16.gmra.mrb[0].mxu0 %v1189
      %v1599 = vpop.f32.mrb[0].mxu0
      %v1600 = vadd.f32 %v749, %v1599
      %v1601 = vpop.f32.mrb[0].mxu0
      %v1602 = vpop.f32.mrb[0].mxu0
      %v1603 = vadd.f32 %v749, %v1602
      %v1604 = vpop.f32.mrb[0].mxu0
      %1605 = vmatprep.mubr.bf16.mxu0 0
      %1606 = vmatmul.mubr.bf16.gmra.mrb[0].mxu0 %v1192
      %v1607 = vpop.f32.mrb[0].mxu0
      %v1608 = vadd.f32 %v749, %v1607
      %v1609 = vpop.f32.mrb[0].mxu0
      %v1610 = vpop.f32.mrb[0].mxu0
      %v1611 = vadd.f32 %v749, %v1610
      %v1612 = vpop.f32.mrb[0].mxu0
      %1613 = vmatprep.mubr.bf16.mxu0 0
      %1614 = vmatmul.mubr.bf16.gmra.mrb[0].mxu0 %v1195
      %v1615 = vpop.f32.mrb[0].mxu0
      %v1616 = vadd.f32 %v749, %v1615
      %v1617 = vpop.f32.mrb[0].mxu0
      %v1618 = vpop.f32.mrb[0].mxu0
      %v1619 = vadd.f32 %v749, %v1618
      %v1620 = vpop.f32.mrb[0].mxu0
      %1621 = vmatprep.mubr.bf16.mxu0 0
      %1622 = vmatmul.mubr.bf16.gmra.mrb[0].mxu0 %v1198
      %v1623 = vpop.f32.mrb[0].mxu0
      %v1624 = vadd.f32 %v749, %v1623
      %v1625 = vpop.f32.mrb[0].mxu0
      %v1626 = vpop.f32.mrb[0].mxu0
      %v1627 = vadd.f32 %v749, %v1626
      %v1628 = vpop.f32.mrb[0].mxu0
      %1629 = vmatprep.mubr.bf16.mxu0 0
      %1630 = vmatmul.mubr.bf16.gmra.mrb[0].mxu0 %v1201
      %v1631 = vpop.f32.mrb[0].mxu0
      %v1632 = vadd.f32 %v749, %v1631
      %v1633 = vpop.f32.mrb[0].mxu0
      %v1634 = vpop.f32.mrb[0].mxu0
      %v1635 = vadd.f32 %v749, %v1634
      %v1636 = vpop.f32.mrb[0].mxu0
      %1637 = vmatprep.mubr.bf16.mxu0 0
      %1638 = vmatmul.mubr.bf16.gmra.mrb[0].mxu0 %v1204
      %v1639 = vpop.f32.mrb[0].mxu0
      %v1640 = vadd.f32 %v749, %v1639
      %v1641 = vpop.f32.mrb[0].mxu0
      %v1642 = vpop.f32.mrb[0].mxu0
      %v1643 = vadd.f32 %v749, %v1642
      %v1644 = vpop.f32.mrb[0].mxu0
      %1645 = vmatprep.mubr.bf16.mxu0 0
      %1646 = vmatmul.mubr.bf16.gmra.mrb[0].mxu0 %v1207
      %v1647 = vpop.f32.mrb[0].mxu0
      %v1648 = vadd.f32 %v749, %v1647
      %v1649 = vpop.f32.mrb[0].mxu0
      %v1650 = vpop.f32.mrb[0].mxu0
      %v1651 = vadd.f32 %v749, %v1650
      %v1652 = vpop.f32.mrb[0].mxu0
      %1653 = vmatprep.mubr.bf16.mxu0 0
      %1654 = vmatmul.mubr.bf16.gmra.mrb[0].mxu0 %v1210
      %v1655 = vpop.f32.mrb[0].mxu0
      %v1656 = vadd.f32 %v749, %v1655
      %v1657 = vpop.f32.mrb[0].mxu0
      %v1658 = vpop.f32.mrb[0].mxu0
      %v1659 = vadd.f32 %v749, %v1658
      %v1660 = vpop.f32.mrb[0].mxu0
      %1661 = vmatprep.mubr.bf16.mxu0 0
      %1662 = vmatmul.mubr.bf16.gmra.mrb[0].mxu0 %v1213
      %v1663 = vpop.f32.mrb[0].mxu0
      %v1664 = vadd.f32 %v749, %v1663
      %v1665 = vpop.f32.mrb[0].mxu0
      %v1666 = vpop.f32.mrb[0].mxu0
      %v1667 = vadd.f32 %v749, %v1666
      %v1668 = vpop.f32.mrb[0].mxu0
      %1669 = vmatprep.mubr.bf16.mxu0 0
      %1670 = vmatmul.mubr.bf16.gmra.mrb[0].mxu0 %v1216
      %v1671 = vpop.f32.mrb[0].mxu0
      %v1672 = vadd.f32 %v749, %v1671
      %v1673 = vpop.f32.mrb[0].mxu0
      %v1674 = vpop.f32.mrb[0].mxu0
      %v1675 = vadd.f32 %v749, %v1674
      %v1676 = vpop.f32.mrb[0].mxu0
      %1677 = vmatprep.mubr.bf16.mxu0 0
      %1678 = vmatmul.mubr.bf16.gmra.mrb[0].mxu0 %v1219
      %v1679 = vpop.f32.mrb[0].mxu0
      %v1680 = vadd.f32 %v749, %v1679
      %v1681 = vpop.f32.mrb[0].mxu0
      %v1682 = vpop.f32.mrb[0].mxu0
      %v1683 = vadd.f32 %v749, %v1682
      %v1684 = vpop.f32.mrb[0].mxu0
      %1685 = vmatprep.mubr.bf16.mxu0 0
      %1686 = vmatmul.mubr.bf16.gmra.mrb[0].mxu0 %v1222
      %v1687 = vpop.f32.mrb[0].mxu0
      %v1688 = vadd.f32 %v749, %v1687
      %v1689 = vpop.f32.mrb[0].mxu0
      %v1690 = vpop.f32.mrb[0].mxu0
      %v1691 = vadd.f32 %v749, %v1690
      %v1692 = vpop.f32.mrb[0].mxu0
      %1693 = vmatprep.mubr.bf16.mxu0 0
      %1694 = vmatmul.mubr.bf16.gmra.mrb[0].mxu0 %v1225
      %v1695 = vpop.f32.mrb[0].mxu0
      %v1696 = vadd.f32 %v749, %v1695
      %v1697 = vpop.f32.mrb[0].mxu0
      %v1698 = vpop.f32.mrb[0].mxu0
      %v1699 = vadd.f32 %v749, %v1698
      %v1700 = vpop.f32.mrb[0].mxu0
      %1701 = vmatprep.mubr.bf16.mxu0 0
      %1702 = vmatmul.mubr.bf16.gmra.mrb[0].mxu0 %v1228
      %v1703 = vpop.f32.mrb[0].mxu0
      %v1704 = vadd.f32 %v749, %v1703
      %v1705 = vpop.f32.mrb[0].mxu0
      %v1706 = vpop.f32.mrb[0].mxu0
      %v1707 = vadd.f32 %v749, %v1706
      %v1708 = vpop.f32.mrb[0].mxu0
      %1709 = vmatprep.mubr.bf16.mxu0 0
      %1710 = vmatmul.mubr.bf16.gmra.mrb[0].mxu0 %v1231
      %v1711 = vpop.f32.mrb[0].mxu0
      %v1712 = vadd.f32 %v749, %v1711
      %v1713 = vpop.f32.mrb[0].mxu0
      %v1714 = vpop.f32.mrb[0].mxu0
      %v1715 = vadd.f32 %v749, %v1714
      %v1716 = vpop.f32.mrb[0].mxu0
      %1717 = vmatprep.mubr.bf16.mxu0 0
      %1718 = vmatmul.mubr.bf16.gmra.mrb[0].mxu0 %v1234
      %v1719 = vpop.f32.mrb[0].mxu0
      %v1720 = vadd.f32 %v749, %v1719
      %v1721 = vpop.f32.mrb[0].mxu0
      %v1722 = vpop.f32.mrb[0].mxu0
      %v1723 = vadd.f32 %v749, %v1722
      %v1724 = vpop.f32.mrb[0].mxu0
      %1725 = vmatprep.mubr.bf16.mxu0 0
      %1726 = vmatmul.mubr.bf16.gmra.mrb[0].mxu0 %v1237
      %v1727 = vpop.f32.mrb[0].mxu0
      %v1728 = vadd.f32 %v749, %v1727
      %v1729 = vpop.f32.mrb[0].mxu0
      %v1730 = vpop.f32.mrb[0].mxu0
      %v1731 = vadd.f32 %v749, %v1730
      %v1732 = vpop.f32.mrb[0].mxu0
      %1733 = vmatprep.mubr.bf16.mxu0 0
      %1734 = vmatmul.mubr.bf16.gmra.mrb[0].mxu0 %v1240
      %v1735 = vpop.f32.mrb[0].mxu0
      %v1736 = vadd.f32 %v749, %v1735
      %v1737 = vpop.f32.mrb[0].mxu0
      %v1738 = vpop.f32.mrb[0].mxu0
      %v1739 = vadd.f32 %v749, %v1738
      %v1740 = vpop.f32.mrb[0].mxu0
      %1741 = vmatprep.mubr.bf16.mxu0 0
      %1742 = vmatmul.mubr.bf16.gmra.mrb[0].mxu0 %v1243
      %v1743 = vpop.f32.mrb[0].mxu0
      %v1744 = vadd.f32 %v749, %v1743
      %v1745 = vpop.f32.mrb[0].mxu0
      %v1746 = vpop.f32.mrb[0].mxu0
      %v1747 = vadd.f32 %v749, %v1746
      %v1748 = vpop.f32.mrb[0].mxu0
      %1749 = vmatprep.mubr.bf16.mxu0 0
      %1750 = vmatmul.mubr.bf16.gmra.mrb[0].mxu0 %v1246
      %v1751 = vpop.f32.mrb[0].mxu0
      %v1752 = vadd.f32 %v749, %v1751
      %v1753 = vpop.f32.mrb[0].mxu0
      %v1754 = vpop.f32.mrb[0].mxu0
      %v1755 = vadd.f32 %v749, %v1754
      %v1756 = vpop.f32.mrb[0].mxu0
      %1757 = vmatprep.mubr.bf16.mxu0 0
      %1758 = vmatmul.mubr.bf16.gmra.mrb[0].mxu0 %v1249
      %v1759 = vpop.f32.mrb[0].mxu0
      %v1760 = vadd.f32 %v749, %v1759
      %v1761 = vpop.f32.mrb[0].mxu0
      %v1762 = vpop.f32.mrb[0].mxu0
      %v1763 = vadd.f32 %v749, %v1762
      %v1764 = vpop.f32.mrb[0].mxu0
      %1765 = vmatprep.mubr.bf16.mxu0 0
      %1766 = vmatmul.mubr.bf16.gmra.mrb[0].mxu0 %v1252
      %v1767 = vpop.f32.mrb[0].mxu0
      %v1768 = vadd.f32 %v749, %v1767
      %v1769 = vpop.f32.mrb[0].mxu0
      %v1770 = vpop.f32.mrb[0].mxu0
      %v1771 = vadd.f32 %v749, %v1770
      %v1772 = vpop.f32.mrb[0].mxu0
      %1773 = vmatprep.mubr.bf16.mxu0 0
      %1774 = vmatmul.mubr.bf16.gmra.mrb[0].mxu0 %v1255
      %v1775 = vpop.f32.mrb[0].mxu0
      %v1776 = vadd.f32 %v749, %v1775
      %v1777 = vpop.f32.mrb[0].mxu0
      %v1778 = vpop.f32.mrb[0].mxu0
      %v1779 = vadd.f32 %v749, %v1778
      %v1780 = vpop.f32.mrb[0].mxu0
      %1781 = vmatprep.mubr.bf16.mxu0 0
      %1782 = vmatmul.mubr.bf16.gmra.mrb[0].mxu0 %v1258
      %v1783 = vpop.f32.mrb[0].mxu0
      %v1784 = vadd.f32 %v749, %v1783
      %v1785 = vpop.f32.mrb[0].mxu0
      %v1786 = vpop.f32.mrb[0].mxu0
      %v1787 = vadd.f32 %v749, %v1786
      %v1788 = vpop.f32.mrb[0].mxu0
      %1789 = vmatprep.mubr.bf16.mxu0 0
      %1790 = vmatmul.mubr.bf16.gmra.mrb[0].mxu0 %v1261
      %v1791 = vpop.f32.mrb[0].mxu0
      %v1792 = vadd.f32 %v749, %v1791
      %v1793 = vpop.f32.mrb[0].mxu0
      %v1794 = vpop.f32.mrb[0].mxu0
      %v1795 = vadd.f32 %v749, %v1794
      %v1796 = vpop.f32.mrb[0].mxu0
      %1797 = vmatprep.mubr.bf16.mxu0 0
      %1798 = vmatmul.mubr.bf16.gmra.mrb[0].mxu0 %v1264
      %v1799 = vpop.f32.mrb[0].mxu0
      %v1800 = vadd.f32 %v749, %v1799
      %v1801 = vpop.f32.mrb[0].mxu0
      %v1802 = vpop.f32.mrb[0].mxu0
      %v1803 = vadd.f32 %v749, %v1802
      %v1804 = vpop.f32.mrb[0].mxu0
      %1805 = vmatprep.mubr.bf16.mxu0 0
      %1806 = vmatmul.mubr.bf16.gmra.mrb[0].mxu0 %v1267
      %v1807 = vpop.f32.mrb[0].mxu0
      %v1808 = vadd.f32 %v749, %v1807
      %v1809 = vpop.f32.mrb[0].mxu0
      %v1810 = vpop.f32.mrb[0].mxu0
      %v1811 = vadd.f32 %v749, %v1810
      %v1812 = vpop.f32.mrb[0].mxu0
      %1813 = vdwg.mxu0
      %vm1814 = vcmp.ge.f32.partialorder %v1304, 0.0
      %vm1815 = vcmp.ge.f32.partialorder %v1307, 0.0
      %vm1816 = vcmp.ge.f32.partialorder %v1312, 0.0
      %vm1817 = vcmp.ge.f32.partialorder %v1315, 0.0
      %vm1818 = vcmp.ge.f32.partialorder %v1320, 0.0
      %vm1819 = vcmp.ge.f32.partialorder %v1323, 0.0
      %vm1820 = vcmp.ge.f32.partialorder %v1328, 0.0
      %vm1821 = vcmp.ge.f32.partialorder %v1331, 0.0
      %vm1822 = vcmp.ge.f32.partialorder %v1336, 0.0
      %vm1823 = vcmp.ge.f32.partialorder %v1339, 0.0
      %vm1824 = vcmp.ge.f32.partialorder %v1344, 0.0
      %vm1825 = vcmp.ge.f32.partialorder %v1347, 0.0
      %vm1826 = vcmp.ge.f32.partialorder %v1352, 0.0
      %vm1827 = vcmp.ge.f32.partialorder %v1355, 0.0
      %vm1828 = vcmp.ge.f32.partialorder %v1360, 0.0
      %vm1829 = vcmp.ge.f32.partialorder %v1363, 0.0
      %vm1830 = vcmp.ge.f32.partialorder %v1368, 0.0
      %vm1831 = vcmp.ge.f32.partialorder %v1371, 0.0
      %vm1832 = vcmp.ge.f32.partialorder %v1376, 0.0
      %vm1833 = vcmp.ge.f32.partialorder %v1379, 0.0
      %vm1834 = vcmp.ge.f32.partialorder %v1384, 0.0
      %vm1835 = vcmp.ge.f32.partialorder %v1387, 0.0
      %vm1836 = vcmp.ge.f32.partialorder %v1392, 0.0
      %vm1837 = vcmp.ge.f32.partialorder %v1395, 0.0
      %vm1838 = vcmp.ge.f32.partialorder %v1400, 0.0
      %vm1839 = vcmp.ge.f32.partialorder %v1403, 0.0
      %vm1840 = vcmp.ge.f32.partialorder %v1408, 0.0
      %vm1841 = vcmp.ge.f32.partialorder %v1411, 0.0
      %vm1842 = vcmp.ge.f32.partialorder %v1416, 0.0
      %vm1843 = vcmp.ge.f32.partialorder %v1419, 0.0
      %vm1844 = vcmp.ge.f32.partialorder %v1424, 0.0
      %vm1845 = vcmp.ge.f32.partialorder %v1427, 0.0
      %vm1846 = vcmp.ge.f32.partialorder %v1432, 0.0
      %vm1847 = vcmp.ge.f32.partialorder %v1435, 0.0
      %vm1848 = vcmp.ge.f32.partialorder %v1440, 0.0
      %vm1849 = vcmp.ge.f32.partialorder %v1443, 0.0
      %vm1850 = vcmp.ge.f32.partialorder %v1448, 0.0
      %vm1851 = vcmp.ge.f32.partialorder %v1451, 0.0
      %vm1852 = vcmp.ge.f32.partialorder %v1456, 0.0
      %vm1853 = vcmp.ge.f32.partialorder %v1459, 0.0
      %vm1854 = vcmp.ge.f32.partialorder %v1464, 0.0
      %vm1855 = vcmp.ge.f32.partialorder %v1467, 0.0
      %vm1856 = vcmp.ge.f32.partialorder %v1472, 0.0
      %vm1857 = vcmp.ge.f32.partialorder %v1475, 0.0
      %vm1858 = vcmp.ge.f32.partialorder %v1480, 0.0
      %vm1859 = vcmp.ge.f32.partialorder %v1483, 0.0
      %vm1860 = vcmp.ge.f32.partialorder %v1488, 0.0
      %vm1861 = vcmp.ge.f32.partialorder %v1491, 0.0
      %vm1862 = vcmp.ge.f32.partialorder %v1496, 0.0
      %vm1863 = vcmp.ge.f32.partialorder %v1499, 0.0
      %vm1864 = vcmp.ge.f32.partialorder %v1504, 0.0
      %vm1865 = vcmp.ge.f32.partialorder %v1507, 0.0
      %vm1866 = vcmp.ge.f32.partialorder %v1512, 0.0
      %vm1867 = vcmp.ge.f32.partialorder %v1515, 0.0
      %vm1868 = vcmp.ge.f32.partialorder %v1520, 0.0
      %vm1869 = vcmp.ge.f32.partialorder %v1523, 0.0
      %vm1870 = vcmp.ge.f32.partialorder %v1528, 0.0
      %vm1871 = vcmp.ge.f32.partialorder %v1531, 0.0
      %vm1872 = vcmp.ge.f32.partialorder %v1536, 0.0
      %vm1873 = vcmp.ge.f32.partialorder %v1539, 0.0
      %vm1874 = vcmp.ge.f32.partialorder %v1544, 0.0
      %vm1875 = vcmp.ge.f32.partialorder %v1547, 0.0
      %vm1876 = vcmp.ge.f32.partialorder %v1552, 0.0
      %vm1877 = vcmp.ge.f32.partialorder %v1555, 0.0
      %vm1878 = vcmp.ge.f32.partialorder %v1560, 0.0
      %vm1879 = vcmp.ge.f32.partialorder %v1563, 0.0
      %vm1880 = vcmp.ge.f32.partialorder %v1568, 0.0
      %vm1881 = vcmp.ge.f32.partialorder %v1571, 0.0
      %vm1882 = vcmp.ge.f32.partialorder %v1576, 0.0
      %vm1883 = vcmp.ge.f32.partialorder %v1579, 0.0
      %vm1884 = vcmp.ge.f32.partialorder %v1584, 0.0
      %vm1885 = vcmp.ge.f32.partialorder %v1587, 0.0
      %vm1886 = vcmp.ge.f32.partialorder %v1592, 0.0
      %vm1887 = vcmp.ge.f32.partialorder %v1595, 0.0
      %vm1888 = vcmp.ge.f32.partialorder %v1600, 0.0
      %vm1889 = vcmp.ge.f32.partialorder %v1603, 0.0
      %vm1890 = vcmp.ge.f32.partialorder %v1608, 0.0
      %vm1891 = vcmp.ge.f32.partialorder %v1611, 0.0
      %vm1892 = vcmp.ge.f32.partialorder %v1616, 0.0
      %vm1893 = vcmp.ge.f32.partialorder %v1619, 0.0
      %vm1894 = vcmp.ge.f32.partialorder %v1624, 0.0
      %vm1895 = vcmp.ge.f32.partialorder %v1627, 0.0
      %vm1896 = vcmp.ge.f32.partialorder %v1632, 0.0
      %vm1897 = vcmp.ge.f32.partialorder %v1635, 0.0
      %vm1898 = vcmp.ge.f32.partialorder %v1640, 0.0
      %vm1899 = vcmp.ge.f32.partialorder %v1643, 0.0
      %vm1900 = vcmp.ge.f32.partialorder %v1648, 0.0
      %vm1901 = vcmp.ge.f32.partialorder %v1651, 0.0
      %vm1902 = vcmp.ge.f32.partialorder %v1656, 0.0
      %vm1903 = vcmp.ge.f32.partialorder %v1659, 0.0
      %vm1904 = vcmp.ge.f32.partialorder %v1664, 0.0
      %vm1905 = vcmp.ge.f32.partialorder %v1667, 0.0
      %vm1906 = vcmp.ge.f32.partialorder %v1672, 0.0
      %vm1907 = vcmp.ge.f32.partialorder %v1675, 0.0
      %vm1908 = vcmp.ge.f32.partialorder %v1680, 0.0
      %vm1909 = vcmp.ge.f32.partialorder %v1683, 0.0
      %vm1910 = vcmp.ge.f32.partialorder %v1688, 0.0
      %vm1911 = vcmp.ge.f32.partialorder %v1691, 0.0
      %vm1912 = vcmp.ge.f32.partialorder %v1696, 0.0
      %vm1913 = vcmp.ge.f32.partialorder %v1699, 0.0
      %vm1914 = vcmp.ge.f32.partialorder %v1704, 0.0
      %vm1915 = vcmp.ge.f32.partialorder %v1707, 0.0
      %vm1916 = vcmp.ge.f32.partialorder %v1712, 0.0
      %vm1917 = vcmp.ge.f32.partialorder %v1715, 0.0
      %vm1918 = vcmp.ge.f32.partialorder %v1720, 0.0
      %vm1919 = vcmp.ge.f32.partialorder %v1723, 0.0
      %vm1920 = vcmp.ge.f32.partialorder %v1728, 0.0
      %vm1921 = vcmp.ge.f32.partialorder %v1731, 0.0
      %vm1922 = vcmp.ge.f32.partialorder %v1736, 0.0
      %vm1923 = vcmp.ge.f32.partialorder %v1739, 0.0
      %vm1924 = vcmp.ge.f32.partialorder %v1744, 0.0
      %vm1925 = vcmp.ge.f32.partialorder %v1747, 0.0
      %vm1926 = vcmp.ge.f32.partialorder %v1752, 0.0
      %vm1927 = vcmp.ge.f32.partialorder %v1755, 0.0
      %vm1928 = vcmp.ge.f32.partialorder %v1760, 0.0
      %vm1929 = vcmp.ge.f32.partialorder %v1763, 0.0
      %vm1930 = vcmp.ge.f32.partialorder %v1768, 0.0
      %vm1931 = vcmp.ge.f32.partialorder %v1771, 0.0
      %vm1932 = vcmp.ge.f32.partialorder %v1776, 0.0
      %vm1933 = vcmp.ge.f32.partialorder %v1779, 0.0
      %vm1934 = vcmp.ge.f32.partialorder %v1784, 0.0
      %vm1935 = vcmp.ge.f32.partialorder %v1787, 0.0
      %vm1936 = vcmp.ge.f32.partialorder %v1792, 0.0
      %vm1937 = vcmp.ge.f32.partialorder %v1795, 0.0
      %vm1938 = vcmp.ge.f32.partialorder %v1800, 0.0
      %vm1939 = vcmp.ge.f32.partialorder %v1803, 0.0
      %vm1940 = vcmp.ge.f32.partialorder %v1808, 0.0
      %vm1941 = vcmp.ge.f32.partialorder %v1811, 0.0
      %v1942 = vmul.f32 %v1304, 0.1
      %v1943 = vmul.f32 %v1307, 0.1
      %v1944 = vmul.f32 %v1312, 0.1
      %v1945 = vmul.f32 %v1315, 0.1
      %v1946 = vmul.f32 %v1320, 0.1
      %v1947 = vmul.f32 %v1323, 0.1
      %v1948 = vmul.f32 %v1328, 0.1
      %v1949 = vmul.f32 %v1331, 0.1
      %v1950 = vmul.f32 %v1336, 0.1
      %v1951 = vmul.f32 %v1339, 0.1
      %v1952 = vmul.f32 %v1344, 0.1
      %v1953 = vmul.f32 %v1347, 0.1
      %v1954 = vmul.f32 %v1352, 0.1
      %v1955 = vmul.f32 %v1355, 0.1
      %v1956 = vmul.f32 %v1360, 0.1
      %v1957 = vmul.f32 %v1363, 0.1
      %v1958 = vmul.f32 %v1368, 0.1
      %v1959 = vmul.f32 %v1371, 0.1
      %v1960 = vmul.f32 %v1376, 0.1
      %v1961 = vmul.f32 %v1379, 0.1
      %v1962 = vmul.f32 %v1384, 0.1
      %v1963 = vmul.f32 %v1387, 0.1
      %v1964 = vmul.f32 %v1392, 0.1
      %v1965 = vmul.f32 %v1395, 0.1
      %v1966 = vmul.f32 %v1400, 0.1
      %v1967 = vmul.f32 %v1403, 0.1
      %v1968 = vmul.f32 %v1408, 0.1
      %v1969 = vmul.f32 %v1411, 0.1
      %v1970 = vmul.f32 %v1416, 0.1
      %v1971 = vmul.f32 %v1419, 0.1
      %v1972 = vmul.f32 %v1424, 0.1
      %v1973 = vmul.f32 %v1427, 0.1
      %v1974 = vmul.f32 %v1432, 0.1
      %v1975 = vmul.f32 %v1435, 0.1
      %v1976 = vmul.f32 %v1440, 0.1
      %v1977 = vmul.f32 %v1443, 0.1
      %v1978 = vmul.f32 %v1448, 0.1
      %v1979 = vmul.f32 %v1451, 0.1
      %v1980 = vmul.f32 %v1456, 0.1
      %v1981 = vmul.f32 %v1459, 0.1
      %v1982 = vmul.f32 %v1464, 0.1
      %v1983 = vmul.f32 %v1467, 0.1
      %v1984 = vmul.f32 %v1472, 0.1
      %v1985 = vmul.f32 %v1475, 0.1
      %v1986 = vmul.f32 %v1480, 0.1
      %v1987 = vmul.f32 %v1483, 0.1
      %v1988 = vmul.f32 %v1488, 0.1
      %v1989 = vmul.f32 %v1491, 0.1
      %v1990 = vmul.f32 %v1496, 0.1
      %v1991 = vmul.f32 %v1499, 0.1
      %v1992 = vmul.f32 %v1504, 0.1
      %v1993 = vmul.f32 %v1507, 0.1
      %v1994 = vmul.f32 %v1512, 0.1
      %v1995 = vmul.f32 %v1515, 0.1
      %v1996 = vmul.f32 %v1520, 0.1
      %v1997 = vmul.f32 %v1523, 0.1
      %v1998 = vmul.f32 %v1528, 0.1
      %v1999 = vmul.f32 %v1531, 0.1
      %v2000 = vmul.f32 %v1536, 0.1
      %v2001 = vmul.f32 %v1539, 0.1
      %v2002 = vmul.f32 %v1544, 0.1
      %v2003 = vmul.f32 %v1547, 0.1
      %v2004 = vmul.f32 %v1552, 0.1
      %v2005 = vmul.f32 %v1555, 0.1
      %v2006 = vmul.f32 %v1560, 0.1
      %v2007 = vmul.f32 %v1563, 0.1
      %v2008 = vmul.f32 %v1568, 0.1
      %v2009 = vmul.f32 %v1571, 0.1
      %v2010 = vmul.f32 %v1576, 0.1
      %v2011 = vmul.f32 %v1579, 0.1
      %v2012 = vmul.f32 %v1584, 0.1
      %v2013 = vmul.f32 %v1587, 0.1
      %v2014 = vmul.f32 %v1592, 0.1
      %v2015 = vmul.f32 %v1595, 0.1
      %v2016 = vmul.f32 %v1600, 0.1
      %v2017 = vmul.f32 %v1603, 0.1
      %v2018 = vmul.f32 %v1608, 0.1
      %v2019 = vmul.f32 %v1611, 0.1
      %v2020 = vmul.f32 %v1616, 0.1
      %v2021 = vmul.f32 %v1619, 0.1
      %v2022 = vmul.f32 %v1624, 0.1
      %v2023 = vmul.f32 %v1627, 0.1
      %v2024 = vmul.f32 %v1632, 0.1
      %v2025 = vmul.f32 %v1635, 0.1
      %v2026 = vmul.f32 %v1640, 0.1
      %v2027 = vmul.f32 %v1643, 0.1
      %v2028 = vmul.f32 %v1648, 0.1
      %v2029 = vmul.f32 %v1651, 0.1
      %v2030 = vmul.f32 %v1656, 0.1
      %v2031 = vmul.f32 %v1659, 0.1
      %v2032 = vmul.f32 %v1664, 0.1
      %v2033 = vmul.f32 %v1667, 0.1
      %v2034 = vmul.f32 %v1672, 0.1
      %v2035 = vmul.f32 %v1675, 0.1
      %v2036 = vmul.f32 %v1680, 0.1
      %v2037 = vmul.f32 %v1683, 0.1
      %v2038 = vmul.f32 %v1688, 0.1
      %v2039 = vmul.f32 %v1691, 0.1
      %v2040 = vmul.f32 %v1696, 0.1
      %v2041 = vmul.f32 %v1699, 0.1
      %v2042 = vmul.f32 %v1704, 0.1
      %v2043 = vmul.f32 %v1707, 0.1
      %v2044 = vmul.f32 %v1712, 0.1
      %v2045 = vmul.f32 %v1715, 0.1
      %v2046 = vmul.f32 %v1720, 0.1
      %v2047 = vmul.f32 %v1723, 0.1
      %v2048 = vmul.f32 %v1728, 0.1
      %v2049 = vmul.f32 %v1731, 0.1
      %v2050 = vmul.f32 %v1736, 0.1
      %v2051 = vmul.f32 %v1739, 0.1
      %v2052 = vmul.f32 %v1744, 0.1
      %v2053 = vmul.f32 %v1747, 0.1
      %v2054 = vmul.f32 %v1752, 0.1
      %v2055 = vmul.f32 %v1755, 0.1
      %v2056 = vmul.f32 %v1760, 0.1
      %v2057 = vmul.f32 %v1763, 0.1
      %v2058 = vmul.f32 %v1768, 0.1
      %v2059 = vmul.f32 %v1771, 0.1
      %v2060 = vmul.f32 %v1776, 0.1
      %v2061 = vmul.f32 %v1779, 0.1
      %v2062 = vmul.f32 %v1784, 0.1
      %v2063 = vmul.f32 %v1787, 0.1
      %v2064 = vmul.f32 %v1792, 0.1
      %v2065 = vmul.f32 %v1795, 0.1
      %v2066 = vmul.f32 %v1800, 0.1
      %v2067 = vmul.f32 %v1803, 0.1
      %v2068 = vmul.f32 %v1808, 0.1
      %v2069 = vmul.f32 %v1811, 0.1
      %v2070 = vsel %vm1814, %v1304, %v1942
      %v2071 = vsel %vm1815, %v1307, %v1943
      %v2072 = vsel %vm1816, %v1312, %v1944
      %v2073 = vsel %vm1817, %v1315, %v1945
      %v2074 = vsel %vm1818, %v1320, %v1946
      %v2075 = vsel %vm1819, %v1323, %v1947
      %v2076 = vsel %vm1820, %v1328, %v1948
      %v2077 = vsel %vm1821, %v1331, %v1949
      %v2078 = vsel %vm1822, %v1336, %v1950
      %v2079 = vsel %vm1823, %v1339, %v1951
      %v2080 = vsel %vm1824, %v1344, %v1952
      %v2081 = vsel %vm1825, %v1347, %v1953
      %v2082 = vsel %vm1826, %v1352, %v1954
      %v2083 = vsel %vm1827, %v1355, %v1955
      %v2084 = vsel %vm1828, %v1360, %v1956
      %v2085 = vsel %vm1829, %v1363, %v1957
      %v2086 = vsel %vm1830, %v1368, %v1958
      %v2087 = vsel %vm1831, %v1371, %v1959
      %v2088 = vsel %vm1832, %v1376, %v1960
      %v2089 = vsel %vm1833, %v1379, %v1961
      %v2090 = vsel %vm1834, %v1384, %v1962
      %v2091 = vsel %vm1835, %v1387, %v1963
      %v2092 = vsel %vm1836, %v1392, %v1964
      %v2093 = vsel %vm1837, %v1395, %v1965
      %v2094 = vsel %vm1838, %v1400, %v1966
      %v2095 = vsel %vm1839, %v1403, %v1967
      %v2096 = vsel %vm1840, %v1408, %v1968
      %v2097 = vsel %vm1841, %v1411, %v1969
      %v2098 = vsel %vm1842, %v1416, %v1970
      %v2099 = vsel %vm1843, %v1419, %v1971
      %v2100 = vsel %vm1844, %v1424, %v1972
      %v2101 = vsel %vm1845, %v1427, %v1973
      %v2102 = vsel %vm1846, %v1432, %v1974
      %v2103 = vsel %vm1847, %v1435, %v1975
      %v2104 = vsel %vm1848, %v1440, %v1976
      %v2105 = vsel %vm1849, %v1443, %v1977
      %v2106 = vsel %vm1850, %v1448, %v1978
      %v2107 = vsel %vm1851, %v1451, %v1979
      %v2108 = vsel %vm1852, %v1456, %v1980
      %v2109 = vsel %vm1853, %v1459, %v1981
      %v2110 = vsel %vm1854, %v1464, %v1982
      %v2111 = vsel %vm1855, %v1467, %v1983
      %v2112 = vsel %vm1856, %v1472, %v1984
      %v2113 = vsel %vm1857, %v1475, %v1985
      %v2114 = vsel %vm1858, %v1480, %v1986
      %v2115 = vsel %vm1859, %v1483, %v1987
      %v2116 = vsel %vm1860, %v1488, %v1988
      %v2117 = vsel %vm1861, %v1491, %v1989
      %v2118 = vsel %vm1862, %v1496, %v1990
      %v2119 = vsel %vm1863, %v1499, %v1991
      %v2120 = vsel %vm1864, %v1504, %v1992
      %v2121 = vsel %vm1865, %v1507, %v1993
      %v2122 = vsel %vm1866, %v1512, %v1994
      %v2123 = vsel %vm1867, %v1515, %v1995
      %v2124 = vsel %vm1868, %v1520, %v1996
      %v2125 = vsel %vm1869, %v1523, %v1997
      %v2126 = vsel %vm1870, %v1528, %v1998
      %v2127 = vsel %vm1871, %v1531, %v1999
      %v2128 = vsel %vm1872, %v1536, %v2000
      %v2129 = vsel %vm1873, %v1539, %v2001
      %v2130 = vsel %vm1874, %v1544, %v2002
      %v2131 = vsel %vm1875, %v1547, %v2003
      %v2132 = vsel %vm1876, %v1552, %v2004
      %v2133 = vsel %vm1877, %v1555, %v2005
      %v2134 = vsel %vm1878, %v1560, %v2006
      %v2135 = vsel %vm1879, %v1563, %v2007
      %v2136 = vsel %vm1880, %v1568, %v2008
      %v2137 = vsel %vm1881, %v1571, %v2009
      %v2138 = vsel %vm1882, %v1576, %v2010
      %v2139 = vsel %vm1883, %v1579, %v2011
      %v2140 = vsel %vm1884, %v1584, %v2012
      %v2141 = vsel %vm1885, %v1587, %v2013
      %v2142 = vsel %vm1886, %v1592, %v2014
      %v2143 = vsel %vm1887, %v1595, %v2015
      %v2144 = vsel %vm1888, %v1600, %v2016
      %v2145 = vsel %vm1889, %v1603, %v2017
      %v2146 = vsel %vm1890, %v1608, %v2018
      %v2147 = vsel %vm1891, %v1611, %v2019
      %v2148 = vsel %vm1892, %v1616, %v2020
      %v2149 = vsel %vm1893, %v1619, %v2021
      %v2150 = vsel %vm1894, %v1624, %v2022
      %v2151 = vsel %vm1895, %v1627, %v2023
      %v2152 = vsel %vm1896, %v1632, %v2024
      %v2153 = vsel %vm1897, %v1635, %v2025
      %v2154 = vsel %vm1898, %v1640, %v2026
      %v2155 = vsel %vm1899, %v1643, %v2027
      %v2156 = vsel %vm1900, %v1648, %v2028
      %v2157 = vsel %vm1901, %v1651, %v2029
      %v2158 = vsel %vm1902, %v1656, %v2030
      %v2159 = vsel %vm1903, %v1659, %v2031
      %v2160 = vsel %vm1904, %v1664, %v2032
      %v2161 = vsel %vm1905, %v1667, %v2033
      %v2162 = vsel %vm1906, %v1672, %v2034
      %v2163 = vsel %vm1907, %v1675, %v2035
      %v2164 = vsel %vm1908, %v1680, %v2036
      %v2165 = vsel %vm1909, %v1683, %v2037
      %v2166 = vsel %vm1910, %v1688, %v2038
      %v2167 = vsel %vm1911, %v1691, %v2039
      %v2168 = vsel %vm1912, %v1696, %v2040
      %v2169 = vsel %vm1913, %v1699, %v2041
      %v2170 = vsel %vm1914, %v1704, %v2042
      %v2171 = vsel %vm1915, %v1707, %v2043
      %v2172 = vsel %vm1916, %v1712, %v2044
      %v2173 = vsel %vm1917, %v1715, %v2045
      %v2174 = vsel %vm1918, %v1720, %v2046
      %v2175 = vsel %vm1919, %v1723, %v2047
      %v2176 = vsel %vm1920, %v1728, %v2048
      %v2177 = vsel %vm1921, %v1731, %v2049
      %v2178 = vsel %vm1922, %v1736, %v2050
      %v2179 = vsel %vm1923, %v1739, %v2051
      %v2180 = vsel %vm1924, %v1744, %v2052
      %v2181 = vsel %vm1925, %v1747, %v2053
      %v2182 = vsel %vm1926, %v1752, %v2054
      %v2183 = vsel %vm1927, %v1755, %v2055
      %v2184 = vsel %vm1928, %v1760, %v2056
      %v2185 = vsel %vm1929, %v1763, %v2057
      %v2186 = vsel %vm1930, %v1768, %v2058
      %v2187 = vsel %vm1931, %v1771, %v2059
      %v2188 = vsel %vm1932, %v1776, %v2060
      %v2189 = vsel %vm1933, %v1779, %v2061
      %v2190 = vsel %vm1934, %v1784, %v2062
      %v2191 = vsel %vm1935, %v1787, %v2063
      %v2192 = vsel %vm1936, %v1792, %v2064
      %v2193 = vsel %vm1937, %v1795, %v2065
      %v2194 = vsel %vm1938, %v1800, %v2066
      %v2195 = vsel %vm1939, %v1803, %v2067
      %v2196 = vsel %vm1940, %v1808, %v2068
      %v2197 = vsel %vm1941, %v1811, %v2069
      %vm2326 = vcmask 1040384
      %v2327 = vrot.slane %v2070, 7
      %v2328 = vrot.slane %v2071, 7
      %v2329 = vsel %vm2326, %v2327, %v2328
      %v2330 = vrot.slane %v2072, 7
      %v2331 = vsel %vm2326, %v2328, %v2330
      %v2332 = vrot.slane %v2073, 7
      %v2333 = vsel %vm2326, %v2330, %v2332
      %v2334 = vrot.slane %v2074, 7
      %v2335 = vrot.slane %v2075, 7
      %v2336 = vsel %vm2326, %v2334, %v2335
      %v2337 = vrot.slane %v2076, 7
      %v2338 = vsel %vm2326, %v2335, %v2337
      %v2339 = vrot.slane %v2077, 7
      %v2340 = vsel %vm2326, %v2337, %v2339
      %v2341 = vrot.slane %v2078, 7
      %v2342 = vrot.slane %v2079, 7
      %v2343 = vsel %vm2326, %v2341, %v2342
      %v2344 = vrot.slane %v2080, 7
      %v2345 = vsel %vm2326, %v2342, %v2344
      %v2346 = vrot.slane %v2081, 7
      %v2347 = vsel %vm2326, %v2344, %v2346
      %v2348 = vrot.slane %v2082, 7
      %v2349 = vrot.slane %v2083, 7
      %v2350 = vsel %vm2326, %v2348, %v2349
      %v2351 = vrot.slane %v2084, 7
      %v2352 = vsel %vm2326, %v2349, %v2351
      %v2353 = vrot.slane %v2085, 7
      %v2354 = vsel %vm2326, %v2351, %v2353
      %v2355 = vrot.slane %v2086, 7
      %v2356 = vrot.slane %v2087, 7
      %v2357 = vsel %vm2326, %v2355, %v2356
      %v2358 = vrot.slane %v2088, 7
      %v2359 = vsel %vm2326, %v2356, %v2358
      %v2360 = vrot.slane %v2089, 7
      %v2361 = vsel %vm2326, %v2358, %v2360
      %v2362 = vrot.slane %v2090, 7
      %v2363 = vrot.slane %v2091, 7
      %v2364 = vsel %vm2326, %v2362, %v2363
      %v2365 = vrot.slane %v2092, 7
      %v2366 = vsel %vm2326, %v2363, %v2365
      %v2367 = vrot.slane %v2093, 7
      %v2368 = vsel %vm2326, %v2365, %v2367
      %v2369 = vrot.slane %v2094, 7
      %v2370 = vrot.slane %v2095, 7
      %v2371 = vsel %vm2326, %v2369, %v2370
      %v2372 = vrot.slane %v2096, 7
      %v2373 = vsel %vm2326, %v2370, %v2372
      %v2374 = vrot.slane %v2097, 7
      %v2375 = vsel %vm2326, %v2372, %v2374
      %v2376 = vrot.slane %v2098, 7
      %v2377 = vrot.slane %v2099, 7
      %v2378 = vsel %vm2326, %v2376, %v2377
      %v2379 = vrot.slane %v2100, 7
      %v2380 = vsel %vm2326, %v2377, %v2379
      %v2381 = vrot.slane %v2101, 7
      %v2382 = vsel %vm2326, %v2379, %v2381
      %v2383 = vrot.slane %v2102, 7
      %v2384 = vrot.slane %v2103, 7
      %v2385 = vsel %vm2326, %v2383, %v2384
      %v2386 = vrot.slane %v2104, 7
      %v2387 = vsel %vm2326, %v2384, %v2386
      %v2388 = vrot.slane %v2105, 7
      %v2389 = vsel %vm2326, %v2386, %v2388
      %v2390 = vrot.slane %v2106, 7
      %v2391 = vrot.slane %v2107, 7
      %v2392 = vsel %vm2326, %v2390, %v2391
      %v2393 = vrot.slane %v2108, 7
      %v2394 = vsel %vm2326, %v2391, %v2393
      %v2395 = vrot.slane %v2109, 7
      %v2396 = vsel %vm2326, %v2393, %v2395
      %v2397 = vrot.slane %v2110, 7
      %v2398 = vrot.slane %v2111, 7
      %v2399 = vsel %vm2326, %v2397, %v2398
      %v2400 = vrot.slane %v2112, 7
      %v2401 = vsel %vm2326, %v2398, %v2400
      %v2402 = vrot.slane %v2113, 7
      %v2403 = vsel %vm2326, %v2400, %v2402
      %v2404 = vrot.slane %v2114, 7
      %v2405 = vrot.slane %v2115, 7
      %v2406 = vsel %vm2326, %v2404, %v2405
      %v2407 = vrot.slane %v2116, 7
      %v2408 = vsel %vm2326, %v2405, %v2407
      %v2409 = vrot.slane %v2117, 7
      %v2410 = vsel %vm2326, %v2407, %v2409
      %v2411 = vrot.slane %v2118, 7
      %v2412 = vrot.slane %v2119, 7
      %v2413 = vsel %vm2326, %v2411, %v2412
      %v2414 = vrot.slane %v2120, 7
      %v2415 = vsel %vm2326, %v2412, %v2414
      %v2416 = vrot.slane %v2121, 7
      %v2417 = vsel %vm2326, %v2414, %v2416
      %v2418 = vrot.slane %v2122, 7
      %v2419 = vrot.slane %v2123, 7
      %v2420 = vsel %vm2326, %v2418, %v2419
      %v2421 = vrot.slane %v2124, 7
      %v2422 = vsel %vm2326, %v2419, %v2421
      %v2423 = vrot.slane %v2125, 7
      %v2424 = vsel %vm2326, %v2421, %v2423
      %v2425 = vrot.slane %v2126, 7
      %v2426 = vrot.slane %v2127, 7
      %v2427 = vsel %vm2326, %v2425, %v2426
      %v2428 = vrot.slane %v2128, 7
      %v2429 = vsel %vm2326, %v2426, %v2428
      %v2430 = vrot.slane %v2129, 7
      %v2431 = vsel %vm2326, %v2428, %v2430
      %v2432 = vrot.slane %v2130, 7
      %v2433 = vrot.slane %v2131, 7
      %v2434 = vsel %vm2326, %v2432, %v2433
      %v2435 = vrot.slane %v2132, 7
      %v2436 = vsel %vm2326, %v2433, %v2435
      %v2437 = vrot.slane %v2133, 7
      %v2438 = vsel %vm2326, %v2435, %v2437
      %v2439 = vrot.slane %v2134, 7
      %v2440 = vrot.slane %v2135, 7
      %v2441 = vsel %vm2326, %v2439, %v2440
      %v2442 = vrot.slane %v2136, 7
      %v2443 = vsel %vm2326, %v2440, %v2442
      %v2444 = vrot.slane %v2137, 7
      %v2445 = vsel %vm2326, %v2442, %v2444
      %v2446 = vrot.slane %v2138, 7
      %v2447 = vrot.slane %v2139, 7
      %v2448 = vsel %vm2326, %v2446, %v2447
      %v2449 = vrot.slane %v2140, 7
      %v2450 = vsel %vm2326, %v2447, %v2449
      %v2451 = vrot.slane %v2141, 7
      %v2452 = vsel %vm2326, %v2449, %v2451
      %v2453 = vrot.slane %v2142, 7
      %v2454 = vrot.slane %v2143, 7
      %v2455 = vsel %vm2326, %v2453, %v2454
      %v2456 = vrot.slane %v2144, 7
      %v2457 = vsel %vm2326, %v2454, %v2456
      %v2458 = vrot.slane %v2145, 7
      %v2459 = vsel %vm2326, %v2456, %v2458
      %v2460 = vrot.slane %v2146, 7
      %v2461 = vrot.slane %v2147, 7
      %v2462 = vsel %vm2326, %v2460, %v2461
      %v2463 = vrot.slane %v2148, 7
      %v2464 = vsel %vm2326, %v2461, %v2463
      %v2465 = vrot.slane %v2149, 7
      %v2466 = vsel %vm2326, %v2463, %v2465
      %v2467 = vrot.slane %v2150, 7
      %v2468 = vrot.slane %v2151, 7
      %v2469 = vsel %vm2326, %v2467, %v2468
      %v2470 = vrot.slane %v2152, 7
      %v2471 = vsel %vm2326, %v2468, %v2470
      %v2472 = vrot.slane %v2153, 7
      %v2473 = vsel %vm2326, %v2470, %v2472
      %v2474 = vrot.slane %v2154, 7
      %v2475 = vrot.slane %v2155, 7
      %v2476 = vsel %vm2326, %v2474, %v2475
      %v2477 = vrot.slane %v2156, 7
      %v2478 = vsel %vm2326, %v2475, %v2477
      %v2479 = vrot.slane %v2157, 7
      %v2480 = vsel %vm2326, %v2477, %v2479
      %v2481 = vrot.slane %v2158, 7
      %v2482 = vrot.slane %v2159, 7
      %v2483 = vsel %vm2326, %v2481, %v2482
      %v2484 = vrot.slane %v2160, 7
      %v2485 = vsel %vm2326, %v2482, %v2484
      %v2486 = vrot.slane %v2161, 7
      %v2487 = vsel %vm2326, %v2484, %v2486
      %v2488 = vrot.slane %v2162, 7
      %v2489 = vrot.slane %v2163, 7
      %v2490 = vsel %vm2326, %v2488, %v2489
      %v2491 = vrot.slane %v2164, 7
      %v2492 = vsel %vm2326, %v2489, %v2491
      %v2493 = vrot.slane %v2165, 7
      %v2494 = vsel %vm2326, %v2491, %v2493
      %v2495 = vrot.slane %v2166, 7
      %v2496 = vrot.slane %v2167, 7
      %v2497 = vsel %vm2326, %v2495, %v2496
      %v2498 = vrot.slane %v2168, 7
      %v2499 = vsel %vm2326, %v2496, %v2498
      %v2500 = vrot.slane %v2169, 7
      %v2501 = vsel %vm2326, %v2498, %v2500
      %v2502 = vrot.slane %v2170, 7
      %v2503 = vrot.slane %v2171, 7
      %v2504 = vsel %vm2326, %v2502, %v2503
      %v2505 = vrot.slane %v2172, 7
      %v2506 = vsel %vm2326, %v2503, %v2505
      %v2507 = vrot.slane %v2173, 7
      %v2508 = vsel %vm2326, %v2505, %v2507
      %v2509 = vrot.slane %v2174, 7
      %v2510 = vrot.slane %v2175, 7
      %v2511 = vsel %vm2326, %v2509, %v2510
      %v2512 = vrot.slane %v2176, 7
      %v2513 = vsel %vm2326, %v2510, %v2512
      %v2514 = vrot.slane %v2177, 7
      %v2515 = vsel %vm2326, %v2512, %v2514
      %v2516 = vrot.slane %v2178, 7
      %v2517 = vrot.slane %v2179, 7
      %v2518 = vsel %vm2326, %v2516, %v2517
      %v2519 = vrot.slane %v2180, 7
      %v2520 = vsel %vm2326, %v2517, %v2519
      %v2521 = vrot.slane %v2181, 7
      %v2522 = vsel %vm2326, %v2519, %v2521
      %v2523 = vrot.slane %v2182, 7
      %v2524 = vrot.slane %v2183, 7
      %v2525 = vsel %vm2326, %v2523, %v2524
      %v2526 = vrot.slane %v2184, 7
      %v2527 = vsel %vm2326, %v2524, %v2526
      %v2528 = vrot.slane %v2185, 7
      %v2529 = vsel %vm2326, %v2526, %v2528
      %v2530 = vrot.slane %v2186, 7
      %v2531 = vrot.slane %v2187, 7
      %v2532 = vsel %vm2326, %v2530, %v2531
      %v2533 = vrot.slane %v2188, 7
      %v2534 = vsel %vm2326, %v2531, %v2533
      %v2535 = vrot.slane %v2189, 7
      %v2536 = vsel %vm2326, %v2533, %v2535
      %v2537 = vrot.slane %v2190, 7
      %v2538 = vrot.slane %v2191, 7
      %v2539 = vsel %vm2326, %v2537, %v2538
      %v2540 = vrot.slane %v2192, 7
      %v2541 = vsel %vm2326, %v2538, %v2540
      %v2542 = vrot.slane %v2193, 7
      %v2543 = vsel %vm2326, %v2540, %v2542
      %v2544 = vrot.slane %v2194, 7
      %v2545 = vrot.slane %v2195, 7
      %v2546 = vsel %vm2326, %v2544, %v2545
      %v2547 = vrot.slane %v2196, 7
      %v2548 = vsel %vm2326, %v2545, %v2547
      %v2549 = vrot.slane %v2197, 7
      %v2550 = vsel %vm2326, %v2547, %v2549
      %v2711 = vsel %vm2326, 0.0, %v2327
      %v2712 = vsel %vm2326, 0.0, %v2334
      %v2713 = vsel %vm2326, 0.0, %v2341
      %v2714 = vsel %vm2326, 0.0, %v2348
      %v2715 = vsel %vm2326, 0.0, %v2355
      %v2716 = vsel %vm2326, 0.0, %v2362
      %v2717 = vsel %vm2326, 0.0, %v2369
      %v2718 = vsel %vm2326, 0.0, %v2376
      %v2719 = vsel %vm2326, 0.0, %v2383
      %v2720 = vsel %vm2326, 0.0, %v2390
      %v2721 = vsel %vm2326, 0.0, %v2397
      %v2722 = vsel %vm2326, 0.0, %v2404
      %v2723 = vsel %vm2326, 0.0, %v2411
      %v2724 = vsel %vm2326, 0.0, %v2418
      %v2725 = vsel %vm2326, 0.0, %v2425
      %v2726 = vsel %vm2326, 0.0, %v2432
      %v2727 = vsel %vm2326, 0.0, %v2439
      %v2728 = vsel %vm2326, 0.0, %v2446
      %v2729 = vsel %vm2326, 0.0, %v2453
      %v2730 = vsel %vm2326, 0.0, %v2460
      %v2731 = vsel %vm2326, 0.0, %v2467
      %v2732 = vsel %vm2326, 0.0, %v2474
      %v2733 = vsel %vm2326, 0.0, %v2481
      %v2734 = vsel %vm2326, 0.0, %v2488
      %v2735 = vsel %vm2326, 0.0, %v2495
      %v2736 = vsel %vm2326, 0.0, %v2502
      %v2737 = vsel %vm2326, 0.0, %v2509
      %v2738 = vsel %vm2326, 0.0, %v2516
      %v2739 = vsel %vm2326, 0.0, %v2523
      %v2740 = vsel %vm2326, 0.0, %v2530
      %v2741 = vsel %vm2326, 0.0, %v2537
      %v2742 = vsel %vm2326, 0.0, %v2544
      %s2743 = scalar_lea.vmem [#allocation2], 40
      %2744 = vst.msk [vmem:[%s2743] sm:$0xff] %vm357, %v2711
      %2745 = vst.msk [vmem:[%s2743 + $0x8] sm:$0xff] %vm357, %v2329
      %2746 = vst.msk [vmem:[%s2743 + $0x10] sm:$0xff] %vm357, %v2331
      %2747 = vst.msk [vmem:[%s2743 + $0x18] sm:$0xff] %vm357, %v2333
      %vm2748 = vcmask 122880
      %2749 = vst.msk [vmem:[%s2743 + $0x20] sm:$0x1] %vm2748, %v2332
      %2750 = vst.msk [vmem:[%s2743 + $0x28] sm:$0xff] %vm357, %v2712
      %2751 = vst.msk [vmem:[%s2743 + $0x30] sm:$0xff] %vm357, %v2336
      %2752 = vst.msk [vmem:[%s2743 + $0x38] sm:$0xff] %vm357, %v2338
      %2753 = vst.msk [vmem:[%s2743 + $0x40] sm:$0xff] %vm357, %v2340
      %2754 = vst.msk [vmem:[%s2743 + $0x48] sm:$0x1] %vm2748, %v2339
      %2755 = vst.msk [vmem:[%s2743 + $0x50] sm:$0xff] %vm357, %v2713
      %2756 = vst.msk [vmem:[%s2743 + $0x58] sm:$0xff] %vm357, %v2343
      %2757 = vst.msk [vmem:[%s2743 + $0x60] sm:$0xff] %vm357, %v2345
      %2758 = vst.msk [vmem:[%s2743 + $0x68] sm:$0xff] %vm357, %v2347
      %2759 = vst.msk [vmem:[%s2743 + $0x70] sm:$0x1] %vm2748, %v2346
      %2760 = vst.msk [vmem:[%s2743 + $0x78] sm:$0xff] %vm357, %v2714
      %2761 = vst.msk [vmem:[%s2743 + $0x80] sm:$0xff] %vm357, %v2350
      %2762 = vst.msk [vmem:[%s2743 + $0x88] sm:$0xff] %vm357, %v2352
      %2763 = vst.msk [vmem:[%s2743 + $0x90] sm:$0xff] %vm357, %v2354
      %2764 = vst.msk [vmem:[%s2743 + $0x98] sm:$0x1] %vm2748, %v2353
      %2765 = vst.msk [vmem:[%s2743 + $0xa0] sm:$0xff] %vm357, %v2715
      %2766 = vst.msk [vmem:[%s2743 + $0xa8] sm:$0xff] %vm357, %v2357
      %2767 = vst.msk [vmem:[%s2743 + $0xb0] sm:$0xff] %vm357, %v2359
      %2768 = vst.msk [vmem:[%s2743 + $0xb8] sm:$0xff] %vm357, %v2361
      %2769 = vst.msk [vmem:[%s2743 + $0xc0] sm:$0x1] %vm2748, %v2360
      %2770 = vst.msk [vmem:[%s2743 + $0xc8] sm:$0xff] %vm357, %v2716
      %2771 = vst.msk [vmem:[%s2743 + $0xd0] sm:$0xff] %vm357, %v2364
      %2772 = vst.msk [vmem:[%s2743 + $0xd8] sm:$0xff] %vm357, %v2366
      %2773 = vst.msk [vmem:[%s2743 + $0xe0] sm:$0xff] %vm357, %v2368
      %2774 = vst.msk [vmem:[%s2743 + $0xe8] sm:$0x1] %vm2748, %v2367
      %2775 = vst.msk [vmem:[%s2743 + $0xf0] sm:$0xff] %vm357, %v2717
      %2776 = vst.msk [vmem:[%s2743 + $0xf8] sm:$0xff] %vm357, %v2371
      %2777 = vst.msk [vmem:[%s2743 + $0x100] sm:$0xff] %vm357, %v2373
      %2778 = vst.msk [vmem:[%s2743 + $0x108] sm:$0xff] %vm357, %v2375
      %2779 = vst.msk [vmem:[%s2743 + $0x110] sm:$0x1] %vm2748, %v2374
      %2780 = vst.msk [vmem:[%s2743 + $0x118] sm:$0xff] %vm357, %v2718
      %2781 = vst.msk [vmem:[%s2743 + $0x120] sm:$0xff] %vm357, %v2378
      %2782 = vst.msk [vmem:[%s2743 + $0x128] sm:$0xff] %vm357, %v2380
      %2783 = vst.msk [vmem:[%s2743 + $0x130] sm:$0xff] %vm357, %v2382
      %2784 = vst.msk [vmem:[%s2743 + $0x138] sm:$0x1] %vm2748, %v2381
      %2785 = vst.msk [vmem:[%s2743 + $0x140] sm:$0xff] %vm357, %v2719
      %2786 = vst.msk [vmem:[%s2743 + $0x148] sm:$0xff] %vm357, %v2385
      %2787 = vst.msk [vmem:[%s2743 + $0x150] sm:$0xff] %vm357, %v2387
      %2788 = vst.msk [vmem:[%s2743 + $0x158] sm:$0xff] %vm357, %v2389
      %2789 = vst.msk [vmem:[%s2743 + $0x160] sm:$0x1] %vm2748, %v2388
      %2790 = vst.msk [vmem:[%s2743 + $0x168] sm:$0xff] %vm357, %v2720
      %2791 = vst.msk [vmem:[%s2743 + $0x170] sm:$0xff] %vm357, %v2392
      %2792 = vst.msk [vmem:[%s2743 + $0x178] sm:$0xff] %vm357, %v2394
      %2793 = vst.msk [vmem:[%s2743 + $0x180] sm:$0xff] %vm357, %v2396
      %2794 = vst.msk [vmem:[%s2743 + $0x188] sm:$0x1] %vm2748, %v2395
      %2795 = vst.msk [vmem:[%s2743 + $0x190] sm:$0xff] %vm357, %v2721
      %2796 = vst.msk [vmem:[%s2743 + $0x198] sm:$0xff] %vm357, %v2399
      %2797 = vst.msk [vmem:[%s2743 + $0x1a0] sm:$0xff] %vm357, %v2401
      %2798 = vst.msk [vmem:[%s2743 + $0x1a8] sm:$0xff] %vm357, %v2403
      %2799 = vst.msk [vmem:[%s2743 + $0x1b0] sm:$0x1] %vm2748, %v2402
      %2800 = vst.msk [vmem:[%s2743 + $0x1b8] sm:$0xff] %vm357, %v2722
      %2801 = vst.msk [vmem:[%s2743 + $0x1c0] sm:$0xff] %vm357, %v2406
      %2802 = vst.msk [vmem:[%s2743 + $0x1c8] sm:$0xff] %vm357, %v2408
      %2803 = vst.msk [vmem:[%s2743 + $0x1d0] sm:$0xff] %vm357, %v2410
      %2804 = vst.msk [vmem:[%s2743 + $0x1d8] sm:$0x1] %vm2748, %v2409
      %2805 = vst.msk [vmem:[%s2743 + $0x1e0] sm:$0xff] %vm357, %v2723
      %2806 = vst.msk [vmem:[%s2743 + $0x1e8] sm:$0xff] %vm357, %v2413
      %2807 = vst.msk [vmem:[%s2743 + $0x1f0] sm:$0xff] %vm357, %v2415
      %2808 = vst.msk [vmem:[%s2743 + $0x1f8] sm:$0xff] %vm357, %v2417
      %2809 = vst.msk [vmem:[%s2743 + $0x200] sm:$0x1] %vm2748, %v2416
      %2810 = vst.msk [vmem:[%s2743 + $0x208] sm:$0xff] %vm357, %v2724
      %2811 = vst.msk [vmem:[%s2743 + $0x210] sm:$0xff] %vm357, %v2420
      %2812 = vst.msk [vmem:[%s2743 + $0x218] sm:$0xff] %vm357, %v2422
      %2813 = vst.msk [vmem:[%s2743 + $0x220] sm:$0xff] %vm357, %v2424
      %2814 = vst.msk [vmem:[%s2743 + $0x228] sm:$0x1] %vm2748, %v2423
      %2815 = vst.msk [vmem:[%s2743 + $0x230] sm:$0xff] %vm357, %v2725
      %2816 = vst.msk [vmem:[%s2743 + $0x238] sm:$0xff] %vm357, %v2427
      %2817 = vst.msk [vmem:[%s2743 + $0x240] sm:$0xff] %vm357, %v2429
      %2818 = vst.msk [vmem:[%s2743 + $0x248] sm:$0xff] %vm357, %v2431
      %2819 = vst.msk [vmem:[%s2743 + $0x250] sm:$0x1] %vm2748, %v2430
      %2820 = vst.msk [vmem:[%s2743 + $0x258] sm:$0xff] %vm357, %v2726
      %2821 = vst.msk [vmem:[%s2743 + $0x260] sm:$0xff] %vm357, %v2434
      %2822 = vst.msk [vmem:[%s2743 + $0x268] sm:$0xff] %vm357, %v2436
      %2823 = vst.msk [vmem:[%s2743 + $0x270] sm:$0xff] %vm357, %v2438
      %2824 = vst.msk [vmem:[%s2743 + $0x278] sm:$0x1] %vm2748, %v2437
      %2825 = vst.msk [vmem:[%s2743 + $0x280] sm:$0xff] %vm357, %v2727
      %2826 = vst.msk [vmem:[%s2743 + $0x288] sm:$0xff] %vm357, %v2441
      %2827 = vst.msk [vmem:[%s2743 + $0x290] sm:$0xff] %vm357, %v2443
      %2828 = vst.msk [vmem:[%s2743 + $0x298] sm:$0xff] %vm357, %v2445
      %2829 = vst.msk [vmem:[%s2743 + $0x2a0] sm:$0x1] %vm2748, %v2444
      %2830 = vst.msk [vmem:[%s2743 + $0x2a8] sm:$0xff] %vm357, %v2728
      %2831 = vst.msk [vmem:[%s2743 + $0x2b0] sm:$0xff] %vm357, %v2448
      %2832 = vst.msk [vmem:[%s2743 + $0x2b8] sm:$0xff] %vm357, %v2450
      %2833 = vst.msk [vmem:[%s2743 + $0x2c0] sm:$0xff] %vm357, %v2452
      %2834 = vst.msk [vmem:[%s2743 + $0x2c8] sm:$0x1] %vm2748, %v2451
      %2835 = vst.msk [vmem:[%s2743 + $0x2d0] sm:$0xff] %vm357, %v2729
      %2836 = vst.msk [vmem:[%s2743 + $0x2d8] sm:$0xff] %vm357, %v2455
      %2837 = vst.msk [vmem:[%s2743 + $0x2e0] sm:$0xff] %vm357, %v2457
      %2838 = vst.msk [vmem:[%s2743 + $0x2e8] sm:$0xff] %vm357, %v2459
      %2839 = vst.msk [vmem:[%s2743 + $0x2f0] sm:$0x1] %vm2748, %v2458
      %2840 = vst.msk [vmem:[%s2743 + $0x2f8] sm:$0xff] %vm357, %v2730
      %2841 = vst.msk [vmem:[%s2743 + $0x300] sm:$0xff] %vm357, %v2462
      %2842 = vst.msk [vmem:[%s2743 + $0x308] sm:$0xff] %vm357, %v2464
      %2843 = vst.msk [vmem:[%s2743 + $0x310] sm:$0xff] %vm357, %v2466
      %2844 = vst.msk [vmem:[%s2743 + $0x318] sm:$0x1] %vm2748, %v2465
      %2845 = vst.msk [vmem:[%s2743 + $0x320] sm:$0xff] %vm357, %v2731
      %2846 = vst.msk [vmem:[%s2743 + $0x328] sm:$0xff] %vm357, %v2469
      %2847 = vst.msk [vmem:[%s2743 + $0x330] sm:$0xff] %vm357, %v2471
      %2848 = vst.msk [vmem:[%s2743 + $0x338] sm:$0xff] %vm357, %v2473
      %2849 = vst.msk [vmem:[%s2743 + $0x340] sm:$0x1] %vm2748, %v2472
      %2850 = vst.msk [vmem:[%s2743 + $0x348] sm:$0xff] %vm357, %v2732
      %2851 = vst.msk [vmem:[%s2743 + $0x350] sm:$0xff] %vm357, %v2476
      %2852 = vst.msk [vmem:[%s2743 + $0x358] sm:$0xff] %vm357, %v2478
      %2853 = vst.msk [vmem:[%s2743 + $0x360] sm:$0xff] %vm357, %v2480
      %2854 = vst.msk [vmem:[%s2743 + $0x368] sm:$0x1] %vm2748, %v2479
      %2855 = vst.msk [vmem:[%s2743 + $0x370] sm:$0xff] %vm357, %v2733
      %2856 = vst.msk [vmem:[%s2743 + $0x378] sm:$0xff] %vm357, %v2483
      %2857 = vst.msk [vmem:[%s2743 + $0x380] sm:$0xff] %vm357, %v2485
      %2858 = vst.msk [vmem:[%s2743 + $0x388] sm:$0xff] %vm357, %v2487
      %2859 = vst.msk [vmem:[%s2743 + $0x390] sm:$0x1] %vm2748, %v2486
      %2860 = vst.msk [vmem:[%s2743 + $0x398] sm:$0xff] %vm357, %v2734
      %2861 = vst.msk [vmem:[%s2743 + $0x3a0] sm:$0xff] %vm357, %v2490
      %2862 = vst.msk [vmem:[%s2743 + $0x3a8] sm:$0xff] %vm357, %v2492
      %2863 = vst.msk [vmem:[%s2743 + $0x3b0] sm:$0xff] %vm357, %v2494
      %2864 = vst.msk [vmem:[%s2743 + $0x3b8] sm:$0x1] %vm2748, %v2493
      %2865 = vst.msk [vmem:[%s2743 + $0x3c0] sm:$0xff] %vm357, %v2735
      %2866 = vst.msk [vmem:[%s2743 + $0x3c8] sm:$0xff] %vm357, %v2497
      %2867 = vst.msk [vmem:[%s2743 + $0x3d0] sm:$0xff] %vm357, %v2499
      %2868 = vst.msk [vmem:[%s2743 + $0x3d8] sm:$0xff] %vm357, %v2501
      %2869 = vst.msk [vmem:[%s2743 + $0x3e0] sm:$0x1] %vm2748, %v2500
      %2870 = vst.msk [vmem:[%s2743 + $0x3e8] sm:$0xff] %vm357, %v2736
      %2871 = vst.msk [vmem:[%s2743 + $0x3f0] sm:$0xff] %vm357, %v2504
      %2872 = vst.msk [vmem:[%s2743 + $0x3f8] sm:$0xff] %vm357, %v2506
      %2873 = vst.msk [vmem:[%s2743 + $0x400] sm:$0xff] %vm357, %v2508
      %2874 = vst.msk [vmem:[%s2743 + $0x408] sm:$0x1] %vm2748, %v2507
      %2875 = vst.msk [vmem:[%s2743 + $0x410] sm:$0xff] %vm357, %v2737
      %2876 = vst.msk [vmem:[%s2743 + $0x418] sm:$0xff] %vm357, %v2511
      %2877 = vst.msk [vmem:[%s2743 + $0x420] sm:$0xff] %vm357, %v2513
      %2878 = vst.msk [vmem:[%s2743 + $0x428] sm:$0xff] %vm357, %v2515
      %2879 = vst.msk [vmem:[%s2743 + $0x430] sm:$0x1] %vm2748, %v2514
      %2880 = vst.msk [vmem:[%s2743 + $0x438] sm:$0xff] %vm357, %v2738
      %2881 = vst.msk [vmem:[%s2743 + $0x440] sm:$0xff] %vm357, %v2518
      %2882 = vst.msk [vmem:[%s2743 + $0x448] sm:$0xff] %vm357, %v2520
      %2883 = vst.msk [vmem:[%s2743 + $0x450] sm:$0xff] %vm357, %v2522
      %2884 = vst.msk [vmem:[%s2743 + $0x458] sm:$0x1] %vm2748, %v2521
      %2885 = vst.msk [vmem:[%s2743 + $0x460] sm:$0xff] %vm357, %v2739
      %2886 = vst.msk [vmem:[%s2743 + $0x468] sm:$0xff] %vm357, %v2525
      %2887 = vst.msk [vmem:[%s2743 + $0x470] sm:$0xff] %vm357, %v2527
      %2888 = vst.msk [vmem:[%s2743 + $0x478] sm:$0xff] %vm357, %v2529
      %2889 = vst.msk [vmem:[%s2743 + $0x480] sm:$0x1] %vm2748, %v2528
      %2890 = vst.msk [vmem:[%s2743 + $0x488] sm:$0xff] %vm357, %v2740
      %2891 = vst.msk [vmem:[%s2743 + $0x490] sm:$0xff] %vm357, %v2532
      %2892 = vst.msk [vmem:[%s2743 + $0x498] sm:$0xff] %vm357, %v2534
      %2893 = vst.msk [vmem:[%s2743 + $0x4a0] sm:$0xff] %vm357, %v2536
      %2894 = vst.msk [vmem:[%s2743 + $0x4a8] sm:$0x1] %vm2748, %v2535
      %2895 = vst.msk [vmem:[%s2743 + $0x4b0] sm:$0xff] %vm357, %v2741
      %2896 = vst.msk [vmem:[%s2743 + $0x4b8] sm:$0xff] %vm357, %v2539
      %2897 = vst.msk [vmem:[%s2743 + $0x4c0] sm:$0xff] %vm357, %v2541
      %2898 = vst.msk [vmem:[%s2743 + $0x4c8] sm:$0xff] %vm357, %v2543
      %2899 = vst.msk [vmem:[%s2743 + $0x4d0] sm:$0x1] %vm2748, %v2542
      %2900 = vst.msk [vmem:[%s2743 + $0x4d8] sm:$0xff] %vm357, %v2742
      %2901 = vst.msk [vmem:[%s2743 + $0x4e0] sm:$0xff] %vm357, %v2546
      %2902 = vst.msk [vmem:[%s2743 + $0x4e8] sm:$0xff] %vm357, %v2548
      %2903 = vst.msk [vmem:[%s2743 + $0x4f0] sm:$0xff] %vm357, %v2550
      %2904 = vst.msk [vmem:[%s2743 + $0x4f8] sm:$0x1] %vm2748, %v2549
      %v2905 = vld [vmem:[#allocation2] ss:$2 sm:$0xff]
      %s2906 = scalar_lea.vmem [#allocation2], 16
      %v2907 = vld [vmem:[%s2906] ss:$2 sm:$0xff]
      %s2908 = scalar_lea.vmem [#allocation2], 40
      %v2909 = vld [vmem:[%s2908] ss:$2 sm:$0xff]
      %s2910 = scalar_lea.vmem [#allocation2], 56
      %v2911 = vld [vmem:[%s2910] ss:$2 sm:$0xff]
      %s2912 = scalar_lea.vmem [#allocation2], 80
      %v2913 = vld [vmem:[%s2912] ss:$2 sm:$0xff]
      %s2914 = scalar_lea.vmem [#allocation2], 96
      %v2915 = vld [vmem:[%s2914] ss:$2 sm:$0xff]
      %s2916 = scalar_lea.vmem [#allocation2], 120
      %v2917 = vld [vmem:[%s2916] ss:$2 sm:$0xff]
      %s2918 = scalar_lea.vmem [#allocation2], 136
      %v2919 = vld [vmem:[%s2918] ss:$2 sm:$0xff]
      %s2920 = scalar_lea.vmem [#allocation2], 160
      %v2921 = vld [vmem:[%s2920] ss:$2 sm:$0xff]
      %s2922 = scalar_lea.vmem [#allocation2], 176
      %v2923 = vld [vmem:[%s2922] ss:$2 sm:$0xff]
      %s2924 = scalar_lea.vmem [#allocation2], 200
      %v2925 = vld [vmem:[%s2924] ss:$2 sm:$0xff]
      %s2926 = scalar_lea.vmem [#allocation2], 216
      %v2927 = vld [vmem:[%s2926] ss:$2 sm:$0xff]
      %s2928 = scalar_lea.vmem [#allocation2], 240
      %v2929 = vld [vmem:[%s2928] ss:$2 sm:$0xff]
      %s2930 = scalar_lea.vmem [#allocation2], 256
      %v2931 = vld [vmem:[%s2930] ss:$2 sm:$0xff]
      %s2932 = scalar_lea.vmem [#allocation2], 280
      %v2933 = vld [vmem:[%s2932] ss:$2 sm:$0xff]
      %s2934 = scalar_lea.vmem [#allocation2], 296
      %v2935 = vld [vmem:[%s2934] ss:$2 sm:$0xff]
      %s2936 = scalar_lea.vmem [#allocation2], 320
      %v2937 = vld [vmem:[%s2936] ss:$2 sm:$0xff]
      %s2938 = scalar_lea.vmem [#allocation2], 336
      %v2939 = vld [vmem:[%s2938] ss:$2 sm:$0xff]
      %s2940 = scalar_lea.vmem [#allocation2], 360
      %v2941 = vld [vmem:[%s2940] ss:$2 sm:$0xff]
      %s2942 = scalar_lea.vmem [#allocation2], 376
      %v2943 = vld [vmem:[%s2942] ss:$2 sm:$0xff]
      %s2944 = scalar_lea.vmem [#allocation2], 400
      %v2945 = vld [vmem:[%s2944] ss:$2 sm:$0xff]
      %s2946 = scalar_lea.vmem [#allocation2], 416
      %v2947 = vld [vmem:[%s2946] ss:$2 sm:$0xff]
      %s2948 = scalar_lea.vmem [#allocation2], 440
      %v2949 = vld [vmem:[%s2948] ss:$2 sm:$0xff]
      %s2950 = scalar_lea.vmem [#allocation2], 456
      %v2951 = vld [vmem:[%s2950] ss:$2 sm:$0xff]
      %s2952 = scalar_lea.vmem [#allocation2], 480
      %v2953 = vld [vmem:[%s2952] ss:$2 sm:$0xff]
      %s2954 = scalar_lea.vmem [#allocation2], 496
      %v2955 = vld [vmem:[%s2954] ss:$2 sm:$0xff]
      %s2956 = scalar_lea.vmem [#allocation2], 520
      %v2957 = vld [vmem:[%s2956] ss:$2 sm:$0xff]
      %s2958 = scalar_lea.vmem [#allocation2], 536
      %v2959 = vld [vmem:[%s2958] ss:$2 sm:$0xff]
      %s2960 = scalar_lea.vmem [#allocation2], 560
      %v2961 = vld [vmem:[%s2960] ss:$2 sm:$0xff]
      %s2962 = scalar_lea.vmem [#allocation2], 576
      %v2963 = vld [vmem:[%s2962] ss:$2 sm:$0xff]
      %s2964 = scalar_lea.vmem [#allocation2], 600
      %v2965 = vld [vmem:[%s2964] ss:$2 sm:$0xff]
      %s2966 = scalar_lea.vmem [#allocation2], 616
      %v2967 = vld [vmem:[%s2966] ss:$2 sm:$0xff]
      %s2968 = scalar_lea.vmem [#allocation2], 640
      %v2969 = vld [vmem:[%s2968] ss:$2 sm:$0xff]
      %s2970 = scalar_lea.vmem [#allocation2], 656
      %v2971 = vld [vmem:[%s2970] ss:$2 sm:$0xff]
      %s2972 = scalar_lea.vmem [#allocation2], 680
      %v2973 = vld [vmem:[%s2972] ss:$2 sm:$0xff]
      %s2974 = scalar_lea.vmem [#allocation2], 696
      %v2975 = vld [vmem:[%s2974] ss:$2 sm:$0xff]
      %s2976 = scalar_lea.vmem [#allocation2], 720
      %v2977 = vld [vmem:[%s2976] ss:$2 sm:$0xff]
      %s2978 = scalar_lea.vmem [#allocation2], 736
      %v2979 = vld [vmem:[%s2978] ss:$2 sm:$0xff]
      %s2980 = scalar_lea.vmem [#allocation2], 760
      %v2981 = vld [vmem:[%s2980] ss:$2 sm:$0xff]
      %s2982 = scalar_lea.vmem [#allocation2], 776
      %v2983 = vld [vmem:[%s2982] ss:$2 sm:$0xff]
      %s2984 = scalar_lea.vmem [#allocation2], 800
      %v2985 = vld [vmem:[%s2984] ss:$2 sm:$0xff]
      %s2986 = scalar_lea.vmem [#allocation2], 816
      %v2987 = vld [vmem:[%s2986] ss:$2 sm:$0xff]
      %s2988 = scalar_lea.vmem [#allocation2], 840
      %v2989 = vld [vmem:[%s2988] ss:$2 sm:$0xff]
      %s2990 = scalar_lea.vmem [#allocation2], 856
      %v2991 = vld [vmem:[%s2990] ss:$2 sm:$0xff]
      %s2992 = scalar_lea.vmem [#allocation2], 880
      %v2993 = vld [vmem:[%s2992] ss:$2 sm:$0xff]
      %s2994 = scalar_lea.vmem [#allocation2], 896
      %v2995 = vld [vmem:[%s2994] ss:$2 sm:$0xff]
      %s2996 = scalar_lea.vmem [#allocation2], 920
      %v2997 = vld [vmem:[%s2996] ss:$2 sm:$0xff]
      %s2998 = scalar_lea.vmem [#allocation2], 936
      %v2999 = vld [vmem:[%s2998] ss:$2 sm:$0xff]
      %s3000 = scalar_lea.vmem [#allocation2], 960
      %v3001 = vld [vmem:[%s3000] ss:$2 sm:$0xff]
      %s3002 = scalar_lea.vmem [#allocation2], 976
      %v3003 = vld [vmem:[%s3002] ss:$2 sm:$0xff]
      %s3004 = scalar_lea.vmem [#allocation2], 1000
      %v3005 = vld [vmem:[%s3004] ss:$2 sm:$0xff]
      %s3006 = scalar_lea.vmem [#allocation2], 1016
      %v3007 = vld [vmem:[%s3006] ss:$2 sm:$0xff]
      %s3008 = scalar_lea.vmem [#allocation2], 1040
      %v3009 = vld [vmem:[%s3008] ss:$2 sm:$0xff]
      %s3010 = scalar_lea.vmem [#allocation2], 1056
      %v3011 = vld [vmem:[%s3010] ss:$2 sm:$0xff]
      %s3012 = scalar_lea.vmem [#allocation2], 1080
      %v3013 = vld [vmem:[%s3012] ss:$2 sm:$0xff]
      %s3014 = scalar_lea.vmem [#allocation2], 1096
      %v3015 = vld [vmem:[%s3014] ss:$2 sm:$0xff]
      %s3016 = scalar_lea.vmem [#allocation2], 1120
      %v3017 = vld [vmem:[%s3016] ss:$2 sm:$0xff]
      %s3018 = scalar_lea.vmem [#allocation2], 1136
      %v3019 = vld [vmem:[%s3018] ss:$2 sm:$0xff]
      %s3020 = scalar_lea.vmem [#allocation2], 1160
      %v3021 = vld [vmem:[%s3020] ss:$2 sm:$0xff]
      %s3022 = scalar_lea.vmem [#allocation2], 1176
      %v3023 = vld [vmem:[%s3022] ss:$2 sm:$0xff]
      %s3024 = scalar_lea.vmem [#allocation2], 1200
      %v3025 = vld [vmem:[%s3024] ss:$2 sm:$0xff]
      %s3026 = scalar_lea.vmem [#allocation2], 1216
      %v3027 = vld [vmem:[%s3026] ss:$2 sm:$0xff]
      %s3028 = scalar_lea.vmem [#allocation2], 1240
      %v3029 = vld [vmem:[%s3028] ss:$2 sm:$0xff]
      %s3030 = scalar_lea.vmem [#allocation2], 1256
      %v3031 = vld [vmem:[%s3030] ss:$2 sm:$0xff]
      %s3032 = scalar_lea.vmem [#allocation2], 1280
      %v3033 = vld [vmem:[%s3032] ss:$2 sm:$0xff]
      %s3034 = scalar_lea.vmem [#allocation2], 1296
      %v3035 = vld [vmem:[%s3034] ss:$2 sm:$0xff]
      %s3036 = scalar_lea.vmem [#allocation2], 1320
      %v3037 = vld [vmem:[%s3036] ss:$2 sm:$0xff]
      %s3038 = scalar_lea.vmem [#allocation2], 1336
      %v3039 = vld [vmem:[%s3038] ss:$2 sm:$0xff]
      %s3040 = scalar_lea.vmem [#allocation2], 1
      %v3041 = vld [vmem:[%s3040] ss:$2 sm:$0xff]
      %s3042 = scalar_lea.vmem [#allocation2], 17
      %v3043 = vld [vmem:[%s3042] ss:$2 sm:$0xff]
      %s3044 = scalar_lea.vmem [#allocation2], 41
      %v3045 = vld [vmem:[%s3044] ss:$2 sm:$0xff]
      %s3046 = scalar_lea.vmem [#allocation2], 57
      %v3047 = vld [vmem:[%s3046] ss:$2 sm:$0xff]
      %s3048 = scalar_lea.vmem [#allocation2], 81
      %v3049 = vld [vmem:[%s3048] ss:$2 sm:$0xff]
      %s3050 = scalar_lea.vmem [#allocation2], 97
      %v3051 = vld [vmem:[%s3050] ss:$2 sm:$0xff]
      %s3052 = scalar_lea.vmem [#allocation2], 121
      %v3053 = vld [vmem:[%s3052] ss:$2 sm:$0xff]
      %s3054 = scalar_lea.vmem [#allocation2], 137
      %v3055 = vld [vmem:[%s3054] ss:$2 sm:$0xff]
      %s3056 = scalar_lea.vmem [#allocation2], 161
      %v3057 = vld [vmem:[%s3056] ss:$2 sm:$0xff]
      %s3058 = scalar_lea.vmem [#allocation2], 177
      %v3059 = vld [vmem:[%s3058] ss:$2 sm:$0xff]
      %s3060 = scalar_lea.vmem [#allocation2], 201
      %v3061 = vld [vmem:[%s3060] ss:$2 sm:$0xff]
      %s3062 = scalar_lea.vmem [#allocation2], 217
      %v3063 = vld [vmem:[%s3062] ss:$2 sm:$0xff]
      %s3064 = scalar_lea.vmem [#allocation2], 241
      %v3065 = vld [vmem:[%s3064] ss:$2 sm:$0xff]
      %s3066 = scalar_lea.vmem [#allocation2], 257
      %v3067 = vld [vmem:[%s3066] ss:$2 sm:$0xff]
      %s3068 = scalar_lea.vmem [#allocation2], 281
      %v3069 = vld [vmem:[%s3068] ss:$2 sm:$0xff]
      %s3070 = scalar_lea.vmem [#allocation2], 297
      %v3071 = vld [vmem:[%s3070] ss:$2 sm:$0xff]
      %s3072 = scalar_lea.vmem [#allocation2], 321
      %v3073 = vld [vmem:[%s3072] ss:$2 sm:$0xff]
      %s3074 = scalar_lea.vmem [#allocation2], 337
      %v3075 = vld [vmem:[%s3074] ss:$2 sm:$0xff]
      %s3076 = scalar_lea.vmem [#allocation2], 361
      %v3077 = vld [vmem:[%s3076] ss:$2 sm:$0xff]
      %s3078 = scalar_lea.vmem [#allocation2], 377
      %v3079 = vld [vmem:[%s3078] ss:$2 sm:$0xff]
      %s3080 = scalar_lea.vmem [#allocation2], 401
      %v3081 = vld [vmem:[%s3080] ss:$2 sm:$0xff]
      %s3082 = scalar_lea.vmem [#allocation2], 417
      %v3083 = vld [vmem:[%s3082] ss:$2 sm:$0xff]
      %s3084 = scalar_lea.vmem [#allocation2], 441
      %v3085 = vld [vmem:[%s3084] ss:$2 sm:$0xff]
      %s3086 = scalar_lea.vmem [#allocation2], 457
      %v3087 = vld [vmem:[%s3086] ss:$2 sm:$0xff]
      %s3088 = scalar_lea.vmem [#allocation2], 481
      %v3089 = vld [vmem:[%s3088] ss:$2 sm:$0xff]
      %s3090 = scalar_lea.vmem [#allocation2], 497
      %v3091 = vld [vmem:[%s3090] ss:$2 sm:$0xff]
      %s3092 = scalar_lea.vmem [#allocation2], 521
      %v3093 = vld [vmem:[%s3092] ss:$2 sm:$0xff]
      %s3094 = scalar_lea.vmem [#allocation2], 537
      %v3095 = vld [vmem:[%s3094] ss:$2 sm:$0xff]
      %s3096 = scalar_lea.vmem [#allocation2], 561
      %v3097 = vld [vmem:[%s3096] ss:$2 sm:$0xff]
      %s3098 = scalar_lea.vmem [#allocation2], 577
      %v3099 = vld [vmem:[%s3098] ss:$2 sm:$0xff]
      %s3100 = scalar_lea.vmem [#allocation2], 601
      %v3101 = vld [vmem:[%s3100] ss:$2 sm:$0xff]
      %s3102 = scalar_lea.vmem [#allocation2], 617
      %v3103 = vld [vmem:[%s3102] ss:$2 sm:$0xff]
      %s3104 = scalar_lea.vmem [#allocation2], 641
      %v3105 = vld [vmem:[%s3104] ss:$2 sm:$0xff]
      %s3106 = scalar_lea.vmem [#allocation2], 657
      %v3107 = vld [vmem:[%s3106] ss:$2 sm:$0xff]
      %s3108 = scalar_lea.vmem [#allocation2], 681
      %v3109 = vld [vmem:[%s3108] ss:$2 sm:$0xff]
      %s3110 = scalar_lea.vmem [#allocation2], 697
      %v3111 = vld [vmem:[%s3110] ss:$2 sm:$0xff]
      %s3112 = scalar_lea.vmem [#allocation2], 721
      %v3113 = vld [vmem:[%s3112] ss:$2 sm:$0xff]
      %s3114 = scalar_lea.vmem [#allocation2], 737
      %v3115 = vld [vmem:[%s3114] ss:$2 sm:$0xff]
      %s3116 = scalar_lea.vmem [#allocation2], 761
      %v3117 = vld [vmem:[%s3116] ss:$2 sm:$0xff]
      %s3118 = scalar_lea.vmem [#allocation2], 777
      %v3119 = vld [vmem:[%s3118] ss:$2 sm:$0xff]
      %s3120 = scalar_lea.vmem [#allocation2], 801
      %v3121 = vld [vmem:[%s3120] ss:$2 sm:$0xff]
      %s3122 = scalar_lea.vmem [#allocation2], 817
      %v3123 = vld [vmem:[%s3122] ss:$2 sm:$0xff]
      %s3124 = scalar_lea.vmem [#allocation2], 841
      %v3125 = vld [vmem:[%s3124] ss:$2 sm:$0xff]
      %s3126 = scalar_lea.vmem [#allocation2], 857
      %v3127 = vld [vmem:[%s3126] ss:$2 sm:$0xff]
      %s3128 = scalar_lea.vmem [#allocation2], 881
      %v3129 = vld [vmem:[%s3128] ss:$2 sm:$0xff]
      %s3130 = scalar_lea.vmem [#allocation2], 897
      %v3131 = vld [vmem:[%s3130] ss:$2 sm:$0xff]
      %s3132 = scalar_lea.vmem [#allocation2], 921
      %v3133 = vld [vmem:[%s3132] ss:$2 sm:$0xff]
      %s3134 = scalar_lea.vmem [#allocation2], 937
      %v3135 = vld [vmem:[%s3134] ss:$2 sm:$0xff]
      %s3136 = scalar_lea.vmem [#allocation2], 961
      %v3137 = vld [vmem:[%s3136] ss:$2 sm:$0xff]
      %s3138 = scalar_lea.vmem [#allocation2], 977
      %v3139 = vld [vmem:[%s3138] ss:$2 sm:$0xff]
      %s3140 = scalar_lea.vmem [#allocation2], 1001
      %v3141 = vld [vmem:[%s3140] ss:$2 sm:$0xff]
      %s3142 = scalar_lea.vmem [#allocation2], 1017
      %v3143 = vld [vmem:[%s3142] ss:$2 sm:$0xff]
      %s3144 = scalar_lea.vmem [#allocation2], 1041
      %v3145 = vld [vmem:[%s3144] ss:$2 sm:$0xff]
      %s3146 = scalar_lea.vmem [#allocation2], 1057
      %v3147 = vld [vmem:[%s3146] ss:$2 sm:$0xff]
      %s3148 = scalar_lea.vmem [#allocation2], 1081
      %v3149 = vld [vmem:[%s3148] ss:$2 sm:$0xff]
      %s3150 = scalar_lea.vmem [#allocation2], 1097
      %v3151 = vld [vmem:[%s3150] ss:$2 sm:$0xff]
      %s3152 = scalar_lea.vmem [#allocation2], 1121
      %v3153 = vld [vmem:[%s3152] ss:$2 sm:$0xff]
      %s3154 = scalar_lea.vmem [#allocation2], 1137
      %v3155 = vld [vmem:[%s3154] ss:$2 sm:$0xff]
      %s3156 = scalar_lea.vmem [#allocation2], 1161
      %v3157 = vld [vmem:[%s3156] ss:$2 sm:$0xff]
      %s3158 = scalar_lea.vmem [#allocation2], 1177
      %v3159 = vld [vmem:[%s3158] ss:$2 sm:$0xff]
      %s3160 = scalar_lea.vmem [#allocation2], 1201
      %v3161 = vld [vmem:[%s3160] ss:$2 sm:$0xff]
      %s3162 = scalar_lea.vmem [#allocation2], 1217
      %v3163 = vld [vmem:[%s3162] ss:$2 sm:$0xff]
      %s3164 = scalar_lea.vmem [#allocation2], 1241
      %v3165 = vld [vmem:[%s3164] ss:$2 sm:$0xff]
      %s3166 = scalar_lea.vmem [#allocation2], 1257
      %v3167 = vld [vmem:[%s3166] ss:$2 sm:$0xff]
      %s3168 = scalar_lea.vmem [#allocation2], 1281
      %v3169 = vld [vmem:[%s3168] ss:$2 sm:$0xff]
      %s3170 = scalar_lea.vmem [#allocation2], 1297
      %v3171 = vld [vmem:[%s3170] ss:$2 sm:$0xff]
      %s3172 = scalar_lea.vmem [#allocation2], 1321
      %v3173 = vld [vmem:[%s3172] ss:$2 sm:$0xff]
      %s3174 = scalar_lea.vmem [#allocation2], 1337
      %v3175 = vld [vmem:[%s3174] ss:$2 sm:$0xff]
      %s3176 = scalar_lea.vmem [#allocation2], 2
      %v3177 = vld [vmem:[%s3176] ss:$2 sm:$0xff]
      %s3178 = scalar_lea.vmem [#allocation2], 18
      %v3179 = vld [vmem:[%s3178] ss:$2 sm:$0xff]
      %s3180 = scalar_lea.vmem [#allocation2], 42
      %v3181 = vld [vmem:[%s3180] ss:$2 sm:$0xff]
      %s3182 = scalar_lea.vmem [#allocation2], 58
      %v3183 = vld [vmem:[%s3182] ss:$2 sm:$0xff]
      %s3184 = scalar_lea.vmem [#allocation2], 82
      %v3185 = vld [vmem:[%s3184] ss:$2 sm:$0xff]
      %s3186 = scalar_lea.vmem [#allocation2], 98
      %v3187 = vld [vmem:[%s3186] ss:$2 sm:$0xff]
      %s3188 = scalar_lea.vmem [#allocation2], 122
      %v3189 = vld [vmem:[%s3188] ss:$2 sm:$0xff]
      %s3190 = scalar_lea.vmem [#allocation2], 138
      %v3191 = vld [vmem:[%s3190] ss:$2 sm:$0xff]
      %s3192 = scalar_lea.vmem [#allocation2], 162
      %v3193 = vld [vmem:[%s3192] ss:$2 sm:$0xff]
      %s3194 = scalar_lea.vmem [#allocation2], 178
      %v3195 = vld [vmem:[%s3194] ss:$2 sm:$0xff]
      %s3196 = scalar_lea.vmem [#allocation2], 202
      %v3197 = vld [vmem:[%s3196] ss:$2 sm:$0xff]
      %s3198 = scalar_lea.vmem [#allocation2], 218
      %v3199 = vld [vmem:[%s3198] ss:$2 sm:$0xff]
      %s3200 = scalar_lea.vmem [#allocation2], 242
      %v3201 = vld [vmem:[%s3200] ss:$2 sm:$0xff]
      %s3202 = scalar_lea.vmem [#allocation2], 258
      %v3203 = vld [vmem:[%s3202] ss:$2 sm:$0xff]
      %s3204 = scalar_lea.vmem [#allocation2], 282
      %v3205 = vld [vmem:[%s3204] ss:$2 sm:$0xff]
      %s3206 = scalar_lea.vmem [#allocation2], 298
      %v3207 = vld [vmem:[%s3206] ss:$2 sm:$0xff]
      %s3208 = scalar_lea.vmem [#allocation2], 322
      %v3209 = vld [vmem:[%s3208] ss:$2 sm:$0xff]
      %s3210 = scalar_lea.vmem [#allocation2], 338
      %v3211 = vld [vmem:[%s3210] ss:$2 sm:$0xff]
      %s3212 = scalar_lea.vmem [#allocation2], 362
      %v3213 = vld [vmem:[%s3212] ss:$2 sm:$0xff]
      %s3214 = scalar_lea.vmem [#allocation2], 378
      %v3215 = vld [vmem:[%s3214] ss:$2 sm:$0xff]
      %s3216 = scalar_lea.vmem [#allocation2], 402
      %v3217 = vld [vmem:[%s3216] ss:$2 sm:$0xff]
      %s3218 = scalar_lea.vmem [#allocation2], 418
      %v3219 = vld [vmem:[%s3218] ss:$2 sm:$0xff]
      %s3220 = scalar_lea.vmem [#allocation2], 442
      %v3221 = vld [vmem:[%s3220] ss:$2 sm:$0xff]
      %s3222 = scalar_lea.vmem [#allocation2], 458
      %v3223 = vld [vmem:[%s3222] ss:$2 sm:$0xff]
      %s3224 = scalar_lea.vmem [#allocation2], 482
      %v3225 = vld [vmem:[%s3224] ss:$2 sm:$0xff]
      %s3226 = scalar_lea.vmem [#allocation2], 498
      %v3227 = vld [vmem:[%s3226] ss:$2 sm:$0xff]
      %s3228 = scalar_lea.vmem [#allocation2], 522
      %v3229 = vld [vmem:[%s3228] ss:$2 sm:$0xff]
      %s3230 = scalar_lea.vmem [#allocation2], 538
      %v3231 = vld [vmem:[%s3230] ss:$2 sm:$0xff]
      %s3232 = scalar_lea.vmem [#allocation2], 562
      %v3233 = vld [vmem:[%s3232] ss:$2 sm:$0xff]
      %s3234 = scalar_lea.vmem [#allocation2], 578
      %v3235 = vld [vmem:[%s3234] ss:$2 sm:$0xff]
      %s3236 = scalar_lea.vmem [#allocation2], 602
      %v3237 = vld [vmem:[%s3236] ss:$2 sm:$0xff]
      %s3238 = scalar_lea.vmem [#allocation2], 618
      %v3239 = vld [vmem:[%s3238] ss:$2 sm:$0xff]
      %s3240 = scalar_lea.vmem [#allocation2], 642
      %v3241 = vld [vmem:[%s3240] ss:$2 sm:$0xff]
      %s3242 = scalar_lea.vmem [#allocation2], 658
      %v3243 = vld [vmem:[%s3242] ss:$2 sm:$0xff]
      %s3244 = scalar_lea.vmem [#allocation2], 682
      %v3245 = vld [vmem:[%s3244] ss:$2 sm:$0xff]
      %s3246 = scalar_lea.vmem [#allocation2], 698
      %v3247 = vld [vmem:[%s3246] ss:$2 sm:$0xff]
      %s3248 = scalar_lea.vmem [#allocation2], 722
      %v3249 = vld [vmem:[%s3248] ss:$2 sm:$0xff]
      %s3250 = scalar_lea.vmem [#allocation2], 738
      %v3251 = vld [vmem:[%s3250] ss:$2 sm:$0xff]
      %s3252 = scalar_lea.vmem [#allocation2], 762
      %v3253 = vld [vmem:[%s3252] ss:$2 sm:$0xff]
      %s3254 = scalar_lea.vmem [#allocation2], 778
      %v3255 = vld [vmem:[%s3254] ss:$2 sm:$0xff]
      %s3256 = scalar_lea.vmem [#allocation2], 802
      %v3257 = vld [vmem:[%s3256] ss:$2 sm:$0xff]
      %s3258 = scalar_lea.vmem [#allocation2], 818
      %v3259 = vld [vmem:[%s3258] ss:$2 sm:$0xff]
      %s3260 = scalar_lea.vmem [#allocation2], 842
      %v3261 = vld [vmem:[%s3260] ss:$2 sm:$0xff]
      %s3262 = scalar_lea.vmem [#allocation2], 858
      %v3263 = vld [vmem:[%s3262] ss:$2 sm:$0xff]
      %s3264 = scalar_lea.vmem [#allocation2], 882
      %v3265 = vld [vmem:[%s3264] ss:$2 sm:$0xff]
      %s3266 = scalar_lea.vmem [#allocation2], 898
      %v3267 = vld [vmem:[%s3266] ss:$2 sm:$0xff]
      %s3268 = scalar_lea.vmem [#allocation2], 922
      %v3269 = vld [vmem:[%s3268] ss:$2 sm:$0xff]
      %s3270 = scalar_lea.vmem [#allocation2], 938
      %v3271 = vld [vmem:[%s3270] ss:$2 sm:$0xff]
      %s3272 = scalar_lea.vmem [#allocation2], 962
      %v3273 = vld [vmem:[%s3272] ss:$2 sm:$0xff]
      %s3274 = scalar_lea.vmem [#allocation2], 978
      %v3275 = vld [vmem:[%s3274] ss:$2 sm:$0xff]
      %s3276 = scalar_lea.vmem [#allocation2], 1002
      %v3277 = vld [vmem:[%s3276] ss:$2 sm:$0xff]
      %s3278 = scalar_lea.vmem [#allocation2], 1018
      %v3279 = vld [vmem:[%s3278] ss:$2 sm:$0xff]
      %s3280 = scalar_lea.vmem [#allocation2], 1042
      %v3281 = vld [vmem:[%s3280] ss:$2 sm:$0xff]
      %s3282 = scalar_lea.vmem [#allocation2], 1058
      %v3283 = vld [vmem:[%s3282] ss:$2 sm:$0xff]
      %s3284 = scalar_lea.vmem [#allocation2], 1082
      %v3285 = vld [vmem:[%s3284] ss:$2 sm:$0xff]
      %s3286 = scalar_lea.vmem [#allocation2], 1098
      %v3287 = vld [vmem:[%s3286] ss:$2 sm:$0xff]
      %s3288 = scalar_lea.vmem [#allocation2], 1122
      %v3289 = vld [vmem:[%s3288] ss:$2 sm:$0xff]
      %s3290 = scalar_lea.vmem [#allocation2], 1138
      %v3291 = vld [vmem:[%s3290] ss:$2 sm:$0xff]
      %s3292 = scalar_lea.vmem [#allocation2], 1162
      %v3293 = vld [vmem:[%s3292] ss:$2 sm:$0xff]
      %s3294 = scalar_lea.vmem [#allocation2], 1178
      %v3295 = vld [vmem:[%s3294] ss:$2 sm:$0xff]
      %s3296 = scalar_lea.vmem [#allocation2], 1202
      %v3297 = vld [vmem:[%s3296] ss:$2 sm:$0xff]
      %s3298 = scalar_lea.vmem [#allocation2], 1218
      %v3299 = vld [vmem:[%s3298] ss:$2 sm:$0xff]
      %s3300 = scalar_lea.vmem [#allocation2], 1242
      %v3301 = vld [vmem:[%s3300] ss:$2 sm:$0xff]
      %s3302 = scalar_lea.vmem [#allocation2], 1258
      %v3303 = vld [vmem:[%s3302] ss:$2 sm:$0xff]
      %s3304 = scalar_lea.vmem [#allocation2], 1282
      %v3305 = vld [vmem:[%s3304] ss:$2 sm:$0xff]
      %s3306 = scalar_lea.vmem [#allocation2], 1298
      %v3307 = vld [vmem:[%s3306] ss:$2 sm:$0xff]
      %s3308 = scalar_lea.vmem [#allocation2], 1322
      %v3309 = vld [vmem:[%s3308] ss:$2 sm:$0xff]
      %s3310 = scalar_lea.vmem [#allocation2], 1338
      %v3311 = vld [vmem:[%s3310] ss:$2 sm:$0xff]
      %s3312 = scalar_lea.vmem [#allocation2], 3
      %v3313 = vld [vmem:[%s3312] ss:$2 sm:$0xff]
      %s3314 = scalar_lea.vmem [#allocation2], 19
      %v3315 = vld [vmem:[%s3314] ss:$2 sm:$0xff]
      %s3316 = scalar_lea.vmem [#allocation2], 43
      %v3317 = vld [vmem:[%s3316] ss:$2 sm:$0xff]
      %s3318 = scalar_lea.vmem [#allocation2], 59
      %v3319 = vld [vmem:[%s3318] ss:$2 sm:$0xff]
      %s3320 = scalar_lea.vmem [#allocation2], 83
      %v3321 = vld [vmem:[%s3320] ss:$2 sm:$0xff]
      %s3322 = scalar_lea.vmem [#allocation2], 99
      %v3323 = vld [vmem:[%s3322] ss:$2 sm:$0xff]
      %s3324 = scalar_lea.vmem [#allocation2], 123
      %v3325 = vld [vmem:[%s3324] ss:$2 sm:$0xff]
      %s3326 = scalar_lea.vmem [#allocation2], 139
      %v3327 = vld [vmem:[%s3326] ss:$2 sm:$0xff]
      %s3328 = scalar_lea.vmem [#allocation2], 163
      %v3329 = vld [vmem:[%s3328] ss:$2 sm:$0xff]
      %s3330 = scalar_lea.vmem [#allocation2], 179
      %v3331 = vld [vmem:[%s3330] ss:$2 sm:$0xff]
      %s3332 = scalar_lea.vmem [#allocation2], 203
      %v3333 = vld [vmem:[%s3332] ss:$2 sm:$0xff]
      %s3334 = scalar_lea.vmem [#allocation2], 219
      %v3335 = vld [vmem:[%s3334] ss:$2 sm:$0xff]
      %s3336 = scalar_lea.vmem [#allocation2], 243
      %v3337 = vld [vmem:[%s3336] ss:$2 sm:$0xff]
      %s3338 = scalar_lea.vmem [#allocation2], 259
      %v3339 = vld [vmem:[%s3338] ss:$2 sm:$0xff]
      %s3340 = scalar_lea.vmem [#allocation2], 283
      %v3341 = vld [vmem:[%s3340] ss:$2 sm:$0xff]
      %s3342 = scalar_lea.vmem [#allocation2], 299
      %v3343 = vld [vmem:[%s3342] ss:$2 sm:$0xff]
      %s3344 = scalar_lea.vmem [#allocation2], 323
      %v3345 = vld [vmem:[%s3344] ss:$2 sm:$0xff]
      %s3346 = scalar_lea.vmem [#allocation2], 339
      %v3347 = vld [vmem:[%s3346] ss:$2 sm:$0xff]
      %s3348 = scalar_lea.vmem [#allocation2], 363
      %v3349 = vld [vmem:[%s3348] ss:$2 sm:$0xff]
      %s3350 = scalar_lea.vmem [#allocation2], 379
      %v3351 = vld [vmem:[%s3350] ss:$2 sm:$0xff]
      %s3352 = scalar_lea.vmem [#allocation2], 403
      %v3353 = vld [vmem:[%s3352] ss:$2 sm:$0xff]
      %s3354 = scalar_lea.vmem [#allocation2], 419
      %v3355 = vld [vmem:[%s3354] ss:$2 sm:$0xff]
      %s3356 = scalar_lea.vmem [#allocation2], 443
      %v3357 = vld [vmem:[%s3356] ss:$2 sm:$0xff]
      %s3358 = scalar_lea.vmem [#allocation2], 459
      %v3359 = vld [vmem:[%s3358] ss:$2 sm:$0xff]
      %s3360 = scalar_lea.vmem [#allocation2], 483
      %v3361 = vld [vmem:[%s3360] ss:$2 sm:$0xff]
      %s3362 = scalar_lea.vmem [#allocation2], 499
      %v3363 = vld [vmem:[%s3362] ss:$2 sm:$0xff]
      %s3364 = scalar_lea.vmem [#allocation2], 523
      %v3365 = vld [vmem:[%s3364] ss:$2 sm:$0xff]
      %s3366 = scalar_lea.vmem [#allocation2], 539
      %v3367 = vld [vmem:[%s3366] ss:$2 sm:$0xff]
      %s3368 = scalar_lea.vmem [#allocation2], 563
      %v3369 = vld [vmem:[%s3368] ss:$2 sm:$0xff]
      %s3370 = scalar_lea.vmem [#allocation2], 579
      %v3371 = vld [vmem:[%s3370] ss:$2 sm:$0xff]
      %s3372 = scalar_lea.vmem [#allocation2], 603
      %v3373 = vld [vmem:[%s3372] ss:$2 sm:$0xff]
      %s3374 = scalar_lea.vmem [#allocation2], 619
      %v3375 = vld [vmem:[%s3374] ss:$2 sm:$0xff]
      %s3376 = scalar_lea.vmem [#allocation2], 643
      %v3377 = vld [vmem:[%s3376] ss:$2 sm:$0xff]
      %s3378 = scalar_lea.vmem [#allocation2], 659
      %v3379 = vld [vmem:[%s3378] ss:$2 sm:$0xff]
      %s3380 = scalar_lea.vmem [#allocation2], 683
      %v3381 = vld [vmem:[%s3380] ss:$2 sm:$0xff]
      %s3382 = scalar_lea.vmem [#allocation2], 699
      %v3383 = vld [vmem:[%s3382] ss:$2 sm:$0xff]
      %s3384 = scalar_lea.vmem [#allocation2], 723
      %v3385 = vld [vmem:[%s3384] ss:$2 sm:$0xff]
      %s3386 = scalar_lea.vmem [#allocation2], 739
      %v3387 = vld [vmem:[%s3386] ss:$2 sm:$0xff]
      %s3388 = scalar_lea.vmem [#allocation2], 763
      %v3389 = vld [vmem:[%s3388] ss:$2 sm:$0xff]
      %s3390 = scalar_lea.vmem [#allocation2], 779
      %v3391 = vld [vmem:[%s3390] ss:$2 sm:$0xff]
      %s3392 = scalar_lea.vmem [#allocation2], 803
      %v3393 = vld [vmem:[%s3392] ss:$2 sm:$0xff]
      %s3394 = scalar_lea.vmem [#allocation2], 819
      %v3395 = vld [vmem:[%s3394] ss:$2 sm:$0xff]
      %s3396 = scalar_lea.vmem [#allocation2], 843
      %v3397 = vld [vmem:[%s3396] ss:$2 sm:$0xff]
      %s3398 = scalar_lea.vmem [#allocation2], 859
      %v3399 = vld [vmem:[%s3398] ss:$2 sm:$0xff]
      %s3400 = scalar_lea.vmem [#allocation2], 883
      %v3401 = vld [vmem:[%s3400] ss:$2 sm:$0xff]
      %s3402 = scalar_lea.vmem [#allocation2], 899
      %v3403 = vld [vmem:[%s3402] ss:$2 sm:$0xff]
      %s3404 = scalar_lea.vmem [#allocation2], 923
      %v3405 = vld [vmem:[%s3404] ss:$2 sm:$0xff]
      %s3406 = scalar_lea.vmem [#allocation2], 939
      %v3407 = vld [vmem:[%s3406] ss:$2 sm:$0xff]
      %s3408 = scalar_lea.vmem [#allocation2], 963
      %v3409 = vld [vmem:[%s3408] ss:$2 sm:$0xff]
      %s3410 = scalar_lea.vmem [#allocation2], 979
      %v3411 = vld [vmem:[%s3410] ss:$2 sm:$0xff]
      %s3412 = scalar_lea.vmem [#allocation2], 1003
      %v3413 = vld [vmem:[%s3412] ss:$2 sm:$0xff]
      %s3414 = scalar_lea.vmem [#allocation2], 1019
      %v3415 = vld [vmem:[%s3414] ss:$2 sm:$0xff]
      %s3416 = scalar_lea.vmem [#allocation2], 1043
      %v3417 = vld [vmem:[%s3416] ss:$2 sm:$0xff]
      %s3418 = scalar_lea.vmem [#allocation2], 1059
      %v3419 = vld [vmem:[%s3418] ss:$2 sm:$0xff]
      %s3420 = scalar_lea.vmem [#allocation2], 1083
      %v3421 = vld [vmem:[%s3420] ss:$2 sm:$0xff]
      %s3422 = scalar_lea.vmem [#allocation2], 1099
      %v3423 = vld [vmem:[%s3422] ss:$2 sm:$0xff]
      %s3424 = scalar_lea.vmem [#allocation2], 1123
      %v3425 = vld [vmem:[%s3424] ss:$2 sm:$0xff]
      %s3426 = scalar_lea.vmem [#allocation2], 1139
      %v3427 = vld [vmem:[%s3426] ss:$2 sm:$0xff]
      %s3428 = scalar_lea.vmem [#allocation2], 1163
      %v3429 = vld [vmem:[%s3428] ss:$2 sm:$0xff]
      %s3430 = scalar_lea.vmem [#allocation2], 1179
      %v3431 = vld [vmem:[%s3430] ss:$2 sm:$0xff]
      %s3432 = scalar_lea.vmem [#allocation2], 1203
      %v3433 = vld [vmem:[%s3432] ss:$2 sm:$0xff]
      %s3434 = scalar_lea.vmem [#allocation2], 1219
      %v3435 = vld [vmem:[%s3434] ss:$2 sm:$0xff]
      %s3436 = scalar_lea.vmem [#allocation2], 1243
      %v3437 = vld [vmem:[%s3436] ss:$2 sm:$0xff]
      %s3438 = scalar_lea.vmem [#allocation2], 1259
      %v3439 = vld [vmem:[%s3438] ss:$2 sm:$0xff]
      %s3440 = scalar_lea.vmem [#allocation2], 1283
      %v3441 = vld [vmem:[%s3440] ss:$2 sm:$0xff]
      %s3442 = scalar_lea.vmem [#allocation2], 1299
      %v3443 = vld [vmem:[%s3442] ss:$2 sm:$0xff]
      %s3444 = scalar_lea.vmem [#allocation2], 1323
      %v3445 = vld [vmem:[%s3444] ss:$2 sm:$0xff]
      %s3446 = scalar_lea.vmem [#allocation2], 1339
      %v3447 = vld [vmem:[%s3446] ss:$2 sm:$0xff]
      %3516 = vrot.lane.b32.xlu0 %v3041, 16
      %v3517 = vpop.permute.xlu0 %3516
      %3518 = vrot.lane.b32.xlu0 %v3043, 16
      %v3519 = vpop.permute.xlu0 %3518
      %3520 = vrot.lane.b32.xlu0 %v3045, 16
      %v3521 = vpop.permute.xlu0 %3520
      %3522 = vrot.lane.b32.xlu0 %v3047, 16
      %v3523 = vpop.permute.xlu0 %3522
      %3524 = vrot.lane.b32.xlu0 %v3049, 16
      %v3525 = vpop.permute.xlu0 %3524
      %3526 = vrot.lane.b32.xlu0 %v3051, 16
      %v3527 = vpop.permute.xlu0 %3526
      %3528 = vrot.lane.b32.xlu0 %v3053, 16
      %v3529 = vpop.permute.xlu0 %3528
      %3530 = vrot.lane.b32.xlu0 %v3055, 16
      %v3531 = vpop.permute.xlu0 %3530
      %3532 = vrot.lane.b32.xlu0 %v3057, 16
      %v3533 = vpop.permute.xlu0 %3532
      %3534 = vrot.lane.b32.xlu0 %v3059, 16
      %v3535 = vpop.permute.xlu0 %3534
      %3536 = vrot.lane.b32.xlu0 %v3061, 16
      %v3537 = vpop.permute.xlu0 %3536
      %3538 = vrot.lane.b32.xlu0 %v3063, 16
      %v3539 = vpop.permute.xlu0 %3538
      %3540 = vrot.lane.b32.xlu0 %v3065, 16
      %v3541 = vpop.permute.xlu0 %3540
      %3542 = vrot.lane.b32.xlu0 %v3067, 16
      %v3543 = vpop.permute.xlu0 %3542
      %3544 = vrot.lane.b32.xlu0 %v3069, 16
      %v3545 = vpop.permute.xlu0 %3544
      %3546 = vrot.lane.b32.xlu0 %v3071, 16
      %v3547 = vpop.permute.xlu0 %3546
      %3548 = vrot.lane.b32.xlu0 %v3073, 16
      %v3549 = vpop.permute.xlu0 %3548
      %3550 = vrot.lane.b32.xlu0 %v3075, 16
      %v3551 = vpop.permute.xlu0 %3550
      %3552 = vrot.lane.b32.xlu0 %v3077, 16
      %v3553 = vpop.permute.xlu0 %3552
      %3554 = vrot.lane.b32.xlu0 %v3079, 16
      %v3555 = vpop.permute.xlu0 %3554
      %3556 = vrot.lane.b32.xlu0 %v3081, 16
      %v3557 = vpop.permute.xlu0 %3556
      %3558 = vrot.lane.b32.xlu0 %v3083, 16
      %v3559 = vpop.permute.xlu0 %3558
      %3560 = vrot.lane.b32.xlu0 %v3085, 16
      %v3561 = vpop.permute.xlu0 %3560
      %3562 = vrot.lane.b32.xlu0 %v3087, 16
      %v3563 = vpop.permute.xlu0 %3562
      %3564 = vrot.lane.b32.xlu0 %v3089, 16
      %v3565 = vpop.permute.xlu0 %3564
      %3566 = vrot.lane.b32.xlu0 %v3091, 16
      %v3567 = vpop.permute.xlu0 %3566
      %3568 = vrot.lane.b32.xlu0 %v3093, 16
      %v3569 = vpop.permute.xlu0 %3568
      %3570 = vrot.lane.b32.xlu0 %v3095, 16
      %v3571 = vpop.permute.xlu0 %3570
      %3572 = vrot.lane.b32.xlu0 %v3097, 16
      %v3573 = vpop.permute.xlu0 %3572
      %3574 = vrot.lane.b32.xlu0 %v3099, 16
      %v3575 = vpop.permute.xlu0 %3574
      %3576 = vrot.lane.b32.xlu0 %v3101, 16
      %v3577 = vpop.permute.xlu0 %3576
      %3578 = vrot.lane.b32.xlu0 %v3103, 16
      %v3579 = vpop.permute.xlu0 %3578
      %3580 = vrot.lane.b32.xlu0 %v3105, 16
      %v3581 = vpop.permute.xlu0 %3580
      %3582 = vrot.lane.b32.xlu0 %v3107, 16
      %v3583 = vpop.permute.xlu0 %3582
      %3584 = vrot.lane.b32.xlu0 %v3109, 16
      %v3585 = vpop.permute.xlu0 %3584
      %3586 = vrot.lane.b32.xlu0 %v3111, 16
      %v3587 = vpop.permute.xlu0 %3586
      %3588 = vrot.lane.b32.xlu0 %v3113, 16
      %v3589 = vpop.permute.xlu0 %3588
      %3590 = vrot.lane.b32.xlu0 %v3115, 16
      %v3591 = vpop.permute.xlu0 %3590
      %3592 = vrot.lane.b32.xlu0 %v3117, 16
      %v3593 = vpop.permute.xlu0 %3592
      %3594 = vrot.lane.b32.xlu0 %v3119, 16
      %v3595 = vpop.permute.xlu0 %3594
      %3596 = vrot.lane.b32.xlu0 %v3121, 16
      %v3597 = vpop.permute.xlu0 %3596
      %3598 = vrot.lane.b32.xlu0 %v3123, 16
      %v3599 = vpop.permute.xlu0 %3598
      %3600 = vrot.lane.b32.xlu0 %v3125, 16
      %v3601 = vpop.permute.xlu0 %3600
      %3602 = vrot.lane.b32.xlu0 %v3127, 16
      %v3603 = vpop.permute.xlu0 %3602
      %3604 = vrot.lane.b32.xlu0 %v3129, 16
      %v3605 = vpop.permute.xlu0 %3604
      %3606 = vrot.lane.b32.xlu0 %v3131, 16
      %v3607 = vpop.permute.xlu0 %3606
      %3608 = vrot.lane.b32.xlu0 %v3133, 16
      %v3609 = vpop.permute.xlu0 %3608
      %3610 = vrot.lane.b32.xlu0 %v3135, 16
      %v3611 = vpop.permute.xlu0 %3610
      %3612 = vrot.lane.b32.xlu0 %v3137, 16
      %v3613 = vpop.permute.xlu0 %3612
      %3614 = vrot.lane.b32.xlu0 %v3139, 16
      %v3615 = vpop.permute.xlu0 %3614
      %3616 = vrot.lane.b32.xlu0 %v3141, 16
      %v3617 = vpop.permute.xlu0 %3616
      %3618 = vrot.lane.b32.xlu0 %v3143, 16
      %v3619 = vpop.permute.xlu0 %3618
      %3620 = vrot.lane.b32.xlu0 %v3145, 16
      %v3621 = vpop.permute.xlu0 %3620
      %3622 = vrot.lane.b32.xlu0 %v3147, 16
      %v3623 = vpop.permute.xlu0 %3622
      %3624 = vrot.lane.b32.xlu0 %v3149, 16
      %v3625 = vpop.permute.xlu0 %3624
      %3626 = vrot.lane.b32.xlu0 %v3151, 16
      %v3627 = vpop.permute.xlu0 %3626
      %3628 = vrot.lane.b32.xlu0 %v3153, 16
      %v3629 = vpop.permute.xlu0 %3628
      %3630 = vrot.lane.b32.xlu0 %v3155, 16
      %v3631 = vpop.permute.xlu0 %3630
      %3632 = vrot.lane.b32.xlu0 %v3157, 16
      %v3633 = vpop.permute.xlu0 %3632
      %3634 = vrot.lane.b32.xlu0 %v3159, 16
      %v3635 = vpop.permute.xlu0 %3634
      %3636 = vrot.lane.b32.xlu0 %v3161, 16
      %v3637 = vpop.permute.xlu0 %3636
      %3638 = vrot.lane.b32.xlu0 %v3163, 16
      %v3639 = vpop.permute.xlu0 %3638
      %3640 = vrot.lane.b32.xlu0 %v3165, 16
      %v3641 = vpop.permute.xlu0 %3640
      %3642 = vrot.lane.b32.xlu0 %v3167, 16
      %v3643 = vpop.permute.xlu0 %3642
      %3644 = vrot.lane.b32.xlu0 %v3169, 16
      %v3645 = vpop.permute.xlu0 %3644
      %3646 = vrot.lane.b32.xlu0 %v3171, 16
      %v3647 = vpop.permute.xlu0 %3646
      %3648 = vrot.lane.b32.xlu0 %v3173, 16
      %v3649 = vpop.permute.xlu0 %3648
      %3650 = vrot.lane.b32.xlu0 %v3175, 16
      %v3651 = vpop.permute.xlu0 %3650
      %3788 = vrot.lane.b32.xlu0 %v3177, 32
      %v3789 = vpop.permute.xlu0 %3788
      %3790 = vrot.lane.b32.xlu0 %v3179, 32
      %v3791 = vpop.permute.xlu0 %3790
      %3792 = vrot.lane.b32.xlu0 %v3181, 32
      %v3793 = vpop.permute.xlu0 %3792
      %3794 = vrot.lane.b32.xlu0 %v3183, 32
      %v3795 = vpop.permute.xlu0 %3794
      %3796 = vrot.lane.b32.xlu0 %v3185, 32
      %v3797 = vpop.permute.xlu0 %3796
      %3798 = vrot.lane.b32.xlu0 %v3187, 32
      %v3799 = vpop.permute.xlu0 %3798
      %3800 = vrot.lane.b32.xlu0 %v3189, 32
      %v3801 = vpop.permute.xlu0 %3800
      %3802 = vrot.lane.b32.xlu0 %v3191, 32
      %v3803 = vpop.permute.xlu0 %3802
      %3804 = vrot.lane.b32.xlu0 %v3193, 32
      %v3805 = vpop.permute.xlu0 %3804
      %3806 = vrot.lane.b32.xlu0 %v3195, 32
      %v3807 = vpop.permute.xlu0 %3806
      %3808 = vrot.lane.b32.xlu0 %v3197, 32
      %v3809 = vpop.permute.xlu0 %3808
      %3810 = vrot.lane.b32.xlu0 %v3199, 32
      %v3811 = vpop.permute.xlu0 %3810
      %3812 = vrot.lane.b32.xlu0 %v3201, 32
      %v3813 = vpop.permute.xlu0 %3812
      %3814 = vrot.lane.b32.xlu0 %v3203, 32
      %v3815 = vpop.permute.xlu0 %3814
      %3816 = vrot.lane.b32.xlu0 %v3205, 32
      %v3817 = vpop.permute.xlu0 %3816
      %3818 = vrot.lane.b32.xlu0 %v3207, 32
      %v3819 = vpop.permute.xlu0 %3818
      %3820 = vrot.lane.b32.xlu0 %v3209, 32
      %v3821 = vpop.permute.xlu0 %3820
      %3822 = vrot.lane.b32.xlu0 %v3211, 32
      %v3823 = vpop.permute.xlu0 %3822
      %3824 = vrot.lane.b32.xlu0 %v3213, 32
      %v3825 = vpop.permute.xlu0 %3824
      %3826 = vrot.lane.b32.xlu0 %v3215, 32
      %v3827 = vpop.permute.xlu0 %3826
      %3828 = vrot.lane.b32.xlu0 %v3217, 32
      %v3829 = vpop.permute.xlu0 %3828
      %3830 = vrot.lane.b32.xlu0 %v3219, 32
      %v3831 = vpop.permute.xlu0 %3830
      %3832 = vrot.lane.b32.xlu0 %v3221, 32
      %v3833 = vpop.permute.xlu0 %3832
      %3834 = vrot.lane.b32.xlu0 %v3223, 32
      %v3835 = vpop.permute.xlu0 %3834
      %3836 = vrot.lane.b32.xlu0 %v3225, 32
      %v3837 = vpop.permute.xlu0 %3836
      %3838 = vrot.lane.b32.xlu0 %v3227, 32
      %v3839 = vpop.permute.xlu0 %3838
      %3840 = vrot.lane.b32.xlu0 %v3229, 32
      %v3841 = vpop.permute.xlu0 %3840
      %3842 = vrot.lane.b32.xlu0 %v3231, 32
      %v3843 = vpop.permute.xlu0 %3842
      %3844 = vrot.lane.b32.xlu0 %v3233, 32
      %v3845 = vpop.permute.xlu0 %3844
      %3846 = vrot.lane.b32.xlu0 %v3235, 32
      %v3847 = vpop.permute.xlu0 %3846
      %3848 = vrot.lane.b32.xlu0 %v3237, 32
      %v3849 = vpop.permute.xlu0 %3848
      %3850 = vrot.lane.b32.xlu0 %v3239, 32
      %v3851 = vpop.permute.xlu0 %3850
      %3852 = vrot.lane.b32.xlu0 %v3241, 32
      %v3853 = vpop.permute.xlu0 %3852
      %3854 = vrot.lane.b32.xlu0 %v3243, 32
      %v3855 = vpop.permute.xlu0 %3854
      %3856 = vrot.lane.b32.xlu0 %v3245, 32
      %v3857 = vpop.permute.xlu0 %3856
      %3858 = vrot.lane.b32.xlu0 %v3247, 32
      %v3859 = vpop.permute.xlu0 %3858
      %3860 = vrot.lane.b32.xlu0 %v3249, 32
      %v3861 = vpop.permute.xlu0 %3860
      %3862 = vrot.lane.b32.xlu0 %v3251, 32
      %v3863 = vpop.permute.xlu0 %3862
      %3864 = vrot.lane.b32.xlu0 %v3253, 32
      %v3865 = vpop.permute.xlu0 %3864
      %3866 = vrot.lane.b32.xlu0 %v3255, 32
      %v3867 = vpop.permute.xlu0 %3866
      %3868 = vrot.lane.b32.xlu0 %v3257, 32
      %v3869 = vpop.permute.xlu0 %3868
      %3870 = vrot.lane.b32.xlu0 %v3259, 32
      %v3871 = vpop.permute.xlu0 %3870
      %3872 = vrot.lane.b32.xlu0 %v3261, 32
      %v3873 = vpop.permute.xlu0 %3872
      %3874 = vrot.lane.b32.xlu0 %v3263, 32
      %v3875 = vpop.permute.xlu0 %3874
      %3876 = vrot.lane.b32.xlu0 %v3265, 32
      %v3877 = vpop.permute.xlu0 %3876
      %3878 = vrot.lane.b32.xlu0 %v3267, 32
      %v3879 = vpop.permute.xlu0 %3878
      %3880 = vrot.lane.b32.xlu0 %v3269, 32
      %v3881 = vpop.permute.xlu0 %3880
      %3882 = vrot.lane.b32.xlu0 %v3271, 32
      %v3883 = vpop.permute.xlu0 %3882
      %3884 = vrot.lane.b32.xlu0 %v3273, 32
      %v3885 = vpop.permute.xlu0 %3884
      %3886 = vrot.lane.b32.xlu0 %v3275, 32
      %v3887 = vpop.permute.xlu0 %3886
      %3888 = vrot.lane.b32.xlu0 %v3277, 32
      %v3889 = vpop.permute.xlu0 %3888
      %3890 = vrot.lane.b32.xlu0 %v3279, 32
      %v3891 = vpop.permute.xlu0 %3890
      %3892 = vrot.lane.b32.xlu0 %v3281, 32
      %v3893 = vpop.permute.xlu0 %3892
      %3894 = vrot.lane.b32.xlu0 %v3283, 32
      %v3895 = vpop.permute.xlu0 %3894
      %3896 = vrot.lane.b32.xlu0 %v3285, 32
      %v3897 = vpop.permute.xlu0 %3896
      %3898 = vrot.lane.b32.xlu0 %v3287, 32
      %v3899 = vpop.permute.xlu0 %3898
      %3900 = vrot.lane.b32.xlu0 %v3289, 32
      %v3901 = vpop.permute.xlu0 %3900
      %3902 = vrot.lane.b32.xlu0 %v3291, 32
      %v3903 = vpop.permute.xlu0 %3902
      %3904 = vrot.lane.b32.xlu0 %v3293, 32
      %v3905 = vpop.permute.xlu0 %3904
      %3906 = vrot.lane.b32.xlu0 %v3295, 32
      %v3907 = vpop.permute.xlu0 %3906
      %3908 = vrot.lane.b32.xlu0 %v3297, 32
      %v3909 = vpop.permute.xlu0 %3908
      %3910 = vrot.lane.b32.xlu0 %v3299, 32
      %v3911 = vpop.permute.xlu0 %3910
      %3912 = vrot.lane.b32.xlu0 %v3301, 32
      %v3913 = vpop.permute.xlu0 %3912
      %3914 = vrot.lane.b32.xlu0 %v3303, 32
      %v3915 = vpop.permute.xlu0 %3914
      %3916 = vrot.lane.b32.xlu0 %v3305, 32
      %v3917 = vpop.permute.xlu0 %3916
      %3918 = vrot.lane.b32.xlu0 %v3307, 32
      %v3919 = vpop.permute.xlu0 %3918
      %3920 = vrot.lane.b32.xlu0 %v3309, 32
      %v3921 = vpop.permute.xlu0 %3920
      %3922 = vrot.lane.b32.xlu0 %v3311, 32
      %v3923 = vpop.permute.xlu0 %3922
      %4060 = vrot.lane.b32.xlu0 %v3313, 48
      %v4061 = vpop.permute.xlu0 %4060
      %4062 = vrot.lane.b32.xlu0 %v3315, 48
      %v4063 = vpop.permute.xlu0 %4062
      %4064 = vrot.lane.b32.xlu0 %v3317, 48
      %v4065 = vpop.permute.xlu0 %4064
      %4066 = vrot.lane.b32.xlu0 %v3319, 48
      %v4067 = vpop.permute.xlu0 %4066
      %4068 = vrot.lane.b32.xlu0 %v3321, 48
      %v4069 = vpop.permute.xlu0 %4068
      %4070 = vrot.lane.b32.xlu0 %v3323, 48
      %v4071 = vpop.permute.xlu0 %4070
      %4072 = vrot.lane.b32.xlu0 %v3325, 48
      %v4073 = vpop.permute.xlu0 %4072
      %4074 = vrot.lane.b32.xlu0 %v3327, 48
      %v4075 = vpop.permute.xlu0 %4074
      %4076 = vrot.lane.b32.xlu0 %v3329, 48
      %v4077 = vpop.permute.xlu0 %4076
      %4078 = vrot.lane.b32.xlu0 %v3331, 48
      %v4079 = vpop.permute.xlu0 %4078
      %4080 = vrot.lane.b32.xlu0 %v3333, 48
      %v4081 = vpop.permute.xlu0 %4080
      %4082 = vrot.lane.b32.xlu0 %v3335, 48
      %v4083 = vpop.permute.xlu0 %4082
      %4084 = vrot.lane.b32.xlu0 %v3337, 48
      %v4085 = vpop.permute.xlu0 %4084
      %4086 = vrot.lane.b32.xlu0 %v3339, 48
      %v4087 = vpop.permute.xlu0 %4086
      %4088 = vrot.lane.b32.xlu0 %v3341, 48
      %v4089 = vpop.permute.xlu0 %4088
      %4090 = vrot.lane.b32.xlu0 %v3343, 48
      %v4091 = vpop.permute.xlu0 %4090
      %4092 = vrot.lane.b32.xlu0 %v3345, 48
      %v4093 = vpop.permute.xlu0 %4092
      %4094 = vrot.lane.b32.xlu0 %v3347, 48
      %v4095 = vpop.permute.xlu0 %4094
      %4096 = vrot.lane.b32.xlu0 %v3349, 48
      %v4097 = vpop.permute.xlu0 %4096
      %4098 = vrot.lane.b32.xlu0 %v3351, 48
      %v4099 = vpop.permute.xlu0 %4098
      %4100 = vrot.lane.b32.xlu0 %v3353, 48
      %v4101 = vpop.permute.xlu0 %4100
      %4102 = vrot.lane.b32.xlu0 %v3355, 48
      %v4103 = vpop.permute.xlu0 %4102
      %4104 = vrot.lane.b32.xlu0 %v3357, 48
      %v4105 = vpop.permute.xlu0 %4104
      %4106 = vrot.lane.b32.xlu0 %v3359, 48
      %v4107 = vpop.permute.xlu0 %4106
      %4108 = vrot.lane.b32.xlu0 %v3361, 48
      %v4109 = vpop.permute.xlu0 %4108
      %4110 = vrot.lane.b32.xlu0 %v3363, 48
      %v4111 = vpop.permute.xlu0 %4110
      %4112 = vrot.lane.b32.xlu0 %v3365, 48
      %v4113 = vpop.permute.xlu0 %4112
      %4114 = vrot.lane.b32.xlu0 %v3367, 48
      %v4115 = vpop.permute.xlu0 %4114
      %4116 = vrot.lane.b32.xlu0 %v3369, 48
      %v4117 = vpop.permute.xlu0 %4116
      %4118 = vrot.lane.b32.xlu0 %v3371, 48
      %v4119 = vpop.permute.xlu0 %4118
      %4120 = vrot.lane.b32.xlu0 %v3373, 48
      %v4121 = vpop.permute.xlu0 %4120
      %4122 = vrot.lane.b32.xlu0 %v3375, 48
      %v4123 = vpop.permute.xlu0 %4122
      %4124 = vrot.lane.b32.xlu0 %v3377, 48
      %v4125 = vpop.permute.xlu0 %4124
      %4126 = vrot.lane.b32.xlu0 %v3379, 48
      %v4127 = vpop.permute.xlu0 %4126
      %4128 = vrot.lane.b32.xlu0 %v3381, 48
      %v4129 = vpop.permute.xlu0 %4128
      %4130 = vrot.lane.b32.xlu0 %v3383, 48
      %v4131 = vpop.permute.xlu0 %4130
      %4132 = vrot.lane.b32.xlu0 %v3385, 48
      %v4133 = vpop.permute.xlu0 %4132
      %4134 = vrot.lane.b32.xlu0 %v3387, 48
      %v4135 = vpop.permute.xlu0 %4134
      %4136 = vrot.lane.b32.xlu0 %v3389, 48
      %v4137 = vpop.permute.xlu0 %4136
      %4138 = vrot.lane.b32.xlu0 %v3391, 48
      %v4139 = vpop.permute.xlu0 %4138
      %4140 = vrot.lane.b32.xlu0 %v3393, 48
      %v4141 = vpop.permute.xlu0 %4140
      %4142 = vrot.lane.b32.xlu0 %v3395, 48
      %v4143 = vpop.permute.xlu0 %4142
      %4144 = vrot.lane.b32.xlu0 %v3397, 48
      %v4145 = vpop.permute.xlu0 %4144
      %4146 = vrot.lane.b32.xlu0 %v3399, 48
      %v4147 = vpop.permute.xlu0 %4146
      %4148 = vrot.lane.b32.xlu0 %v3401, 48
      %v4149 = vpop.permute.xlu0 %4148
      %4150 = vrot.lane.b32.xlu0 %v3403, 48
      %v4151 = vpop.permute.xlu0 %4150
      %4152 = vrot.lane.b32.xlu0 %v3405, 48
      %v4153 = vpop.permute.xlu0 %4152
      %4154 = vrot.lane.b32.xlu0 %v3407, 48
      %v4155 = vpop.permute.xlu0 %4154
      %4156 = vrot.lane.b32.xlu0 %v3409, 48
      %v4157 = vpop.permute.xlu0 %4156
      %4158 = vrot.lane.b32.xlu0 %v3411, 48
      %v4159 = vpop.permute.xlu0 %4158
      %4160 = vrot.lane.b32.xlu0 %v3413, 48
      %v4161 = vpop.permute.xlu0 %4160
      %4162 = vrot.lane.b32.xlu0 %v3415, 48
      %v4163 = vpop.permute.xlu0 %4162
      %4164 = vrot.lane.b32.xlu0 %v3417, 48
      %v4165 = vpop.permute.xlu0 %4164
      %4166 = vrot.lane.b32.xlu0 %v3419, 48
      %v4167 = vpop.permute.xlu0 %4166
      %4168 = vrot.lane.b32.xlu0 %v3421, 48
      %v4169 = vpop.permute.xlu0 %4168
      %4170 = vrot.lane.b32.xlu0 %v3423, 48
      %v4171 = vpop.permute.xlu0 %4170
      %4172 = vrot.lane.b32.xlu0 %v3425, 48
      %v4173 = vpop.permute.xlu0 %4172
      %4174 = vrot.lane.b32.xlu0 %v3427, 48
      %v4175 = vpop.permute.xlu0 %4174
      %4176 = vrot.lane.b32.xlu0 %v3429, 48
      %v4177 = vpop.permute.xlu0 %4176
      %4178 = vrot.lane.b32.xlu0 %v3431, 48
      %v4179 = vpop.permute.xlu0 %4178
      %4180 = vrot.lane.b32.xlu0 %v3433, 48
      %v4181 = vpop.permute.xlu0 %4180
      %4182 = vrot.lane.b32.xlu0 %v3435, 48
      %v4183 = vpop.permute.xlu0 %4182
      %4184 = vrot.lane.b32.xlu0 %v3437, 48
      %v4185 = vpop.permute.xlu0 %4184
      %4186 = vrot.lane.b32.xlu0 %v3439, 48
      %v4187 = vpop.permute.xlu0 %4186
      %4188 = vrot.lane.b32.xlu0 %v3441, 48
      %v4189 = vpop.permute.xlu0 %4188
      %4190 = vrot.lane.b32.xlu0 %v3443, 48
      %v4191 = vpop.permute.xlu0 %4190
      %4192 = vrot.lane.b32.xlu0 %v3445, 48
      %v4193 = vpop.permute.xlu0 %4192
      %4194 = vrot.lane.b32.xlu0 %v3447, 48
      %v4195 = vpop.permute.xlu0 %4194
      %v4264 = vsel %vm357, %v2905, %v3517
      %v4265 = vsel %vm357, %v2907, %v3519
      %v4266 = vsel %vm357, %v2909, %v3521
      %v4267 = vsel %vm357, %v2911, %v3523
      %v4268 = vsel %vm357, %v2913, %v3525
      %v4269 = vsel %vm357, %v2915, %v3527
      %v4270 = vsel %vm357, %v2917, %v3529
      %v4271 = vsel %vm357, %v2919, %v3531
      %v4272 = vsel %vm357, %v2921, %v3533
      %v4273 = vsel %vm357, %v2923, %v3535
      %v4274 = vsel %vm357, %v2925, %v3537
      %v4275 = vsel %vm357, %v2927, %v3539
      %v4276 = vsel %vm357, %v2929, %v3541
      %v4277 = vsel %vm357, %v2931, %v3543
      %v4278 = vsel %vm357, %v2933, %v3545
      %v4279 = vsel %vm357, %v2935, %v3547
      %v4280 = vsel %vm357, %v2937, %v3549
      %v4281 = vsel %vm357, %v2939, %v3551
      %v4282 = vsel %vm357, %v2941, %v3553
      %v4283 = vsel %vm357, %v2943, %v3555
      %v4284 = vsel %vm357, %v2945, %v3557
      %v4285 = vsel %vm357, %v2947, %v3559
      %v4286 = vsel %vm357, %v2949, %v3561
      %v4287 = vsel %vm357, %v2951, %v3563
      %v4288 = vsel %vm357, %v2953, %v3565
      %v4289 = vsel %vm357, %v2955, %v3567
      %v4290 = vsel %vm357, %v2957, %v3569
      %v4291 = vsel %vm357, %v2959, %v3571
      %v4292 = vsel %vm357, %v2961, %v3573
      %v4293 = vsel %vm357, %v2963, %v3575
      %v4294 = vsel %vm357, %v2965, %v3577
      %v4295 = vsel %vm357, %v2967, %v3579
      %v4296 = vsel %vm357, %v2969, %v3581
      %v4297 = vsel %vm357, %v2971, %v3583
      %v4298 = vsel %vm357, %v2973, %v3585
      %v4299 = vsel %vm357, %v2975, %v3587
      %v4300 = vsel %vm357, %v2977, %v3589
      %v4301 = vsel %vm357, %v2979, %v3591
      %v4302 = vsel %vm357, %v2981, %v3593
      %v4303 = vsel %vm357, %v2983, %v3595
      %v4304 = vsel %vm357, %v2985, %v3597
      %v4305 = vsel %vm357, %v2987, %v3599
      %v4306 = vsel %vm357, %v2989, %v3601
      %v4307 = vsel %vm357, %v2991, %v3603
      %v4308 = vsel %vm357, %v2993, %v3605
      %v4309 = vsel %vm357, %v2995, %v3607
      %v4310 = vsel %vm357, %v2997, %v3609
      %v4311 = vsel %vm357, %v2999, %v3611
      %v4312 = vsel %vm357, %v3001, %v3613
      %v4313 = vsel %vm357, %v3003, %v3615
      %v4314 = vsel %vm357, %v3005, %v3617
      %v4315 = vsel %vm357, %v3007, %v3619
      %v4316 = vsel %vm357, %v3009, %v3621
      %v4317 = vsel %vm357, %v3011, %v3623
      %v4318 = vsel %vm357, %v3013, %v3625
      %v4319 = vsel %vm357, %v3015, %v3627
      %v4320 = vsel %vm357, %v3017, %v3629
      %v4321 = vsel %vm357, %v3019, %v3631
      %v4322 = vsel %vm357, %v3021, %v3633
      %v4323 = vsel %vm357, %v3023, %v3635
      %v4324 = vsel %vm357, %v3025, %v3637
      %v4325 = vsel %vm357, %v3027, %v3639
      %v4326 = vsel %vm357, %v3029, %v3641
      %v4327 = vsel %vm357, %v3031, %v3643
      %v4328 = vsel %vm357, %v3033, %v3645
      %v4329 = vsel %vm357, %v3035, %v3647
      %v4330 = vsel %vm357, %v3037, %v3649
      %v4331 = vsel %vm357, %v3039, %v3651
      %v4332 = vsel %vm528, %v4264, %v3789
      %v4333 = vsel %vm528, %v4265, %v3791
      %v4334 = vsel %vm528, %v4266, %v3793
      %v4335 = vsel %vm528, %v4267, %v3795
      %v4336 = vsel %vm528, %v4268, %v3797
      %v4337 = vsel %vm528, %v4269, %v3799
      %v4338 = vsel %vm528, %v4270, %v3801
      %v4339 = vsel %vm528, %v4271, %v3803
      %v4340 = vsel %vm528, %v4272, %v3805
      %v4341 = vsel %vm528, %v4273, %v3807
      %v4342 = vsel %vm528, %v4274, %v3809
      %v4343 = vsel %vm528, %v4275, %v3811
      %v4344 = vsel %vm528, %v4276, %v3813
      %v4345 = vsel %vm528, %v4277, %v3815
      %v4346 = vsel %vm528, %v4278, %v3817
      %v4347 = vsel %vm528, %v4279, %v3819
      %v4348 = vsel %vm528, %v4280, %v3821
      %v4349 = vsel %vm528, %v4281, %v3823
      %v4350 = vsel %vm528, %v4282, %v3825
      %v4351 = vsel %vm528, %v4283, %v3827
      %v4352 = vsel %vm528, %v4284, %v3829
      %v4353 = vsel %vm528, %v4285, %v3831
      %v4354 = vsel %vm528, %v4286, %v3833
      %v4355 = vsel %vm528, %v4287, %v3835
      %v4356 = vsel %vm528, %v4288, %v3837
      %v4357 = vsel %vm528, %v4289, %v3839
      %v4358 = vsel %vm528, %v4290, %v3841
      %v4359 = vsel %vm528, %v4291, %v3843
      %v4360 = vsel %vm528, %v4292, %v3845
      %v4361 = vsel %vm528, %v4293, %v3847
      %v4362 = vsel %vm528, %v4294, %v3849
      %v4363 = vsel %vm528, %v4295, %v3851
      %v4364 = vsel %vm528, %v4296, %v3853
      %v4365 = vsel %vm528, %v4297, %v3855
      %v4366 = vsel %vm528, %v4298, %v3857
      %v4367 = vsel %vm528, %v4299, %v3859
      %v4368 = vsel %vm528, %v4300, %v3861
      %v4369 = vsel %vm528, %v4301, %v3863
      %v4370 = vsel %vm528, %v4302, %v3865
      %v4371 = vsel %vm528, %v4303, %v3867
      %v4372 = vsel %vm528, %v4304, %v3869
      %v4373 = vsel %vm528, %v4305, %v3871
      %v4374 = vsel %vm528, %v4306, %v3873
      %v4375 = vsel %vm528, %v4307, %v3875
      %v4376 = vsel %vm528, %v4308, %v3877
      %v4377 = vsel %vm528, %v4309, %v3879
      %v4378 = vsel %vm528, %v4310, %v3881
      %v4379 = vsel %vm528, %v4311, %v3883
      %v4380 = vsel %vm528, %v4312, %v3885
      %v4381 = vsel %vm528, %v4313, %v3887
      %v4382 = vsel %vm528, %v4314, %v3889
      %v4383 = vsel %vm528, %v4315, %v3891
      %v4384 = vsel %vm528, %v4316, %v3893
      %v4385 = vsel %vm528, %v4317, %v3895
      %v4386 = vsel %vm528, %v4318, %v3897
      %v4387 = vsel %vm528, %v4319, %v3899
      %v4388 = vsel %vm528, %v4320, %v3901
      %v4389 = vsel %vm528, %v4321, %v3903
      %v4390 = vsel %vm528, %v4322, %v3905
      %v4391 = vsel %vm528, %v4323, %v3907
      %v4392 = vsel %vm528, %v4324, %v3909
      %v4393 = vsel %vm528, %v4325, %v3911
      %v4394 = vsel %vm528, %v4326, %v3913
      %v4395 = vsel %vm528, %v4327, %v3915
      %v4396 = vsel %vm528, %v4328, %v3917
      %v4397 = vsel %vm528, %v4329, %v3919
      %v4398 = vsel %vm528, %v4330, %v3921
      %v4399 = vsel %vm528, %v4331, %v3923
      %vm4400 = vcmask 392192
      %v4401 = vsel %vm4400, %v4332, %v4061
      %v4402 = vsel %vm4400, %v4333, %v4063
      %v4403 = vsel %vm4400, %v4334, %v4065
      %v4404 = vsel %vm4400, %v4335, %v4067
      %v4405 = vsel %vm4400, %v4336, %v4069
      %v4406 = vsel %vm4400, %v4337, %v4071
      %v4407 = vsel %vm4400, %v4338, %v4073
      %v4408 = vsel %vm4400, %v4339, %v4075
      %v4409 = vsel %vm4400, %v4340, %v4077
      %v4410 = vsel %vm4400, %v4341, %v4079
      %v4411 = vsel %vm4400, %v4342, %v4081
      %v4412 = vsel %vm4400, %v4343, %v4083
      %v4413 = vsel %vm4400, %v4344, %v4085
      %v4414 = vsel %vm4400, %v4345, %v4087
      %v4415 = vsel %vm4400, %v4346, %v4089
      %v4416 = vsel %vm4400, %v4347, %v4091
      %v4417 = vsel %vm4400, %v4348, %v4093
      %v4418 = vsel %vm4400, %v4349, %v4095
      %v4419 = vsel %vm4400, %v4350, %v4097
      %v4420 = vsel %vm4400, %v4351, %v4099
      %v4421 = vsel %vm4400, %v4352, %v4101
      %v4422 = vsel %vm4400, %v4353, %v4103
      %v4423 = vsel %vm4400, %v4354, %v4105
      %v4424 = vsel %vm4400, %v4355, %v4107
      %v4425 = vsel %vm4400, %v4356, %v4109
      %v4426 = vsel %vm4400, %v4357, %v4111
      %v4427 = vsel %vm4400, %v4358, %v4113
      %v4428 = vsel %vm4400, %v4359, %v4115
      %v4429 = vsel %vm4400, %v4360, %v4117
      %v4430 = vsel %vm4400, %v4361, %v4119
      %v4431 = vsel %vm4400, %v4362, %v4121
      %v4432 = vsel %vm4400, %v4363, %v4123
      %v4433 = vsel %vm4400, %v4364, %v4125
      %v4434 = vsel %vm4400, %v4365, %v4127
      %v4435 = vsel %vm4400, %v4366, %v4129
      %v4436 = vsel %vm4400, %v4367, %v4131
      %v4437 = vsel %vm4400, %v4368, %v4133
      %v4438 = vsel %vm4400, %v4369, %v4135
      %v4439 = vsel %vm4400, %v4370, %v4137
      %v4440 = vsel %vm4400, %v4371, %v4139
      %v4441 = vsel %vm4400, %v4372, %v4141
      %v4442 = vsel %vm4400, %v4373, %v4143
      %v4443 = vsel %vm4400, %v4374, %v4145
      %v4444 = vsel %vm4400, %v4375, %v4147
      %v4445 = vsel %vm4400, %v4376, %v4149
      %v4446 = vsel %vm4400, %v4377, %v4151
      %v4447 = vsel %vm4400, %v4378, %v4153
      %v4448 = vsel %vm4400, %v4379, %v4155
      %v4449 = vsel %vm4400, %v4380, %v4157
      %v4450 = vsel %vm4400, %v4381, %v4159
      %v4451 = vsel %vm4400, %v4382, %v4161
      %v4452 = vsel %vm4400, %v4383, %v4163
      %v4453 = vsel %vm4400, %v4384, %v4165
      %v4454 = vsel %vm4400, %v4385, %v4167
      %v4455 = vsel %vm4400, %v4386, %v4169
      %v4456 = vsel %vm4400, %v4387, %v4171
      %v4457 = vsel %vm4400, %v4388, %v4173
      %v4458 = vsel %vm4400, %v4389, %v4175
      %v4459 = vsel %vm4400, %v4390, %v4177
      %v4460 = vsel %vm4400, %v4391, %v4179
      %v4461 = vsel %vm4400, %v4392, %v4181
      %v4462 = vsel %vm4400, %v4393, %v4183
      %v4463 = vsel %vm4400, %v4394, %v4185
      %v4464 = vsel %vm4400, %v4395, %v4187
      %v4465 = vsel %vm4400, %v4396, %v4189
      %v4466 = vsel %vm4400, %v4397, %v4191
      %v4467 = vsel %vm4400, %v4398, %v4193
      %v4468 = vsel %vm4400, %v4399, %v4195
      %4501 = vrot.lane.b32.xlu0 %v4403, 64
      %v4502 = vpop.permute.xlu0 %4501
      %4503 = vrot.lane.b32.xlu0 %v4404, 64
      %v4504 = vpop.permute.xlu0 %4503
      %4505 = vrot.lane.b32.xlu0 %v4407, 64
      %v4506 = vpop.permute.xlu0 %4505
      %4507 = vrot.lane.b32.xlu0 %v4408, 64
      %v4508 = vpop.permute.xlu0 %4507
      %4509 = vrot.lane.b32.xlu0 %v4411, 64
      %v4510 = vpop.permute.xlu0 %4509
      %4511 = vrot.lane.b32.xlu0 %v4412, 64
      %v4512 = vpop.permute.xlu0 %4511
      %4513 = vrot.lane.b32.xlu0 %v4415, 64
      %v4514 = vpop.permute.xlu0 %4513
      %4515 = vrot.lane.b32.xlu0 %v4416, 64
      %v4516 = vpop.permute.xlu0 %4515
      %4517 = vrot.lane.b32.xlu0 %v4419, 64
      %v4518 = vpop.permute.xlu0 %4517
      %4519 = vrot.lane.b32.xlu0 %v4420, 64
      %v4520 = vpop.permute.xlu0 %4519
      %4521 = vrot.lane.b32.xlu0 %v4423, 64
      %v4522 = vpop.permute.xlu0 %4521
      %4523 = vrot.lane.b32.xlu0 %v4424, 64
      %v4524 = vpop.permute.xlu0 %4523
      %4525 = vrot.lane.b32.xlu0 %v4427, 64
      %v4526 = vpop.permute.xlu0 %4525
      %4527 = vrot.lane.b32.xlu0 %v4428, 64
      %v4528 = vpop.permute.xlu0 %4527
      %4529 = vrot.lane.b32.xlu0 %v4431, 64
      %v4530 = vpop.permute.xlu0 %4529
      %4531 = vrot.lane.b32.xlu0 %v4432, 64
      %v4532 = vpop.permute.xlu0 %4531
      %4533 = vrot.lane.b32.xlu0 %v4435, 64
      %v4534 = vpop.permute.xlu0 %4533
      %4535 = vrot.lane.b32.xlu0 %v4436, 64
      %v4536 = vpop.permute.xlu0 %4535
      %4537 = vrot.lane.b32.xlu0 %v4439, 64
      %v4538 = vpop.permute.xlu0 %4537
      %4539 = vrot.lane.b32.xlu0 %v4440, 64
      %v4540 = vpop.permute.xlu0 %4539
      %4541 = vrot.lane.b32.xlu0 %v4443, 64
      %v4542 = vpop.permute.xlu0 %4541
      %4543 = vrot.lane.b32.xlu0 %v4444, 64
      %v4544 = vpop.permute.xlu0 %4543
      %4545 = vrot.lane.b32.xlu0 %v4447, 64
      %v4546 = vpop.permute.xlu0 %4545
      %4547 = vrot.lane.b32.xlu0 %v4448, 64
      %v4548 = vpop.permute.xlu0 %4547
      %4549 = vrot.lane.b32.xlu0 %v4451, 64
      %v4550 = vpop.permute.xlu0 %4549
      %4551 = vrot.lane.b32.xlu0 %v4452, 64
      %v4552 = vpop.permute.xlu0 %4551
      %4553 = vrot.lane.b32.xlu0 %v4455, 64
      %v4554 = vpop.permute.xlu0 %4553
      %4555 = vrot.lane.b32.xlu0 %v4456, 64
      %v4556 = vpop.permute.xlu0 %4555
      %4557 = vrot.lane.b32.xlu0 %v4459, 64
      %v4558 = vpop.permute.xlu0 %4557
      %4559 = vrot.lane.b32.xlu0 %v4460, 64
      %v4560 = vpop.permute.xlu0 %4559
      %4561 = vrot.lane.b32.xlu0 %v4463, 64
      %v4562 = vpop.permute.xlu0 %4561
      %4563 = vrot.lane.b32.xlu0 %v4464, 64
      %v4564 = vpop.permute.xlu0 %4563
      %4599 = vrot.lane.b32.xlu0 %v4467, 64
      %v4600 = vpop.permute.xlu0 %4599
      %4601 = vrot.lane.b32.xlu0 %v4468, 64
      %v4602 = vpop.permute.xlu0 %4601
      %v4605 = vsel %vm583, %v4401, %v4502
      %v4606 = vsel %vm583, %v4402, %v4504
      %v4607 = vsel %vm583, %v4405, %v4506
      %v4608 = vsel %vm583, %v4406, %v4508
      %v4609 = vsel %vm583, %v4409, %v4510
      %v4610 = vsel %vm583, %v4410, %v4512
      %v4611 = vsel %vm583, %v4413, %v4514
      %v4612 = vsel %vm583, %v4414, %v4516
      %v4613 = vsel %vm583, %v4417, %v4518
      %v4614 = vsel %vm583, %v4418, %v4520
      %v4615 = vsel %vm583, %v4421, %v4522
      %v4616 = vsel %vm583, %v4422, %v4524
      %v4617 = vsel %vm583, %v4425, %v4526
      %v4618 = vsel %vm583, %v4426, %v4528
      %v4619 = vsel %vm583, %v4429, %v4530
      %v4620 = vsel %vm583, %v4430, %v4532
      %v4621 = vsel %vm583, %v4433, %v4534
      %v4622 = vsel %vm583, %v4434, %v4536
      %v4623 = vsel %vm583, %v4437, %v4538
      %v4624 = vsel %vm583, %v4438, %v4540
      %v4625 = vsel %vm583, %v4441, %v4542
      %v4626 = vsel %vm583, %v4442, %v4544
      %v4627 = vsel %vm583, %v4445, %v4546
      %v4628 = vsel %vm583, %v4446, %v4548
      %v4629 = vsel %vm583, %v4449, %v4550
      %v4630 = vsel %vm583, %v4450, %v4552
      %v4631 = vsel %vm583, %v4453, %v4554
      %v4632 = vsel %vm583, %v4454, %v4556
      %v4633 = vsel %vm583, %v4457, %v4558
      %v4634 = vsel %vm583, %v4458, %v4560
      %v4635 = vsel %vm583, %v4461, %v4562
      %v4636 = vsel %vm583, %v4462, %v4564
      %v4637 = vsel %vm583, %v4465, %v4600
      %v4638 = vsel %vm583, %v4466, %v4602
      %v4639 = vpack.c.bf16 %v4606, %v4605
      %v4640 = vpack.c.bf16 %v4608, %v4607
      %v4641 = vpack.c.bf16 %v4610, %v4609
      %v4642 = vpack.c.bf16 %v4612, %v4611
      %v4643 = vpack.c.bf16 %v4614, %v4613
      %v4644 = vpack.c.bf16 %v4616, %v4615
      %v4645 = vpack.c.bf16 %v4618, %v4617
      %v4646 = vpack.c.bf16 %v4620, %v4619
      %v4647 = vpack.c.bf16 %v4622, %v4621
      %v4648 = vpack.c.bf16 %v4624, %v4623
      %v4649 = vpack.c.bf16 %v4626, %v4625
      %v4650 = vpack.c.bf16 %v4628, %v4627
      %v4651 = vpack.c.bf16 %v4630, %v4629
      %v4652 = vpack.c.bf16 %v4632, %v4631
      %v4653 = vpack.c.bf16 %v4634, %v4633
      %v4654 = vpack.c.bf16 %v4636, %v4635
      %v4655 = vpack.c.bf16 %v4638, %v4637
      %v4656 = vld [vmem:[%s3] sm:$0xf]
      %v4657 = vld [vmem:[%s3 + $0x4] sm:$0xf]
      %v4658 = vld [vmem:[%s3 + $0x8] sm:$0xf]
      %v4659 = vld [vmem:[%s3 + $0xc] sm:$0xf]
      %v4660 = vld [vmem:[%s3 + $0x10] sm:$0xf]
      %v4661 = vld [vmem:[%s3 + $0x14] sm:$0xf]
      %v4662 = vld [vmem:[%s3 + $0x18] sm:$0xf]
      %v4663 = vld [vmem:[%s3 + $0x1c] sm:$0xf]
      %v4664 = vld [vmem:[%s3 + $0x20] sm:$0xf]
      %v4665 = vld [vmem:[%s3 + $0x24] sm:$0xf]
      %v4666 = vld [vmem:[%s3 + $0x28] sm:$0xf]
      %v4667 = vld [vmem:[%s3 + $0x2c] sm:$0xf]
      %v4668 = vld [vmem:[%s3 + $0x30] sm:$0xf]
      %v4669 = vld [vmem:[%s3 + $0x34] sm:$0xf]
      %v4670 = vld [vmem:[%s3 + $0x38] sm:$0xf]
      %v4671 = vld [vmem:[%s3 + $0x3c] sm:$0xf]
      %v4672 = vld [vmem:[%s3 + $0x40] sm:$0xf]
      %v4673 = vld [vmem:[%s3 + $0x44] sm:$0xf]
      %v4674 = vld [vmem:[%s3 + $0x48] sm:$0xf]
      %v4675 = vld [vmem:[%s3 + $0x4c] sm:$0xf]
      %v4676 = vld [vmem:[%s3 + $0x50] sm:$0xf]
      %v4677 = vld [vmem:[%s3 + $0x54] sm:$0xf]
      %v4678 = vld [vmem:[%s3 + $0x58] sm:$0xf]
      %v4679 = vld [vmem:[%s3 + $0x5c] sm:$0xf]
      %v4680 = vld [vmem:[%s3 + $0x60] sm:$0xf]
      %v4681 = vld [vmem:[%s3 + $0x64] sm:$0xf]
      %v4682 = vld [vmem:[%s3 + $0x68] sm:$0xf]
      %v4683 = vld [vmem:[%s3 + $0x6c] sm:$0xf]
      %v4684 = vld [vmem:[%s3 + $0x70] sm:$0xf]
      %v4685 = vld [vmem:[%s3 + $0x74] sm:$0xf]
      %v4686 = vld [vmem:[%s3 + $0x78] sm:$0xf]
      %v4687 = vld [vmem:[%s3 + $0x7c] sm:$0xf]
      %v4688 = vld [vmem:[%s4] sm:$0x1]
      %v4690 = vlaneseq
      %v4691 = vshrl.u32 %v4690, 7
      %v4692 = vsub.s32 0, %v4691
      %v4693 = vrot.slane %v4688, %v4692
      %v4727 = vunpack.c.l.b16 %v4656
      %v4728 = vunpack.c.l.b16 %v4657
      %v4729 = vunpack.c.l.b16 %v4658
      %v4730 = vunpack.c.l.b16 %v4659
      %v4731 = vunpack.c.l.b16 %v4660
      %v4732 = vunpack.c.l.b16 %v4661
      %v4733 = vunpack.c.l.b16 %v4662
      %v4734 = vunpack.c.l.b16 %v4663
      %v4735 = vunpack.c.l.b16 %v4664
      %v4736 = vunpack.c.l.b16 %v4665
      %v4737 = vunpack.c.l.b16 %v4666
      %v4738 = vunpack.c.l.b16 %v4667
      %v4739 = vunpack.c.l.b16 %v4668
      %v4740 = vunpack.c.l.b16 %v4669
      %v4741 = vunpack.c.l.b16 %v4670
      %v4742 = vunpack.c.l.b16 %v4671
      %v4743 = vunpack.c.l.b16 %v4672
      %v4744 = vunpack.c.l.b16 %v4673
      %v4745 = vunpack.c.l.b16 %v4674
      %v4746 = vunpack.c.l.b16 %v4675
      %v4747 = vunpack.c.l.b16 %v4676
      %v4748 = vunpack.c.l.b16 %v4677
      %v4749 = vunpack.c.l.b16 %v4678
      %v4750 = vunpack.c.l.b16 %v4679
      %v4751 = vunpack.c.l.b16 %v4680
      %v4752 = vunpack.c.l.b16 %v4681
      %v4753 = vunpack.c.l.b16 %v4682
      %v4754 = vunpack.c.l.b16 %v4683
      %v4755 = vunpack.c.l.b16 %v4684
      %v4756 = vunpack.c.l.b16 %v4685
      %v4757 = vunpack.c.l.b16 %v4686
      %v4758 = vunpack.c.l.b16 %v4687
      %v4759 = vpack.c.b16 %v4728, %v4727
      %v4760 = vpack.c.b16 %v4730, %v4729
      %v4761 = vpack.c.b16 %v4732, %v4731
      %v4762 = vpack.c.b16 %v4734, %v4733
      %v4763 = vpack.c.b16 %v4736, %v4735
      %v4764 = vpack.c.b16 %v4738, %v4737
      %v4765 = vpack.c.b16 %v4740, %v4739
      %v4766 = vpack.c.b16 %v4742, %v4741
      %v4767 = vpack.c.b16 %v4744, %v4743
      %v4768 = vpack.c.b16 %v4746, %v4745
      %v4769 = vpack.c.b16 %v4748, %v4747
      %v4770 = vpack.c.b16 %v4750, %v4749
      %v4771 = vpack.c.b16 %v4752, %v4751
      %v4772 = vpack.c.b16 %v4754, %v4753
      %v4773 = vpack.c.b16 %v4756, %v4755
      %v4774 = vpack.c.b16 %v4758, %v4757
      %4791 = vmatprep.subr.bf16.mxu0 0
      %4792 = vmatpush1.bf16.msra.mxu0 %v4759
      %4793 = vmatprep.subr.bf16.mxu0 0
      %4794 = vmatpush1.bf16.msra.mxu0 %v4760
      %4795 = vmatprep.subr.bf16.mxu0 0
      %4796 = vmatpush1.bf16.msra.mxu0 %v4761
      %4797 = vmatprep.subr.bf16.mxu0 0
      %4798 = vmatpush1.bf16.msra.mxu0 %v4762
      %4799 = vmatprep.subr.bf16.mxu0 0
      %4800 = vmatpush1.bf16.msra.mxu0 %v4763
      %4801 = vmatprep.subr.bf16.mxu0 0
      %4802 = vmatpush1.bf16.msra.mxu0 %v4764
      %4803 = vmatprep.subr.bf16.mxu0 0
      %4804 = vmatpush1.bf16.msra.mxu0 %v4765
      %4805 = vmatprep.subr.bf16.mxu0 0
      %4806 = vmatpush1.bf16.msra.mxu0 %v4766
      %4807 = vmatprep.subr.bf16.mxu0 0
      %4808 = vmatpush1.bf16.msra.mxu0 %v4767
      %4809 = vmatprep.subr.bf16.mxu0 0
      %4810 = vmatpush1.bf16.msra.mxu0 %v4768
      %4811 = vmatprep.subr.bf16.mxu0 0
      %4812 = vmatpush1.bf16.msra.mxu0 %v4769
      %4813 = vmatprep.subr.bf16.mxu0 0
      %4814 = vmatpush1.bf16.msra.mxu0 %v4770
      %4815 = vmatprep.subr.bf16.mxu0 0
      %4816 = vmatpush1.bf16.msra.mxu0 %v4771
      %4817 = vmatprep.subr.bf16.mxu0 0
      %4818 = vmatpush1.bf16.msra.mxu0 %v4772
      %4819 = vmatprep.subr.bf16.mxu0 0
      %4820 = vmatpush1.bf16.msra.mxu0 %v4773
      %4821 = vmatprep.subr.bf16.mxu0 0
      %4822 = vmatpush1.bf16.msra.mxu0 %v4774
      %4823 = vmatprep.mubr.bf16.mxu0 %v4640
      %4824 = vmatmul.mubr.bf16.gmra.mrb[0].mxu0 %v4639
      %v4825 = vpop.f32.mrb[0].mxu0
      %v4826 = vadd.f32 %v4693, %v4825
      %v4827 = vpop.f32.mrb[0].mxu0
      %v4828 = vpop.f32.mrb[0].mxu0
      %v4829 = vadd.f32 %v4693, %v4828
      %v4830 = vpop.f32.mrb[0].mxu0
      %4831 = vmatprep.mubr.bf16.mxu0 %v4641
      %4832 = vmatmul.mubr.bf16.gmra.mrb[0].mxu0 %v4640
      %v4833 = vpop.f32.mrb[0].mxu0
      %v4834 = vadd.f32 %v4693, %v4833
      %v4835 = vpop.f32.mrb[0].mxu0
      %v4836 = vpop.f32.mrb[0].mxu0
      %v4837 = vadd.f32 %v4693, %v4836
      %v4838 = vpop.f32.mrb[0].mxu0
      %4839 = vmatprep.mubr.bf16.mxu0 %v4642
      %4840 = vmatmul.mubr.bf16.gmra.mrb[0].mxu0 %v4641
      %v4841 = vpop.f32.mrb[0].mxu0
      %v4842 = vadd.f32 %v4693, %v4841
      %v4843 = vpop.f32.mrb[0].mxu0
      %v4844 = vpop.f32.mrb[0].mxu0
      %v4845 = vadd.f32 %v4693, %v4844
      %v4846 = vpop.f32.mrb[0].mxu0
      %4847 = vmatprep.mubr.bf16.mxu0 %v4643
      %4848 = vmatmul.mubr.bf16.gmra.mrb[0].mxu0 %v4642
      %v4849 = vpop.f32.mrb[0].mxu0
      %v4850 = vadd.f32 %v4693, %v4849
      %v4851 = vpop.f32.mrb[0].mxu0
      %v4852 = vpop.f32.mrb[0].mxu0
      %v4853 = vadd.f32 %v4693, %v4852
      %v4854 = vpop.f32.mrb[0].mxu0
      %4855 = vmatprep.mubr.bf16.mxu0 %v4644
      %4856 = vmatmul.mubr.bf16.gmra.mrb[0].mxu0 %v4643
      %v4857 = vpop.f32.mrb[0].mxu0
      %v4858 = vadd.f32 %v4693, %v4857
      %v4859 = vpop.f32.mrb[0].mxu0
      %v4860 = vpop.f32.mrb[0].mxu0
      %v4861 = vadd.f32 %v4693, %v4860
      %v4862 = vpop.f32.mrb[0].mxu0
      %4863 = vmatprep.mubr.bf16.mxu0 %v4645
      %4864 = vmatmul.mubr.bf16.gmra.mrb[0].mxu0 %v4644
      %v4865 = vpop.f32.mrb[0].mxu0
      %v4866 = vadd.f32 %v4693, %v4865
      %v4867 = vpop.f32.mrb[0].mxu0
      %v4868 = vpop.f32.mrb[0].mxu0
      %v4869 = vadd.f32 %v4693, %v4868
      %v4870 = vpop.f32.mrb[0].mxu0
      %4871 = vmatprep.mubr.bf16.mxu0 %v4646
      %4872 = vmatmul.mubr.bf16.gmra.mrb[0].mxu0 %v4645
      %v4873 = vpop.f32.mrb[0].mxu0
      %v4874 = vadd.f32 %v4693, %v4873
      %v4875 = vpop.f32.mrb[0].mxu0
      %v4876 = vpop.f32.mrb[0].mxu0
      %v4877 = vadd.f32 %v4693, %v4876
      %v4878 = vpop.f32.mrb[0].mxu0
      %4879 = vmatprep.mubr.bf16.mxu0 %v4647
      %4880 = vmatmul.mubr.bf16.gmra.mrb[0].mxu0 %v4646
      %v4881 = vpop.f32.mrb[0].mxu0
      %v4882 = vadd.f32 %v4693, %v4881
      %v4883 = vpop.f32.mrb[0].mxu0
      %v4884 = vpop.f32.mrb[0].mxu0
      %v4885 = vadd.f32 %v4693, %v4884
      %v4886 = vpop.f32.mrb[0].mxu0
      %4887 = vmatprep.mubr.bf16.mxu0 %v4648
      %4888 = vmatmul.mubr.bf16.gmra.mrb[0].mxu0 %v4647
      %v4889 = vpop.f32.mrb[0].mxu0
      %v4890 = vadd.f32 %v4693, %v4889
      %v4891 = vpop.f32.mrb[0].mxu0
      %v4892 = vpop.f32.mrb[0].mxu0
      %v4893 = vadd.f32 %v4693, %v4892
      %v4894 = vpop.f32.mrb[0].mxu0
      %4895 = vmatprep.mubr.bf16.mxu0 %v4649
      %4896 = vmatmul.mubr.bf16.gmra.mrb[0].mxu0 %v4648
      %v4897 = vpop.f32.mrb[0].mxu0
      %v4898 = vadd.f32 %v4693, %v4897
      %v4899 = vpop.f32.mrb[0].mxu0
      %v4900 = vpop.f32.mrb[0].mxu0
      %v4901 = vadd.f32 %v4693, %v4900
      %v4902 = vpop.f32.mrb[0].mxu0
      %4903 = vmatprep.mubr.bf16.mxu0 %v4650
      %4904 = vmatmul.mubr.bf16.gmra.mrb[0].mxu0 %v4649
      %v4905 = vpop.f32.mrb[0].mxu0
      %v4906 = vadd.f32 %v4693, %v4905
      %v4907 = vpop.f32.mrb[0].mxu0
      %v4908 = vpop.f32.mrb[0].mxu0
      %v4909 = vadd.f32 %v4693, %v4908
      %v4910 = vpop.f32.mrb[0].mxu0
      %4911 = vmatprep.mubr.bf16.mxu0 %v4651
      %4912 = vmatmul.mubr.bf16.gmra.mrb[0].mxu0 %v4650
      %v4913 = vpop.f32.mrb[0].mxu0
      %v4914 = vadd.f32 %v4693, %v4913
      %v4915 = vpop.f32.mrb[0].mxu0
      %v4916 = vpop.f32.mrb[0].mxu0
      %v4917 = vadd.f32 %v4693, %v4916
      %v4918 = vpop.f32.mrb[0].mxu0
      %4919 = vmatprep.mubr.bf16.mxu0 %v4652
      %4920 = vmatmul.mubr.bf16.gmra.mrb[0].mxu0 %v4651
      %v4921 = vpop.f32.mrb[0].mxu0
      %v4922 = vadd.f32 %v4693, %v4921
      %v4923 = vpop.f32.mrb[0].mxu0
      %v4924 = vpop.f32.mrb[0].mxu0
      %v4925 = vadd.f32 %v4693, %v4924
      %v4926 = vpop.f32.mrb[0].mxu0
      %4927 = vmatprep.mubr.bf16.mxu0 %v4653
      %4928 = vmatmul.mubr.bf16.gmra.mrb[0].mxu0 %v4652
      %v4929 = vpop.f32.mrb[0].mxu0
      %v4930 = vadd.f32 %v4693, %v4929
      %v4931 = vpop.f32.mrb[0].mxu0
      %v4932 = vpop.f32.mrb[0].mxu0
      %v4933 = vadd.f32 %v4693, %v4932
      %v4934 = vpop.f32.mrb[0].mxu0
      %4935 = vmatprep.mubr.bf16.mxu0 %v4654
      %4936 = vmatmul.mubr.bf16.gmra.mrb[0].mxu0 %v4653
      %v4937 = vpop.f32.mrb[0].mxu0
      %v4938 = vadd.f32 %v4693, %v4937
      %v4939 = vpop.f32.mrb[0].mxu0
      %v4940 = vpop.f32.mrb[0].mxu0
      %v4941 = vadd.f32 %v4693, %v4940
      %v4942 = vpop.f32.mrb[0].mxu0
      %4943 = vmatprep.mubr.bf16.mxu0 %v4655
      %4944 = vmatmul.mubr.bf16.gmra.mrb[0].mxu0 %v4654
      %v4945 = vpop.f32.mrb[0].mxu0
      %v4946 = vadd.f32 %v4693, %v4945
      %v4947 = vpop.f32.mrb[0].mxu0
      %v4948 = vpop.f32.mrb[0].mxu0
      %v4949 = vadd.f32 %v4693, %v4948
      %v4950 = vpop.f32.mrb[0].mxu0
      %4951 = vdwg.mxu0
      %vm4952 = vcmp.ge.f32.partialorder %v4826, 0.0
      %vm4953 = vcmp.ge.f32.partialorder %v4829, 0.0
      %vm4954 = vcmp.ge.f32.partialorder %v4834, 0.0
      %vm4955 = vcmp.ge.f32.partialorder %v4837, 0.0
      %vm4956 = vcmp.ge.f32.partialorder %v4842, 0.0
      %vm4957 = vcmp.ge.f32.partialorder %v4845, 0.0
      %vm4958 = vcmp.ge.f32.partialorder %v4850, 0.0
      %vm4959 = vcmp.ge.f32.partialorder %v4853, 0.0
      %vm4960 = vcmp.ge.f32.partialorder %v4858, 0.0
      %vm4961 = vcmp.ge.f32.partialorder %v4861, 0.0
      %vm4962 = vcmp.ge.f32.partialorder %v4866, 0.0
      %vm4963 = vcmp.ge.f32.partialorder %v4869, 0.0
      %vm4964 = vcmp.ge.f32.partialorder %v4874, 0.0
      %vm4965 = vcmp.ge.f32.partialorder %v4877, 0.0
      %vm4966 = vcmp.ge.f32.partialorder %v4882, 0.0
      %vm4967 = vcmp.ge.f32.partialorder %v4885, 0.0
      %vm4968 = vcmp.ge.f32.partialorder %v4890, 0.0
      %vm4969 = vcmp.ge.f32.partialorder %v4893, 0.0
      %vm4970 = vcmp.ge.f32.partialorder %v4898, 0.0
      %vm4971 = vcmp.ge.f32.partialorder %v4901, 0.0
      %vm4972 = vcmp.ge.f32.partialorder %v4906, 0.0
      %vm4973 = vcmp.ge.f32.partialorder %v4909, 0.0
      %vm4974 = vcmp.ge.f32.partialorder %v4914, 0.0
      %vm4975 = vcmp.ge.f32.partialorder %v4917, 0.0
      %vm4976 = vcmp.ge.f32.partialorder %v4922, 0.0
      %vm4977 = vcmp.ge.f32.partialorder %v4925, 0.0
      %vm4978 = vcmp.ge.f32.partialorder %v4930, 0.0
      %vm4979 = vcmp.ge.f32.partialorder %v4933, 0.0
      %vm4980 = vcmp.ge.f32.partialorder %v4938, 0.0
      %vm4981 = vcmp.ge.f32.partialorder %v4941, 0.0
      %vm4982 = vcmp.ge.f32.partialorder %v4946, 0.0
      %vm4983 = vcmp.ge.f32.partialorder %v4949, 0.0
      %v4984 = vmul.f32 %v4826, 0.1
      %v4985 = vmul.f32 %v4829, 0.1
      %v4986 = vmul.f32 %v4834, 0.1
      %v4987 = vmul.f32 %v4837, 0.1
      %v4988 = vmul.f32 %v4842, 0.1
      %v4989 = vmul.f32 %v4845, 0.1
      %v4990 = vmul.f32 %v4850, 0.1
      %v4991 = vmul.f32 %v4853, 0.1
      %v4992 = vmul.f32 %v4858, 0.1
      %v4993 = vmul.f32 %v4861, 0.1
      %v4994 = vmul.f32 %v4866, 0.1
      %v4995 = vmul.f32 %v4869, 0.1
      %v4996 = vmul.f32 %v4874, 0.1
      %v4997 = vmul.f32 %v4877, 0.1
      %v4998 = vmul.f32 %v4882, 0.1
      %v4999 = vmul.f32 %v4885, 0.1
      %v5000 = vmul.f32 %v4890, 0.1
      %v5001 = vmul.f32 %v4893, 0.1
      %v5002 = vmul.f32 %v4898, 0.1
      %v5003 = vmul.f32 %v4901, 0.1
      %v5004 = vmul.f32 %v4906, 0.1
      %v5005 = vmul.f32 %v4909, 0.1
      %v5006 = vmul.f32 %v4914, 0.1
      %v5007 = vmul.f32 %v4917, 0.1
      %v5008 = vmul.f32 %v4922, 0.1
      %v5009 = vmul.f32 %v4925, 0.1
      %v5010 = vmul.f32 %v4930, 0.1
      %v5011 = vmul.f32 %v4933, 0.1
      %v5012 = vmul.f32 %v4938, 0.1
      %v5013 = vmul.f32 %v4941, 0.1
      %v5014 = vmul.f32 %v4946, 0.1
      %v5015 = vmul.f32 %v4949, 0.1
      %v5016 = vsel %vm4952, %v4826, %v4984
      %v5017 = vsel %vm4953, %v4829, %v4985
      %v5018 = vsel %vm4954, %v4834, %v4986
      %v5019 = vsel %vm4955, %v4837, %v4987
      %v5020 = vsel %vm4956, %v4842, %v4988
      %v5021 = vsel %vm4957, %v4845, %v4989
      %v5022 = vsel %vm4958, %v4850, %v4990
      %v5023 = vsel %vm4959, %v4853, %v4991
      %v5024 = vsel %vm4960, %v4858, %v4992
      %v5025 = vsel %vm4961, %v4861, %v4993
      %v5026 = vsel %vm4962, %v4866, %v4994
      %v5027 = vsel %vm4963, %v4869, %v4995
      %v5028 = vsel %vm4964, %v4874, %v4996
      %v5029 = vsel %vm4965, %v4877, %v4997
      %v5030 = vsel %vm4966, %v4882, %v4998
      %v5031 = vsel %vm4967, %v4885, %v4999
      %v5032 = vsel %vm4968, %v4890, %v5000
      %v5033 = vsel %vm4969, %v4893, %v5001
      %v5034 = vsel %vm4970, %v4898, %v5002
      %v5035 = vsel %vm4971, %v4901, %v5003
      %v5036 = vsel %vm4972, %v4906, %v5004
      %v5037 = vsel %vm4973, %v4909, %v5005
      %v5038 = vsel %vm4974, %v4914, %v5006
      %v5039 = vsel %vm4975, %v4917, %v5007
      %v5040 = vsel %vm4976, %v4922, %v5008
      %v5041 = vsel %vm4977, %v4925, %v5009
      %v5042 = vsel %vm4978, %v4930, %v5010
      %v5043 = vsel %vm4979, %v4933, %v5011
      %v5044 = vsel %vm4980, %v4938, %v5012
      %v5045 = vsel %vm4981, %v4941, %v5013
      %v5046 = vsel %vm4982, %v4946, %v5014
      %v5047 = vsel %vm4983, %v4949, %v5015
      %v5080 = vrot.slane %v5016, 7
      %v5081 = vrot.slane %v5017, 7
      %v5082 = vsel %vm2326, %v5080, %v5081
      %v5083 = vrot.slane %v5018, 7
      %v5084 = vrot.slane %v5019, 7
      %v5085 = vsel %vm2326, %v5083, %v5084
      %v5086 = vrot.slane %v5020, 7
      %v5087 = vrot.slane %v5021, 7
      %v5088 = vsel %vm2326, %v5086, %v5087
      %v5089 = vrot.slane %v5022, 7
      %v5090 = vrot.slane %v5023, 7
      %v5091 = vsel %vm2326, %v5089, %v5090
      %v5092 = vrot.slane %v5024, 7
      %v5093 = vrot.slane %v5025, 7
      %v5094 = vsel %vm2326, %v5092, %v5093
      %v5095 = vrot.slane %v5026, 7
      %v5096 = vrot.slane %v5027, 7
      %v5097 = vsel %vm2326, %v5095, %v5096
      %v5098 = vrot.slane %v5028, 7
      %v5099 = vrot.slane %v5029, 7
      %v5100 = vsel %vm2326, %v5098, %v5099
      %v5101 = vrot.slane %v5030, 7
      %v5102 = vrot.slane %v5031, 7
      %v5103 = vsel %vm2326, %v5101, %v5102
      %v5104 = vrot.slane %v5032, 7
      %v5105 = vrot.slane %v5033, 7
      %v5106 = vsel %vm2326, %v5104, %v5105
      %v5107 = vrot.slane %v5034, 7
      %v5108 = vrot.slane %v5035, 7
      %v5109 = vsel %vm2326, %v5107, %v5108
      %v5110 = vrot.slane %v5036, 7
      %v5111 = vrot.slane %v5037, 7
      %v5112 = vsel %vm2326, %v5110, %v5111
      %v5113 = vrot.slane %v5038, 7
      %v5114 = vrot.slane %v5039, 7
      %v5115 = vsel %vm2326, %v5113, %v5114
      %v5116 = vrot.slane %v5040, 7
      %v5117 = vrot.slane %v5041, 7
      %v5118 = vsel %vm2326, %v5116, %v5117
      %v5119 = vrot.slane %v5042, 7
      %v5120 = vrot.slane %v5043, 7
      %v5121 = vsel %vm2326, %v5119, %v5120
      %v5122 = vrot.slane %v5044, 7
      %v5123 = vrot.slane %v5045, 7
      %v5124 = vsel %vm2326, %v5122, %v5123
      %v5125 = vrot.slane %v5046, 7
      %v5126 = vrot.slane %v5047, 7
      %v5127 = vsel %vm2326, %v5125, %v5126
      %v5176 = vsel %vm2326, 0.0, %v5080
      %v5177 = vsel %vm2326, 0.0, %v5083
      %v5178 = vsel %vm2326, 0.0, %v5086
      %v5179 = vsel %vm2326, 0.0, %v5089
      %v5180 = vsel %vm2326, 0.0, %v5092
      %v5181 = vsel %vm2326, 0.0, %v5095
      %v5182 = vsel %vm2326, 0.0, %v5098
      %v5183 = vsel %vm2326, 0.0, %v5101
      %v5184 = vsel %vm2326, 0.0, %v5104
      %v5185 = vsel %vm2326, 0.0, %v5107
      %v5186 = vsel %vm2326, 0.0, %v5110
      %v5187 = vsel %vm2326, 0.0, %v5113
      %v5188 = vsel %vm2326, 0.0, %v5116
      %v5189 = vsel %vm2326, 0.0, %v5119
      %v5190 = vsel %vm2326, 0.0, %v5122
      %v5191 = vsel %vm2326, 0.0, %v5125
      %s5192 = scalar_lea.vmem [#allocation3], 24
      %5193 = vst.msk [vmem:[%s5192] sm:$0xff] %vm528, %v5176
      %5194 = vst.msk [vmem:[%s5192 + $0x8] sm:$0xff] %vm528, %v5082
      %vm5195 = vcmask 253952
      %5196 = vst.msk [vmem:[%s5192 + $0x10] sm:$0x1] %vm5195, %v5081
      %5197 = vst.msk [vmem:[%s5192 + $0x18] sm:$0xff] %vm528, %v5177
      %5198 = vst.msk [vmem:[%s5192 + $0x20] sm:$0xff] %vm528, %v5085
      %5199 = vst.msk [vmem:[%s5192 + $0x28] sm:$0x1] %vm5195, %v5084
      %5200 = vst.msk [vmem:[%s5192 + $0x30] sm:$0xff] %vm528, %v5178
      %5201 = vst.msk [vmem:[%s5192 + $0x38] sm:$0xff] %vm528, %v5088
      %5202 = vst.msk [vmem:[%s5192 + $0x40] sm:$0x1] %vm5195, %v5087
      %5203 = vst.msk [vmem:[%s5192 + $0x48] sm:$0xff] %vm528, %v5179
      %5204 = vst.msk [vmem:[%s5192 + $0x50] sm:$0xff] %vm528, %v5091
      %5205 = vst.msk [vmem:[%s5192 + $0x58] sm:$0x1] %vm5195, %v5090
      %5206 = vst.msk [vmem:[%s5192 + $0x60] sm:$0xff] %vm528, %v5180
      %5207 = vst.msk [vmem:[%s5192 + $0x68] sm:$0xff] %vm528, %v5094
      %5208 = vst.msk [vmem:[%s5192 + $0x70] sm:$0x1] %vm5195, %v5093
      %5209 = vst.msk [vmem:[%s5192 + $0x78] sm:$0xff] %vm528, %v5181
      %5210 = vst.msk [vmem:[%s5192 + $0x80] sm:$0xff] %vm528, %v5097
      %5211 = vst.msk [vmem:[%s5192 + $0x88] sm:$0x1] %vm5195, %v5096
      %5212 = vst.msk [vmem:[%s5192 + $0x90] sm:$0xff] %vm528, %v5182
      %5213 = vst.msk [vmem:[%s5192 + $0x98] sm:$0xff] %vm528, %v5100
      %5214 = vst.msk [vmem:[%s5192 + $0xa0] sm:$0x1] %vm5195, %v5099
      %5215 = vst.msk [vmem:[%s5192 + $0xa8] sm:$0xff] %vm528, %v5183
      %5216 = vst.msk [vmem:[%s5192 + $0xb0] sm:$0xff] %vm528, %v5103
      %5217 = vst.msk [vmem:[%s5192 + $0xb8] sm:$0x1] %vm5195, %v5102
      %5218 = vst.msk [vmem:[%s5192 + $0xc0] sm:$0xff] %vm528, %v5184
      %5219 = vst.msk [vmem:[%s5192 + $0xc8] sm:$0xff] %vm528, %v5106
      %5220 = vst.msk [vmem:[%s5192 + $0xd0] sm:$0x1] %vm5195, %v5105
      %5221 = vst.msk [vmem:[%s5192 + $0xd8] sm:$0xff] %vm528, %v5185
      %5222 = vst.msk [vmem:[%s5192 + $0xe0] sm:$0xff] %vm528, %v5109
      %5223 = vst.msk [vmem:[%s5192 + $0xe8] sm:$0x1] %vm5195, %v5108
      %5224 = vst.msk [vmem:[%s5192 + $0xf0] sm:$0xff] %vm528, %v5186
      %5225 = vst.msk [vmem:[%s5192 + $0xf8] sm:$0xff] %vm528, %v5112
      %5226 = vst.msk [vmem:[%s5192 + $0x100] sm:$0x1] %vm5195, %v5111
      %5227 = vst.msk [vmem:[%s5192 + $0x108] sm:$0xff] %vm528, %v5187
      %5228 = vst.msk [vmem:[%s5192 + $0x110] sm:$0xff] %vm528, %v5115
      %5229 = vst.msk [vmem:[%s5192 + $0x118] sm:$0x1] %vm5195, %v5114
      %5230 = vst.msk [vmem:[%s5192 + $0x120] sm:$0xff] %vm528, %v5188
      %5231 = vst.msk [vmem:[%s5192 + $0x128] sm:$0xff] %vm528, %v5118
      %5232 = vst.msk [vmem:[%s5192 + $0x130] sm:$0x1] %vm5195, %v5117
      %5233 = vst.msk [vmem:[%s5192 + $0x138] sm:$0xff] %vm528, %v5189
      %5234 = vst.msk [vmem:[%s5192 + $0x140] sm:$0xff] %vm528, %v5121
      %5235 = vst.msk [vmem:[%s5192 + $0x148] sm:$0x1] %vm5195, %v5120
      %5236 = vst.msk [vmem:[%s5192 + $0x150] sm:$0xff] %vm528, %v5190
      %5237 = vst.msk [vmem:[%s5192 + $0x158] sm:$0xff] %vm528, %v5124
      %5238 = vst.msk [vmem:[%s5192 + $0x160] sm:$0x1] %vm5195, %v5123
      %5239 = vst.msk [vmem:[%s5192 + $0x168] sm:$0xff] %vm528, %v5191
      %5240 = vst.msk [vmem:[%s5192 + $0x170] sm:$0xff] %vm528, %v5127
      %5241 = vst.msk [vmem:[%s5192 + $0x178] sm:$0x1] %vm5195, %v5126
      %v5242 = vld [vmem:[#allocation3] ss:$2 sm:$0xff]
      %s5243 = scalar_lea.vmem [#allocation3], 24
      %v5244 = vld [vmem:[%s5243] ss:$2 sm:$0xff]
      %s5245 = scalar_lea.vmem [#allocation3], 48
      %v5246 = vld [vmem:[%s5245] ss:$2 sm:$0xff]
      %s5247 = scalar_lea.vmem [#allocation3], 72
      %v5248 = vld [vmem:[%s5247] ss:$2 sm:$0xff]
      %s5249 = scalar_lea.vmem [#allocation3], 96
      %v5250 = vld [vmem:[%s5249] ss:$2 sm:$0xff]
      %s5251 = scalar_lea.vmem [#allocation3], 120
      %v5252 = vld [vmem:[%s5251] ss:$2 sm:$0xff]
      %s5253 = scalar_lea.vmem [#allocation3], 144
      %v5254 = vld [vmem:[%s5253] ss:$2 sm:$0xff]
      %s5255 = scalar_lea.vmem [#allocation3], 168
      %v5256 = vld [vmem:[%s5255] ss:$2 sm:$0xff]
      %s5257 = scalar_lea.vmem [#allocation3], 192
      %v5258 = vld [vmem:[%s5257] ss:$2 sm:$0xff]
      %s5259 = scalar_lea.vmem [#allocation3], 216
      %v5260 = vld [vmem:[%s5259] ss:$2 sm:$0xff]
      %s5261 = scalar_lea.vmem [#allocation3], 240
      %v5262 = vld [vmem:[%s5261] ss:$2 sm:$0xff]
      %s5263 = scalar_lea.vmem [#allocation3], 264
      %v5264 = vld [vmem:[%s5263] ss:$2 sm:$0xff]
      %s5265 = scalar_lea.vmem [#allocation3], 288
      %v5266 = vld [vmem:[%s5265] ss:$2 sm:$0xff]
      %s5267 = scalar_lea.vmem [#allocation3], 312
      %v5268 = vld [vmem:[%s5267] ss:$2 sm:$0xff]
      %s5269 = scalar_lea.vmem [#allocation3], 336
      %v5270 = vld [vmem:[%s5269] ss:$2 sm:$0xff]
      %s5271 = scalar_lea.vmem [#allocation3], 360
      %v5272 = vld [vmem:[%s5271] ss:$2 sm:$0xff]
      %s5273 = scalar_lea.vmem [#allocation3], 384
      %v5274 = vld [vmem:[%s5273] ss:$2 sm:$0xff]
      %s5275 = scalar_lea.vmem [#allocation3], 408
      %v5276 = vld [vmem:[%s5275] ss:$2 sm:$0xff]
      %s5277 = scalar_lea.vmem [#allocation3], 1
      %v5278 = vld [vmem:[%s5277] ss:$2 sm:$0xff]
      %s5279 = scalar_lea.vmem [#allocation3], 25
      %v5280 = vld [vmem:[%s5279] ss:$2 sm:$0xff]
      %s5281 = scalar_lea.vmem [#allocation3], 49
      %v5282 = vld [vmem:[%s5281] ss:$2 sm:$0xff]
      %s5283 = scalar_lea.vmem [#allocation3], 73
      %v5284 = vld [vmem:[%s5283] ss:$2 sm:$0xff]
      %s5285 = scalar_lea.vmem [#allocation3], 97
      %v5286 = vld [vmem:[%s5285] ss:$2 sm:$0xff]
      %s5287 = scalar_lea.vmem [#allocation3], 121
      %v5288 = vld [vmem:[%s5287] ss:$2 sm:$0xff]
      %s5289 = scalar_lea.vmem [#allocation3], 145
      %v5290 = vld [vmem:[%s5289] ss:$2 sm:$0xff]
      %s5291 = scalar_lea.vmem [#allocation3], 169
      %v5292 = vld [vmem:[%s5291] ss:$2 sm:$0xff]
      %s5293 = scalar_lea.vmem [#allocation3], 193
      %v5294 = vld [vmem:[%s5293] ss:$2 sm:$0xff]
      %s5295 = scalar_lea.vmem [#allocation3], 217
      %v5296 = vld [vmem:[%s5295] ss:$2 sm:$0xff]
      %s5297 = scalar_lea.vmem [#allocation3], 241
      %v5298 = vld [vmem:[%s5297] ss:$2 sm:$0xff]
      %s5299 = scalar_lea.vmem [#allocation3], 265
      %v5300 = vld [vmem:[%s5299] ss:$2 sm:$0xff]
      %s5301 = scalar_lea.vmem [#allocation3], 289
      %v5302 = vld [vmem:[%s5301] ss:$2 sm:$0xff]
      %s5303 = scalar_lea.vmem [#allocation3], 313
      %v5304 = vld [vmem:[%s5303] ss:$2 sm:$0xff]
      %s5305 = scalar_lea.vmem [#allocation3], 337
      %v5306 = vld [vmem:[%s5305] ss:$2 sm:$0xff]
      %s5307 = scalar_lea.vmem [#allocation3], 361
      %v5308 = vld [vmem:[%s5307] ss:$2 sm:$0xff]
      %s5309 = scalar_lea.vmem [#allocation3], 385
      %v5310 = vld [vmem:[%s5309] ss:$2 sm:$0xff]
      %s5311 = scalar_lea.vmem [#allocation3], 409
      %v5312 = vld [vmem:[%s5311] ss:$2 sm:$0xff]
      %s5313 = scalar_lea.vmem [#allocation3], 2
      %v5314 = vld [vmem:[%s5313] ss:$2 sm:$0xff]
      %s5315 = scalar_lea.vmem [#allocation3], 26
      %v5316 = vld [vmem:[%s5315] ss:$2 sm:$0xff]
      %s5317 = scalar_lea.vmem [#allocation3], 50
      %v5318 = vld [vmem:[%s5317] ss:$2 sm:$0xff]
      %s5319 = scalar_lea.vmem [#allocation3], 74
      %v5320 = vld [vmem:[%s5319] ss:$2 sm:$0xff]
      %s5321 = scalar_lea.vmem [#allocation3], 98
      %v5322 = vld [vmem:[%s5321] ss:$2 sm:$0xff]
      %s5323 = scalar_lea.vmem [#allocation3], 122
      %v5324 = vld [vmem:[%s5323] ss:$2 sm:$0xff]
      %s5325 = scalar_lea.vmem [#allocation3], 146
      %v5326 = vld [vmem:[%s5325] ss:$2 sm:$0xff]
      %s5327 = scalar_lea.vmem [#allocation3], 170
      %v5328 = vld [vmem:[%s5327] ss:$2 sm:$0xff]
      %s5329 = scalar_lea.vmem [#allocation3], 194
      %v5330 = vld [vmem:[%s5329] ss:$2 sm:$0xff]
      %s5331 = scalar_lea.vmem [#allocation3], 218
      %v5332 = vld [vmem:[%s5331] ss:$2 sm:$0xff]
      %s5333 = scalar_lea.vmem [#allocation3], 242
      %v5334 = vld [vmem:[%s5333] ss:$2 sm:$0xff]
      %s5335 = scalar_lea.vmem [#allocation3], 266
      %v5336 = vld [vmem:[%s5335] ss:$2 sm:$0xff]
      %s5337 = scalar_lea.vmem [#allocation3], 290
      %v5338 = vld [vmem:[%s5337] ss:$2 sm:$0xff]
      %s5339 = scalar_lea.vmem [#allocation3], 314
      %v5340 = vld [vmem:[%s5339] ss:$2 sm:$0xff]
      %s5341 = scalar_lea.vmem [#allocation3], 338
      %v5342 = vld [vmem:[%s5341] ss:$2 sm:$0xff]
      %s5343 = scalar_lea.vmem [#allocation3], 362
      %v5344 = vld [vmem:[%s5343] ss:$2 sm:$0xff]
      %s5345 = scalar_lea.vmem [#allocation3], 386
      %v5346 = vld [vmem:[%s5345] ss:$2 sm:$0xff]
      %s5347 = scalar_lea.vmem [#allocation3], 410
      %v5348 = vld [vmem:[%s5347] ss:$2 sm:$0xff]
      %s5349 = scalar_lea.vmem [#allocation3], 3
      %v5350 = vld [vmem:[%s5349] ss:$2 sm:$0xff]
      %s5351 = scalar_lea.vmem [#allocation3], 27
      %v5352 = vld [vmem:[%s5351] ss:$2 sm:$0xff]
      %s5353 = scalar_lea.vmem [#allocation3], 51
      %v5354 = vld [vmem:[%s5353] ss:$2 sm:$0xff]
      %s5355 = scalar_lea.vmem [#allocation3], 75
      %v5356 = vld [vmem:[%s5355] ss:$2 sm:$0xff]
      %s5357 = scalar_lea.vmem [#allocation3], 99
      %v5358 = vld [vmem:[%s5357] ss:$2 sm:$0xff]
      %s5359 = scalar_lea.vmem [#allocation3], 123
      %v5360 = vld [vmem:[%s5359] ss:$2 sm:$0xff]
      %s5361 = scalar_lea.vmem [#allocation3], 147
      %v5362 = vld [vmem:[%s5361] ss:$2 sm:$0xff]
      %s5363 = scalar_lea.vmem [#allocation3], 171
      %v5364 = vld [vmem:[%s5363] ss:$2 sm:$0xff]
      %s5365 = scalar_lea.vmem [#allocation3], 195
      %v5366 = vld [vmem:[%s5365] ss:$2 sm:$0xff]
      %s5367 = scalar_lea.vmem [#allocation3], 219
      %v5368 = vld [vmem:[%s5367] ss:$2 sm:$0xff]
      %s5369 = scalar_lea.vmem [#allocation3], 243
      %v5370 = vld [vmem:[%s5369] ss:$2 sm:$0xff]
      %s5371 = scalar_lea.vmem [#allocation3], 267
      %v5372 = vld [vmem:[%s5371] ss:$2 sm:$0xff]
      %s5373 = scalar_lea.vmem [#allocation3], 291
      %v5374 = vld [vmem:[%s5373] ss:$2 sm:$0xff]
      %s5375 = scalar_lea.vmem [#allocation3], 315
      %v5376 = vld [vmem:[%s5375] ss:$2 sm:$0xff]
      %s5377 = scalar_lea.vmem [#allocation3], 339
      %v5378 = vld [vmem:[%s5377] ss:$2 sm:$0xff]
      %s5379 = scalar_lea.vmem [#allocation3], 363
      %v5380 = vld [vmem:[%s5379] ss:$2 sm:$0xff]
      %s5381 = scalar_lea.vmem [#allocation3], 387
      %v5382 = vld [vmem:[%s5381] ss:$2 sm:$0xff]
      %s5383 = scalar_lea.vmem [#allocation3], 411
      %v5384 = vld [vmem:[%s5383] ss:$2 sm:$0xff]
      %5403 = vrot.lane.b32.xlu0 %v5278, 32
      %v5404 = vpop.permute.xlu0 %5403
      %5405 = vrot.lane.b32.xlu0 %v5280, 32
      %v5406 = vpop.permute.xlu0 %5405
      %5407 = vrot.lane.b32.xlu0 %v5282, 32
      %v5408 = vpop.permute.xlu0 %5407
      %5409 = vrot.lane.b32.xlu0 %v5284, 32
      %v5410 = vpop.permute.xlu0 %5409
      %5411 = vrot.lane.b32.xlu0 %v5286, 32
      %v5412 = vpop.permute.xlu0 %5411
      %5413 = vrot.lane.b32.xlu0 %v5288, 32
      %v5414 = vpop.permute.xlu0 %5413
      %5415 = vrot.lane.b32.xlu0 %v5290, 32
      %v5416 = vpop.permute.xlu0 %5415
      %5417 = vrot.lane.b32.xlu0 %v5292, 32
      %v5418 = vpop.permute.xlu0 %5417
      %5419 = vrot.lane.b32.xlu0 %v5294, 32
      %v5420 = vpop.permute.xlu0 %5419
      %5421 = vrot.lane.b32.xlu0 %v5296, 32
      %v5422 = vpop.permute.xlu0 %5421
      %5423 = vrot.lane.b32.xlu0 %v5298, 32
      %v5424 = vpop.permute.xlu0 %5423
      %5425 = vrot.lane.b32.xlu0 %v5300, 32
      %v5426 = vpop.permute.xlu0 %5425
      %5427 = vrot.lane.b32.xlu0 %v5302, 32
      %v5428 = vpop.permute.xlu0 %5427
      %5429 = vrot.lane.b32.xlu0 %v5304, 32
      %v5430 = vpop.permute.xlu0 %5429
      %5431 = vrot.lane.b32.xlu0 %v5306, 32
      %v5432 = vpop.permute.xlu0 %5431
      %5433 = vrot.lane.b32.xlu0 %v5308, 32
      %v5434 = vpop.permute.xlu0 %5433
      %5435 = vrot.lane.b32.xlu0 %v5310, 32
      %v5436 = vpop.permute.xlu0 %5435
      %5437 = vrot.lane.b32.xlu0 %v5312, 32
      %v5438 = vpop.permute.xlu0 %5437
      %5475 = vrot.lane.b32.xlu0 %v5314, 64
      %v5476 = vpop.permute.xlu0 %5475
      %5477 = vrot.lane.b32.xlu0 %v5316, 64
      %v5478 = vpop.permute.xlu0 %5477
      %5479 = vrot.lane.b32.xlu0 %v5318, 64
      %v5480 = vpop.permute.xlu0 %5479
      %5481 = vrot.lane.b32.xlu0 %v5320, 64
      %v5482 = vpop.permute.xlu0 %5481
      %5483 = vrot.lane.b32.xlu0 %v5322, 64
      %v5484 = vpop.permute.xlu0 %5483
      %5485 = vrot.lane.b32.xlu0 %v5324, 64
      %v5486 = vpop.permute.xlu0 %5485
      %5487 = vrot.lane.b32.xlu0 %v5326, 64
      %v5488 = vpop.permute.xlu0 %5487
      %5489 = vrot.lane.b32.xlu0 %v5328, 64
      %v5490 = vpop.permute.xlu0 %5489
      %5491 = vrot.lane.b32.xlu0 %v5330, 64
      %v5492 = vpop.permute.xlu0 %5491
      %5493 = vrot.lane.b32.xlu0 %v5332, 64
      %v5494 = vpop.permute.xlu0 %5493
      %5495 = vrot.lane.b32.xlu0 %v5334, 64
      %v5496 = vpop.permute.xlu0 %5495
      %5497 = vrot.lane.b32.xlu0 %v5336, 64
      %v5498 = vpop.permute.xlu0 %5497
      %5499 = vrot.lane.b32.xlu0 %v5338, 64
      %v5500 = vpop.permute.xlu0 %5499
      %5501 = vrot.lane.b32.xlu0 %v5340, 64
      %v5502 = vpop.permute.xlu0 %5501
      %5503 = vrot.lane.b32.xlu0 %v5342, 64
      %v5504 = vpop.permute.xlu0 %5503
      %5505 = vrot.lane.b32.xlu0 %v5344, 64
      %v5506 = vpop.permute.xlu0 %5505
      %5507 = vrot.lane.b32.xlu0 %v5346, 64
      %v5508 = vpop.permute.xlu0 %5507
      %5509 = vrot.lane.b32.xlu0 %v5348, 64
      %v5510 = vpop.permute.xlu0 %5509
      %5547 = vrot.lane.b32.xlu0 %v5350, 96
      %v5548 = vpop.permute.xlu0 %5547
      %5549 = vrot.lane.b32.xlu0 %v5352, 96
      %v5550 = vpop.permute.xlu0 %5549
      %5551 = vrot.lane.b32.xlu0 %v5354, 96
      %v5552 = vpop.permute.xlu0 %5551
      %5553 = vrot.lane.b32.xlu0 %v5356, 96
      %v5554 = vpop.permute.xlu0 %5553
      %5555 = vrot.lane.b32.xlu0 %v5358, 96
      %v5556 = vpop.permute.xlu0 %5555
      %5557 = vrot.lane.b32.xlu0 %v5360, 96
      %v5558 = vpop.permute.xlu0 %5557
      %5559 = vrot.lane.b32.xlu0 %v5362, 96
      %v5560 = vpop.permute.xlu0 %5559
      %5561 = vrot.lane.b32.xlu0 %v5364, 96
      %v5562 = vpop.permute.xlu0 %5561
      %5563 = vrot.lane.b32.xlu0 %v5366, 96
      %v5564 = vpop.permute.xlu0 %5563
      %5565 = vrot.lane.b32.xlu0 %v5368, 96
      %v5566 = vpop.permute.xlu0 %5565
      %5567 = vrot.lane.b32.xlu0 %v5370, 96
      %v5568 = vpop.permute.xlu0 %5567
      %5569 = vrot.lane.b32.xlu0 %v5372, 96
      %v5570 = vpop.permute.xlu0 %5569
      %5571 = vrot.lane.b32.xlu0 %v5374, 96
      %v5572 = vpop.permute.xlu0 %5571
      %5573 = vrot.lane.b32.xlu0 %v5376, 96
      %v5574 = vpop.permute.xlu0 %5573
      %5575 = vrot.lane.b32.xlu0 %v5378, 96
      %v5576 = vpop.permute.xlu0 %5575
      %5577 = vrot.lane.b32.xlu0 %v5380, 96
      %v5578 = vpop.permute.xlu0 %5577
      %5579 = vrot.lane.b32.xlu0 %v5382, 96
      %v5580 = vpop.permute.xlu0 %5579
      %5581 = vrot.lane.b32.xlu0 %v5384, 96
      %v5582 = vpop.permute.xlu0 %5581
      %v5601 = vsel %vm528, %v5242, %v5404
      %v5602 = vsel %vm528, %v5244, %v5406
      %v5603 = vsel %vm528, %v5246, %v5408
      %v5604 = vsel %vm528, %v5248, %v5410
      %v5605 = vsel %vm528, %v5250, %v5412
      %v5606 = vsel %vm528, %v5252, %v5414
      %v5607 = vsel %vm528, %v5254, %v5416
      %v5608 = vsel %vm528, %v5256, %v5418
      %v5609 = vsel %vm528, %v5258, %v5420
      %v5610 = vsel %vm528, %v5260, %v5422
      %v5611 = vsel %vm528, %v5262, %v5424
      %v5612 = vsel %vm528, %v5264, %v5426
      %v5613 = vsel %vm528, %v5266, %v5428
      %v5614 = vsel %vm528, %v5268, %v5430
      %v5615 = vsel %vm528, %v5270, %v5432
      %v5616 = vsel %vm528, %v5272, %v5434
      %v5617 = vsel %vm528, %v5274, %v5436
      %v5618 = vsel %vm528, %v5276, %v5438
      %v5619 = vsel %vm583, %v5601, %v5476
      %v5620 = vsel %vm583, %v5602, %v5478
      %v5621 = vsel %vm583, %v5603, %v5480
      %v5622 = vsel %vm583, %v5604, %v5482
      %v5623 = vsel %vm583, %v5605, %v5484
      %v5624 = vsel %vm583, %v5606, %v5486
      %v5625 = vsel %vm583, %v5607, %v5488
      %v5626 = vsel %vm583, %v5608, %v5490
      %v5627 = vsel %vm583, %v5609, %v5492
      %v5628 = vsel %vm583, %v5610, %v5494
      %v5629 = vsel %vm583, %v5611, %v5496
      %v5630 = vsel %vm583, %v5612, %v5498
      %v5631 = vsel %vm583, %v5613, %v5500
      %v5632 = vsel %vm583, %v5614, %v5502
      %v5633 = vsel %vm583, %v5615, %v5504
      %v5634 = vsel %vm583, %v5616, %v5506
      %v5635 = vsel %vm583, %v5617, %v5508
      %v5636 = vsel %vm583, %v5618, %v5510
      %vm5637 = vcmask 785408
      %v5638 = vsel %vm5637, %v5619, %v5548
      %v5639 = vsel %vm5637, %v5620, %v5550
      %v5640 = vsel %vm5637, %v5621, %v5552
      %v5641 = vsel %vm5637, %v5622, %v5554
      %v5642 = vsel %vm5637, %v5623, %v5556
      %v5643 = vsel %vm5637, %v5624, %v5558
      %v5644 = vsel %vm5637, %v5625, %v5560
      %v5645 = vsel %vm5637, %v5626, %v5562
      %v5646 = vsel %vm5637, %v5627, %v5564
      %v5647 = vsel %vm5637, %v5628, %v5566
      %v5648 = vsel %vm5637, %v5629, %v5568
      %v5649 = vsel %vm5637, %v5630, %v5570
      %v5650 = vsel %vm5637, %v5631, %v5572
      %v5651 = vsel %vm5637, %v5632, %v5574
      %v5652 = vsel %vm5637, %v5633, %v5576
      %v5653 = vsel %vm5637, %v5634, %v5578
      %v5654 = vsel %vm5637, %v5635, %v5580
      %v5655 = vsel %vm5637, %v5636, %v5582
      %v5656 = vpack.c.bf16 %v5640, %v5638
      %v5657 = vpack.c.bf16 %v5641, %v5639
      %v5658 = vpack.c.bf16 %v5642, %v5640
      %v5659 = vpack.c.bf16 %v5643, %v5641
      %v5660 = vpack.c.bf16 %v5644, %v5642
      %v5661 = vpack.c.bf16 %v5645, %v5643
      %v5662 = vpack.c.bf16 %v5646, %v5644
      %v5663 = vpack.c.bf16 %v5647, %v5645
      %v5664 = vpack.c.bf16 %v5648, %v5646
      %v5665 = vpack.c.bf16 %v5649, %v5647
      %v5666 = vpack.c.bf16 %v5650, %v5648
      %v5667 = vpack.c.bf16 %v5651, %v5649
      %v5668 = vpack.c.bf16 %v5652, %v5650
      %v5669 = vpack.c.bf16 %v5653, %v5651
      %v5670 = vpack.c.bf16 %v5654, %v5652
      %v5671 = vpack.c.bf16 %v5655, %v5653
      %v5672 = vld [vmem:[%s5] sm:$0xf]
      %v5673 = vld [vmem:[%s5 + $0x4] sm:$0xf]
      %v5674 = vld [vmem:[%s5 + $0x8] sm:$0xf]
      %v5675 = vld [vmem:[%s5 + $0xc] sm:$0xf]
      %v5676 = vld [vmem:[%s5 + $0x10] sm:$0xf]
      %v5677 = vld [vmem:[%s5 + $0x14] sm:$0xf]
      %v5678 = vld [vmem:[%s5 + $0x18] sm:$0xf]
      %v5679 = vld [vmem:[%s5 + $0x1c] sm:$0xf]
      %v5680 = vld [vmem:[%s5 + $0x20] sm:$0xf]
      %v5681 = vld [vmem:[%s5 + $0x24] sm:$0xf]
      %v5682 = vld [vmem:[%s5 + $0x28] sm:$0xf]
      %v5683 = vld [vmem:[%s5 + $0x2c] sm:$0xf]
      %v5684 = vld [vmem:[%s5 + $0x30] sm:$0xf]
      %v5685 = vld [vmem:[%s5 + $0x34] sm:$0xf]
      %v5686 = vld [vmem:[%s5 + $0x38] sm:$0xf]
      %v5687 = vld [vmem:[%s5 + $0x3c] sm:$0xf]
      %v5688 = vld [vmem:[%s5 + $0x40] sm:$0xf]
      %v5689 = vld [vmem:[%s5 + $0x44] sm:$0xf]
      %v5690 = vld [vmem:[%s5 + $0x48] sm:$0xf]
      %v5691 = vld [vmem:[%s5 + $0x4c] sm:$0xf]
      %v5692 = vld [vmem:[%s5 + $0x50] sm:$0xf]
      %v5693 = vld [vmem:[%s5 + $0x54] sm:$0xf]
      %v5694 = vld [vmem:[%s5 + $0x58] sm:$0xf]
      %v5695 = vld [vmem:[%s5 + $0x5c] sm:$0xf]
      %v5696 = vld [vmem:[%s5 + $0x60] sm:$0xf]
      %v5697 = vld [vmem:[%s5 + $0x64] sm:$0xf]
      %v5698 = vld [vmem:[%s5 + $0x68] sm:$0xf]
      %v5699 = vld [vmem:[%s5 + $0x6c] sm:$0xf]
      %v5700 = vld [vmem:[%s5 + $0x70] sm:$0xf]
      %v5701 = vld [vmem:[%s5 + $0x74] sm:$0xf]
      %v5702 = vld [vmem:[%s5 + $0x78] sm:$0xf]
      %v5703 = vld [vmem:[%s5 + $0x7c] sm:$0xf]
      %v5704 = vld [vmem:[%s5 + $0x80] sm:$0xf]
      %v5705 = vld [vmem:[%s5 + $0x84] sm:$0xf]
      %v5706 = vld [vmem:[%s5 + $0x88] sm:$0xf]
      %v5707 = vld [vmem:[%s5 + $0x8c] sm:$0xf]
      %v5708 = vld [vmem:[%s5 + $0x90] sm:$0xf]
      %v5709 = vld [vmem:[%s5 + $0x94] sm:$0xf]
      %v5710 = vld [vmem:[%s5 + $0x98] sm:$0xf]
      %v5711 = vld [vmem:[%s5 + $0x9c] sm:$0xf]
      %v5712 = vld [vmem:[%s5 + $0xa0] sm:$0xf]
      %v5713 = vld [vmem:[%s5 + $0xa4] sm:$0xf]
      %v5714 = vld [vmem:[%s5 + $0xa8] sm:$0xf]
      %v5715 = vld [vmem:[%s5 + $0xac] sm:$0xf]
      %v5716 = vld [vmem:[%s5 + $0xb0] sm:$0xf]
      %v5717 = vld [vmem:[%s5 + $0xb4] sm:$0xf]
      %v5718 = vld [vmem:[%s5 + $0xb8] sm:$0xf]
      %v5719 = vld [vmem:[%s5 + $0xbc] sm:$0xf]
      %v5720 = vld [vmem:[%s5 + $0xc0] sm:$0xf]
      %v5721 = vld [vmem:[%s5 + $0xc4] sm:$0xf]
      %v5722 = vld [vmem:[%s5 + $0xc8] sm:$0xf]
      %v5723 = vld [vmem:[%s5 + $0xcc] sm:$0xf]
      %v5724 = vld [vmem:[%s5 + $0xd0] sm:$0xf]
      %v5725 = vld [vmem:[%s5 + $0xd4] sm:$0xf]
      %v5726 = vld [vmem:[%s5 + $0xd8] sm:$0xf]
      %v5727 = vld [vmem:[%s5 + $0xdc] sm:$0xf]
      %v5728 = vld [vmem:[%s5 + $0xe0] sm:$0xf]
      %v5729 = vld [vmem:[%s5 + $0xe4] sm:$0xf]
      %v5730 = vld [vmem:[%s5 + $0xe8] sm:$0xf]
      %v5731 = vld [vmem:[%s5 + $0xec] sm:$0xf]
      %v5732 = vld [vmem:[%s5 + $0xf0] sm:$0xf]
      %v5733 = vld [vmem:[%s5 + $0xf4] sm:$0xf]
      %v5734 = vld [vmem:[%s5 + $0xf8] sm:$0xf]
      %v5735 = vld [vmem:[%s5 + $0xfc] sm:$0xf]
      %v5736 = vld [vmem:[%s6] sm:$0x1]
      %v5738 = vlaneseq
      %v5739 = vshrl.u32 %v5738, 7
      %v5740 = vsub.s32 0, %v5739
      %v5741 = vrot.slane %v5736, %v5740
      %v5807 = vunpack.c.l.b16 %v5672
      %v5808 = vunpack.c.l.b16 %v5673
      %v5809 = vunpack.c.l.b16 %v5674
      %v5810 = vunpack.c.l.b16 %v5675
      %v5811 = vunpack.c.l.b16 %v5676
      %v5812 = vunpack.c.l.b16 %v5677
      %v5813 = vunpack.c.l.b16 %v5678
      %v5814 = vunpack.c.l.b16 %v5679
      %v5815 = vunpack.c.l.b16 %v5680
      %v5816 = vunpack.c.l.b16 %v5681
      %v5817 = vunpack.c.l.b16 %v5682
      %v5818 = vunpack.c.l.b16 %v5683
      %v5819 = vunpack.c.l.b16 %v5684
      %v5820 = vunpack.c.l.b16 %v5685
      %v5821 = vunpack.c.l.b16 %v5686
      %v5822 = vunpack.c.l.b16 %v5687
      %v5823 = vunpack.c.l.b16 %v5688
      %v5824 = vunpack.c.l.b16 %v5689
      %v5825 = vunpack.c.l.b16 %v5690
      %v5826 = vunpack.c.l.b16 %v5691
      %v5827 = vunpack.c.l.b16 %v5692
      %v5828 = vunpack.c.l.b16 %v5693
      %v5829 = vunpack.c.l.b16 %v5694
      %v5830 = vunpack.c.l.b16 %v5695
      %v5831 = vunpack.c.l.b16 %v5696
      %v5832 = vunpack.c.l.b16 %v5697
      %v5833 = vunpack.c.l.b16 %v5698
      %v5834 = vunpack.c.l.b16 %v5699
      %v5835 = vunpack.c.l.b16 %v5700
      %v5836 = vunpack.c.l.b16 %v5701
      %v5837 = vunpack.c.l.b16 %v5702
      %v5838 = vunpack.c.l.b16 %v5703
      %v5839 = vunpack.c.l.b16 %v5704
      %v5840 = vunpack.c.l.b16 %v5705
      %v5841 = vunpack.c.l.b16 %v5706
      %v5842 = vunpack.c.l.b16 %v5707
      %v5843 = vunpack.c.l.b16 %v5708
      %v5844 = vunpack.c.l.b16 %v5709
      %v5845 = vunpack.c.l.b16 %v5710
      %v5846 = vunpack.c.l.b16 %v5711
      %v5847 = vunpack.c.l.b16 %v5712
      %v5848 = vunpack.c.l.b16 %v5713
      %v5849 = vunpack.c.l.b16 %v5714
      %v5850 = vunpack.c.l.b16 %v5715
      %v5851 = vunpack.c.l.b16 %v5716
      %v5852 = vunpack.c.l.b16 %v5717
      %v5853 = vunpack.c.l.b16 %v5718
      %v5854 = vunpack.c.l.b16 %v5719
      %v5855 = vunpack.c.l.b16 %v5720
      %v5856 = vunpack.c.l.b16 %v5721
      %v5857 = vunpack.c.l.b16 %v5722
      %v5858 = vunpack.c.l.b16 %v5723
      %v5859 = vunpack.c.l.b16 %v5724
      %v5860 = vunpack.c.l.b16 %v5725
      %v5861 = vunpack.c.l.b16 %v5726
      %v5862 = vunpack.c.l.b16 %v5727
      %v5863 = vunpack.c.l.b16 %v5728
      %v5864 = vunpack.c.l.b16 %v5729
      %v5865 = vunpack.c.l.b16 %v5730
      %v5866 = vunpack.c.l.b16 %v5731
      %v5867 = vunpack.c.l.b16 %v5732
      %v5868 = vunpack.c.l.b16 %v5733
      %v5869 = vunpack.c.l.b16 %v5734
      %v5870 = vunpack.c.l.b16 %v5735
      %v5871 = vpack.c.b16 %v5808, %v5807
      %v5872 = vpack.c.b16 %v5810, %v5809
      %v5873 = vpack.c.b16 %v5812, %v5811
      %v5874 = vpack.c.b16 %v5814, %v5813
      %v5875 = vpack.c.b16 %v5816, %v5815
      %v5876 = vpack.c.b16 %v5818, %v5817
      %v5877 = vpack.c.b16 %v5820, %v5819
      %v5878 = vpack.c.b16 %v5822, %v5821
      %v5879 = vpack.c.b16 %v5824, %v5823
      %v5880 = vpack.c.b16 %v5826, %v5825
      %v5881 = vpack.c.b16 %v5828, %v5827
      %v5882 = vpack.c.b16 %v5830, %v5829
      %v5883 = vpack.c.b16 %v5832, %v5831
      %v5884 = vpack.c.b16 %v5834, %v5833
      %v5885 = vpack.c.b16 %v5836, %v5835
      %v5886 = vpack.c.b16 %v5838, %v5837
      %v5887 = vpack.c.b16 %v5840, %v5839
      %v5888 = vpack.c.b16 %v5842, %v5841
      %v5889 = vpack.c.b16 %v5844, %v5843
      %v5890 = vpack.c.b16 %v5846, %v5845
      %v5891 = vpack.c.b16 %v5848, %v5847
      %v5892 = vpack.c.b16 %v5850, %v5849
      %v5893 = vpack.c.b16 %v5852, %v5851
      %v5894 = vpack.c.b16 %v5854, %v5853
      %v5895 = vpack.c.b16 %v5856, %v5855
      %v5896 = vpack.c.b16 %v5858, %v5857
      %v5897 = vpack.c.b16 %v5860, %v5859
      %v5898 = vpack.c.b16 %v5862, %v5861
      %v5899 = vpack.c.b16 %v5864, %v5863
      %v5900 = vpack.c.b16 %v5866, %v5865
      %v5901 = vpack.c.b16 %v5868, %v5867
      %v5902 = vpack.c.b16 %v5870, %v5869
      %5935 = vmatprep.subr.bf16.mxu0 0
      %5936 = vmatpush1.bf16.msra.mxu0 %v5871
      %5937 = vmatprep.subr.bf16.mxu0 0
      %5938 = vmatpush1.bf16.msra.mxu0 %v5872
      %5939 = vmatprep.subr.bf16.mxu0 0
      %5940 = vmatpush1.bf16.msra.mxu0 %v5873
      %5941 = vmatprep.subr.bf16.mxu0 0
      %5942 = vmatpush1.bf16.msra.mxu0 %v5874
      %5943 = vmatprep.subr.bf16.mxu0 0
      %5944 = vmatpush1.bf16.msra.mxu0 %v5875
      %5945 = vmatprep.subr.bf16.mxu0 0
      %5946 = vmatpush1.bf16.msra.mxu0 %v5876
      %5947 = vmatprep.subr.bf16.mxu0 0
      %5948 = vmatpush1.bf16.msra.mxu0 %v5877
      %5949 = vmatprep.subr.bf16.mxu0 0
      %5950 = vmatpush1.bf16.msra.mxu0 %v5878
      %5951 = vmatprep.subr.bf16.mxu0 0
      %5952 = vmatpush1.bf16.msra.mxu0 %v5879
      %5953 = vmatprep.subr.bf16.mxu0 0
      %5954 = vmatpush1.bf16.msra.mxu0 %v5880
      %5955 = vmatprep.subr.bf16.mxu0 0
      %5956 = vmatpush1.bf16.msra.mxu0 %v5881
      %5957 = vmatprep.subr.bf16.mxu0 0
      %5958 = vmatpush1.bf16.msra.mxu0 %v5882
      %5959 = vmatprep.subr.bf16.mxu0 0
      %5960 = vmatpush1.bf16.msra.mxu0 %v5883
      %5961 = vmatprep.subr.bf16.mxu0 0
      %5962 = vmatpush1.bf16.msra.mxu0 %v5884
      %5963 = vmatprep.subr.bf16.mxu0 0
      %5964 = vmatpush1.bf16.msra.mxu0 %v5885
      %5965 = vmatprep.subr.bf16.mxu0 0
      %5966 = vmatpush1.bf16.msra.mxu0 %v5886
      %5967 = vmatprep.mubr.bf16.mxu0 %v5657
      %5968 = vmatmul.mubr.bf16.gmra.mrb[0].mxu0 %v5656
      %v5969 = vpop.f32.mrb[0].mxu0
      %v5970 = vadd.f32 %v5741, %v5969
      %v5971 = vpop.f32.mrb[0].mxu0
      %v5972 = vpop.f32.mrb[0].mxu0
      %v5973 = vadd.f32 %v5741, %v5972
      %v5974 = vpop.f32.mrb[0].mxu0
      %5975 = vmatprep.mubr.bf16.mxu0 %v5661
      %5976 = vmatmul.mubr.bf16.gmra.mrb[0].mxu0 %v5660
      %v5977 = vpop.f32.mrb[0].mxu0
      %v5978 = vadd.f32 %v5741, %v5977
      %v5979 = vpop.f32.mrb[0].mxu0
      %v5980 = vpop.f32.mrb[0].mxu0
      %v5981 = vadd.f32 %v5741, %v5980
      %v5982 = vpop.f32.mrb[0].mxu0
      %5983 = vmatprep.mubr.bf16.mxu0 %v5665
      %5984 = vmatmul.mubr.bf16.gmra.mrb[0].mxu0 %v5664
      %v5985 = vpop.f32.mrb[0].mxu0
      %v5986 = vadd.f32 %v5741, %v5985
      %v5987 = vpop.f32.mrb[0].mxu0
      %v5988 = vpop.f32.mrb[0].mxu0
      %v5989 = vadd.f32 %v5741, %v5988
      %v5990 = vpop.f32.mrb[0].mxu0
      %5991 = vmatprep.mubr.bf16.mxu0 %v5669
      %5992 = vmatmul.mubr.bf16.gmra.mrb[0].mxu0 %v5668
      %v5993 = vpop.f32.mrb[0].mxu0
      %v5994 = vadd.f32 %v5741, %v5993
      %v5995 = vpop.f32.mrb[0].mxu0
      %v5996 = vpop.f32.mrb[0].mxu0
      %v5997 = vadd.f32 %v5741, %v5996
      %v5998 = vpop.f32.mrb[0].mxu0
      %5999 = vdwg.mxu0
      %6000 = vmatprep.subr.bf16.mxu0 0
      %6001 = vmatpush1.bf16.msra.mxu0 %v5887
      %6002 = vmatprep.subr.bf16.mxu0 0
      %6003 = vmatpush1.bf16.msra.mxu0 %v5888
      %6004 = vmatprep.subr.bf16.mxu0 0
      %6005 = vmatpush1.bf16.msra.mxu0 %v5889
      %6006 = vmatprep.subr.bf16.mxu0 0
      %6007 = vmatpush1.bf16.msra.mxu0 %v5890
      %6008 = vmatprep.subr.bf16.mxu0 0
      %6009 = vmatpush1.bf16.msra.mxu0 %v5891
      %6010 = vmatprep.subr.bf16.mxu0 0
      %6011 = vmatpush1.bf16.msra.mxu0 %v5892
      %6012 = vmatprep.subr.bf16.mxu0 0
      %6013 = vmatpush1.bf16.msra.mxu0 %v5893
      %6014 = vmatprep.subr.bf16.mxu0 0
      %6015 = vmatpush1.bf16.msra.mxu0 %v5894
      %6016 = vmatprep.subr.bf16.mxu0 0
      %6017 = vmatpush1.bf16.msra.mxu0 %v5895
      %6018 = vmatprep.subr.bf16.mxu0 0
      %6019 = vmatpush1.bf16.msra.mxu0 %v5896
      %6020 = vmatprep.subr.bf16.mxu0 0
      %6021 = vmatpush1.bf16.msra.mxu0 %v5897
      %6022 = vmatprep.subr.bf16.mxu0 0
      %6023 = vmatpush1.bf16.msra.mxu0 %v5898
      %6024 = vmatprep.subr.bf16.mxu0 0
      %6025 = vmatpush1.bf16.msra.mxu0 %v5899
      %6026 = vmatprep.subr.bf16.mxu0 0
      %6027 = vmatpush1.bf16.msra.mxu0 %v5900
      %6028 = vmatprep.subr.bf16.mxu0 0
      %6029 = vmatpush1.bf16.msra.mxu0 %v5901
      %6030 = vmatprep.subr.bf16.mxu0 0
      %6031 = vmatpush1.bf16.msra.mxu0 %v5902
      %6032 = vmatprep.mubr.bf16.mxu0 %v5659
      %6033 = vmatmul.mubr.bf16.gmra.mrb[0].mxu0 %v5658
      %v6034 = vpop.f32.mrb[0].mxu0
      %v6035 = vadd.f32 %v5970, %v6034
      %v6036 = vpop.f32.mrb[0].mxu0
      %v6037 = vpop.f32.mrb[0].mxu0
      %v6038 = vadd.f32 %v5973, %v6037
      %v6039 = vpop.f32.mrb[0].mxu0
      %6040 = vmatprep.mubr.bf16.mxu0 %v5663
      %6041 = vmatmul.mubr.bf16.gmra.mrb[0].mxu0 %v5662
      %v6042 = vpop.f32.mrb[0].mxu0
      %v6043 = vadd.f32 %v5978, %v6042
      %v6044 = vpop.f32.mrb[0].mxu0
      %v6045 = vpop.f32.mrb[0].mxu0
      %v6046 = vadd.f32 %v5981, %v6045
      %v6047 = vpop.f32.mrb[0].mxu0
      %6048 = vmatprep.mubr.bf16.mxu0 %v5667
      %6049 = vmatmul.mubr.bf16.gmra.mrb[0].mxu0 %v5666
      %v6050 = vpop.f32.mrb[0].mxu0
      %v6051 = vadd.f32 %v5986, %v6050
      %v6052 = vpop.f32.mrb[0].mxu0
      %v6053 = vpop.f32.mrb[0].mxu0
      %v6054 = vadd.f32 %v5989, %v6053
      %v6055 = vpop.f32.mrb[0].mxu0
      %6056 = vmatprep.mubr.bf16.mxu0 %v5671
      %6057 = vmatmul.mubr.bf16.gmra.mrb[0].mxu0 %v5670
      %v6058 = vpop.f32.mrb[0].mxu0
      %v6059 = vadd.f32 %v5994, %v6058
      %v6060 = vpop.f32.mrb[0].mxu0
      %v6061 = vpop.f32.mrb[0].mxu0
      %v6062 = vadd.f32 %v5997, %v6061
      %v6063 = vpop.f32.mrb[0].mxu0
      %6064 = vdwg.mxu0
      %vm6065 = vcmp.ge.f32.partialorder %v6035, 0.0
      %vm6066 = vcmp.ge.f32.partialorder %v6038, 0.0
      %vm6067 = vcmp.ge.f32.partialorder %v6043, 0.0
      %vm6068 = vcmp.ge.f32.partialorder %v6046, 0.0
      %vm6069 = vcmp.ge.f32.partialorder %v6051, 0.0
      %vm6070 = vcmp.ge.f32.partialorder %v6054, 0.0
      %vm6071 = vcmp.ge.f32.partialorder %v6059, 0.0
      %vm6072 = vcmp.ge.f32.partialorder %v6062, 0.0
      %v6073 = vmul.f32 %v6035, 0.1
      %v6074 = vmul.f32 %v6038, 0.1
      %v6075 = vmul.f32 %v6043, 0.1
      %v6076 = vmul.f32 %v6046, 0.1
      %v6077 = vmul.f32 %v6051, 0.1
      %v6078 = vmul.f32 %v6054, 0.1
      %v6079 = vmul.f32 %v6059, 0.1
      %v6080 = vmul.f32 %v6062, 0.1
      %v6081 = vsel %vm6065, %v6035, %v6073
      %v6082 = vsel %vm6066, %v6038, %v6074
      %v6083 = vsel %vm6067, %v6043, %v6075
      %v6084 = vsel %vm6068, %v6046, %v6076
      %v6085 = vsel %vm6069, %v6051, %v6077
      %v6086 = vsel %vm6070, %v6054, %v6078
      %v6087 = vsel %vm6071, %v6059, %v6079
      %v6088 = vsel %vm6072, %v6062, %v6080
      %v6097 = vrot.slane %v6081, 7
      %v6098 = vrot.slane %v6082, 7
      %v6099 = vrot.slane %v6083, 7
      %v6100 = vrot.slane %v6084, 7
      %v6101 = vrot.slane %v6085, 7
      %v6102 = vrot.slane %v6086, 7
      %v6103 = vrot.slane %v6087, 7
      %v6104 = vrot.slane %v6088, 7
      %v6113 = vsel %vm2326, 0.0, %v6097
      %v6114 = vsel %vm2326, 0.0, %v6098
      %v6115 = vsel %vm2326, 0.0, %v6099
      %v6116 = vsel %vm2326, 0.0, %v6100
      %v6117 = vsel %vm2326, 0.0, %v6101
      %v6118 = vsel %vm2326, 0.0, %v6102
      %v6119 = vsel %vm2326, 0.0, %v6103
      %v6120 = vsel %vm2326, 0.0, %v6104
      %s6121 = scalar_lea.vmem [#allocation4], 24
      %6122 = vst.msk [vmem:[%s6121] sm:$0xff] %vm583, %v6113
      %vm6123 = vcmask 516096
      %6124 = vst.msk [vmem:[%s6121 + $0x8] sm:$0x1] %vm6123, %v6097
      %6125 = vst.msk [vmem:[%s6121 + $0x18] sm:$0xff] %vm583, %v6114
      %6126 = vst.msk [vmem:[%s6121 + $0x20] sm:$0x1] %vm6123, %v6098
      %6127 = vst.msk [vmem:[%s6121 + $0x30] sm:$0xff] %vm583, %v6115
      %6128 = vst.msk [vmem:[%s6121 + $0x38] sm:$0x1] %vm6123, %v6099
      %6129 = vst.msk [vmem:[%s6121 + $0x48] sm:$0xff] %vm583, %v6116
      %6130 = vst.msk [vmem:[%s6121 + $0x50] sm:$0x1] %vm6123, %v6100
      %6131 = vst.msk [vmem:[%s6121 + $0x60] sm:$0xff] %vm583, %v6117
      %6132 = vst.msk [vmem:[%s6121 + $0x68] sm:$0x1] %vm6123, %v6101
      %6133 = vst.msk [vmem:[%s6121 + $0x78] sm:$0xff] %vm583, %v6118
      %6134 = vst.msk [vmem:[%s6121 + $0x80] sm:$0x1] %vm6123, %v6102
      %6135 = vst.msk [vmem:[%s6121 + $0x90] sm:$0xff] %vm583, %v6119
      %6136 = vst.msk [vmem:[%s6121 + $0x98] sm:$0x1] %vm6123, %v6103
      %6137 = vst.msk [vmem:[%s6121 + $0xa8] sm:$0xff] %vm583, %v6120
      %6138 = vst.msk [vmem:[%s6121 + $0xb0] sm:$0x1] %vm6123, %v6104
      %v6139 = vld [vmem:[#allocation4] ss:$2 sm:$0xff]
      %s6140 = scalar_lea.vmem [#allocation4], 24
      %v6141 = vld [vmem:[%s6140] ss:$2 sm:$0xff]
      %s6142 = scalar_lea.vmem [#allocation4], 48
      %v6143 = vld [vmem:[%s6142] ss:$2 sm:$0xff]
      %s6144 = scalar_lea.vmem [#allocation4], 72
      %v6145 = vld [vmem:[%s6144] ss:$2 sm:$0xff]
      %s6146 = scalar_lea.vmem [#allocation4], 96
      %v6147 = vld [vmem:[%s6146] ss:$2 sm:$0xff]
      %s6148 = scalar_lea.vmem [#allocation4], 120
      %v6149 = vld [vmem:[%s6148] ss:$2 sm:$0xff]
      %s6150 = scalar_lea.vmem [#allocation4], 144
      %v6151 = vld [vmem:[%s6150] ss:$2 sm:$0xff]
      %s6152 = scalar_lea.vmem [#allocation4], 168
      %v6153 = vld [vmem:[%s6152] ss:$2 sm:$0xff]
      %s6154 = scalar_lea.vmem [#allocation4], 192
      %v6155 = vld [vmem:[%s6154] ss:$2 sm:$0xff]
      %s6156 = scalar_lea.vmem [#allocation4], 216
      %v6157 = vld [vmem:[%s6156] ss:$2 sm:$0xff]
      %s6158 = scalar_lea.vmem [#allocation4], 1
      %v6159 = vld [vmem:[%s6158] ss:$2 sm:$0xff]
      %s6160 = scalar_lea.vmem [#allocation4], 25
      %v6161 = vld [vmem:[%s6160] ss:$2 sm:$0xff]
      %s6162 = scalar_lea.vmem [#allocation4], 49
      %v6163 = vld [vmem:[%s6162] ss:$2 sm:$0xff]
      %s6164 = scalar_lea.vmem [#allocation4], 73
      %v6165 = vld [vmem:[%s6164] ss:$2 sm:$0xff]
      %s6166 = scalar_lea.vmem [#allocation4], 97
      %v6167 = vld [vmem:[%s6166] ss:$2 sm:$0xff]
      %s6168 = scalar_lea.vmem [#allocation4], 121
      %v6169 = vld [vmem:[%s6168] ss:$2 sm:$0xff]
      %s6170 = scalar_lea.vmem [#allocation4], 145
      %v6171 = vld [vmem:[%s6170] ss:$2 sm:$0xff]
      %s6172 = scalar_lea.vmem [#allocation4], 169
      %v6173 = vld [vmem:[%s6172] ss:$2 sm:$0xff]
      %s6174 = scalar_lea.vmem [#allocation4], 193
      %v6175 = vld [vmem:[%s6174] ss:$2 sm:$0xff]
      %s6176 = scalar_lea.vmem [#allocation4], 217
      %v6177 = vld [vmem:[%s6176] ss:$2 sm:$0xff]
      %s6178 = scalar_lea.vmem [#allocation4], 2
      %v6179 = vld [vmem:[%s6178] ss:$2 sm:$0xff]
      %s6180 = scalar_lea.vmem [#allocation4], 26
      %v6181 = vld [vmem:[%s6180] ss:$2 sm:$0xff]
      %s6182 = scalar_lea.vmem [#allocation4], 50
      %v6183 = vld [vmem:[%s6182] ss:$2 sm:$0xff]
      %s6184 = scalar_lea.vmem [#allocation4], 74
      %v6185 = vld [vmem:[%s6184] ss:$2 sm:$0xff]
      %s6186 = scalar_lea.vmem [#allocation4], 98
      %v6187 = vld [vmem:[%s6186] ss:$2 sm:$0xff]
      %s6188 = scalar_lea.vmem [#allocation4], 122
      %v6189 = vld [vmem:[%s6188] ss:$2 sm:$0xff]
      %s6190 = scalar_lea.vmem [#allocation4], 146
      %v6191 = vld [vmem:[%s6190] ss:$2 sm:$0xff]
      %s6192 = scalar_lea.vmem [#allocation4], 170
      %v6193 = vld [vmem:[%s6192] ss:$2 sm:$0xff]
      %s6194 = scalar_lea.vmem [#allocation4], 194
      %v6195 = vld [vmem:[%s6194] ss:$2 sm:$0xff]
      %s6196 = scalar_lea.vmem [#allocation4], 218
      %v6197 = vld [vmem:[%s6196] ss:$2 sm:$0xff]
      %s6198 = scalar_lea.vmem [#allocation4], 3
      %v6199 = vld [vmem:[%s6198] ss:$2 sm:$0xff]
      %s6200 = scalar_lea.vmem [#allocation4], 27
      %v6201 = vld [vmem:[%s6200] ss:$2 sm:$0xff]
      %s6202 = scalar_lea.vmem [#allocation4], 51
      %v6203 = vld [vmem:[%s6202] ss:$2 sm:$0xff]
      %s6204 = scalar_lea.vmem [#allocation4], 75
      %v6205 = vld [vmem:[%s6204] ss:$2 sm:$0xff]
      %s6206 = scalar_lea.vmem [#allocation4], 99
      %v6207 = vld [vmem:[%s6206] ss:$2 sm:$0xff]
      %s6208 = scalar_lea.vmem [#allocation4], 123
      %v6209 = vld [vmem:[%s6208] ss:$2 sm:$0xff]
      %s6210 = scalar_lea.vmem [#allocation4], 147
      %v6211 = vld [vmem:[%s6210] ss:$2 sm:$0xff]
      %s6212 = scalar_lea.vmem [#allocation4], 171
      %v6213 = vld [vmem:[%s6212] ss:$2 sm:$0xff]
      %s6214 = scalar_lea.vmem [#allocation4], 195
      %v6215 = vld [vmem:[%s6214] ss:$2 sm:$0xff]
      %s6216 = scalar_lea.vmem [#allocation4], 219
      %v6217 = vld [vmem:[%s6216] ss:$2 sm:$0xff]
      %6228 = vrot.lane.b32.xlu0 %v6159, 64
      %v6229 = vpop.permute.xlu0 %6228
      %6230 = vrot.lane.b32.xlu0 %v6161, 64
      %v6231 = vpop.permute.xlu0 %6230
      %6232 = vrot.lane.b32.xlu0 %v6163, 64
      %v6233 = vpop.permute.xlu0 %6232
      %6234 = vrot.lane.b32.xlu0 %v6165, 64
      %v6235 = vpop.permute.xlu0 %6234
      %6236 = vrot.lane.b32.xlu0 %v6167, 64
      %v6237 = vpop.permute.xlu0 %6236
      %6238 = vrot.lane.b32.xlu0 %v6169, 64
      %v6239 = vpop.permute.xlu0 %6238
      %6240 = vrot.lane.b32.xlu0 %v6171, 64
      %v6241 = vpop.permute.xlu0 %6240
      %6242 = vrot.lane.b32.xlu0 %v6173, 64
      %v6243 = vpop.permute.xlu0 %6242
      %6244 = vrot.lane.b32.xlu0 %v6175, 64
      %v6245 = vpop.permute.xlu0 %6244
      %6246 = vrot.lane.b32.xlu0 %v6177, 64
      %v6247 = vpop.permute.xlu0 %6246
      %6268 = vrot.lane.b32.xlu0 %v6199, 64
      %v6269 = vpop.permute.xlu0 %6268
      %6270 = vrot.lane.b32.xlu0 %v6201, 64
      %v6271 = vpop.permute.xlu0 %6270
      %6272 = vrot.lane.b32.xlu0 %v6203, 64
      %v6273 = vpop.permute.xlu0 %6272
      %6274 = vrot.lane.b32.xlu0 %v6205, 64
      %v6275 = vpop.permute.xlu0 %6274
      %6276 = vrot.lane.b32.xlu0 %v6207, 64
      %v6277 = vpop.permute.xlu0 %6276
      %6278 = vrot.lane.b32.xlu0 %v6209, 64
      %v6279 = vpop.permute.xlu0 %6278
      %6280 = vrot.lane.b32.xlu0 %v6211, 64
      %v6281 = vpop.permute.xlu0 %6280
      %6282 = vrot.lane.b32.xlu0 %v6213, 64
      %v6283 = vpop.permute.xlu0 %6282
      %6284 = vrot.lane.b32.xlu0 %v6215, 64
      %v6285 = vpop.permute.xlu0 %6284
      %6286 = vrot.lane.b32.xlu0 %v6217, 64
      %v6287 = vpop.permute.xlu0 %6286
      %v6298 = vsel %vm583, %v6139, %v6229
      %v6299 = vsel %vm583, %v6141, %v6231
      %v6300 = vsel %vm583, %v6143, %v6233
      %v6301 = vsel %vm583, %v6145, %v6235
      %v6302 = vsel %vm583, %v6147, %v6237
      %v6303 = vsel %vm583, %v6149, %v6239
      %v6304 = vsel %vm583, %v6151, %v6241
      %v6305 = vsel %vm583, %v6153, %v6243
      %v6306 = vsel %vm583, %v6155, %v6245
      %v6307 = vsel %vm583, %v6157, %v6247
      %v6308 = vsel %vm583, %v6179, %v6269
      %v6309 = vsel %vm583, %v6181, %v6271
      %v6310 = vsel %vm583, %v6183, %v6273
      %v6311 = vsel %vm583, %v6185, %v6275
      %v6312 = vsel %vm583, %v6187, %v6277
      %v6313 = vsel %vm583, %v6189, %v6279
      %v6314 = vsel %vm583, %v6191, %v6281
      %v6315 = vsel %vm583, %v6193, %v6283
      %v6316 = vsel %vm583, %v6195, %v6285
      %v6317 = vsel %vm583, %v6197, %v6287
      %v6318 = vpack.c.bf16 %v6300, %v6298
      %v6319 = vpack.c.bf16 %v6310, %v6308
      %v6320 = vpack.c.bf16 %v6301, %v6299
      %v6321 = vpack.c.bf16 %v6311, %v6309
      %v6322 = vpack.c.bf16 %v6302, %v6300
      %v6323 = vpack.c.bf16 %v6312, %v6310
      %v6324 = vpack.c.bf16 %v6303, %v6301
      %v6325 = vpack.c.bf16 %v6313, %v6311
      %v6326 = vpack.c.bf16 %v6304, %v6302
      %v6327 = vpack.c.bf16 %v6314, %v6312
      %v6328 = vpack.c.bf16 %v6305, %v6303
      %v6329 = vpack.c.bf16 %v6315, %v6313
      %v6330 = vpack.c.bf16 %v6306, %v6304
      %v6331 = vpack.c.bf16 %v6316, %v6314
      %v6332 = vpack.c.bf16 %v6307, %v6305
      %v6333 = vpack.c.bf16 %v6317, %v6315
      %v6334 = vld [vmem:[%s7] sm:$0xf]
      %v6335 = vld [vmem:[%s7 + $0x4] sm:$0xf]
      %v6336 = vld [vmem:[%s7 + $0x8] sm:$0xf]
      %v6337 = vld [vmem:[%s7 + $0xc] sm:$0xf]
      %v6338 = vld [vmem:[%s7 + $0x10] sm:$0xf]
      %v6339 = vld [vmem:[%s7 + $0x14] sm:$0xf]
      %v6340 = vld [vmem:[%s7 + $0x18] sm:$0xf]
      %v6341 = vld [vmem:[%s7 + $0x1c] sm:$0xf]
      %v6342 = vld [vmem:[%s7 + $0x20] sm:$0xf]
      %v6343 = vld [vmem:[%s7 + $0x24] sm:$0xf]
      %v6344 = vld [vmem:[%s7 + $0x28] sm:$0xf]
      %v6345 = vld [vmem:[%s7 + $0x2c] sm:$0xf]
      %v6346 = vld [vmem:[%s7 + $0x30] sm:$0xf]
      %v6347 = vld [vmem:[%s7 + $0x34] sm:$0xf]
      %v6348 = vld [vmem:[%s7 + $0x38] sm:$0xf]
      %v6349 = vld [vmem:[%s7 + $0x3c] sm:$0xf]
      %v6350 = vld [vmem:[%s7 + $0x40] sm:$0xf]
      %v6351 = vld [vmem:[%s7 + $0x44] sm:$0xf]
      %v6352 = vld [vmem:[%s7 + $0x48] sm:$0xf]
      %v6353 = vld [vmem:[%s7 + $0x4c] sm:$0xf]
      %v6354 = vld [vmem:[%s7 + $0x50] sm:$0xf]
      %v6355 = vld [vmem:[%s7 + $0x54] sm:$0xf]
      %v6356 = vld [vmem:[%s7 + $0x58] sm:$0xf]
      %v6357 = vld [vmem:[%s7 + $0x5c] sm:$0xf]
      %v6358 = vld [vmem:[%s7 + $0x60] sm:$0xf]
      %v6359 = vld [vmem:[%s7 + $0x64] sm:$0xf]
      %v6360 = vld [vmem:[%s7 + $0x68] sm:$0xf]
      %v6361 = vld [vmem:[%s7 + $0x6c] sm:$0xf]
      %v6362 = vld [vmem:[%s7 + $0x70] sm:$0xf]
      %v6363 = vld [vmem:[%s7 + $0x74] sm:$0xf]
      %v6364 = vld [vmem:[%s7 + $0x78] sm:$0xf]
      %v6365 = vld [vmem:[%s7 + $0x7c] sm:$0xf]
      %v6366 = vld [vmem:[%s7 + $0x80] sm:$0xf]
      %v6367 = vld [vmem:[%s7 + $0x84] sm:$0xf]
      %v6368 = vld [vmem:[%s7 + $0x88] sm:$0xf]
      %v6369 = vld [vmem:[%s7 + $0x8c] sm:$0xf]
      %v6370 = vld [vmem:[%s7 + $0x90] sm:$0xf]
      %v6371 = vld [vmem:[%s7 + $0x94] sm:$0xf]
      %v6372 = vld [vmem:[%s7 + $0x98] sm:$0xf]
      %v6373 = vld [vmem:[%s7 + $0x9c] sm:$0xf]
      %v6374 = vld [vmem:[%s7 + $0xa0] sm:$0xf]
      %v6375 = vld [vmem:[%s7 + $0xa4] sm:$0xf]
      %v6376 = vld [vmem:[%s7 + $0xa8] sm:$0xf]
      %v6377 = vld [vmem:[%s7 + $0xac] sm:$0xf]
      %v6378 = vld [vmem:[%s7 + $0xb0] sm:$0xf]
      %v6379 = vld [vmem:[%s7 + $0xb4] sm:$0xf]
      %v6380 = vld [vmem:[%s7 + $0xb8] sm:$0xf]
      %v6381 = vld [vmem:[%s7 + $0xbc] sm:$0xf]
      %v6382 = vld [vmem:[%s7 + $0xc0] sm:$0xf]
      %v6383 = vld [vmem:[%s7 + $0xc4] sm:$0xf]
      %v6384 = vld [vmem:[%s7 + $0xc8] sm:$0xf]
      %v6385 = vld [vmem:[%s7 + $0xcc] sm:$0xf]
      %v6386 = vld [vmem:[%s7 + $0xd0] sm:$0xf]
      %v6387 = vld [vmem:[%s7 + $0xd4] sm:$0xf]
      %v6388 = vld [vmem:[%s7 + $0xd8] sm:$0xf]
      %v6389 = vld [vmem:[%s7 + $0xdc] sm:$0xf]
      %v6390 = vld [vmem:[%s7 + $0xe0] sm:$0xf]
      %v6391 = vld [vmem:[%s7 + $0xe4] sm:$0xf]
      %v6392 = vld [vmem:[%s7 + $0xe8] sm:$0xf]
      %v6393 = vld [vmem:[%s7 + $0xec] sm:$0xf]
      %v6394 = vld [vmem:[%s7 + $0xf0] sm:$0xf]
      %v6395 = vld [vmem:[%s7 + $0xf4] sm:$0xf]
      %v6396 = vld [vmem:[%s7 + $0xf8] sm:$0xf]
      %v6397 = vld [vmem:[%s7 + $0xfc] sm:$0xf]
      %v6398 = vld [vmem:[%s7 + $0x100] sm:$0xf]
      %v6399 = vld [vmem:[%s7 + $0x104] sm:$0xf]
      %v6400 = vld [vmem:[%s7 + $0x108] sm:$0xf]
      %v6401 = vld [vmem:[%s7 + $0x10c] sm:$0xf]
      %v6402 = vld [vmem:[%s7 + $0x110] sm:$0xf]
      %v6403 = vld [vmem:[%s7 + $0x114] sm:$0xf]
      %v6404 = vld [vmem:[%s7 + $0x118] sm:$0xf]
      %v6405 = vld [vmem:[%s7 + $0x11c] sm:$0xf]
      %v6406 = vld [vmem:[%s7 + $0x120] sm:$0xf]
      %v6407 = vld [vmem:[%s7 + $0x124] sm:$0xf]
      %v6408 = vld [vmem:[%s7 + $0x128] sm:$0xf]
      %v6409 = vld [vmem:[%s7 + $0x12c] sm:$0xf]
      %v6410 = vld [vmem:[%s7 + $0x130] sm:$0xf]
      %v6411 = vld [vmem:[%s7 + $0x134] sm:$0xf]
      %v6412 = vld [vmem:[%s7 + $0x138] sm:$0xf]
      %v6413 = vld [vmem:[%s7 + $0x13c] sm:$0xf]
      %v6414 = vld [vmem:[%s7 + $0x140] sm:$0xf]
      %v6415 = vld [vmem:[%s7 + $0x144] sm:$0xf]
      %v6416 = vld [vmem:[%s7 + $0x148] sm:$0xf]
      %v6417 = vld [vmem:[%s7 + $0x14c] sm:$0xf]
      %v6418 = vld [vmem:[%s7 + $0x150] sm:$0xf]
      %v6419 = vld [vmem:[%s7 + $0x154] sm:$0xf]
      %v6420 = vld [vmem:[%s7 + $0x158] sm:$0xf]
      %v6421 = vld [vmem:[%s7 + $0x15c] sm:$0xf]
      %v6422 = vld [vmem:[%s7 + $0x160] sm:$0xf]
      %v6423 = vld [vmem:[%s7 + $0x164] sm:$0xf]
      %v6424 = vld [vmem:[%s7 + $0x168] sm:$0xf]
      %v6425 = vld [vmem:[%s7 + $0x16c] sm:$0xf]
      %v6426 = vld [vmem:[%s7 + $0x170] sm:$0xf]
      %v6427 = vld [vmem:[%s7 + $0x174] sm:$0xf]
      %v6428 = vld [vmem:[%s7 + $0x178] sm:$0xf]
      %v6429 = vld [vmem:[%s7 + $0x17c] sm:$0xf]
      %v6430 = vld [vmem:[%s7 + $0x180] sm:$0xf]
      %v6431 = vld [vmem:[%s7 + $0x184] sm:$0xf]
      %v6432 = vld [vmem:[%s7 + $0x188] sm:$0xf]
      %v6433 = vld [vmem:[%s7 + $0x18c] sm:$0xf]
      %v6434 = vld [vmem:[%s7 + $0x190] sm:$0xf]
      %v6435 = vld [vmem:[%s7 + $0x194] sm:$0xf]
      %v6436 = vld [vmem:[%s7 + $0x198] sm:$0xf]
      %v6437 = vld [vmem:[%s7 + $0x19c] sm:$0xf]
      %v6438 = vld [vmem:[%s7 + $0x1a0] sm:$0xf]
      %v6439 = vld [vmem:[%s7 + $0x1a4] sm:$0xf]
      %v6440 = vld [vmem:[%s7 + $0x1a8] sm:$0xf]
      %v6441 = vld [vmem:[%s7 + $0x1ac] sm:$0xf]
      %v6442 = vld [vmem:[%s7 + $0x1b0] sm:$0xf]
      %v6443 = vld [vmem:[%s7 + $0x1b4] sm:$0xf]
      %v6444 = vld [vmem:[%s7 + $0x1b8] sm:$0xf]
      %v6445 = vld [vmem:[%s7 + $0x1bc] sm:$0xf]
      %v6446 = vld [vmem:[%s7 + $0x1c0] sm:$0xf]
      %v6447 = vld [vmem:[%s7 + $0x1c4] sm:$0xf]
      %v6448 = vld [vmem:[%s7 + $0x1c8] sm:$0xf]
      %v6449 = vld [vmem:[%s7 + $0x1cc] sm:$0xf]
      %v6450 = vld [vmem:[%s7 + $0x1d0] sm:$0xf]
      %v6451 = vld [vmem:[%s7 + $0x1d4] sm:$0xf]
      %v6452 = vld [vmem:[%s7 + $0x1d8] sm:$0xf]
      %v6453 = vld [vmem:[%s7 + $0x1dc] sm:$0xf]
      %v6454 = vld [vmem:[%s7 + $0x1e0] sm:$0xf]
      %v6455 = vld [vmem:[%s7 + $0x1e4] sm:$0xf]
      %v6456 = vld [vmem:[%s7 + $0x1e8] sm:$0xf]
      %v6457 = vld [vmem:[%s7 + $0x1ec] sm:$0xf]
      %v6458 = vld [vmem:[%s7 + $0x1f0] sm:$0xf]
      %v6459 = vld [vmem:[%s7 + $0x1f4] sm:$0xf]
      %v6460 = vld [vmem:[%s7 + $0x1f8] sm:$0xf]
      %v6461 = vld [vmem:[%s7 + $0x1fc] sm:$0xf]
      %v6462 = vld [vmem:[%s8] sm:$0x1]
      %v6464 = vlaneseq
      %v6465 = vshrl.u32 %v6464, 7
      %v6466 = vsub.s32 0, %v6465
      %v6467 = vrot.slane %v6462, %v6466
      %v6597 = vunpack.c.l.b16 %v6334
      %v6598 = vunpack.c.l.b16 %v6335
      %v6599 = vunpack.c.l.b16 %v6336
      %v6600 = vunpack.c.l.b16 %v6337
      %v6601 = vunpack.c.l.b16 %v6338
      %v6602 = vunpack.c.l.b16 %v6339
      %v6603 = vunpack.c.l.b16 %v6340
      %v6604 = vunpack.c.l.b16 %v6341
      %v6605 = vunpack.c.l.b16 %v6342
      %v6606 = vunpack.c.l.b16 %v6343
      %v6607 = vunpack.c.l.b16 %v6344
      %v6608 = vunpack.c.l.b16 %v6345
      %v6609 = vunpack.c.l.b16 %v6346
      %v6610 = vunpack.c.l.b16 %v6347
      %v6611 = vunpack.c.l.b16 %v6348
      %v6612 = vunpack.c.l.b16 %v6349
      %v6613 = vunpack.c.l.b16 %v6350
      %v6614 = vunpack.c.l.b16 %v6351
      %v6615 = vunpack.c.l.b16 %v6352
      %v6616 = vunpack.c.l.b16 %v6353
      %v6617 = vunpack.c.l.b16 %v6354
      %v6618 = vunpack.c.l.b16 %v6355
      %v6619 = vunpack.c.l.b16 %v6356
      %v6620 = vunpack.c.l.b16 %v6357
      %v6621 = vunpack.c.l.b16 %v6358
      %v6622 = vunpack.c.l.b16 %v6359
      %v6623 = vunpack.c.l.b16 %v6360
      %v6624 = vunpack.c.l.b16 %v6361
      %v6625 = vunpack.c.l.b16 %v6362
      %v6626 = vunpack.c.l.b16 %v6363
      %v6627 = vunpack.c.l.b16 %v6364
      %v6628 = vunpack.c.l.b16 %v6365
      %v6629 = vunpack.c.l.b16 %v6366
      %v6630 = vunpack.c.l.b16 %v6367
      %v6631 = vunpack.c.l.b16 %v6368
      %v6632 = vunpack.c.l.b16 %v6369
      %v6633 = vunpack.c.l.b16 %v6370
      %v6634 = vunpack.c.l.b16 %v6371
      %v6635 = vunpack.c.l.b16 %v6372
      %v6636 = vunpack.c.l.b16 %v6373
      %v6637 = vunpack.c.l.b16 %v6374
      %v6638 = vunpack.c.l.b16 %v6375
      %v6639 = vunpack.c.l.b16 %v6376
      %v6640 = vunpack.c.l.b16 %v6377
      %v6641 = vunpack.c.l.b16 %v6378
      %v6642 = vunpack.c.l.b16 %v6379
      %v6643 = vunpack.c.l.b16 %v6380
      %v6644 = vunpack.c.l.b16 %v6381
      %v6645 = vunpack.c.l.b16 %v6382
      %v6646 = vunpack.c.l.b16 %v6383
      %v6647 = vunpack.c.l.b16 %v6384
      %v6648 = vunpack.c.l.b16 %v6385
      %v6649 = vunpack.c.l.b16 %v6386
      %v6650 = vunpack.c.l.b16 %v6387
      %v6651 = vunpack.c.l.b16 %v6388
      %v6652 = vunpack.c.l.b16 %v6389
      %v6653 = vunpack.c.l.b16 %v6390
      %v6654 = vunpack.c.l.b16 %v6391
      %v6655 = vunpack.c.l.b16 %v6392
      %v6656 = vunpack.c.l.b16 %v6393
      %v6657 = vunpack.c.l.b16 %v6394
      %v6658 = vunpack.c.l.b16 %v6395
      %v6659 = vunpack.c.l.b16 %v6396
      %v6660 = vunpack.c.l.b16 %v6397
      %v6661 = vunpack.c.l.b16 %v6398
      %v6662 = vunpack.c.l.b16 %v6399
      %v6663 = vunpack.c.l.b16 %v6400
      %v6664 = vunpack.c.l.b16 %v6401
      %v6665 = vunpack.c.l.b16 %v6402
      %v6666 = vunpack.c.l.b16 %v6403
      %v6667 = vunpack.c.l.b16 %v6404
      %v6668 = vunpack.c.l.b16 %v6405
      %v6669 = vunpack.c.l.b16 %v6406
      %v6670 = vunpack.c.l.b16 %v6407
      %v6671 = vunpack.c.l.b16 %v6408
      %v6672 = vunpack.c.l.b16 %v6409
      %v6673 = vunpack.c.l.b16 %v6410
      %v6674 = vunpack.c.l.b16 %v6411
      %v6675 = vunpack.c.l.b16 %v6412
      %v6676 = vunpack.c.l.b16 %v6413
      %v6677 = vunpack.c.l.b16 %v6414
      %v6678 = vunpack.c.l.b16 %v6415
      %v6679 = vunpack.c.l.b16 %v6416
      %v6680 = vunpack.c.l.b16 %v6417
      %v6681 = vunpack.c.l.b16 %v6418
      %v6682 = vunpack.c.l.b16 %v6419
      %v6683 = vunpack.c.l.b16 %v6420
      %v6684 = vunpack.c.l.b16 %v6421
      %v6685 = vunpack.c.l.b16 %v6422
      %v6686 = vunpack.c.l.b16 %v6423
      %v6687 = vunpack.c.l.b16 %v6424
      %v6688 = vunpack.c.l.b16 %v6425
      %v6689 = vunpack.c.l.b16 %v6426
      %v6690 = vunpack.c.l.b16 %v6427
      %v6691 = vunpack.c.l.b16 %v6428
      %v6692 = vunpack.c.l.b16 %v6429
      %v6693 = vunpack.c.l.b16 %v6430
      %v6694 = vunpack.c.l.b16 %v6431
      %v6695 = vunpack.c.l.b16 %v6432
      %v6696 = vunpack.c.l.b16 %v6433
      %v6697 = vunpack.c.l.b16 %v6434
      %v6698 = vunpack.c.l.b16 %v6435
      %v6699 = vunpack.c.l.b16 %v6436
      %v6700 = vunpack.c.l.b16 %v6437
      %v6701 = vunpack.c.l.b16 %v6438
      %v6702 = vunpack.c.l.b16 %v6439
      %v6703 = vunpack.c.l.b16 %v6440
      %v6704 = vunpack.c.l.b16 %v6441
      %v6705 = vunpack.c.l.b16 %v6442
      %v6706 = vunpack.c.l.b16 %v6443
      %v6707 = vunpack.c.l.b16 %v6444
      %v6708 = vunpack.c.l.b16 %v6445
      %v6709 = vunpack.c.l.b16 %v6446
      %v6710 = vunpack.c.l.b16 %v6447
      %v6711 = vunpack.c.l.b16 %v6448
      %v6712 = vunpack.c.l.b16 %v6449
      %v6713 = vunpack.c.l.b16 %v6450
      %v6714 = vunpack.c.l.b16 %v6451
      %v6715 = vunpack.c.l.b16 %v6452
      %v6716 = vunpack.c.l.b16 %v6453
      %v6717 = vunpack.c.l.b16 %v6454
      %v6718 = vunpack.c.l.b16 %v6455
      %v6719 = vunpack.c.l.b16 %v6456
      %v6720 = vunpack.c.l.b16 %v6457
      %v6721 = vunpack.c.l.b16 %v6458
      %v6722 = vunpack.c.l.b16 %v6459
      %v6723 = vunpack.c.l.b16 %v6460
      %v6724 = vunpack.c.l.b16 %v6461
      %v6725 = vpack.c.b16 %v6598, %v6597
      %v6726 = vpack.c.b16 %v6600, %v6599
      %v6727 = vpack.c.b16 %v6602, %v6601
      %v6728 = vpack.c.b16 %v6604, %v6603
      %v6729 = vpack.c.b16 %v6606, %v6605
      %v6730 = vpack.c.b16 %v6608, %v6607
      %v6731 = vpack.c.b16 %v6610, %v6609
      %v6732 = vpack.c.b16 %v6612, %v6611
      %v6733 = vpack.c.b16 %v6614, %v6613
      %v6734 = vpack.c.b16 %v6616, %v6615
      %v6735 = vpack.c.b16 %v6618, %v6617
      %v6736 = vpack.c.b16 %v6620, %v6619
      %v6737 = vpack.c.b16 %v6622, %v6621
      %v6738 = vpack.c.b16 %v6624, %v6623
      %v6739 = vpack.c.b16 %v6626, %v6625
      %v6740 = vpack.c.b16 %v6628, %v6627
      %v6741 = vpack.c.b16 %v6630, %v6629
      %v6742 = vpack.c.b16 %v6632, %v6631
      %v6743 = vpack.c.b16 %v6634, %v6633
      %v6744 = vpack.c.b16 %v6636, %v6635
      %v6745 = vpack.c.b16 %v6638, %v6637
      %v6746 = vpack.c.b16 %v6640, %v6639
      %v6747 = vpack.c.b16 %v6642, %v6641
      %v6748 = vpack.c.b16 %v6644, %v6643
      %v6749 = vpack.c.b16 %v6646, %v6645
      %v6750 = vpack.c.b16 %v6648, %v6647
      %v6751 = vpack.c.b16 %v6650, %v6649
      %v6752 = vpack.c.b16 %v6652, %v6651
      %v6753 = vpack.c.b16 %v6654, %v6653
      %v6754 = vpack.c.b16 %v6656, %v6655
      %v6755 = vpack.c.b16 %v6658, %v6657
      %v6756 = vpack.c.b16 %v6660, %v6659
      %v6757 = vpack.c.b16 %v6662, %v6661
      %v6758 = vpack.c.b16 %v6664, %v6663
      %v6759 = vpack.c.b16 %v6666, %v6665
      %v6760 = vpack.c.b16 %v6668, %v6667
      %v6761 = vpack.c.b16 %v6670, %v6669
      %v6762 = vpack.c.b16 %v6672, %v6671
      %v6763 = vpack.c.b16 %v6674, %v6673
      %v6764 = vpack.c.b16 %v6676, %v6675
      %v6765 = vpack.c.b16 %v6678, %v6677
      %v6766 = vpack.c.b16 %v6680, %v6679
      %v6767 = vpack.c.b16 %v6682, %v6681
      %v6768 = vpack.c.b16 %v6684, %v6683
      %v6769 = vpack.c.b16 %v6686, %v6685
      %v6770 = vpack.c.b16 %v6688, %v6687
      %v6771 = vpack.c.b16 %v6690, %v6689
      %v6772 = vpack.c.b16 %v6692, %v6691
      %v6773 = vpack.c.b16 %v6694, %v6693
      %v6774 = vpack.c.b16 %v6696, %v6695
      %v6775 = vpack.c.b16 %v6698, %v6697
      %v6776 = vpack.c.b16 %v6700, %v6699
      %v6777 = vpack.c.b16 %v6702, %v6701
      %v6778 = vpack.c.b16 %v6704, %v6703
      %v6779 = vpack.c.b16 %v6706, %v6705
      %v6780 = vpack.c.b16 %v6708, %v6707
      %v6781 = vpack.c.b16 %v6710, %v6709
      %v6782 = vpack.c.b16 %v6712, %v6711
      %v6783 = vpack.c.b16 %v6714, %v6713
      %v6784 = vpack.c.b16 %v6716, %v6715
      %v6785 = vpack.c.b16 %v6718, %v6717
      %v6786 = vpack.c.b16 %v6720, %v6719
      %v6787 = vpack.c.b16 %v6722, %v6721
      %v6788 = vpack.c.b16 %v6724, %v6723
      %6853 = vmatprep.subr.bf16.mxu0 0
      %6854 = vmatpush1.bf16.msra.mxu0 %v6725
      %6855 = vmatprep.subr.bf16.mxu0 0
      %6856 = vmatpush1.bf16.msra.mxu0 %v6726
      %6857 = vmatprep.subr.bf16.mxu0 0
      %6858 = vmatpush1.bf16.msra.mxu0 %v6727
      %6859 = vmatprep.subr.bf16.mxu0 0
      %6860 = vmatpush1.bf16.msra.mxu0 %v6728
      %6861 = vmatprep.subr.bf16.mxu0 0
      %6862 = vmatpush1.bf16.msra.mxu0 %v6729
      %6863 = vmatprep.subr.bf16.mxu0 0
      %6864 = vmatpush1.bf16.msra.mxu0 %v6730
      %6865 = vmatprep.subr.bf16.mxu0 0
      %6866 = vmatpush1.bf16.msra.mxu0 %v6731
      %6867 = vmatprep.subr.bf16.mxu0 0
      %6868 = vmatpush1.bf16.msra.mxu0 %v6732
      %6869 = vmatprep.subr.bf16.mxu0 0
      %6870 = vmatpush1.bf16.msra.mxu0 %v6733
      %6871 = vmatprep.subr.bf16.mxu0 0
      %6872 = vmatpush1.bf16.msra.mxu0 %v6734
      %6873 = vmatprep.subr.bf16.mxu0 0
      %6874 = vmatpush1.bf16.msra.mxu0 %v6735
      %6875 = vmatprep.subr.bf16.mxu0 0
      %6876 = vmatpush1.bf16.msra.mxu0 %v6736
      %6877 = vmatprep.subr.bf16.mxu0 0
      %6878 = vmatpush1.bf16.msra.mxu0 %v6737
      %6879 = vmatprep.subr.bf16.mxu0 0
      %6880 = vmatpush1.bf16.msra.mxu0 %v6738
      %6881 = vmatprep.subr.bf16.mxu0 0
      %6882 = vmatpush1.bf16.msra.mxu0 %v6739
      %6883 = vmatprep.subr.bf16.mxu0 0
      %6884 = vmatpush1.bf16.msra.mxu0 %v6740
      %6885 = vmatprep.mubr.bf16.mxu0 %v6319
      %6886 = vmatmul.mubr.bf16.gmra.mrb[0].mxu0 %v6318
      %v6887 = vpop.f32.mrb[0].mxu0
      %v6888 = vadd.f32 %v6467, %v6887
      %v6889 = vpop.f32.mrb[0].mxu0
      %v6890 = vpop.f32.mrb[0].mxu0
      %v6891 = vadd.f32 %v6467, %v6890
      %v6892 = vpop.f32.mrb[0].mxu0
      %6893 = vmatprep.mubr.bf16.mxu0 %v6327
      %6894 = vmatmul.mubr.bf16.gmra.mrb[0].mxu0 %v6326
      %v6895 = vpop.f32.mrb[0].mxu0
      %v6896 = vadd.f32 %v6467, %v6895
      %v6897 = vpop.f32.mrb[0].mxu0
      %v6898 = vpop.f32.mrb[0].mxu0
      %v6899 = vadd.f32 %v6467, %v6898
      %v6900 = vpop.f32.mrb[0].mxu0
      %6901 = vdwg.mxu0
      %6902 = vmatprep.subr.bf16.mxu0 0
      %6903 = vmatpush1.bf16.msra.mxu0 %v6741
      %6904 = vmatprep.subr.bf16.mxu0 0
      %6905 = vmatpush1.bf16.msra.mxu0 %v6742
      %6906 = vmatprep.subr.bf16.mxu0 0
      %6907 = vmatpush1.bf16.msra.mxu0 %v6743
      %6908 = vmatprep.subr.bf16.mxu0 0
      %6909 = vmatpush1.bf16.msra.mxu0 %v6744
      %6910 = vmatprep.subr.bf16.mxu0 0
      %6911 = vmatpush1.bf16.msra.mxu0 %v6745
      %6912 = vmatprep.subr.bf16.mxu0 0
      %6913 = vmatpush1.bf16.msra.mxu0 %v6746
      %6914 = vmatprep.subr.bf16.mxu0 0
      %6915 = vmatpush1.bf16.msra.mxu0 %v6747
      %6916 = vmatprep.subr.bf16.mxu0 0
      %6917 = vmatpush1.bf16.msra.mxu0 %v6748
      %6918 = vmatprep.subr.bf16.mxu0 0
      %6919 = vmatpush1.bf16.msra.mxu0 %v6749
      %6920 = vmatprep.subr.bf16.mxu0 0
      %6921 = vmatpush1.bf16.msra.mxu0 %v6750
      %6922 = vmatprep.subr.bf16.mxu0 0
      %6923 = vmatpush1.bf16.msra.mxu0 %v6751
      %6924 = vmatprep.subr.bf16.mxu0 0
      %6925 = vmatpush1.bf16.msra.mxu0 %v6752
      %6926 = vmatprep.subr.bf16.mxu0 0
      %6927 = vmatpush1.bf16.msra.mxu0 %v6753
      %6928 = vmatprep.subr.bf16.mxu0 0
      %6929 = vmatpush1.bf16.msra.mxu0 %v6754
      %6930 = vmatprep.subr.bf16.mxu0 0
      %6931 = vmatpush1.bf16.msra.mxu0 %v6755
      %6932 = vmatprep.subr.bf16.mxu0 0
      %6933 = vmatpush1.bf16.msra.mxu0 %v6756
      %6934 = vmatprep.mubr.bf16.mxu0 %v6321
      %6935 = vmatmul.mubr.bf16.gmra.mrb[0].mxu0 %v6320
      %v6936 = vpop.f32.mrb[0].mxu0
      %v6937 = vadd.f32 %v6888, %v6936
      %v6938 = vpop.f32.mrb[0].mxu0
      %v6939 = vpop.f32.mrb[0].mxu0
      %v6940 = vadd.f32 %v6891, %v6939
      %v6941 = vpop.f32.mrb[0].mxu0
      %6942 = vmatprep.mubr.bf16.mxu0 %v6329
      %6943 = vmatmul.mubr.bf16.gmra.mrb[0].mxu0 %v6328
      %v6944 = vpop.f32.mrb[0].mxu0
      %v6945 = vadd.f32 %v6896, %v6944
      %v6946 = vpop.f32.mrb[0].mxu0
      %v6947 = vpop.f32.mrb[0].mxu0
      %v6948 = vadd.f32 %v6899, %v6947
      %v6949 = vpop.f32.mrb[0].mxu0
      %6950 = vdwg.mxu0
      %6951 = vmatprep.subr.bf16.mxu0 0
      %6952 = vmatpush1.bf16.msra.mxu0 %v6757
      %6953 = vmatprep.subr.bf16.mxu0 0
      %6954 = vmatpush1.bf16.msra.mxu0 %v6758
      %6955 = vmatprep.subr.bf16.mxu0 0
      %6956 = vmatpush1.bf16.msra.mxu0 %v6759
      %6957 = vmatprep.subr.bf16.mxu0 0
      %6958 = vmatpush1.bf16.msra.mxu0 %v6760
      %6959 = vmatprep.subr.bf16.mxu0 0
      %6960 = vmatpush1.bf16.msra.mxu0 %v6761
      %6961 = vmatprep.subr.bf16.mxu0 0
      %6962 = vmatpush1.bf16.msra.mxu0 %v6762
      %6963 = vmatprep.subr.bf16.mxu0 0
      %6964 = vmatpush1.bf16.msra.mxu0 %v6763
      %6965 = vmatprep.subr.bf16.mxu0 0
      %6966 = vmatpush1.bf16.msra.mxu0 %v6764
      %6967 = vmatprep.subr.bf16.mxu0 0
      %6968 = vmatpush1.bf16.msra.mxu0 %v6765
      %6969 = vmatprep.subr.bf16.mxu0 0
      %6970 = vmatpush1.bf16.msra.mxu0 %v6766
      %6971 = vmatprep.subr.bf16.mxu0 0
      %6972 = vmatpush1.bf16.msra.mxu0 %v6767
      %6973 = vmatprep.subr.bf16.mxu0 0
      %6974 = vmatpush1.bf16.msra.mxu0 %v6768
      %6975 = vmatprep.subr.bf16.mxu0 0
      %6976 = vmatpush1.bf16.msra.mxu0 %v6769
      %6977 = vmatprep.subr.bf16.mxu0 0
      %6978 = vmatpush1.bf16.msra.mxu0 %v6770
      %6979 = vmatprep.subr.bf16.mxu0 0
      %6980 = vmatpush1.bf16.msra.mxu0 %v6771
      %6981 = vmatprep.subr.bf16.mxu0 0
      %6982 = vmatpush1.bf16.msra.mxu0 %v6772
      %6983 = vmatprep.mubr.bf16.mxu0 %v6323
      %6984 = vmatmul.mubr.bf16.gmra.mrb[0].mxu0 %v6322
      %v6985 = vpop.f32.mrb[0].mxu0
      %v6986 = vadd.f32 %v6937, %v6985
      %v6987 = vpop.f32.mrb[0].mxu0
      %v6988 = vpop.f32.mrb[0].mxu0
      %v6989 = vadd.f32 %v6940, %v6988
      %v6990 = vpop.f32.mrb[0].mxu0
      %6991 = vmatprep.mubr.bf16.mxu0 %v6331
      %6992 = vmatmul.mubr.bf16.gmra.mrb[0].mxu0 %v6330
      %v6993 = vpop.f32.mrb[0].mxu0
      %v6994 = vadd.f32 %v6945, %v6993
      %v6995 = vpop.f32.mrb[0].mxu0
      %v6996 = vpop.f32.mrb[0].mxu0
      %v6997 = vadd.f32 %v6948, %v6996
      %v6998 = vpop.f32.mrb[0].mxu0
      %6999 = vdwg.mxu0
      %7000 = vmatprep.subr.bf16.mxu0 0
      %7001 = vmatpush1.bf16.msra.mxu0 %v6773
      %7002 = vmatprep.subr.bf16.mxu0 0
      %7003 = vmatpush1.bf16.msra.mxu0 %v6774
      %7004 = vmatprep.subr.bf16.mxu0 0
      %7005 = vmatpush1.bf16.msra.mxu0 %v6775
      %7006 = vmatprep.subr.bf16.mxu0 0
      %7007 = vmatpush1.bf16.msra.mxu0 %v6776
      %7008 = vmatprep.subr.bf16.mxu0 0
      %7009 = vmatpush1.bf16.msra.mxu0 %v6777
      %7010 = vmatprep.subr.bf16.mxu0 0
      %7011 = vmatpush1.bf16.msra.mxu0 %v6778
      %7012 = vmatprep.subr.bf16.mxu0 0
      %7013 = vmatpush1.bf16.msra.mxu0 %v6779
      %7014 = vmatprep.subr.bf16.mxu0 0
      %7015 = vmatpush1.bf16.msra.mxu0 %v6780
      %7016 = vmatprep.subr.bf16.mxu0 0
      %7017 = vmatpush1.bf16.msra.mxu0 %v6781
      %7018 = vmatprep.subr.bf16.mxu0 0
      %7019 = vmatpush1.bf16.msra.mxu0 %v6782
      %7020 = vmatprep.subr.bf16.mxu0 0
      %7021 = vmatpush1.bf16.msra.mxu0 %v6783
      %7022 = vmatprep.subr.bf16.mxu0 0
      %7023 = vmatpush1.bf16.msra.mxu0 %v6784
      %7024 = vmatprep.subr.bf16.mxu0 0
      %7025 = vmatpush1.bf16.msra.mxu0 %v6785
      %7026 = vmatprep.subr.bf16.mxu0 0
      %7027 = vmatpush1.bf16.msra.mxu0 %v6786
      %7028 = vmatprep.subr.bf16.mxu0 0
      %7029 = vmatpush1.bf16.msra.mxu0 %v6787
      %7030 = vmatprep.subr.bf16.mxu0 0
      %7031 = vmatpush1.bf16.msra.mxu0 %v6788
      %7032 = vmatprep.mubr.bf16.mxu0 %v6325
      %7033 = vmatmul.mubr.bf16.gmra.mrb[0].mxu0 %v6324
      %v7034 = vpop.f32.mrb[0].mxu0
      %v7035 = vadd.f32 %v6986, %v7034
      %v7036 = vpop.f32.mrb[0].mxu0
      %v7037 = vpop.f32.mrb[0].mxu0
      %v7038 = vadd.f32 %v6989, %v7037
      %v7039 = vpop.f32.mrb[0].mxu0
      %7040 = vmatprep.mubr.bf16.mxu0 %v6333
      %7041 = vmatmul.mubr.bf16.gmra.mrb[0].mxu0 %v6332
      %v7042 = vpop.f32.mrb[0].mxu0
      %v7043 = vadd.f32 %v6994, %v7042
      %v7044 = vpop.f32.mrb[0].mxu0
      %v7045 = vpop.f32.mrb[0].mxu0
      %v7046 = vadd.f32 %v6997, %v7045
      %v7047 = vpop.f32.mrb[0].mxu0
      %7048 = vdwg.mxu0
      %vm7049 = vcmp.ge.f32.partialorder %v7035, 0.0
      %vm7050 = vcmp.ge.f32.partialorder %v7038, 0.0
      %vm7051 = vcmp.ge.f32.partialorder %v7043, 0.0
      %vm7052 = vcmp.ge.f32.partialorder %v7046, 0.0
      %v7053 = vmul.f32 %v7035, 0.1
      %v7054 = vmul.f32 %v7038, 0.1
      %v7055 = vmul.f32 %v7043, 0.1
      %v7056 = vmul.f32 %v7046, 0.1
      %v7057 = vsel %vm7049, %v7035, %v7053
      %v7058 = vsel %vm7050, %v7038, %v7054
      %v7059 = vsel %vm7051, %v7043, %v7055
      %v7060 = vsel %vm7052, %v7046, %v7056
      %v7061 = vld [vmem:[%s9] sm:$0xff]
      %v7062 = vld [vmem:[%s9 + $0x8] sm:$0xff]
      %v7063 = vld [vmem:[%s9 + $0x10] sm:$0xff]
      %v7064 = vld [vmem:[%s9 + $0x18] sm:$0xff]
      %v7065 = vmul.f32 %v7057, %v7061
      %v7066 = vmul.f32 %v7058, %v7062
      %v7067 = vmul.f32 %v7059, %v7063
      %v7068 = vmul.f32 %v7060, %v7064
      %v7069 = vadd.f32 %v7065, %v7066
      %v7070 = vadd.f32 %v7069, %v7067
      %v7071 = vadd.f32 %v7070, %v7068
      %v7072 = vrot.slane %v7071, 4
      %v7073 = vadd.f32 %v7071, %v7072
      %v7074 = vrot.slane %v7073, 2
      %v7075 = vadd.f32 %v7073, %v7074
      %v7076 = vrot.slane %v7075, 1
      %v7077 = vadd.f32 %v7075, %v7076
      %7078 = vst [vmem:[%s355] sm:$0x1] %v7077
      %p7079 = scmp.lt.s32.totalorder %s21, 1
      %s7080 = scalar_select %p7079, %s21, 1
      %s7081 = scalar_lea.vmem %s10, %s7080
      // Predicated region
      $region61: #{discriminator_forward.1} parent=59 // pred_check
        %p7082 = pneg %p254
      $region62: #{discriminator_forward.1} parent=59 // pred_check_branch
        %7084 = sbr.rel (%p7082) target = $region64
      $region63: #{discriminator_forward.1} parent=59 // pred_region
        _
      $region64: #{discriminator_forward.1} parent=59 // pred_fallthru
        _
    $region60: #{discriminator_forward.1} parent=5 // pred_fallthru
      _
    %p7085 = scmp.le.s32.totalorder 2, %s16
    // Predicated region
    $region65: #{discriminator_forward.1} parent=5 // pred_check
      %p7086 = pneg %p7085
    $region66: #{discriminator_forward.1} parent=5 // pred_check_branch
      %7088 = sbr.rel (%p7086) target = $region68
    $region67: #{discriminator_forward.1} parent=5 // pred_region
      %s7089 = ssub.s32 %s16, 2
      // Predicated region
      $region69: #{discriminator_forward.1} parent=67 // pred_check
        %p7090 = pneg %p260
      $region70: #{discriminator_forward.1} parent=67 // pred_check_branch
        %7092 = sbr.rel (%p7090) target = $region72
      $region71: #{discriminator_forward.1} parent=67 // pred_region
        %p7093 = scmp.lt.s32.totalorder %s22, 1
        %s7094 = scalar_select %p7093, %s22, 1
        %s7095 = scalar_lea.vmem %s10, %s7094
      $region72: #{discriminator_forward.1} parent=67 // pred_fallthru
        _
    $region68: #{discriminator_forward.1} parent=5 // pred_fallthru
      _
  $region6: #{discriminator_forward.1} parent=0 // loop_footer
    %s20 = sadd.s32 1, %s16
  $region7: #{discriminator_forward.1} parent=0 // loop_footer_branch
    %15 = sbr.rel target = $region3
  $region8: #{discriminator_forward.1} parent=0 // loop_exit
    _

</llo_original>
